<compile_context>
chip_gen: v5e
topology: v5e:2x2
jax: 0.10.0
libtpu: 0.0.40
codegen_flags: <defaults>
</compile_context>

<pallas_src>
import math
import functools

import jax
import jax.numpy as jnp
from jax.experimental import pallas as pl
from jax.experimental.pallas import tpu as pltpu  # noqa: F401  (kept for TPU-specific tuning hooks)

EPS = 1e-6


# ----------------------------- in-kernel helpers -----------------------------

def _layernorm(x):
    # torch.nn.LayerNorm(dim, elementwise_affine=False, eps=1e-6): biased variance over last dim.
    mu = jnp.mean(x, axis=-1, keepdims=True)
    xc = x - mu
    var = jnp.mean(xc * xc, axis=-1, keepdims=True)
    return xc * jax.lax.rsqrt(var + EPS)


def _gelu_tanh(x):
    # tanh-approximate GELU (goes to the EUP slot); ~1e-3 max abs deviation vs exact erf GELU.
    return 0.5 * x * (1.0 + jnp.tanh(0.7978845608028654 * (x + 0.044715 * x * x * x)))


# --------------------------------- kernels -----------------------------------

def stem_kernel(temb_ref, xflat_ref,
                ew1_ref, eb1_ref, ew2_ref, eb2_ref,
                iw1_ref, ib1_ref, iw2_ref, ib2_ref,
                c_ref, h_ref):
    # t-embedding MLP: Linear -> SiLU -> Linear   (sin/cos PositionalEmbedding is wrapper glue)
    e = temb_ref[...]
    h = jnp.dot(e, ew1_ref[...], preferred_element_type=jnp.float32) + eb1_ref[...]
    h = h * jax.nn.sigmoid(h)
    c_ref[...] = jnp.dot(h, ew2_ref[...], preferred_element_type=jnp.float32) + eb2_ref[...]

    # input_emb: Linear(2*D*S -> D*S) -> Linear(D*S -> D*S).  These two weights dominate HBM
    # traffic, so they are stored in bf16 and fed to the MXU in bf16 with f32 accumulation.
    xf = xflat_ref[...].astype(jnp.bfloat16)
    g = jnp.dot(xf, iw1_ref[...], preferred_element_type=jnp.float32) + ib1_ref[...]
    g = jnp.dot(g.astype(jnp.bfloat16), iw2_ref[...],
                preferred_element_type=jnp.float32) + ib2_ref[...]
    h_ref[...] = g


def trunk_kernel(tok_ref, cfull_ref, pw_ref, pb_ref, pos_ref,
                 wq_ref, bq_ref, wk_ref, bk_ref, wv_ref, bv_ref,
                 Et_ref, Ft_ref, wo_ref, bo_ref,
                 w1_ref, b1_ref, w2_ref, b2_ref, wmod_ref, bmod_ref,
                 wg_ref, bg_ref, wb_ref, bb_ref, wlin_ref, blin_ref,
                 out_ref, *, n_heads):
    depth = wq_ref.shape[0]
    L, D = pos_ref.shape[1], pos_ref.shape[2]
    B = tok_ref.shape[0] // L
    dh = D // n_heads
    att_scale = 1.0 / math.sqrt(float(dh))

    c_full = cfull_ref[...]                                     # (B*L, D), row-broadcast cond

    # patches: per-token Linear(S -> D) on all B*L tokens in one matmul, then + pos_embedding
    seq = jnp.dot(tok_ref[...], pw_ref[...], preferred_element_type=jnp.float32) + pb_ref[...]
    pos = pos_ref[0]                                            # (L, D)
    x2 = seq + jnp.concatenate([pos] * B, axis=0)               # (B*L, D)

    for d in range(depth):                                      # depth fully unrolled (tiny)
        # adaLN modulation for the whole batch at once (rows already broadcast via c_full).
        # wmod column layout: [gamma_1 | beta_1 | gamma_2 | beta_2 | scale_1 | scale_2]
        mod = jnp.dot(c_full, wmod_ref[d], preferred_element_type=jnp.float32) + bmod_ref[d]
        scale_msa = mod[:, 0 * D:1 * D]
        shift_msa = mod[:, 1 * D:2 * D]
        scale_mlp = mod[:, 2 * D:3 * D]
        shift_mlp = mod[:, 3 * D:4 * D]
        gate_msa = mod[:, 4 * D:5 * D]
        gate_mlp = mod[:, 5 * D:6 * D]

        # ---- Linformer attention ----
        h1 = _layernorm(x2) * (1.0 + scale_msa) + shift_msa     # modulate(ln_1(x), shift, scale)
        q = jnp.dot(h1, wq_ref[d], preferred_element_type=jnp.float32) + bq_ref[d]
        k = jnp.dot(h1, wk_ref[d], preferred_element_type=jnp.float32) + bk_ref[d]
        v = jnp.dot(h1, wv_ref[d], preferred_element_type=jnp.float32) + bv_ref[d]

        # sequence compression E^T K / F^T V for every batch element with one matmul each:
        # stack the per-batch (L, D) slabs along lanes -> (L, B*D)
        k_w = jnp.concatenate([k[b * L:(b + 1) * L, :] for b in range(B)], axis=-1)
        v_w = jnp.concatenate([v[b * L:(b + 1) * L, :] for b in range(B)], axis=-1)
        Ek = jnp.dot(Et_ref[d], k_w, preferred_element_type=jnp.float32)   # (kL, B*D)
        Fv = jnp.dot(Ft_ref[d], v_w, preferred_element_type=jnp.float32)   # (kL, B*D)

        # (batch, head)-batched attention; group g = b*n_heads + h
        q_g = jnp.stack([q[b * L:(b + 1) * L, h * dh:(h + 1) * dh]
                         for b in range(B) for h in range(n_heads)], axis=0)      # (BH, L, dh)
        Ek_g = jnp.stack([Ek[:, b * D + h * dh:b * D + (h + 1) * dh]
                          for b in range(B) for h in range(n_heads)], axis=0)     # (BH, kL, dh)
        Fv_g = jnp.stack([Fv[:, b * D + h * dh:b * D + (h + 1) * dh]
                          for b in range(B) for h in range(n_heads)], axis=0)     # (BH, kL, dh)

        logits = jnp.einsum('gld,gkd->glk', q_g, Ek_g,
                            preferred_element_type=jnp.float32) * att_scale       # (BH, L, kL)
        logits = logits - jnp.max(logits, axis=-1, keepdims=True)
        p = jnp.exp(logits)
        attn = p / jnp.sum(p, axis=-1, keepdims=True)
        ctx_g = jnp.einsum('glk,gkd->gld', attn, Fv_g,
                           preferred_element_type=jnp.float32)                    # (BH, L, dh)

        # reassemble (B*L, D): rows grouped by batch, features (lanes) grouped by head,
        # then a single output projection for the whole batch.
        ctx = jnp.concatenate(
            [jnp.concatenate([ctx_g[b * n_heads + h] for h in range(n_heads)], axis=-1)
             for b in range(B)], axis=0)
        attn_out = jnp.dot(ctx, wo_ref[d], preferred_element_type=jnp.float32) + bo_ref[d]
        x2 = attn_out * gate_msa + x2

        # ---- MLP branch ----
        h2 = _layernorm(x2) * (1.0 + scale_mlp) + shift_mlp
        m = jnp.dot(h2, w1_ref[d], preferred_element_type=jnp.float32) + b1_ref[d]
        m = _gelu_tanh(m)
        m = jnp.dot(m, w2_ref[d], preferred_element_type=jnp.float32) + b2_ref[d]
        x2 = m * gate_mlp + x2

    # ---- FinalLayer: adaLN-modulated LayerNorm + Linear(D -> patch_size*out_channels) ----
    scale_f = jnp.dot(c_full, wg_ref[...], preferred_element_type=jnp.float32) + bg_ref[...]
    shift_f = jnp.dot(c_full, wb_ref[...], preferred_element_type=jnp.float32) + bb_ref[...]
    hf = _layernorm(x2) * (1.0 + scale_f) + shift_f
    out_ref[...] = jnp.dot(hf, wlin_ref[...], preferred_element_type=jnp.float32) + blin_ref[...]


# ------------------------------- pallas wrappers ------------------------------

def stem_apply(temb, x_flat, p):
    B, D = temb.shape
    DS = p["inp_w1"].shape[1]
    return pl.pallas_call(
        stem_kernel,
        out_shape=(jax.ShapeDtypeStruct((B, D), jnp.float32),
                   jax.ShapeDtypeStruct((B, DS), jnp.float32)),
    )(temb, x_flat,
      p["emb_w1"], p["emb_b1"], p["emb_w2"], p["emb_b2"],
      p["inp_w1"], p["inp_b1"], p["inp_w2"], p["inp_b2"])


def trunk_apply(tok, c_full, p, *, n_heads):
    BL = tok.shape[0]
    P = p["final"]["wlin"].shape[1]
    blk, fin = p["blk"], p["final"]
    kern = functools.partial(trunk_kernel, n_heads=n_heads)
    return pl.pallas_call(
        kern,
        out_shape=jax.ShapeDtypeStruct((BL, P), jnp.float32),
    )(tok, c_full, p["patch_w"], p["patch_b"], p["pos"],
      blk["wq"], blk["bq"], blk["wk"], blk["bk"], blk["wv"], blk["bv"],
      blk["Et"], blk["Ft"], blk["wo"], blk["bo"],
      blk["w1"], blk["b1"], blk["w2"], blk["b2"], blk["wmod"], blk["bmod"],
      fin["wg"], fin["bg"], fin["wb"], fin["bb"], fin["wlin"], fin["blin"])


# --------------------------------- glue (JAX) ---------------------------------

def timestep_embedding(t, dim):
    # PositionalEmbedding(dim, scale=1.0): sin/cos of outer(t, freqs).  Pure elementwise glue.
    half = dim // 2
    freqs = jnp.exp(jnp.arange(half, dtype=jnp.float32) * (-math.log(10000.0) / half))
    emb = t.astype(jnp.float32)[:, None] * freqs[None, :]
    return jnp.concatenate([jnp.sin(emb), jnp.cos(emb)], axis=-1)


def transformer_forward(params, x, cond, t, *, cfg):
    B = x.shape[0]
    D, S, heads, C = cfg["dim"], cfg["input_size"], cfg["heads"], cfg["in_channels"]
    N = cfg["num_atoms"]

    # glue: sinusoidal t-embedding + torch-identical flatten of cat([x, cond], -1)
    temb = timestep_embedding(t, D)                                        # (B, D)
    xc = jnp.concatenate([x, cond], axis=-1)                               # (B, 1, N, 2S)
    xc = jnp.transpose(xc, (0, 2, 3, 1))                                   # (B, N, 2S, 1)
    x_flat = xc.reshape(B, -1)                                             # (B, 2*D*S)  (N == D)

    # pallas call 1: t-emb MLP + input_emb
    c, h = stem_apply(temb, x_flat, params)                                # (B, D), (B, D*S)

    # layout plumbing between the two fused calls (torch reshape [-1, dim, input_size, 1])
    tok = h.reshape(B * N, S)                                              # per-token rows
    c_full = jnp.repeat(c, N, axis=0)                                      # (B*L, D) row-broadcast

    # pallas call 2: patches + pos + depth x TransformerBlock + FinalLayer (all in VMEM)
    out2d = trunk_apply(tok, c_full, params, n_heads=heads)                # (B*L, S*C)
    return out2d.reshape(B, C, N, S)                                       # torch reshape([B,C,N,H])


# ------------------------------- parameter init --------------------------------
# Synthetic deterministic init.  NOTE: the reference zero-inits the adaLN (gamma/beta/scale)
# linears and the final projection; we use small random values instead so the attention/MLP
# paths are actually exercised by the kernels.

def init_params(key, cfg):
    D, S, N = cfg["dim"], cfg["input_size"], cfg["num_atoms"]
    kL, M, depth, C = cfg["k"], cfg["mlp_dim"], cfg["depth"], cfg["in_channels"]
    keys = iter(jax.random.split(key, 64))

    def nrm(shape, scale=0.05, dtype=jnp.float32):
        return (scale * jax.random.normal(next(keys), shape, jnp.float32)).astype(dtype)

    p = {
        "emb_w1": nrm((D, D)), "emb_b1": nrm((1, D), 0.02),
        "emb_w2": nrm((D, D)), "emb_b2": nrm((1, D), 0.02),
        # input_emb weights in bf16 (DMA-bound layer); biases kept in f32
        "inp_w1": nrm((2 * D * S, D * S), dtype=jnp.bfloat16), "inp_b1": nrm((1, D * S), 0.02),
        "inp_w2": nrm((D * S, D * S), dtype=jnp.bfloat16), "inp_b2": nrm((1, D * S), 0.02),
        "patch_w": nrm((S, D)), "patch_b": nrm((1, D), 0.02),
        "pos": nrm((1, N, D), 1.0),
    }
    # per-block weights stacked along a leading depth axis (streamed/resident in VMEM)
    p["blk"] = {
        "wq": nrm((depth, D, D)), "bq": nrm((depth, 1, D), 0.02),
        "wk": nrm((depth, D, D)), "bk": nrm((depth, 1, D), 0.02),
        "wv": nrm((depth, D, D)), "bv": nrm((depth, 1, D), 0.02),
        "wo": nrm((depth, D, D)), "bo": nrm((depth, 1, D), 0.02),
        # Linformer E, F ~ randn(seq_len, k); pre-transposed to (k, seq_len) for the kernel.
        "Et": nrm((depth, kL, N), 1.0), "Ft": nrm((depth, kL, N), 1.0),
        "w1": nrm((depth, D, M)), "b1": nrm((depth, 1, M), 0.02),
        "w2": nrm((depth, M, D)), "b2": nrm((depth, 1, D), 0.02),
        # [gamma_1 | beta_1 | gamma_2 | beta_2 | scale_1 | scale_2] stacked on the out dim
        "wmod": nrm((depth, D, 6 * D), 0.02), "bmod": nrm((depth, 1, 6 * D), 0.02),
    }
    p["final"] = {
        "wg": nrm((D, D), 0.02), "bg": nrm((1, D), 0.02),
        "wb": nrm((D, D), 0.02), "bb": nrm((1, D), 0.02),
        "wlin": nrm((D, S * C)), "blin": nrm((1, S * C), 0.02),
    }
    return p


# ------------------------------------ main --------------------------------------

if __name__ == "__main__":
    cfg = dict(num_atoms=32, input_size=9, dim=32, depth=2, heads=4,
               mlp_dim=64, k=16, in_channels=1)
    assert cfg["num_atoms"] == cfg["dim"]  # required for the reference forward to be consistent

    key = jax.random.PRNGKey(0)
    kp, kx, kc, kt = jax.random.split(key, 4)
    params = init_params(kp, cfg)

    B = 2
    x = jax.random.normal(kx, (B, cfg["in_channels"], cfg["num_atoms"], cfg["input_size"]),
                          jnp.float32)
    cond = jax.random.normal(kc, (B, cfg["in_channels"], cfg["num_atoms"], cfg["input_size"]),
                             jnp.float32)
    t = jax.random.uniform(kt, (B,), jnp.float32) * 1000.0

    fwd = jax.jit(functools.partial(transformer_forward, cfg=cfg))
    out = fwd(params, x, cond, t)
    jax.block_until_ready(out)

    assert out.shape == (B, cfg["in_channels"], cfg["dim"], cfg["input_size"])
    assert bool(jnp.all(jnp.isfinite(out)))
    print("KERNEL_OK")
</pallas_src>

<mosaic_0001>
module attributes {stable_mosaic.version = 11 : i64} {
  func.func @stem_kernel(%arg0: memref<2x32xf32, #tpu.memory_space<vmem>>, %arg1: memref<2x576xf32, #tpu.memory_space<vmem>>, %arg2: memref<32x32xf32, #tpu.memory_space<vmem>>, %arg3: memref<1x32xf32, #tpu.memory_space<vmem>>, %arg4: memref<32x32xf32, #tpu.memory_space<vmem>>, %arg5: memref<1x32xf32, #tpu.memory_space<vmem>>, %arg6: memref<576x288xbf16, #tpu.memory_space<vmem>>, %arg7: memref<1x288xf32, #tpu.memory_space<vmem>>, %arg8: memref<288x288xbf16, #tpu.memory_space<vmem>>, %arg9: memref<1x288xf32, #tpu.memory_space<vmem>>, %arg10: memref<2x32xf32, #tpu.memory_space<vmem>>, %arg11: memref<2x288xf32, #tpu.memory_space<vmem>>) attributes {dimension_semantics = [], scalar_prefetch = 0 : i64, scratch_operands = 0 : i64, tpu.core_type = #tpu.core_type<tc>} {
    %c0 = arith.constant 0 : index
    %c0_0 = arith.constant 0 : index
    %0 = vector.load %arg0[%c0, %c0_0] : memref<2x32xf32, #tpu.memory_space<vmem>>, vector<2x32xf32>
    %c0_1 = arith.constant 0 : index
    %c0_2 = arith.constant 0 : index
    %1 = vector.load %arg2[%c0_1, %c0_2] : memref<32x32xf32, #tpu.memory_space<vmem>>, vector<32x32xf32>
    %cst = arith.constant dense<0.000000e+00> : vector<2x32xf32>
    %2 = tpu.matmul %0, %1, %cst {dimension_numbers = #tpu.dot_dimension_numbers<[1], [0], [0], [1], [0, 0, 1, 1], [], []>} : vector<2x32xf32>, vector<32x32xf32>, vector<2x32xf32> -> vector<2x32xf32>
    %c0_3 = arith.constant 0 : index
    %c0_4 = arith.constant 0 : index
    %3 = vector.load %arg3[%c0_3, %c0_4] : memref<1x32xf32, #tpu.memory_space<vmem>>, vector<1x32xf32>
    %4 = vector.broadcast %3 : vector<1x32xf32> to vector<2x32xf32>
    %5 = arith.addf %2, %4 : vector<2x32xf32>
    %6 = arith.negf %5 : vector<2x32xf32>
    %7 = math.exp %6 : vector<2x32xf32>
    %cst_5 = arith.constant 1.000000e+00 : f32
    %8 = vector.broadcast %cst_5 : f32 to vector<2x32xf32>
    %9 = arith.addf %8, %7 : vector<2x32xf32>
    %10 = arith.divf %8, %9 : vector<2x32xf32>
    %11 = arith.mulf %5, %10 : vector<2x32xf32>
    %c0_6 = arith.constant 0 : index
    %c0_7 = arith.constant 0 : index
    %12 = vector.load %arg4[%c0_6, %c0_7] : memref<32x32xf32, #tpu.memory_space<vmem>>, vector<32x32xf32>
    %cst_8 = arith.constant dense<0.000000e+00> : vector<2x32xf32>
    %13 = tpu.matmul %11, %12, %cst_8 {dimension_numbers = #tpu.dot_dimension_numbers<[1], [0], [0], [1], [0, 0, 1, 1], [], []>} : vector<2x32xf32>, vector<32x32xf32>, vector<2x32xf32> -> vector<2x32xf32>
    %c0_9 = arith.constant 0 : index
    %c0_10 = arith.constant 0 : index
    %14 = vector.load %arg5[%c0_9, %c0_10] : memref<1x32xf32, #tpu.memory_space<vmem>>, vector<1x32xf32>
    %15 = vector.broadcast %14 : vector<1x32xf32> to vector<2x32xf32>
    %16 = arith.addf %13, %15 : vector<2x32xf32>
    %c0_11 = arith.constant 0 : index
    %c0_12 = arith.constant 0 : index
    %17 = vector.load %arg10[%c0_11, %c0_12] : memref<2x32xf32, #tpu.memory_space<vmem>>, vector<2x32xf32>
    tpu.vector_store %arg10[%c0_11, %c0_12], %16 {strides = array<i32>} : memref<2x32xf32, #tpu.memory_space<vmem>>, vector<2x32xf32>,
    %c0_13 = arith.constant 0 : index
    %c0_14 = arith.constant 0 : index
    %18 = vector.load %arg1[%c0_13, %c0_14] : memref<2x576xf32, #tpu.memory_space<vmem>>, vector<2x576xf32>
    %19 = arith.truncf %18 : vector<2x576xf32> to vector<2x576xbf16>
    %c0_15 = arith.constant 0 : index
    %c0_16 = arith.constant 0 : index
    %20 = vector.load %arg6[%c0_15, %c0_16] : memref<576x288xbf16, #tpu.memory_space<vmem>>, vector<576x288xbf16>
    %cst_17 = arith.constant dense<0.000000e+00> : vector<2x288xf32>
    %21 = tpu.matmul %19, %20, %cst_17 {dimension_numbers = #tpu.dot_dimension_numbers<[1], [0], [0], [1], [0, 0, 1, 1], [], []>} : vector<2x576xbf16>, vector<576x288xbf16>, vector<2x288xf32> -> vector<2x288xf32>
    %c0_18 = arith.constant 0 : index
    %c0_19 = arith.constant 0 : index
    %22 = vector.load %arg7[%c0_18, %c0_19] : memref<1x288xf32, #tpu.memory_space<vmem>>, vector<1x288xf32>
    %23 = vector.broadcast %22 : vector<1x288xf32> to vector<2x288xf32>
    %24 = arith.addf %21, %23 : vector<2x288xf32>
    %25 = arith.truncf %24 : vector<2x288xf32> to vector<2x288xbf16>
    %c0_20 = arith.constant 0 : index
    %c0_21 = arith.constant 0 : index
    %26 = vector.load %arg8[%c0_20, %c0_21] : memref<288x288xbf16, #tpu.memory_space<vmem>>, vector<288x288xbf16>
    %cst_22 = arith.constant dense<0.000000e+00> : vector<2x288xf32>
    %27 = tpu.matmul %25, %26, %cst_22 {dimension_numbers = #tpu.dot_dimension_numbers<[1], [0], [0], [1], [0, 0, 1, 1], [], []>} : vector<2x288xbf16>, vector<288x288xbf16>, vector<2x288xf32> -> vector<2x288xf32>
    %c0_23 = arith.constant 0 : index
    %c0_24 = arith.constant 0 : index
    %28 = vector.load %arg9[%c0_23, %c0_24] : memref<1x288xf32, #tpu.memory_space<vmem>>, vector<1x288xf32>
    %29 = vector.broadcast %28 : vector<1x288xf32> to vector<2x288xf32>
    %30 = arith.addf %27, %29 : vector<2x288xf32>
    %c0_25 = arith.constant 0 : index
    %c0_26 = arith.constant 0 : index
    %31 = vector.load %arg11[%c0_25, %c0_26] : memref<2x288xf32, #tpu.memory_space<vmem>>, vector<2x288xf32>
    tpu.vector_store %arg11[%c0_25, %c0_26], %30 {strides = array<i32>} : memref<2x288xf32, #tpu.memory_space<vmem>>, vector<2x288xf32>,
    return
  }
}

module attributes {stable_mosaic.version = 11 : i64} {
  func.func @trunk_kernel(%arg0: memref<64x9xf32, #tpu.memory_space<vmem>>, %arg1: memref<64x32xf32, #tpu.memory_space<vmem>>, %arg2: memref<9x32xf32, #tpu.memory_space<vmem>>, %arg3: memref<1x32xf32, #tpu.memory_space<vmem>>, %arg4: memref<1x32x32xf32, #tpu.memory_space<vmem>>, %arg5: memref<2x32x32xf32, #tpu.memory_space<vmem>>, %arg6: memref<2x1x32xf32, #tpu.memory_space<vmem>>, %arg7: memref<2x32x32xf32, #tpu.memory_space<vmem>>, %arg8: memref<2x1x32xf32, #tpu.memory_space<vmem>>, %arg9: memref<2x32x32xf32, #tpu.memory_space<vmem>>, %arg10: memref<2x1x32xf32, #tpu.memory_space<vmem>>, %arg11: memref<2x16x32xf32, #tpu.memory_space<vmem>>, %arg12: memref<2x16x32xf32, #tpu.memory_space<vmem>>, %arg13: memref<2x32x32xf32, #tpu.memory_space<vmem>>, %arg14: memref<2x1x32xf32, #tpu.memory_space<vmem>>, %arg15: memref<2x32x64xf32, #tpu.memory_space<vmem>>, %arg16: memref<2x1x64xf32, #tpu.memory_space<vmem>>, %arg17: memref<2x64x32xf32, #tpu.memory_space<vmem>>, %arg18: memref<2x1x32xf32, #tpu.memory_space<vmem>>, %arg19: memref<2x32x192xf32, #tpu.memory_space<vmem>>, %arg20: memref<2x1x192xf32, #tpu.memory_space<vmem>>, %arg21: memref<32x32xf32, #tpu.memory_space<vmem>>, %arg22: memref<1x32xf32, #tpu.memory_space<vmem>>, %arg23: memref<32x32xf32, #tpu.memory_space<vmem>>, %arg24: memref<1x32xf32, #tpu.memory_space<vmem>>, %arg25: memref<32x9xf32, #tpu.memory_space<vmem>>, %arg26: memref<1x9xf32, #tpu.memory_space<vmem>>, %arg27: memref<64x9xf32, #tpu.memory_space<vmem>>) attributes {dimension_semantics = [], scalar_prefetch = 0 : i64, scratch_operands = 0 : i64, tpu.core_type = #tpu.core_type<tc>} {
    %c0 = arith.constant 0 : index
    %c0_0 = arith.constant 0 : index
    %0 = vector.load %arg1[%c0, %c0_0] : memref<64x32xf32, #tpu.memory_space<vmem>>, vector<64x32xf32>
    %c0_1 = arith.constant 0 : index
    %c0_2 = arith.constant 0 : index
    %1 = vector.load %arg0[%c0_1, %c0_2] : memref<64x9xf32, #tpu.memory_space<vmem>>, vector<64x9xf32>
    %c0_3 = arith.constant 0 : index
    %c0_4 = arith.constant 0 : index
    %2 = vector.load %arg2[%c0_3, %c0_4] : memref<9x32xf32, #tpu.memory_space<vmem>>, vector<9x32xf32>
    %cst = arith.constant dense<0.000000e+00> : vector<64x32xf32>
    %3 = tpu.matmul %1, %2, %cst {dimension_numbers = #tpu.dot_dimension_numbers<[1], [0], [0], [1], [0, 0, 1, 1], [], []>} : vector<64x9xf32>, vector<9x32xf32>, vector<64x32xf32> -> vector<64x32xf32>
    %c0_5 = arith.constant 0 : index
    %c0_6 = arith.constant 0 : index
    %4 = vector.load %arg3[%c0_5, %c0_6] : memref<1x32xf32, #tpu.memory_space<vmem>>, vector<1x32xf32>
    %5 = vector.broadcast %4 : vector<1x32xf32> to vector<64x32xf32>
    %6 = arith.addf %3, %5 : vector<64x32xf32>
    %c0_7 = arith.constant 0 : index
    %c0_8 = arith.constant 0 : index
    %c0_9 = arith.constant 0 : index
    %7 = vector.load %arg4[%c0_7, %c0_8, %c0_9] : memref<1x32x32xf32, #tpu.memory_space<vmem>>, vector<1x32x32xf32>
    %8 = vector.shape_cast %7 : vector<1x32x32xf32> to vector<32x32xf32>
    %9 = tpu.concatenate %8, %8 in 0 : vector<32x32xf32>, vector<32x32xf32> -> vector<64x32xf32>
    %10 = arith.addf %6, %9 : vector<64x32xf32>
    %c0_10 = arith.constant 0 : index
    %c0_11 = arith.constant 0 : index
    %c0_12 = arith.constant 0 : index
    %11 = vector.load %arg19[%c0_10, %c0_11, %c0_12] : memref<2x32x192xf32, #tpu.memory_space<vmem>>, vector<1x32x192xf32>
    %12 = vector.shape_cast %11 : vector<1x32x192xf32> to vector<32x192xf32>
    %cst_13 = arith.constant dense<0.000000e+00> : vector<64x192xf32>
    %13 = tpu.matmul %0, %12, %cst_13 {dimension_numbers = #tpu.dot_dimension_numbers<[1], [0], [0], [1], [0, 0, 1, 1], [], []>} : vector<64x32xf32>, vector<32x192xf32>, vector<64x192xf32> -> vector<64x192xf32>
    %c0_14 = arith.constant 0 : index
    %c0_15 = arith.constant 0 : index
    %c0_16 = arith.constant 0 : index
    %14 = vector.load %arg20[%c0_14, %c0_15, %c0_16] : memref<2x1x192xf32, #tpu.memory_space<vmem>>, vector<1x1x192xf32>
    %15 = vector.shape_cast %14 : vector<1x1x192xf32> to vector<1x192xf32>
    %16 = vector.broadcast %15 : vector<1x192xf32> to vector<64x192xf32>
    %17 = arith.addf %13, %16 : vector<64x192xf32>
    %18 = vector.extract_strided_slice %17 {offsets = [0, 0], sizes = [64, 32], strides = [1, 1]} : vector<64x192xf32> to vector<64x32xf32>
    %19 = vector.extract_strided_slice %17 {offsets = [0, 32], sizes = [64, 32], strides = [1, 1]} : vector<64x192xf32> to vector<64x32xf32>
    %20 = vector.extract_strided_slice %17 {offsets = [0, 64], sizes = [64, 32], strides = [1, 1]} : vector<64x192xf32> to vector<64x32xf32>
    %21 = vector.extract_strided_slice %17 {offsets = [0, 96], sizes = [64, 32], strides = [1, 1]} : vector<64x192xf32> to vector<64x32xf32>
    %22 = vector.extract_strided_slice %17 {offsets = [0, 128], sizes = [64, 32], strides = [1, 1]} : vector<64x192xf32> to vector<64x32xf32>
    %23 = vector.extract_strided_slice %17 {offsets = [0, 160], sizes = [64, 32], strides = [1, 1]} : vector<64x192xf32> to vector<64x32xf32>
    %cst_17 = arith.constant dense<0.000000e+00> : vector<64xf32>
    %24 = vector.multi_reduction <add>, %10, %cst_17 [1] : vector<64x32xf32> to vector<64xf32>
    %25 = vector.shape_cast %24 : vector<64xf32> to vector<64x1xf32>
    %cst_18 = arith.constant 3.200000e+01 : f32
    %26 = vector.broadcast %cst_18 : f32 to vector<64x1xf32>
    %27 = arith.divf %25, %26 : vector<64x1xf32>
    %28 = vector.broadcast %27 : vector<64x1xf32> to vector<64x32xf32>
    %29 = arith.subf %10, %28 : vector<64x32xf32>
    %30 = arith.mulf %29, %29 : vector<64x32xf32>
    %cst_19 = arith.constant dense<0.000000e+00> : vector<64xf32>
    %31 = vector.multi_reduction <add>, %30, %cst_19 [1] : vector<64x32xf32> to vector<64xf32>
    %32 = vector.shape_cast %31 : vector<64xf32> to vector<64x1xf32>
    %cst_20 = arith.constant 3.200000e+01 : f32
    %33 = vector.broadcast %cst_20 : f32 to vector<64x1xf32>
    %34 = arith.divf %32, %33 : vector<64x1xf32>
    %cst_21 = arith.constant 9.99999997E-7 : f32
    %35 = vector.broadcast %cst_21 : f32 to vector<64x1xf32>
    %36 = arith.addf %34, %35 : vector<64x1xf32>
    %37 = math.rsqrt %36 : vector<64x1xf32>
    %38 = vector.broadcast %37 : vector<64x1xf32> to vector<64x32xf32>
    %39 = arith.mulf %29, %38 : vector<64x32xf32>
    %cst_22 = arith.constant 1.000000e+00 : f32
    %40 = vector.broadcast %cst_22 : f32 to vector<64x32xf32>
    %41 = arith.addf %40, %18 : vector<64x32xf32>
    %42 = arith.mulf %39, %41 : vector<64x32xf32>
    %43 = arith.addf %42, %19 : vector<64x32xf32>
    %c0_23 = arith.constant 0 : index
    %c0_24 = arith.constant 0 : index
    %c0_25 = arith.constant 0 : index
    %44 = vector.load %arg5[%c0_23, %c0_24, %c0_25] : memref<2x32x32xf32, #tpu.memory_space<vmem>>, vector<1x32x32xf32>
    %45 = vector.shape_cast %44 : vector<1x32x32xf32> to vector<32x32xf32>
    %cst_26 = arith.constant dense<0.000000e+00> : vector<64x32xf32>
    %46 = tpu.matmul %43, %45, %cst_26 {dimension_numbers = #tpu.dot_dimension_numbers<[1], [0], [0], [1], [0, 0, 1, 1], [], []>} : vector<64x32xf32>, vector<32x32xf32>, vector<64x32xf32> -> vector<64x32xf32>
    %c0_27 = arith.constant 0 : index
    %c0_28 = arith.constant 0 : index
    %c0_29 = arith.constant 0 : index
    %47 = vector.load %arg6[%c0_27, %c0_28, %c0_29] : memref<2x1x32xf32, #tpu.memory_space<vmem>>, vector<1x1x32xf32>
    %48 = vector.shape_cast %47 : vector<1x1x32xf32> to vector<1x32xf32>
    %49 = vector.broadcast %48 : vector<1x32xf32> to vector<64x32xf32>
    %50 = arith.addf %46, %49 : vector<64x32xf32>
    %c0_30 = arith.constant 0 : index
    %c0_31 = arith.constant 0 : index
    %c0_32 = arith.constant 0 : index
    %51 = vector.load %arg7[%c0_30, %c0_31, %c0_32] : memref<2x32x32xf32, #tpu.memory_space<vmem>>, vector<1x32x32xf32>
    %52 = vector.shape_cast %51 : vector<1x32x32xf32> to vector<32x32xf32>
    %cst_33 = arith.constant dense<0.000000e+00> : vector<64x32xf32>
    %53 = tpu.matmul %43, %52, %cst_33 {dimension_numbers = #tpu.dot_dimension_numbers<[1], [0], [0], [1], [0, 0, 1, 1], [], []>} : vector<64x32xf32>, vector<32x32xf32>, vector<64x32xf32> -> vector<64x32xf32>
    %c0_34 = arith.constant 0 : index
    %c0_35 = arith.constant 0 : index
    %c0_36 = arith.constant 0 : index
    %54 = vector.load %arg8[%c0_34, %c0_35, %c0_36] : memref<2x1x32xf32, #tpu.memory_space<vmem>>, vector<1x1x32xf32>
    %55 = vector.shape_cast %54 : vector<1x1x32xf32> to vector<1x32xf32>
    %56 = vector.broadcast %55 : vector<1x32xf32> to vector<64x32xf32>
    %57 = arith.addf %53, %56 : vector<64x32xf32>
    %c0_37 = arith.constant 0 : index
    %c0_38 = arith.constant 0 : index
    %c0_39 = arith.constant 0 : index
    %58 = vector.load %arg9[%c0_37, %c0_38, %c0_39] : memref<2x32x32xf32, #tpu.memory_space<vmem>>, vector<1x32x32xf32>
    %59 = vector.shape_cast %58 : vector<1x32x32xf32> to vector<32x32xf32>
    %cst_40 = arith.constant dense<0.000000e+00> : vector<64x32xf32>
    %60 = tpu.matmul %43, %59, %cst_40 {dimension_numbers = #tpu.dot_dimension_numbers<[1], [0], [0], [1], [0, 0, 1, 1], [], []>} : vector<64x32xf32>, vector<32x32xf32>, vector<64x32xf32> -> vector<64x32xf32>
    %c0_41 = arith.constant 0 : index
    %c0_42 = arith.constant 0 : index
    %c0_43 = arith.constant 0 : index
    %61 = vector.load %arg10[%c0_41, %c0_42, %c0_43] : memref<2x1x32xf32, #tpu.memory_space<vmem>>, vector<1x1x32xf32>
    %62 = vector.shape_cast %61 : vector<1x1x32xf32> to vector<1x32xf32>
    %63 = vector.broadcast %62 : vector<1x32xf32> to vector<64x32xf32>
    %64 = arith.addf %60, %63 : vector<64x32xf32>
    %65 = vector.extract_strided_slice %57 {offsets = [0, 0], sizes = [32, 32], strides = [1, 1]} : vector<64x32xf32> to vector<32x32xf32>
    %66 = vector.extract_strided_slice %57 {offsets = [32, 0], sizes = [32, 32], strides = [1, 1]} : vector<64x32xf32> to vector<32x32xf32>
    %67 = tpu.concatenate %65, %66 in 1 : vector<32x32xf32>, vector<32x32xf32> -> vector<32x64xf32>
    %68 = vector.extract_strided_slice %64 {offsets = [0, 0], sizes = [32, 32], strides = [1, 1]} : vector<64x32xf32> to vector<32x32xf32>
    %69 = vector.extract_strided_slice %64 {offsets = [32, 0], sizes = [32, 32], strides = [1, 1]} : vector<64x32xf32> to vector<32x32xf32>
    %70 = tpu.concatenate %68, %69 in 1 : vector<32x32xf32>, vector<32x32xf32> -> vector<32x64xf32>
    %c0_44 = arith.constant 0 : index
    %c0_45 = arith.constant 0 : index
    %c0_46 = arith.constant 0 : index
    %71 = vector.load %arg11[%c0_44, %c0_45, %c0_46] : memref<2x16x32xf32, #tpu.memory_space<vmem>>, vector<1x16x32xf32>
    %72 = vector.shape_cast %71 : vector<1x16x32xf32> to vector<16x32xf32>
    %cst_47 = arith.constant dense<0.000000e+00> : vector<16x64xf32>
    %73 = tpu.matmul %72, %67, %cst_47 {dimension_numbers = #tpu.dot_dimension_numbers<[1], [0], [0], [1], [0, 0, 1, 1], [], []>} : vector<16x32xf32>, vector<32x64xf32>, vector<16x64xf32> -> vector<16x64xf32>
    %c0_48 = arith.constant 0 : index
    %c0_49 = arith.constant 0 : index
    %c0_50 = arith.constant 0 : index
    %74 = vector.load %arg12[%c0_48, %c0_49, %c0_50] : memref<2x16x32xf32, #tpu.memory_space<vmem>>, vector<1x16x32xf32>
    %75 = vector.shape_cast %74 : vector<1x16x32xf32> to vector<16x32xf32>
    %cst_51 = arith.constant dense<0.000000e+00> : vector<16x64xf32>
    %76 = tpu.matmul %75, %70, %cst_51 {dimension_numbers = #tpu.dot_dimension_numbers<[1], [0], [0], [1], [0, 0, 1, 1], [], []>} : vector<16x32xf32>, vector<32x64xf32>, vector<16x64xf32> -> vector<16x64xf32>
    %77 = vector.extract_strided_slice %50 {offsets = [0, 0], sizes = [32, 8], strides = [1, 1]} : vector<64x32xf32> to vector<32x8xf32>
    %78 = vector.extract_strided_slice %50 {offsets = [0, 8], sizes = [32, 8], strides = [1, 1]} : vector<64x32xf32> to vector<32x8xf32>
    %79 = vector.extract_strided_slice %50 {offsets = [0, 16], sizes = [32, 8], strides = [1, 1]} : vector<64x32xf32> to vector<32x8xf32>
    %80 = vector.extract_strided_slice %50 {offsets = [0, 24], sizes = [32, 8], strides = [1, 1]} : vector<64x32xf32> to vector<32x8xf32>
    %81 = vector.extract_strided_slice %50 {offsets = [32, 0], sizes = [32, 8], strides = [1, 1]} : vector<64x32xf32> to vector<32x8xf32>
    %82 = vector.extract_strided_slice %50 {offsets = [32, 8], sizes = [32, 8], strides = [1, 1]} : vector<64x32xf32> to vector<32x8xf32>
    %83 = vector.extract_strided_slice %50 {offsets = [32, 16], sizes = [32, 8], strides = [1, 1]} : vector<64x32xf32> to vector<32x8xf32>
    %84 = vector.extract_strided_slice %50 {offsets = [32, 24], sizes = [32, 8], strides = [1, 1]} : vector<64x32xf32> to vector<32x8xf32>
    %85 = vector.shape_cast %77 : vector<32x8xf32> to vector<1x32x8xf32>
    %86 = vector.shape_cast %78 : vector<32x8xf32> to vector<1x32x8xf32>
    %87 = vector.shape_cast %79 : vector<32x8xf32> to vector<1x32x8xf32>
    %88 = vector.shape_cast %80 : vector<32x8xf32> to vector<1x32x8xf32>
    %89 = vector.shape_cast %81 : vector<32x8xf32> to vector<1x32x8xf32>
    %90 = vector.shape_cast %82 : vector<32x8xf32> to vector<1x32x8xf32>
    %91 = vector.shape_cast %83 : vector<32x8xf32> to vector<1x32x8xf32>
    %92 = vector.shape_cast %84 : vector<32x8xf32> to vector<1x32x8xf32>
    %93 = tpu.concatenate %85, %86, %87, %88, %89, %90, %91, %92 in 0 : vector<1x32x8xf32>, vector<1x32x8xf32>, vector<1x32x8xf32>, vector<1x32x8xf32>, vector<1x32x8xf32>, vector<1x32x8xf32>, vector<1x32x8xf32>, vector<1x32x8xf32> -> vector<8x32x8xf32>
    %94 = vector.extract_strided_slice %73 {offsets = [0, 0], sizes = [16, 8], strides = [1, 1]} : vector<16x64xf32> to vector<16x8xf32>
    %95 = vector.extract_strided_slice %73 {offsets = [0, 8], sizes = [16, 8], strides = [1, 1]} : vector<16x64xf32> to vector<16x8xf32>
    %96 = vector.extract_strided_slice %73 {offsets = [0, 16], sizes = [16, 8], strides = [1, 1]} : vector<16x64xf32> to vector<16x8xf32>
    %97 = vector.extract_strided_slice %73 {offsets = [0, 24], sizes = [16, 8], strides = [1, 1]} : vector<16x64xf32> to vector<16x8xf32>
    %98 = vector.extract_strided_slice %73 {offsets = [0, 32], sizes = [16, 8], strides = [1, 1]} : vector<16x64xf32> to vector<16x8xf32>
    %99 = vector.extract_strided_slice %73 {offsets = [0, 40], sizes = [16, 8], strides = [1, 1]} : vector<16x64xf32> to vector<16x8xf32>
    %100 = vector.extract_strided_slice %73 {offsets = [0, 48], sizes = [16, 8], strides = [1, 1]} : vector<16x64xf32> to vector<16x8xf32>
    %101 = vector.extract_strided_slice %73 {offsets = [0, 56], sizes = [16, 8], strides = [1, 1]} : vector<16x64xf32> to vector<16x8xf32>
    %102 = vector.shape_cast %94 : vector<16x8xf32> to vector<1x16x8xf32>
    %103 = vector.shape_cast %95 : vector<16x8xf32> to vector<1x16x8xf32>
    %104 = vector.shape_cast %96 : vector<16x8xf32> to vector<1x16x8xf32>
    %105 = vector.shape_cast %97 : vector<16x8xf32> to vector<1x16x8xf32>
    %106 = vector.shape_cast %98 : vector<16x8xf32> to vector<1x16x8xf32>
    %107 = vector.shape_cast %99 : vector<16x8xf32> to vector<1x16x8xf32>
    %108 = vector.shape_cast %100 : vector<16x8xf32> to vector<1x16x8xf32>
    %109 = vector.shape_cast %101 : vector<16x8xf32> to vector<1x16x8xf32>
    %110 = tpu.concatenate %102, %103, %104, %105, %106, %107, %108, %109 in 0 : vector<1x16x8xf32>, vector<1x16x8xf32>, vector<1x16x8xf32>, vector<1x16x8xf32>, vector<1x16x8xf32>, vector<1x16x8xf32>, vector<1x16x8xf32>, vector<1x16x8xf32> -> vector<8x16x8xf32>
    %111 = vector.extract_strided_slice %76 {offsets = [0, 0], sizes = [16, 8], strides = [1, 1]} : vector<16x64xf32> to vector<16x8xf32>
    %112 = vector.extract_strided_slice %76 {offsets = [0, 8], sizes = [16, 8], strides = [1, 1]} : vector<16x64xf32> to vector<16x8xf32>
    %113 = vector.extract_strided_slice %76 {offsets = [0, 16], sizes = [16, 8], strides = [1, 1]} : vector<16x64xf32> to vector<16x8xf32>
    %114 = vector.extract_strided_slice %76 {offsets = [0, 24], sizes = [16, 8], strides = [1, 1]} : vector<16x64xf32> to vector<16x8xf32>
    %115 = vector.extract_strided_slice %76 {offsets = [0, 32], sizes = [16, 8], strides = [1, 1]} : vector<16x64xf32> to vector<16x8xf32>
    %116 = vector.extract_strided_slice %76 {offsets = [0, 40], sizes = [16, 8], strides = [1, 1]} : vector<16x64xf32> to vector<16x8xf32>
    %117 = vector.extract_strided_slice %76 {offsets = [0, 48], sizes = [16, 8], strides = [1, 1]} : vector<16x64xf32> to vector<16x8xf32>
    %118 = vector.extract_strided_slice %76 {offsets = [0, 56], sizes = [16, 8], strides = [1, 1]} : vector<16x64xf32> to vector<16x8xf32>
    %119 = vector.shape_cast %111 : vector<16x8xf32> to vector<1x16x8xf32>
    %120 = vector.shape_cast %112 : vector<16x8xf32> to vector<1x16x8xf32>
    %121 = vector.shape_cast %113 : vector<16x8xf32> to vector<1x16x8xf32>
    %122 = vector.shape_cast %114 : vector<16x8xf32> to vector<1x16x8xf32>
    %123 = vector.shape_cast %115 : vector<16x8xf32> to vector<1x16x8xf32>
    %124 = vector.shape_cast %116 : vector<16x8xf32> to vector<1x16x8xf32>
    %125 = vector.shape_cast %117 : vector<16x8xf32> to vector<1x16x8xf32>
    %126 = vector.shape_cast %118 : vector<16x8xf32> to vector<1x16x8xf32>
    %127 = tpu.concatenate %119, %120, %121, %122, %123, %124, %125, %126 in 0 : vector<1x16x8xf32>, vector<1x16x8xf32>, vector<1x16x8xf32>, vector<1x16x8xf32>, vector<1x16x8xf32>, vector<1x16x8xf32>, vector<1x16x8xf32>, vector<1x16x8xf32> -> vector<8x16x8xf32>
    "tpu.trace_start"() <{level = 10 : i32, message = "gld,gkd->glk"}> : () -> ()
    %cst_52 = arith.constant dense<0.000000e+00> : vector<8x32x16xf32>
    %128 = tpu.matmul %93, %110, %cst_52 {dimension_numbers = #tpu.dot_dimension_numbers<[2], [2], [1], [1], [0, 0, 0, 1, 1, 1], [0], [0]>} : vector<8x32x8xf32>, vector<8x16x8xf32>, vector<8x32x16xf32> -> vector<8x32x16xf32>
    "tpu.trace_stop"() : () -> ()
    %cst_53 = arith.constant 0.353553385 : f32
    %129 = vector.broadcast %cst_53 : f32 to vector<8x32x16xf32>
    %130 = arith.mulf %128, %129 : vector<8x32x16xf32>
    %cst_54 = arith.constant dense<0xFF800000> : vector<8x32xf32>
    %131 = vector.multi_reduction <maximumf>, %130, %cst_54 [2] : vector<8x32x16xf32> to vector<8x32xf32>
    %132 = vector.shape_cast %131 : vector<8x32xf32> to vector<8x32x1xf32>
    %133 = vector.broadcast %132 : vector<8x32x1xf32> to vector<8x32x16xf32>
    %134 = arith.subf %130, %133 : vector<8x32x16xf32>
    %135 = math.exp %134 : vector<8x32x16xf32>
    %cst_55 = arith.constant dense<0.000000e+00> : vector<8x32xf32>
    %136 = vector.multi_reduction <add>, %135, %cst_55 [2] : vector<8x32x16xf32> to vector<8x32xf32>
    %137 = vector.shape_cast %136 : vector<8x32xf32> to vector<8x32x1xf32>
    %138 = vector.broadcast %137 : vector<8x32x1xf32> to vector<8x32x16xf32>
    %139 = arith.divf %135, %138 : vector<8x32x16xf32>
    "tpu.trace_start"() <{level = 10 : i32, message = "glk,gkd->gld"}> : () -> ()
    %cst_56 = arith.constant dense<0.000000e+00> : vector<8x32x8xf32>
    %140 = tpu.matmul %139, %127, %cst_56 {dimension_numbers = #tpu.dot_dimension_numbers<[2], [1], [1], [2], [0, 0, 0, 1, 1, 2], [0], [0]>} : vector<8x32x16xf32>, vector<8x16x8xf32>, vector<8x32x8xf32> -> vector<8x32x8xf32>
    "tpu.trace_stop"() : () -> ()
    %141 = vector.extract_strided_slice %140 {offsets = [0, 0, 0], sizes = [1, 32, 8], strides = [1, 1, 1]} : vector<8x32x8xf32> to vector<1x32x8xf32>
    %142 = vector.shape_cast %141 : vector<1x32x8xf32> to vector<32x8xf32>
    %143 = vector.extract_strided_slice %140 {offsets = [1, 0, 0], sizes = [1, 32, 8], strides = [1, 1, 1]} : vector<8x32x8xf32> to vector<1x32x8xf32>
    %144 = vector.shape_cast %143 : vector<1x32x8xf32> to vector<32x8xf32>
    %145 = vector.extract_strided_slice %140 {offsets = [2, 0, 0], sizes = [1, 32, 8], strides = [1, 1, 1]} : vector<8x32x8xf32> to vector<1x32x8xf32>
    %146 = vector.shape_cast %145 : vector<1x32x8xf32> to vector<32x8xf32>
    %147 = vector.extract_strided_slice %140 {offsets = [3, 0, 0], sizes = [1, 32, 8], strides = [1, 1, 1]} : vector<8x32x8xf32> to vector<1x32x8xf32>
    %148 = vector.shape_cast %147 : vector<1x32x8xf32> to vector<32x8xf32>
    %149 = tpu.concatenate %142, %144, %146, %148 in 1 : vector<32x8xf32>, vector<32x8xf32>, vector<32x8xf32>, vector<32x8xf32> -> vector<32x32xf32>
    %150 = vector.extract_strided_slice %140 {offsets = [4, 0, 0], sizes = [1, 32, 8], strides = [1, 1, 1]} : vector<8x32x8xf32> to vector<1x32x8xf32>
    %151 = vector.shape_cast %150 : vector<1x32x8xf32> to vector<32x8xf32>
    %152 = vector.extract_strided_slice %140 {offsets = [5, 0, 0], sizes = [1, 32, 8], strides = [1, 1, 1]} : vector<8x32x8xf32> to vector<1x32x8xf32>
    %153 = vector.shape_cast %152 : vector<1x32x8xf32> to vector<32x8xf32>
    %154 = vector.extract_strided_slice %140 {offsets = [6, 0, 0], sizes = [1, 32, 8], strides = [1, 1, 1]} : vector<8x32x8xf32> to vector<1x32x8xf32>
    %155 = vector.shape_cast %154 : vector<1x32x8xf32> to vector<32x8xf32>
    %156 = vector.extract_strided_slice %140 {offsets = [7, 0, 0], sizes = [1, 32, 8], strides = [1, 1, 1]} : vector<8x32x8xf32> to vector<1x32x8xf32>
    %157 = vector.shape_cast %156 : vector<1x32x8xf32> to vector<32x8xf32>
    %158 = tpu.concatenate %151, %153, %155, %157 in 1 : vector<32x8xf32>, vector<32x8xf32>, vector<32x8xf32>, vector<32x8xf32> -> vector<32x32xf32>
    %159 = tpu.concatenate %149, %158 in 0 : vector<32x32xf32>, vector<32x32xf32> -> vector<64x32xf32>
    %c0_57 = arith.constant 0 : index
    %c0_58 = arith.constant 0 : index
    %c0_59 = arith.constant 0 : index
    %160 = vector.load %arg13[%c0_57, %c0_58, %c0_59] : memref<2x32x32xf32, #tpu.memory_space<vmem>>, vector<1x32x32xf32>
    %161 = vector.shape_cast %160 : vector<1x32x32xf32> to vector<32x32xf32>
    %cst_60 = arith.constant dense<0.000000e+00> : vector<64x32xf32>
    %162 = tpu.matmul %159, %161, %cst_60 {dimension_numbers = #tpu.dot_dimension_numbers<[1], [0], [0], [1], [0, 0, 1, 1], [], []>} : vector<64x32xf32>, vector<32x32xf32>, vector<64x32xf32> -> vector<64x32xf32>
    %c0_61 = arith.constant 0 : index
    %c0_62 = arith.constant 0 : index
    %c0_63 = arith.constant 0 : index
    %163 = vector.load %arg14[%c0_61, %c0_62, %c0_63] : memref<2x1x32xf32, #tpu.memory_space<vmem>>, vector<1x1x32xf32>
    %164 = vector.shape_cast %163 : vector<1x1x32xf32> to vector<1x32xf32>
    %165 = vector.broadcast %164 : vector<1x32xf32> to vector<64x32xf32>
    %166 = arith.addf %162, %165 : vector<64x32xf32>
    %167 = arith.mulf %166, %22 : vector<64x32xf32>
    %168 = arith.addf %167, %10 : vector<64x32xf32>
    %cst_64 = arith.constant dense<0.000000e+00> : vector<64xf32>
    %169 = vector.multi_reduction <add>, %168, %cst_64 [1] : vector<64x32xf32> to vector<64xf32>
    %170 = vector.shape_cast %169 : vector<64xf32> to vector<64x1xf32>
    %cst_65 = arith.constant 3.200000e+01 : f32
    %171 = vector.broadcast %cst_65 : f32 to vector<64x1xf32>
    %172 = arith.divf %170, %171 : vector<64x1xf32>
    %173 = vector.broadcast %172 : vector<64x1xf32> to vector<64x32xf32>
    %174 = arith.subf %168, %173 : vector<64x32xf32>
    %175 = arith.mulf %174, %174 : vector<64x32xf32>
    %cst_66 = arith.constant dense<0.000000e+00> : vector<64xf32>
    %176 = vector.multi_reduction <add>, %175, %cst_66 [1] : vector<64x32xf32> to vector<64xf32>
    %177 = vector.shape_cast %176 : vector<64xf32> to vector<64x1xf32>
    %cst_67 = arith.constant 3.200000e+01 : f32
    %178 = vector.broadcast %cst_67 : f32 to vector<64x1xf32>
    %179 = arith.divf %177, %178 : vector<64x1xf32>
    %cst_68 = arith.constant 9.99999997E-7 : f32
    %180 = vector.broadcast %cst_68 : f32 to vector<64x1xf32>
    %181 = arith.addf %179, %180 : vector<64x1xf32>
    %182 = math.rsqrt %181 : vector<64x1xf32>
    %183 = vector.broadcast %182 : vector<64x1xf32> to vector<64x32xf32>
    %184 = arith.mulf %174, %183 : vector<64x32xf32>
    %cst_69 = arith.constant 1.000000e+00 : f32
    %185 = vector.broadcast %cst_69 : f32 to vector<64x32xf32>
    %186 = arith.addf %185, %20 : vector<64x32xf32>
    %187 = arith.mulf %184, %186 : vector<64x32xf32>
    %188 = arith.addf %187, %21 : vector<64x32xf32>
    %c0_70 = arith.constant 0 : index
    %c0_71 = arith.constant 0 : index
    %c0_72 = arith.constant 0 : index
    %189 = vector.load %arg15[%c0_70, %c0_71, %c0_72] : memref<2x32x64xf32, #tpu.memory_space<vmem>>, vector<1x32x64xf32>
    %190 = vector.shape_cast %189 : vector<1x32x64xf32> to vector<32x64xf32>
    %cst_73 = arith.constant dense<0.000000e+00> : vector<64x64xf32>
    %191 = tpu.matmul %188, %190, %cst_73 {dimension_numbers = #tpu.dot_dimension_numbers<[1], [0], [0], [1], [0, 0, 1, 1], [], []>} : vector<64x32xf32>, vector<32x64xf32>, vector<64x64xf32> -> vector<64x64xf32>
    %c0_74 = arith.constant 0 : index
    %c0_75 = arith.constant 0 : index
    %c0_76 = arith.constant 0 : index
    %192 = vector.load %arg16[%c0_74, %c0_75, %c0_76] : memref<2x1x64xf32, #tpu.memory_space<vmem>>, vector<1x1x64xf32>
    %193 = vector.shape_cast %192 : vector<1x1x64xf32> to vector<1x64xf32>
    %194 = vector.broadcast %193 : vector<1x64xf32> to vector<64x64xf32>
    %195 = arith.addf %191, %194 : vector<64x64xf32>
    %cst_77 = arith.constant 5.000000e-01 : f32
    %196 = vector.broadcast %cst_77 : f32 to vector<64x64xf32>
    %197 = arith.mulf %196, %195 : vector<64x64xf32>
    %cst_78 = arith.constant 4.471500e-02 : f32
    %198 = vector.broadcast %cst_78 : f32 to vector<64x64xf32>
    %199 = arith.mulf %198, %195 : vector<64x64xf32>
    %200 = arith.mulf %199, %195 : vector<64x64xf32>
    %201 = arith.mulf %200, %195 : vector<64x64xf32>
    %202 = arith.addf %195, %201 : vector<64x64xf32>
    %cst_79 = arith.constant 0.797884583 : f32
    %203 = vector.broadcast %cst_79 : f32 to vector<64x64xf32>
    %204 = arith.mulf %203, %202 : vector<64x64xf32>
    %205 = math.tanh %204 : vector<64x64xf32>
    %cst_80 = arith.constant 1.000000e+00 : f32
    %206 = vector.broadcast %cst_80 : f32 to vector<64x64xf32>
    %207 = arith.addf %206, %205 : vector<64x64xf32>
    %208 = arith.mulf %197, %207 : vector<64x64xf32>
    %c0_81 = arith.constant 0 : index
    %c0_82 = arith.constant 0 : index
    %c0_83 = arith.constant 0 : index
    %209 = vector.load %arg17[%c0_81, %c0_82, %c0_83] : memref<2x64x32xf32, #tpu.memory_space<vmem>>, vector<1x64x32xf32>
    %210 = vector.shape_cast %209 : vector<1x64x32xf32> to vector<64x32xf32>
    %cst_84 = arith.constant dense<0.000000e+00> : vector<64x32xf32>
    %211 = tpu.matmul %208, %210, %cst_84 {dimension_numbers = #tpu.dot_dimension_numbers<[1], [0], [0], [1], [0, 0, 1, 1], [], []>} : vector<64x64xf32>, vector<64x32xf32>, vector<64x32xf32> -> vector<64x32xf32>
    %c0_85 = arith.constant 0 : index
    %c0_86 = arith.constant 0 : index
    %c0_87 = arith.constant 0 : index
    %212 = vector.load %arg18[%c0_85, %c0_86, %c0_87] : memref<2x1x32xf32, #tpu.memory_space<vmem>>, vector<1x1x32xf32>
    %213 = vector.shape_cast %212 : vector<1x1x32xf32> to vector<1x32xf32>
    %214 = vector.broadcast %213 : vector<1x32xf32> to vector<64x32xf32>
    %215 = arith.addf %211, %214 : vector<64x32xf32>
    %216 = arith.mulf %215, %23 : vector<64x32xf32>
    %217 = arith.addf %216, %168 : vector<64x32xf32>
    %c1 = arith.constant 1 : index
    %c0_88 = arith.constant 0 : index
    %c0_89 = arith.constant 0 : index
    %218 = vector.load %arg19[%c1, %c0_88, %c0_89] : memref<2x32x192xf32, #tpu.memory_space<vmem>>, vector<1x32x192xf32>
    %219 = vector.shape_cast %218 : vector<1x32x192xf32> to vector<32x192xf32>
    %cst_90 = arith.constant dense<0.000000e+00> : vector<64x192xf32>
    %220 = tpu.matmul %0, %219, %cst_90 {dimension_numbers = #tpu.dot_dimension_numbers<[1], [0], [0], [1], [0, 0, 1, 1], [], []>} : vector<64x32xf32>, vector<32x192xf32>, vector<64x192xf32> -> vector<64x192xf32>
    %c1_91 = arith.constant 1 : index
    %c0_92 = arith.constant 0 : index
    %c0_93 = arith.constant 0 : index
    %221 = vector.load %arg20[%c1_91, %c0_92, %c0_93] : memref<2x1x192xf32, #tpu.memory_space<vmem>>, vector<1x1x192xf32>
    %222 = vector.shape_cast %221 : vector<1x1x192xf32> to vector<1x192xf32>
    %223 = vector.broadcast %222 : vector<1x192xf32> to vector<64x192xf32>
    %224 = arith.addf %220, %223 : vector<64x192xf32>
    %225 = vector.extract_strided_slice %224 {offsets = [0, 0], sizes = [64, 32], strides = [1, 1]} : vector<64x192xf32> to vector<64x32xf32>
    %226 = vector.extract_strided_slice %224 {offsets = [0, 32], sizes = [64, 32], strides = [1, 1]} : vector<64x192xf32> to vector<64x32xf32>
    %227 = vector.extract_strided_slice %224 {offsets = [0, 64], sizes = [64, 32], strides = [1, 1]} : vector<64x192xf32> to vector<64x32xf32>
    %228 = vector.extract_strided_slice %224 {offsets = [0, 96], sizes = [64, 32], strides = [1, 1]} : vector<64x192xf32> to vector<64x32xf32>
    %229 = vector.extract_strided_slice %224 {offsets = [0, 128], sizes = [64, 32], strides = [1, 1]} : vector<64x192xf32> to vector<64x32xf32>
    %230 = vector.extract_strided_slice %224 {offsets = [0, 160], sizes = [64, 32], strides = [1, 1]} : vector<64x192xf32> to vector<64x32xf32>
    %cst_94 = arith.constant dense<0.000000e+00> : vector<64xf32>
    %231 = vector.multi_reduction <add>, %217, %cst_94 [1] : vector<64x32xf32> to vector<64xf32>
    %232 = vector.shape_cast %231 : vector<64xf32> to vector<64x1xf32>
    %cst_95 = arith.constant 3.200000e+01 : f32
    %233 = vector.broadcast %cst_95 : f32 to vector<64x1xf32>
    %234 = arith.divf %232, %233 : vector<64x1xf32>
    %235 = vector.broadcast %234 : vector<64x1xf32> to vector<64x32xf32>
    %236 = arith.subf %217, %235 : vector<64x32xf32>
    %237 = arith.mulf %236, %236 : vector<64x32xf32>
    %cst_96 = arith.constant dense<0.000000e+00> : vector<64xf32>
    %238 = vector.multi_reduction <add>, %237, %cst_96 [1] : vector<64x32xf32> to vector<64xf32>
    %239 = vector.shape_cast %238 : vector<64xf32> to vector<64x1xf32>
    %cst_97 = arith.constant 3.200000e+01 : f32
    %240 = vector.broadcast %cst_97 : f32 to vector<64x1xf32>
    %241 = arith.divf %239, %240 : vector<64x1xf32>
    %cst_98 = arith.constant 9.99999997E-7 : f32
    %242 = vector.broadcast %cst_98 : f32 to vector<64x1xf32>
    %243 = arith.addf %241, %242 : vector<64x1xf32>
    %244 = math.rsqrt %243 : vector<64x1xf32>
    %245 = vector.broadcast %244 : vector<64x1xf32> to vector<64x32xf32>
    %246 = arith.mulf %236, %245 : vector<64x32xf32>
    %cst_99 = arith.constant 1.000000e+00 : f32
    %247 = vector.broadcast %cst_99 : f32 to vector<64x32xf32>
    %248 = arith.addf %247, %225 : vector<64x32xf32>
    %249 = arith.mulf %246, %248 : vector<64x32xf32>
    %250 = arith.addf %249, %226 : vector<64x32xf32>
    %c1_100 = arith.constant 1 : index
    %c0_101 = arith.constant 0 : index
    %c0_102 = arith.constant 0 : index
    %251 = vector.load %arg5[%c1_100, %c0_101, %c0_102] : memref<2x32x32xf32, #tpu.memory_space<vmem>>, vector<1x32x32xf32>
    %252 = vector.shape_cast %251 : vector<1x32x32xf32> to vector<32x32xf32>
    %cst_103 = arith.constant dense<0.000000e+00> : vector<64x32xf32>
    %253 = tpu.matmul %250, %252, %cst_103 {dimension_numbers = #tpu.dot_dimension_numbers<[1], [0], [0], [1], [0, 0, 1, 1], [], []>} : vector<64x32xf32>, vector<32x32xf32>, vector<64x32xf32> -> vector<64x32xf32>
    %c1_104 = arith.constant 1 : index
    %c0_105 = arith.constant 0 : index
    %c0_106 = arith.constant 0 : index
    %254 = vector.load %arg6[%c1_104, %c0_105, %c0_106] : memref<2x1x32xf32, #tpu.memory_space<vmem>>, vector<1x1x32xf32>
    %255 = vector.shape_cast %254 : vector<1x1x32xf32> to vector<1x32xf32>
    %256 = vector.broadcast %255 : vector<1x32xf32> to vector<64x32xf32>
    %257 = arith.addf %253, %256 : vector<64x32xf32>
    %c1_107 = arith.constant 1 : index
    %c0_108 = arith.constant 0 : index
    %c0_109 = arith.constant 0 : index
    %258 = vector.load %arg7[%c1_107, %c0_108, %c0_109] : memref<2x32x32xf32, #tpu.memory_space<vmem>>, vector<1x32x32xf32>
    %259 = vector.shape_cast %258 : vector<1x32x32xf32> to vector<32x32xf32>
    %cst_110 = arith.constant dense<0.000000e+00> : vector<64x32xf32>
    %260 = tpu.matmul %250, %259, %cst_110 {dimension_numbers = #tpu.dot_dimension_numbers<[1], [0], [0], [1], [0, 0, 1, 1], [], []>} : vector<64x32xf32>, vector<32x32xf32>, vector<64x32xf32> -> vector<64x32xf32>
    %c1_111 = arith.constant 1 : index
    %c0_112 = arith.constant 0 : index
    %c0_113 = arith.constant 0 : index
    %261 = vector.load %arg8[%c1_111, %c0_112, %c0_113] : memref<2x1x32xf32, #tpu.memory_space<vmem>>, vector<1x1x32xf32>
    %262 = vector.shape_cast %261 : vector<1x1x32xf32> to vector<1x32xf32>
    %263 = vector.broadcast %262 : vector<1x32xf32> to vector<64x32xf32>
    %264 = arith.addf %260, %263 : vector<64x32xf32>
    %c1_114 = arith.constant 1 : index
    %c0_115 = arith.constant 0 : index
    %c0_116 = arith.constant 0 : index
    %265 = vector.load %arg9[%c1_114, %c0_115, %c0_116] : memref<2x32x32xf32, #tpu.memory_space<vmem>>, vector<1x32x32xf32>
    %266 = vector.shape_cast %265 : vector<1x32x32xf32> to vector<32x32xf32>
    %cst_117 = arith.constant dense<0.000000e+00> : vector<64x32xf32>
    %267 = tpu.matmul %250, %266, %cst_117 {dimension_numbers = #tpu.dot_dimension_numbers<[1], [0], [0], [1], [0, 0, 1, 1], [], []>} : vector<64x32xf32>, vector<32x32xf32>, vector<64x32xf32> -> vector<64x32xf32>
    %c1_118 = arith.constant 1 : index
    %c0_119 = arith.constant 0 : index
    %c0_120 = arith.constant 0 : index
    %268 = vector.load %arg10[%c1_118, %c0_119, %c0_120] : memref<2x1x32xf32, #tpu.memory_space<vmem>>, vector<1x1x32xf32>
    %269 = vector.shape_cast %268 : vector<1x1x32xf32> to vector<1x32xf32>
    %270 = vector.broadcast %269 : vector<1x32xf32> to vector<64x32xf32>
    %271 = arith.addf %267, %270 : vector<64x32xf32>
    %272 = vector.extract_strided_slice %264 {offsets = [0, 0], sizes = [32, 32], strides = [1, 1]} : vector<64x32xf32> to vector<32x32xf32>
    %273 = vector.extract_strided_slice %264 {offsets = [32, 0], sizes = [32, 32], strides = [1, 1]} : vector<64x32xf32> to vector<32x32xf32>
    %274 = tpu.concatenate %272, %273 in 1 : vector<32x32xf32>, vector<32x32xf32> -> vector<32x64xf32>
    %275 = vector.extract_strided_slice %271 {offsets = [0, 0], sizes = [32, 32], strides = [1, 1]} : vector<64x32xf32> to vector<32x32xf32>
    %276 = vector.extract_strided_slice %271 {offsets = [32, 0], sizes = [32, 32], strides = [1, 1]} : vector<64x32xf32> to vector<32x32xf32>
    %277 = tpu.concatenate %275, %276 in 1 : vector<32x32xf32>, vector<32x32xf32> -> vector<32x64xf32>
    %c1_121 = arith.constant 1 : index
    %c0_122 = arith.constant 0 : index
    %c0_123 = arith.constant 0 : index
    %278 = vector.load %arg11[%c1_121, %c0_122, %c0_123] : memref<2x16x32xf32, #tpu.memory_space<vmem>>, vector<1x16x32xf32>
    %279 = vector.shape_cast %278 : vector<1x16x32xf32> to vector<16x32xf32>
    %cst_124 = arith.constant dense<0.000000e+00> : vector<16x64xf32>
    %280 = tpu.matmul %279, %274, %cst_124 {dimension_numbers = #tpu.dot_dimension_numbers<[1], [0], [0], [1], [0, 0, 1, 1], [], []>} : vector<16x32xf32>, vector<32x64xf32>, vector<16x64xf32> -> vector<16x64xf32>
    %c1_125 = arith.constant 1 : index
    %c0_126 = arith.constant 0 : index
    %c0_127 = arith.constant 0 : index
    %281 = vector.load %arg12[%c1_125, %c0_126, %c0_127] : memref<2x16x32xf32, #tpu.memory_space<vmem>>, vector<1x16x32xf32>
    %282 = vector.shape_cast %281 : vector<1x16x32xf32> to vector<16x32xf32>
    %cst_128 = arith.constant dense<0.000000e+00> : vector<16x64xf32>
    %283 = tpu.matmul %282, %277, %cst_128 {dimension_numbers = #tpu.dot_dimension_numbers<[1], [0], [0], [1], [0, 0, 1, 1], [], []>} : vector<16x32xf32>, vector<32x64xf32>, vector<16x64xf32> -> vector<16x64xf32>
    %284 = vector.extract_strided_slice %257 {offsets = [0, 0], sizes = [32, 8], strides = [1, 1]} : vector<64x32xf32> to vector<32x8xf32>
    %285 = vector.extract_strided_slice %257 {offsets = [0, 8], sizes = [32, 8], strides = [1, 1]} : vector<64x32xf32> to vector<32x8xf32>
    %286 = vector.extract_strided_slice %257 {offsets = [0, 16], sizes = [32, 8], strides = [1, 1]} : vector<64x32xf32> to vector<32x8xf32>
    %287 = vector.extract_strided_slice %257 {offsets = [0, 24], sizes = [32, 8], strides = [1, 1]} : vector<64x32xf32> to vector<32x8xf32>
    %288 = vector.extract_strided_slice %257 {offsets = [32, 0], sizes = [32, 8], strides = [1, 1]} : vector<64x32xf32> to vector<32x8xf32>
    %289 = vector.extract_strided_slice %257 {offsets = [32, 8], sizes = [32, 8], strides = [1, 1]} : vector<64x32xf32> to vector<32x8xf32>
    %290 = vector.extract_strided_slice %257 {offsets = [32, 16], sizes = [32, 8], strides = [1, 1]} : vector<64x32xf32> to vector<32x8xf32>
    %291 = vector.extract_strided_slice %257 {offsets = [32, 24], sizes = [32, 8], strides = [1, 1]} : vector<64x32xf32> to vector<32x8xf32>
    %292 = vector.shape_cast %284 : vector<32x8xf32> to vector<1x32x8xf32>
    %293 = vector.shape_cast %285 : vector<32x8xf32> to vector<1x32x8xf32>
    %294 = vector.shape_cast %286 : vector<32x8xf32> to vector<1x32x8xf32>
    %295 = vector.shape_cast %287 : vector<32x8xf32> to vector<1x32x8xf32>
    %296 = vector.shape_cast %288 : vector<32x8xf32> to vector<1x32x8xf32>
    %297 = vector.shape_cast %289 : vector<32x8xf32> to vector<1x32x8xf32>
    %298 = vector.shape_cast %290 : vector<32x8xf32> to vector<1x32x8xf32>
    %299 = vector.shape_cast %291 : vector<32x8xf32> to vector<1x32x8xf32>
    %300 = tpu.concatenate %292, %293, %294, %295, %296, %297, %298, %299 in 0 : vector<1x32x8xf32>, vector<1x32x8xf32>, vector<1x32x8xf32>, vector<1x32x8xf32>, vector<1x32x8xf32>, vector<1x32x8xf32>, vector<1x32x8xf32>, vector<1x32x8xf32> -> vector<8x32x8xf32>
    %301 = vector.extract_strided_slice %280 {offsets = [0, 0], sizes = [16, 8], strides = [1, 1]} : vector<16x64xf32> to vector<16x8xf32>
    %302 = vector.extract_strided_slice %280 {offsets = [0, 8], sizes = [16, 8], strides = [1, 1]} : vector<16x64xf32> to vector<16x8xf32>
    %303 = vector.extract_strided_slice %280 {offsets = [0, 16], sizes = [16, 8], strides = [1, 1]} : vector<16x64xf32> to vector<16x8xf32>
    %304 = vector.extract_strided_slice %280 {offsets = [0, 24], sizes = [16, 8], strides = [1, 1]} : vector<16x64xf32> to vector<16x8xf32>
    %305 = vector.extract_strided_slice %280 {offsets = [0, 32], sizes = [16, 8], strides = [1, 1]} : vector<16x64xf32> to vector<16x8xf32>
    %306 = vector.extract_strided_slice %280 {offsets = [0, 40], sizes = [16, 8], strides = [1, 1]} : vector<16x64xf32> to vector<16x8xf32>
    %307 = vector.extract_strided_slice %280 {offsets = [0, 48], sizes = [16, 8], strides = [1, 1]} : vector<16x64xf32> to vector<16x8xf32>
    %308 = vector.extract_strided_slice %280 {offsets = [0, 56], sizes = [16, 8], strides = [1, 1]} : vector<16x64xf32> to vector<16x8xf32>
    %309 = vector.shape_cast %301 : vector<16x8xf32> to vector<1x16x8xf32>
    %310 = vector.shape_cast %302 : vector<16x8xf32> to vector<1x16x8xf32>
    %311 = vector.shape_cast %303 : vector<16x8xf32> to vector<1x16x8xf32>
    %312 = vector.shape_cast %304 : vector<16x8xf32> to vector<1x16x8xf32>
    %313 = vector.shape_cast %305 : vector<16x8xf32> to vector<1x16x8xf32>
    %314 = vector.shape_cast %306 : vector<16x8xf32> to vector<1x16x8xf32>
    %315 = vector.shape_cast %307 : vector<16x8xf32> to vector<1x16x8xf32>
    %316 = vector.shape_cast %308 : vector<16x8xf32> to vector<1x16x8xf32>
    %317 = tpu.concatenate %309, %310, %311, %312, %313, %314, %315, %316 in 0 : vector<1x16x8xf32>, vector<1x16x8xf32>, vector<1x16x8xf32>, vector<1x16x8xf32>, vector<1x16x8xf32>, vector<1x16x8xf32>, vector<1x16x8xf32>, vector<1x16x8xf32> -> vector<8x16x8xf32>
    %318 = vector.extract_strided_slice %283 {offsets = [0, 0], sizes = [16, 8], strides = [1, 1]} : vector<16x64xf32> to vector<16x8xf32>
    %319 = vector.extract_strided_slice %283 {offsets = [0, 8], sizes = [16, 8], strides = [1, 1]} : vector<16x64xf32> to vector<16x8xf32>
    %320 = vector.extract_strided_slice %283 {offsets = [0, 16], sizes = [16, 8], strides = [1, 1]} : vector<16x64xf32> to vector<16x8xf32>
    %321 = vector.extract_strided_slice %283 {offsets = [0, 24], sizes = [16, 8], strides = [1, 1]} : vector<16x64xf32> to vector<16x8xf32>
    %322 = vector.extract_strided_slice %283 {offsets = [0, 32], sizes = [16, 8], strides = [1, 1]} : vector<16x64xf32> to vector<16x8xf32>
    %323 = vector.extract_strided_slice %283 {offsets = [0, 40], sizes = [16, 8], strides = [1, 1]} : vector<16x64xf32> to vector<16x8xf32>
    %324 = vector.extract_strided_slice %283 {offsets = [0, 48], sizes = [16, 8], strides = [1, 1]} : vector<16x64xf32> to vector<16x8xf32>
    %325 = vector.extract_strided_slice %283 {offsets = [0, 56], sizes = [16, 8], strides = [1, 1]} : vector<16x64xf32> to vector<16x8xf32>
    %326 = vector.shape_cast %318 : vector<16x8xf32> to vector<1x16x8xf32>
    %327 = vector.shape_cast %319 : vector<16x8xf32> to vector<1x16x8xf32>
    %328 = vector.shape_cast %320 : vector<16x8xf32> to vector<1x16x8xf32>
    %329 = vector.shape_cast %321 : vector<16x8xf32> to vector<1x16x8xf32>
    %330 = vector.shape_cast %322 : vector<16x8xf32> to vector<1x16x8xf32>
    %331 = vector.shape_cast %323 : vector<16x8xf32> to vector<1x16x8xf32>
    %332 = vector.shape_cast %324 : vector<16x8xf32> to vector<1x16x8xf32>
    %333 = vector.shape_cast %325 : vector<16x8xf32> to vector<1x16x8xf32>
    %334 = tpu.concatenate %326, %327, %328, %329, %330, %331, %332, %333 in 0 : vector<1x16x8xf32>, vector<1x16x8xf32>, vector<1x16x8xf32>, vector<1x16x8xf32>, vector<1x16x8xf32>, vector<1x16x8xf32>, vector<1x16x8xf32>, vector<1x16x8xf32> -> vector<8x16x8xf32>
    "tpu.trace_start"() <{level = 10 : i32, message = "gld,gkd->glk"}> : () -> ()
    %cst_129 = arith.constant dense<0.000000e+00> : vector<8x32x16xf32>
    %335 = tpu.matmul %300, %317, %cst_129 {dimension_numbers = #tpu.dot_dimension_numbers<[2], [2], [1], [1], [0, 0, 0, 1, 1, 1], [0], [0]>} : vector<8x32x8xf32>, vector<8x16x8xf32>, vector<8x32x16xf32> -> vector<8x32x16xf32>
    "tpu.trace_stop"() : () -> ()
    %cst_130 = arith.constant 0.353553385 : f32
    %336 = vector.broadcast %cst_130 : f32 to vector<8x32x16xf32>
    %337 = arith.mulf %335, %336 : vector<8x32x16xf32>
    %cst_131 = arith.constant dense<0xFF800000> : vector<8x32xf32>
    %338 = vector.multi_reduction <maximumf>, %337, %cst_131 [2] : vector<8x32x16xf32> to vector<8x32xf32>
    %339 = vector.shape_cast %338 : vector<8x32xf32> to vector<8x32x1xf32>
    %340 = vector.broadcast %339 : vector<8x32x1xf32> to vector<8x32x16xf32>
    %341 = arith.subf %337, %340 : vector<8x32x16xf32>
    %342 = math.exp %341 : vector<8x32x16xf32>
    %cst_132 = arith.constant dense<0.000000e+00> : vector<8x32xf32>
    %343 = vector.multi_reduction <add>, %342, %cst_132 [2] : vector<8x32x16xf32> to vector<8x32xf32>
    %344 = vector.shape_cast %343 : vector<8x32xf32> to vector<8x32x1xf32>
    %345 = vector.broadcast %344 : vector<8x32x1xf32> to vector<8x32x16xf32>
    %346 = arith.divf %342, %345 : vector<8x32x16xf32>
    "tpu.trace_start"() <{level = 10 : i32, message = "glk,gkd->gld"}> : () -> ()
    %cst_133 = arith.constant dense<0.000000e+00> : vector<8x32x8xf32>
    %347 = tpu.matmul %346, %334, %cst_133 {dimension_numbers = #tpu.dot_dimension_numbers<[2], [1], [1], [2], [0, 0, 0, 1, 1, 2], [0], [0]>} : vector<8x32x16xf32>, vector<8x16x8xf32>, vector<8x32x8xf32> -> vector<8x32x8xf32>
    "tpu.trace_stop"() : () -> ()
    %348 = vector.extract_strided_slice %347 {offsets = [0, 0, 0], sizes = [1, 32, 8], strides = [1, 1, 1]} : vector<8x32x8xf32> to vector<1x32x8xf32>
    %349 = vector.shape_cast %348 : vector<1x32x8xf32> to vector<32x8xf32>
    %350 = vector.extract_strided_slice %347 {offsets = [1, 0, 0], sizes = [1, 32, 8], strides = [1, 1, 1]} : vector<8x32x8xf32> to vector<1x32x8xf32>
    %351 = vector.shape_cast %350 : vector<1x32x8xf32> to vector<32x8xf32>
    %352 = vector.extract_strided_slice %347 {offsets = [2, 0, 0], sizes = [1, 32, 8], strides = [1, 1, 1]} : vector<8x32x8xf32> to vector<1x32x8xf32>
    %353 = vector.shape_cast %352 : vector<1x32x8xf32> to vector<32x8xf32>
    %354 = vector.extract_strided_slice %347 {offsets = [3, 0, 0], sizes = [1, 32, 8], strides = [1, 1, 1]} : vector<8x32x8xf32> to vector<1x32x8xf32>
    %355 = vector.shape_cast %354 : vector<1x32x8xf32> to vector<32x8xf32>
    %356 = tpu.concatenate %349, %351, %353, %355 in 1 : vector<32x8xf32>, vector<32x8xf32>, vector<32x8xf32>, vector<32x8xf32> -> vector<32x32xf32>
    %357 = vector.extract_strided_slice %347 {offsets = [4, 0, 0], sizes = [1, 32, 8], strides = [1, 1, 1]} : vector<8x32x8xf32> to vector<1x32x8xf32>
    %358 = vector.shape_cast %357 : vector<1x32x8xf32> to vector<32x8xf32>
    %359 = vector.extract_strided_slice %347 {offsets = [5, 0, 0], sizes = [1, 32, 8], strides = [1, 1, 1]} : vector<8x32x8xf32> to vector<1x32x8xf32>
    %360 = vector.shape_cast %359 : vector<1x32x8xf32> to vector<32x8xf32>
    %361 = vector.extract_strided_slice %347 {offsets = [6, 0, 0], sizes = [1, 32, 8], strides = [1, 1, 1]} : vector<8x32x8xf32> to vector<1x32x8xf32>
    %362 = vector.shape_cast %361 : vector<1x32x8xf32> to vector<32x8xf32>
    %363 = vector.extract_strided_slice %347 {offsets = [7, 0, 0], sizes = [1, 32, 8], strides = [1, 1, 1]} : vector<8x32x8xf32> to vector<1x32x8xf32>
    %364 = vector.shape_cast %363 : vector<1x32x8xf32> to vector<32x8xf32>
    %365 = tpu.concatenate %358, %360, %362, %364 in 1 : vector<32x8xf32>, vector<32x8xf32>, vector<32x8xf32>, vector<32x8xf32> -> vector<32x32xf32>
    %366 = tpu.concatenate %356, %365 in 0 : vector<32x32xf32>, vector<32x32xf32> -> vector<64x32xf32>
    %c1_134 = arith.constant 1 : index
    %c0_135 = arith.constant 0 : index
    %c0_136 = arith.constant 0 : index
    %367 = vector.load %arg13[%c1_134, %c0_135, %c0_136] : memref<2x32x32xf32, #tpu.memory_space<vmem>>, vector<1x32x32xf32>
    %368 = vector.shape_cast %367 : vector<1x32x32xf32> to vector<32x32xf32>
    %cst_137 = arith.constant dense<0.000000e+00> : vector<64x32xf32>
    %369 = tpu.matmul %366, %368, %cst_137 {dimension_numbers = #tpu.dot_dimension_numbers<[1], [0], [0], [1], [0, 0, 1, 1], [], []>} : vector<64x32xf32>, vector<32x32xf32>, vector<64x32xf32> -> vector<64x32xf32>
    %c1_138 = arith.constant 1 : index
    %c0_139 = arith.constant 0 : index
    %c0_140 = arith.constant 0 : index
    %370 = vector.load %arg14[%c1_138, %c0_139, %c0_140] : memref<2x1x32xf32, #tpu.memory_space<vmem>>, vector<1x1x32xf32>
    %371 = vector.shape_cast %370 : vector<1x1x32xf32> to vector<1x32xf32>
    %372 = vector.broadcast %371 : vector<1x32xf32> to vector<64x32xf32>
    %373 = arith.addf %369, %372 : vector<64x32xf32>
    %374 = arith.mulf %373, %229 : vector<64x32xf32>
    %375 = arith.addf %374, %217 : vector<64x32xf32>
    %cst_141 = arith.constant dense<0.000000e+00> : vector<64xf32>
    %376 = vector.multi_reduction <add>, %375, %cst_141 [1] : vector<64x32xf32> to vector<64xf32>
    %377 = vector.shape_cast %376 : vector<64xf32> to vector<64x1xf32>
    %cst_142 = arith.constant 3.200000e+01 : f32
    %378 = vector.broadcast %cst_142 : f32 to vector<64x1xf32>
    %379 = arith.divf %377, %378 : vector<64x1xf32>
    %380 = vector.broadcast %379 : vector<64x1xf32> to vector<64x32xf32>
    %381 = arith.subf %375, %380 : vector<64x32xf32>
    %382 = arith.mulf %381, %381 : vector<64x32xf32>
    %cst_143 = arith.constant dense<0.000000e+00> : vector<64xf32>
    %383 = vector.multi_reduction <add>, %382, %cst_143 [1] : vector<64x32xf32> to vector<64xf32>
    %384 = vector.shape_cast %383 : vector<64xf32> to vector<64x1xf32>
    %cst_144 = arith.constant 3.200000e+01 : f32
    %385 = vector.broadcast %cst_144 : f32 to vector<64x1xf32>
    %386 = arith.divf %384, %385 : vector<64x1xf32>
    %cst_145 = arith.constant 9.99999997E-7 : f32
    %387 = vector.broadcast %cst_145 : f32 to vector<64x1xf32>
    %388 = arith.addf %386, %387 : vector<64x1xf32>
    %389 = math.rsqrt %388 : vector<64x1xf32>
    %390 = vector.broadcast %389 : vector<64x1xf32> to vector<64x32xf32>
    %391 = arith.mulf %381, %390 : vector<64x32xf32>
    %cst_146 = arith.constant 1.000000e+00 : f32
    %392 = vector.broadcast %cst_146 : f32 to vector<64x32xf32>
    %393 = arith.addf %392, %227 : vector<64x32xf32>
    %394 = arith.mulf %391, %393 : vector<64x32xf32>
    %395 = arith.addf %394, %228 : vector<64x32xf32>
    %c1_147 = arith.constant 1 : index
    %c0_148 = arith.constant 0 : index
    %c0_149 = arith.constant 0 : index
    %396 = vector.load %arg15[%c1_147, %c0_148, %c0_149] : memref<2x32x64xf32, #tpu.memory_space<vmem>>, vector<1x32x64xf32>
    %397 = vector.shape_cast %396 : vector<1x32x64xf32> to vector<32x64xf32>
    %cst_150 = arith.constant dense<0.000000e+00> : vector<64x64xf32>
    %398 = tpu.matmul %395, %397, %cst_150 {dimension_numbers = #tpu.dot_dimension_numbers<[1], [0], [0], [1], [0, 0, 1, 1], [], []>} : vector<64x32xf32>, vector<32x64xf32>, vector<64x64xf32> -> vector<64x64xf32>
    %c1_151 = arith.constant 1 : index
    %c0_152 = arith.constant 0 : index
    %c0_153 = arith.constant 0 : index
    %399 = vector.load %arg16[%c1_151, %c0_152, %c0_153] : memref<2x1x64xf32, #tpu.memory_space<vmem>>, vector<1x1x64xf32>
    %400 = vector.shape_cast %399 : vector<1x1x64xf32> to vector<1x64xf32>
    %401 = vector.broadcast %400 : vector<1x64xf32> to vector<64x64xf32>
    %402 = arith.addf %398, %401 : vector<64x64xf32>
    %cst_154 = arith.constant 5.000000e-01 : f32
    %403 = vector.broadcast %cst_154 : f32 to vector<64x64xf32>
    %404 = arith.mulf %403, %402 : vector<64x64xf32>
    %cst_155 = arith.constant 4.471500e-02 : f32
    %405 = vector.broadcast %cst_155 : f32 to vector<64x64xf32>
    %406 = arith.mulf %405, %402 : vector<64x64xf32>
    %407 = arith.mulf %406, %402 : vector<64x64xf32>
    %408 = arith.mulf %407, %402 : vector<64x64xf32>
    %409 = arith.addf %402, %408 : vector<64x64xf32>
    %cst_156 = arith.constant 0.797884583 : f32
    %410 = vector.broadcast %cst_156 : f32 to vector<64x64xf32>
    %411 = arith.mulf %410, %409 : vector<64x64xf32>
    %412 = math.tanh %411 : vector<64x64xf32>
    %cst_157 = arith.constant 1.000000e+00 : f32
    %413 = vector.broadcast %cst_157 : f32 to vector<64x64xf32>
    %414 = arith.addf %413, %412 : vector<64x64xf32>
    %415 = arith.mulf %404, %414 : vector<64x64xf32>
    %c1_158 = arith.constant 1 : index
    %c0_159 = arith.constant 0 : index
    %c0_160 = arith.constant 0 : index
    %416 = vector.load %arg17[%c1_158, %c0_159, %c0_160] : memref<2x64x32xf32, #tpu.memory_space<vmem>>, vector<1x64x32xf32>
    %417 = vector.shape_cast %416 : vector<1x64x32xf32> to vector<64x32xf32>
    %cst_161 = arith.constant dense<0.000000e+00> : vector<64x32xf32>
    %418 = tpu.matmul %415, %417, %cst_161 {dimension_numbers = #tpu.dot_dimension_numbers<[1], [0], [0], [1], [0, 0, 1, 1], [], []>} : vector<64x64xf32>, vector<64x32xf32>, vector<64x32xf32> -> vector<64x32xf32>
    %c1_162 = arith.constant 1 : index
    %c0_163 = arith.constant 0 : index
    %c0_164 = arith.constant 0 : index
    %419 = vector.load %arg18[%c1_162, %c0_163, %c0_164] : memref<2x1x32xf32, #tpu.memory_space<vmem>>, vector<1x1x32xf32>
    %420 = vector.shape_cast %419 : vector<1x1x32xf32> to vector<1x32xf32>
    %421 = vector.broadcast %420 : vector<1x32xf32> to vector<64x32xf32>
    %422 = arith.addf %418, %421 : vector<64x32xf32>
    %423 = arith.mulf %422, %230 : vector<64x32xf32>
    %424 = arith.addf %423, %375 : vector<64x32xf32>
    %c0_165 = arith.constant 0 : index
    %c0_166 = arith.constant 0 : index
    %425 = vector.load %arg21[%c0_165, %c0_166] : memref<32x32xf32, #tpu.memory_space<vmem>>, vector<32x32xf32>
    %cst_167 = arith.constant dense<0.000000e+00> : vector<64x32xf32>
    %426 = tpu.matmul %0, %425, %cst_167 {dimension_numbers = #tpu.dot_dimension_numbers<[1], [0], [0], [1], [0, 0, 1, 1], [], []>} : vector<64x32xf32>, vector<32x32xf32>, vector<64x32xf32> -> vector<64x32xf32>
    %c0_168 = arith.constant 0 : index
    %c0_169 = arith.constant 0 : index
    %427 = vector.load %arg22[%c0_168, %c0_169] : memref<1x32xf32, #tpu.memory_space<vmem>>, vector<1x32xf32>
    %428 = vector.broadcast %427 : vector<1x32xf32> to vector<64x32xf32>
    %429 = arith.addf %426, %428 : vector<64x32xf32>
    %c0_170 = arith.constant 0 : index
    %c0_171 = arith.constant 0 : index
    %430 = vector.load %arg23[%c0_170, %c0_171] : memref<32x32xf32, #tpu.memory_space<vmem>>, vector<32x32xf32>
    %cst_172 = arith.constant dense<0.000000e+00> : vector<64x32xf32>
    %431 = tpu.matmul %0, %430, %cst_172 {dimension_numbers = #tpu.dot_dimension_numbers<[1], [0], [0], [1], [0, 0, 1, 1], [], []>} : vector<64x32xf32>, vector<32x32xf32>, vector<64x32xf32> -> vector<64x32xf32>
    %c0_173 = arith.constant 0 : index
    %c0_174 = arith.constant 0 : index
    %432 = vector.load %arg24[%c0_173, %c0_174] : memref<1x32xf32, #tpu.memory_space<vmem>>, vector<1x32xf32>
    %433 = vector.broadcast %432 : vector<1x32xf32> to vector<64x32xf32>
    %434 = arith.addf %431, %433 : vector<64x32xf32>
    %cst_175 = arith.constant dense<0.000000e+00> : vector<64xf32>
    %435 = vector.multi_reduction <add>, %424, %cst_175 [1] : vector<64x32xf32> to vector<64xf32>
    %436 = vector.shape_cast %435 : vector<64xf32> to vector<64x1xf32>
    %cst_176 = arith.constant 3.200000e+01 : f32
    %437 = vector.broadcast %cst_176 : f32 to vector<64x1xf32>
    %438 = arith.divf %436, %437 : vector<64x1xf32>
    %439 = vector.broadcast %438 : vector<64x1xf32> to vector<64x32xf32>
    %440 = arith.subf %424, %439 : vector<64x32xf32>
    %441 = arith.mulf %440, %440 : vector<64x32xf32>
    %cst_177 = arith.constant dense<0.000000e+00> : vector<64xf32>
    %442 = vector.multi_reduction <add>, %441, %cst_177 [1] : vector<64x32xf32> to vector<64xf32>
    %443 = vector.shape_cast %442 : vector<64xf32> to vector<64x1xf32>
    %cst_178 = arith.constant 3.200000e+01 : f32
    %444 = vector.broadcast %cst_178 : f32 to vector<64x1xf32>
    %445 = arith.divf %443, %444 : vector<64x1xf32>
    %cst_179 = arith.constant 9.99999997E-7 : f32
    %446 = vector.broadcast %cst_179 : f32 to vector<64x1xf32>
    %447 = arith.addf %445, %446 : vector<64x1xf32>
    %448 = math.rsqrt %447 : vector<64x1xf32>
    %449 = vector.broadcast %448 : vector<64x1xf32> to vector<64x32xf32>
    %450 = arith.mulf %440, %449 : vector<64x32xf32>
    %cst_180 = arith.constant 1.000000e+00 : f32
    %451 = vector.broadcast %cst_180 : f32 to vector<64x32xf32>
    %452 = arith.addf %451, %429 : vector<64x32xf32>
    %453 = arith.mulf %450, %452 : vector<64x32xf32>
    %454 = arith.addf %453, %434 : vector<64x32xf32>
    %c0_181 = arith.constant 0 : index
    %c0_182 = arith.constant 0 : index
    %455 = vector.load %arg25[%c0_181, %c0_182] : memref<32x9xf32, #tpu.memory_space<vmem>>, vector<32x9xf32>
    %cst_183 = arith.constant dense<0.000000e+00> : vector<64x9xf32>
    %456 = tpu.matmul %454, %455, %cst_183 {dimension_numbers = #tpu.dot_dimension_numbers<[1], [0], [0], [1], [0, 0, 1, 1], [], []>} : vector<64x32xf32>, vector<32x9xf32>, vector<64x9xf32> -> vector<64x9xf32>
    %c0_184 = arith.constant 0 : index
    %c0_185 = arith.constant 0 : index
    %457 = vector.load %arg26[%c0_184, %c0_185] : memref<1x9xf32, #tpu.memory_space<vmem>>, vector<1x9xf32>
    %458 = vector.broadcast %457 : vector<1x9xf32> to vector<64x9xf32>
    %459 = arith.addf %456, %458 : vector<64x9xf32>
    %c0_186 = arith.constant 0 : index
    %c0_187 = arith.constant 0 : index
    %460 = vector.load %arg27[%c0_186, %c0_187] : memref<64x9xf32, #tpu.memory_space<vmem>>, vector<64x9xf32>
    tpu.vector_store %arg27[%c0_186, %c0_187], %459 {strides = array<i32>} : memref<64x9xf32, #tpu.memory_space<vmem>>, vector<64x9xf32>,
    return
  }
}

</mosaic_0001>

<llo_original>
// kernel: transformer_forward.2
$region0: #{transformer_forward.2}
  #allocation0 [shape = 'u32[]', space=smem, size = 0x4, offset = 0x4, fixed_abs, tag = 'smem constant byte address 0x4 - core index']
  #allocation1 [shape = 'u32[72,128]{1,0:T(1,128)}', space=vmem, size = 0x9000, scoped, tag = 'internal scratch']
  %s0 = inlined_call_operand.vmem [shape: f32[2,32], index: 0, kind: input, shape index: {}]
  %s1 = inlined_call_operand.vmem [shape: f32[2,576], index: 1, kind: input, shape index: {}]
  %s2 = inlined_call_operand.vmem [shape: f32[32,32], index: 2, kind: input, shape index: {}]
  %s3 = inlined_call_operand.vmem [shape: f32[1,32], index: 3, kind: input, shape index: {}]
  %s4 = inlined_call_operand.vmem [shape: f32[32,32], index: 4, kind: input, shape index: {}]
  %s5 = inlined_call_operand.vmem [shape: f32[1,32], index: 5, kind: input, shape index: {}]
  %s6 = inlined_call_operand.vmem [shape: bf16[576,288], index: 6, kind: input, shape index: {}]
  %s7 = inlined_call_operand.vmem [shape: f32[1,288], index: 7, kind: input, shape index: {}]
  %s8 = inlined_call_operand.vmem [shape: bf16[288,288], index: 8, kind: input, shape index: {}]
  %s9 = inlined_call_operand.vmem [shape: f32[1,288], index: 9, kind: input, shape index: {}]
  %s10 = inlined_call_operand.vmem [shape: f32[2,32], index: 10, kind: output, shape index: {0}]
  %s11 = inlined_call_operand.vmem [shape: f32[2,288], index: 11, kind: output, shape index: {1}]
  %12 = xla_tuple %s10, %s11
  %s13 = sld [smem:[#allocation0]]
  $region58: #{transformer_forward.2} parent=0
    _
  %s15 = ssub.s32 1, %s13
  %s16 = scalar_select 0, %s15, %s13
  // Predicated region
  $region2: #{transformer_forward.2} parent=0 // pred_check
    _
  $region3: #{transformer_forward.2} parent=0 // pred_check_branch
    %18 = sbr.rel (0) target = $region5
  $region4: #{transformer_forward.2} parent=0 // pred_region
    _
  $region5: #{transformer_forward.2} parent=0 // pred_fallthru
    _
  // Predicated region
  $region6: #{transformer_forward.2} parent=0 // pred_check
    _
  $region7: #{transformer_forward.2} parent=0 // pred_check_branch
    %20 = sbr.rel (0) target = $region9
  $region8: #{transformer_forward.2} parent=0 // pred_region
    _
  $region9: #{transformer_forward.2} parent=0 // pred_fallthru
    _
  // Predicated region
  $region10: #{transformer_forward.2} parent=0 // pred_check
    _
  $region11: #{transformer_forward.2} parent=0 // pred_check_branch
    %22 = sbr.rel (0) target = $region13
  $region12: #{transformer_forward.2} parent=0 // pred_region
    _
  $region13: #{transformer_forward.2} parent=0 // pred_fallthru
    _
  // Predicated region
  $region14: #{transformer_forward.2} parent=0 // pred_check
    _
  $region15: #{transformer_forward.2} parent=0 // pred_check_branch
    %24 = sbr.rel (0) target = $region17
  $region16: #{transformer_forward.2} parent=0 // pred_region
    _
  $region17: #{transformer_forward.2} parent=0 // pred_fallthru
    _
  // Predicated region
  $region18: #{transformer_forward.2} parent=0 // pred_check
    _
  $region19: #{transformer_forward.2} parent=0 // pred_check_branch
    %26 = sbr.rel (0) target = $region21
  $region20: #{transformer_forward.2} parent=0 // pred_region
    _
  $region21: #{transformer_forward.2} parent=0 // pred_fallthru
    _
  // Predicated region
  $region22: #{transformer_forward.2} parent=0 // pred_check
    _
  $region23: #{transformer_forward.2} parent=0 // pred_check_branch
    %28 = sbr.rel (0) target = $region25
  $region24: #{transformer_forward.2} parent=0 // pred_region
    _
  $region25: #{transformer_forward.2} parent=0 // pred_fallthru
    _
  // Predicated region
  $region26: #{transformer_forward.2} parent=0 // pred_check
    _
  $region27: #{transformer_forward.2} parent=0 // pred_check_branch
    %30 = sbr.rel (0) target = $region29
  $region28: #{transformer_forward.2} parent=0 // pred_region
    _
  $region29: #{transformer_forward.2} parent=0 // pred_fallthru
    _
  // Predicated region
  $region30: #{transformer_forward.2} parent=0 // pred_check
    _
  $region31: #{transformer_forward.2} parent=0 // pred_check_branch
    %32 = sbr.rel (0) target = $region33
  $region32: #{transformer_forward.2} parent=0 // pred_region
    _
  $region33: #{transformer_forward.2} parent=0 // pred_fallthru
    _
  // Predicated region
  $region34: #{transformer_forward.2} parent=0 // pred_check
    _
  $region35: #{transformer_forward.2} parent=0 // pred_check_branch
    %34 = sbr.rel (0) target = $region37
  $region36: #{transformer_forward.2} parent=0 // pred_region
    _
  $region37: #{transformer_forward.2} parent=0 // pred_fallthru
    _
  // Predicated region
  $region38: #{transformer_forward.2} parent=0 // pred_check
    _
  $region39: #{transformer_forward.2} parent=0 // pred_check_branch
    %36 = sbr.rel (0) target = $region41
  $region40: #{transformer_forward.2} parent=0 // pred_region
    _
  $region41: #{transformer_forward.2} parent=0 // pred_fallthru
    _
  %v38 = vld [vmem:[%s0] sm:$0x3]
  %v39 = vld [vmem:[%s2] sm:$0xff]
  %v40 = vld [vmem:[%s2 + $0x8] sm:$0xff]
  %v41 = vld [vmem:[%s2 + $0x10] sm:$0xff]
  %v42 = vld [vmem:[%s2 + $0x18] sm:$0xff]
  %v43 = vld [vmem:[%s3] sm:$0x1]
  %v45 = vperm.slane %v43, 0
  %vm47 = vcmask 261120
  %v49 = vsel %vm47, %v38, 0
  %51 = vmatpush.msra.mxu0 0.0
  %52 = vmatpush.msra.mxu0 0.0
  %53 = vmatpush.msra.mxu0 0.0
  %54 = vmatpush.msra.mxu0 0.0
  %55 = vmatpush.msra.mxu0 0.0
  %56 = vmatpush.msra.mxu0 0.0
  %57 = vmatpush.msra.mxu0 0.0
  %58 = vmatpush.msra.mxu0 0.0
  %59 = vmatpush.msra.mxu0 0.0
  %60 = vmatpush.msra.mxu0 0.0
  %61 = vmatpush.msra.mxu0 0.0
  %62 = vmatpush.msra.mxu0 0.0
  %63 = vmatpush.msra.mxu0 %v42
  %64 = vmatpush.msra.mxu0 %v41
  %65 = vmatpush.msra.mxu0 %v40
  %66 = vmatpush.msra.mxu0 %v39
  %67 = vmatmul.f32.gmra.mxu0 %v49
  %v68 = vpop.f32.mrf.mxu0
  %v69 = vadd.f32 %v45, %v68
  %70 = vdwg.mxu0
  %v71 = vxor.u32 %v69, 2147483648
  %v72 = vmul.f32 %v71, 1.442695
  %v73 = vpow.pop %v72
  %v74 = vadd.f32 %v73, 1.0
  %v75 = vrcp.pop %v74
  %v76 = vmul.f32 %v74, %v75
  %v77 = vsub.f32 1.0, %v76
  %v78 = vmul.f32 %v75, %v77
  %v79 = vadd.f32 %v75, %v78
  %vm80 = vweird.f32 %v74
  %vm81 = vweird.f32 %v75
  %vm82 = vmor %vm80, %vm81
  %v83 = vsel %vm82, %v75, %v79
  %v84 = vand.u32 2147483647, %v74
  %vm85 = vcmp.eq.f32.partialorder %v84, 8.507059e+37
  %v86 = vand.u32 %v74, 2147483648
  %v87 = vor.u32 1.1754944e-38, %v86
  %v88 = vsel %vm85, %v87, %v83
  %v89 = vmul.f32 1.0, %v88
  %v90 = vmul.f32 %v69, %v89
  %v91 = vld [vmem:[%s4] sm:$0xff]
  %v92 = vld [vmem:[%s4 + $0x8] sm:$0xff]
  %v93 = vld [vmem:[%s4 + $0x10] sm:$0xff]
  %v94 = vld [vmem:[%s4 + $0x18] sm:$0xff]
  %v95 = vld [vmem:[%s5] sm:$0x1]
  %v97 = vperm.slane %v95, 0
  %v100 = vsel %vm47, %v90, 0
  %102 = vmatpush.msra.mxu0 0.0
  %103 = vmatpush.msra.mxu0 0.0
  %104 = vmatpush.msra.mxu0 0.0
  %105 = vmatpush.msra.mxu0 0.0
  %106 = vmatpush.msra.mxu0 0.0
  %107 = vmatpush.msra.mxu0 0.0
  %108 = vmatpush.msra.mxu0 0.0
  %109 = vmatpush.msra.mxu0 0.0
  %110 = vmatpush.msra.mxu0 0.0
  %111 = vmatpush.msra.mxu0 0.0
  %112 = vmatpush.msra.mxu0 0.0
  %113 = vmatpush.msra.mxu0 0.0
  %114 = vmatpush.msra.mxu0 %v94
  %115 = vmatpush.msra.mxu0 %v93
  %116 = vmatpush.msra.mxu0 %v92
  %117 = vmatpush.msra.mxu0 %v91
  %118 = vmatmul.f32.gmra.mxu0 %v100
  %v119 = vpop.f32.mrf.mxu0
  %v120 = vadd.f32 %v97, %v119
  %121 = vdwg.mxu0
  %vm122 = vcmask 254976
  %123 = vst.msk [vmem:[%s10] sm:$0x3] %vm122, %v120
  %v124 = vld [vmem:[%s1] sm:$0xff]
  %v125 = vld [vmem:[%s1 + $0x8] sm:$0x3]
  %128 = vst [vmem:[#allocation1] ss:$4 sm:$0xff] %v124
  %s129 = scalar_lea.vmem [#allocation1], 32
  %130 = vst [vmem:[%s129] ss:$4 sm:$0xff] %v125
  %v131 = vld.sshfl [vmem:[#allocation1] sm:$0xff pattern:$0x73625140]
  %v132 = vld.sshfl [vmem:[#allocation1 + $0x8] sm:$0xff pattern:$0x73625140]
  %v133 = vld.sshfl [vmem:[#allocation1 + $0x10] sm:$0xff pattern:$0x73625140]
  %v134 = vld.sshfl [vmem:[#allocation1 + $0x18] sm:$0xff pattern:$0x73625140]
  %v135 = vld.sshfl [vmem:[#allocation1 + $0x20] sm:$0xff pattern:$0x73625140]
  %v141 = vpack.c.bf16 %v131, %v131
  %v142 = vpack.c.bf16 %v132, %v132
  %v143 = vpack.c.bf16 %v133, %v133
  %v144 = vpack.c.bf16 %v134, %v134
  %v145 = vpack.c.bf16 %v135, %v135
  %v146 = vld [vmem:[%s6] sm:$0xff]
  %v147 = vld [vmem:[%s6 + $0x8] sm:$0xf]
  %v148 = vld [vmem:[%s6 + $0xc] sm:$0xff]
  %v149 = vld [vmem:[%s6 + $0x14] sm:$0xf]
  %v150 = vld [vmem:[%s6 + $0x18] sm:$0xff]
  %v151 = vld [vmem:[%s6 + $0x20] sm:$0xf]
  %v152 = vld [vmem:[%s6 + $0x24] sm:$0xff]
  %v153 = vld [vmem:[%s6 + $0x2c] sm:$0xf]
  %v154 = vld [vmem:[%s6 + $0x30] sm:$0xff]
  %v155 = vld [vmem:[%s6 + $0x38] sm:$0xf]
  %v156 = vld [vmem:[%s6 + $0x3c] sm:$0xff]
  %v157 = vld [vmem:[%s6 + $0x44] sm:$0xf]
  %v158 = vld [vmem:[%s6 + $0x48] sm:$0xff]
  %v159 = vld [vmem:[%s6 + $0x50] sm:$0xf]
  %v160 = vld [vmem:[%s6 + $0x54] sm:$0xff]
  %v161 = vld [vmem:[%s6 + $0x5c] sm:$0xf]
  %v162 = vld [vmem:[%s6 + $0x60] sm:$0xff]
  %v163 = vld [vmem:[%s6 + $0x68] sm:$0xf]
  %v164 = vld [vmem:[%s6 + $0x6c] sm:$0xff]
  %v165 = vld [vmem:[%s6 + $0x74] sm:$0xf]
  %v166 = vld [vmem:[%s6 + $0x78] sm:$0xff]
  %v167 = vld [vmem:[%s6 + $0x80] sm:$0xf]
  %v168 = vld [vmem:[%s6 + $0x84] sm:$0xff]
  %v169 = vld [vmem:[%s6 + $0x8c] sm:$0xf]
  %v170 = vld [vmem:[%s6 + $0x90] sm:$0xff]
  %v171 = vld [vmem:[%s6 + $0x98] sm:$0xf]
  %v172 = vld [vmem:[%s6 + $0x9c] sm:$0xff]
  %v173 = vld [vmem:[%s6 + $0xa4] sm:$0xf]
  %v174 = vld [vmem:[%s6 + $0xa8] sm:$0xff]
  %v175 = vld [vmem:[%s6 + $0xb0] sm:$0xf]
  %v176 = vld [vmem:[%s6 + $0xb4] sm:$0xff]
  %v177 = vld [vmem:[%s6 + $0xbc] sm:$0xf]
  %v178 = vld [vmem:[%s6 + $0xc0] sm:$0xff]
  %v179 = vld [vmem:[%s6 + $0xc8] sm:$0xf]
  %v180 = vld [vmem:[%s6 + $0xcc] sm:$0xff]
  %v181 = vld [vmem:[%s6 + $0xd4] sm:$0xf]
  %v182 = vld [vmem:[%s6 + $0xd8] sm:$0xff]
  %v183 = vld [vmem:[%s6 + $0xe0] sm:$0xf]
  %v184 = vld [vmem:[%s6 + $0xe4] sm:$0xff]
  %v185 = vld [vmem:[%s6 + $0xec] sm:$0xf]
  %v186 = vld [vmem:[%s6 + $0xf0] sm:$0xff]
  %v187 = vld [vmem:[%s6 + $0xf8] sm:$0xf]
  %v188 = vld [vmem:[%s6 + $0xfc] sm:$0xff]
  %v189 = vld [vmem:[%s6 + $0x104] sm:$0xf]
  %v190 = vld [vmem:[%s6 + $0x108] sm:$0xff]
  %v191 = vld [vmem:[%s6 + $0x110] sm:$0xf]
  %v192 = vld [vmem:[%s6 + $0x114] sm:$0xff]
  %v193 = vld [vmem:[%s6 + $0x11c] sm:$0xf]
  %v194 = vld [vmem:[%s6 + $0x120] sm:$0xff]
  %v195 = vld [vmem:[%s6 + $0x128] sm:$0xf]
  %v196 = vld [vmem:[%s6 + $0x12c] sm:$0xff]
  %v197 = vld [vmem:[%s6 + $0x134] sm:$0xf]
  %v198 = vld [vmem:[%s6 + $0x138] sm:$0xff]
  %v199 = vld [vmem:[%s6 + $0x140] sm:$0xf]
  %v200 = vld [vmem:[%s6 + $0x144] sm:$0xff]
  %v201 = vld [vmem:[%s6 + $0x14c] sm:$0xf]
  %v202 = vld [vmem:[%s6 + $0x150] sm:$0xff]
  %v203 = vld [vmem:[%s6 + $0x158] sm:$0xf]
  %v204 = vld [vmem:[%s6 + $0x15c] sm:$0xff]
  %v205 = vld [vmem:[%s6 + $0x164] sm:$0xf]
  %v206 = vld [vmem:[%s6 + $0x168] sm:$0xff]
  %v207 = vld [vmem:[%s6 + $0x170] sm:$0xf]
  %v208 = vld [vmem:[%s6 + $0x174] sm:$0xff]
  %v209 = vld [vmem:[%s6 + $0x17c] sm:$0xf]
  %v210 = vld [vmem:[%s6 + $0x180] sm:$0xff]
  %v211 = vld [vmem:[%s6 + $0x188] sm:$0xf]
  %v212 = vld [vmem:[%s6 + $0x18c] sm:$0xff]
  %v213 = vld [vmem:[%s6 + $0x194] sm:$0xf]
  %v214 = vld [vmem:[%s6 + $0x198] sm:$0xff]
  %v215 = vld [vmem:[%s6 + $0x1a0] sm:$0xf]
  %v216 = vld [vmem:[%s6 + $0x1a4] sm:$0xff]
  %v217 = vld [vmem:[%s6 + $0x1ac] sm:$0xf]
  %v218 = vld [vmem:[%s6 + $0x1b0] sm:$0xff]
  %v219 = vld [vmem:[%s6 + $0x1b8] sm:$0xf]
  %v220 = vld [vmem:[%s6 + $0x1bc] sm:$0xff]
  %v221 = vld [vmem:[%s6 + $0x1c4] sm:$0xf]
  %v222 = vld [vmem:[%s6 + $0x1c8] sm:$0xff]
  %v223 = vld [vmem:[%s6 + $0x1d0] sm:$0xf]
  %v224 = vld [vmem:[%s6 + $0x1d4] sm:$0xff]
  %v225 = vld [vmem:[%s6 + $0x1dc] sm:$0xf]
  %v226 = vld [vmem:[%s6 + $0x1e0] sm:$0xff]
  %v227 = vld [vmem:[%s6 + $0x1e8] sm:$0xf]
  %v228 = vld [vmem:[%s6 + $0x1ec] sm:$0xff]
  %v229 = vld [vmem:[%s6 + $0x1f4] sm:$0xf]
  %v230 = vld [vmem:[%s6 + $0x1f8] sm:$0xff]
  %v231 = vld [vmem:[%s6 + $0x200] sm:$0xf]
  %v232 = vld [vmem:[%s6 + $0x204] sm:$0xff]
  %v233 = vld [vmem:[%s6 + $0x20c] sm:$0xf]
  %v234 = vld [vmem:[%s6 + $0x210] sm:$0xff]
  %v235 = vld [vmem:[%s6 + $0x218] sm:$0xf]
  %v236 = vld [vmem:[%s6 + $0x21c] sm:$0xff]
  %v237 = vld [vmem:[%s6 + $0x224] sm:$0xf]
  %v238 = vld [vmem:[%s6 + $0x228] sm:$0xff]
  %v239 = vld [vmem:[%s6 + $0x230] sm:$0xf]
  %v240 = vld [vmem:[%s6 + $0x234] sm:$0xff]
  %v241 = vld [vmem:[%s6 + $0x23c] sm:$0xf]
  %v242 = vld [vmem:[%s6 + $0x240] sm:$0xff]
  %v243 = vld [vmem:[%s6 + $0x248] sm:$0xf]
  %v244 = vld [vmem:[%s6 + $0x24c] sm:$0xff]
  %v245 = vld [vmem:[%s6 + $0x254] sm:$0xf]
  %v246 = vld [vmem:[%s6 + $0x258] sm:$0xff]
  %v247 = vld [vmem:[%s6 + $0x260] sm:$0xf]
  %v248 = vld [vmem:[%s6 + $0x264] sm:$0xff]
  %v249 = vld [vmem:[%s6 + $0x26c] sm:$0xf]
  %v250 = vld [vmem:[%s6 + $0x270] sm:$0xff]
  %v251 = vld [vmem:[%s6 + $0x278] sm:$0xf]
  %v252 = vld [vmem:[%s6 + $0x27c] sm:$0xff]
  %v253 = vld [vmem:[%s6 + $0x284] sm:$0xf]
  %v254 = vld [vmem:[%s6 + $0x288] sm:$0xff]
  %v255 = vld [vmem:[%s6 + $0x290] sm:$0xf]
  %v256 = vld [vmem:[%s6 + $0x294] sm:$0xff]
  %v257 = vld [vmem:[%s6 + $0x29c] sm:$0xf]
  %v258 = vld [vmem:[%s6 + $0x2a0] sm:$0xff]
  %v259 = vld [vmem:[%s6 + $0x2a8] sm:$0xf]
  %v260 = vld [vmem:[%s6 + $0x2ac] sm:$0xff]
  %v261 = vld [vmem:[%s6 + $0x2b4] sm:$0xf]
  %v262 = vld [vmem:[%s6 + $0x2b8] sm:$0xff]
  %v263 = vld [vmem:[%s6 + $0x2c0] sm:$0xf]
  %v264 = vld [vmem:[%s6 + $0x2c4] sm:$0xff]
  %v265 = vld [vmem:[%s6 + $0x2cc] sm:$0xf]
  %v266 = vld [vmem:[%s6 + $0x2d0] sm:$0xff]
  %v267 = vld [vmem:[%s6 + $0x2d8] sm:$0xf]
  %v268 = vld [vmem:[%s6 + $0x2dc] sm:$0xff]
  %v269 = vld [vmem:[%s6 + $0x2e4] sm:$0xf]
  %v270 = vld [vmem:[%s6 + $0x2e8] sm:$0xff]
  %v271 = vld [vmem:[%s6 + $0x2f0] sm:$0xf]
  %v272 = vld [vmem:[%s6 + $0x2f4] sm:$0xff]
  %v273 = vld [vmem:[%s6 + $0x2fc] sm:$0xf]
  %v274 = vld [vmem:[%s6 + $0x300] sm:$0xff]
  %v275 = vld [vmem:[%s6 + $0x308] sm:$0xf]
  %v276 = vld [vmem:[%s6 + $0x30c] sm:$0xff]
  %v277 = vld [vmem:[%s6 + $0x314] sm:$0xf]
  %v278 = vld [vmem:[%s6 + $0x318] sm:$0xff]
  %v279 = vld [vmem:[%s6 + $0x320] sm:$0xf]
  %v280 = vld [vmem:[%s6 + $0x324] sm:$0xff]
  %v281 = vld [vmem:[%s6 + $0x32c] sm:$0xf]
  %v282 = vld [vmem:[%s6 + $0x330] sm:$0xff]
  %v283 = vld [vmem:[%s6 + $0x338] sm:$0xf]
  %v284 = vld [vmem:[%s6 + $0x33c] sm:$0xff]
  %v285 = vld [vmem:[%s6 + $0x344] sm:$0xf]
  %v286 = vld [vmem:[%s6 + $0x348] sm:$0xff]
  %v287 = vld [vmem:[%s6 + $0x350] sm:$0xf]
  %v288 = vld [vmem:[%s6 + $0x354] sm:$0xff]
  %v289 = vld [vmem:[%s6 + $0x35c] sm:$0xf]
  %v290 = vld [vmem:[%s7] sm:$0x7]
  %v292 = vperm.slane %v290, 0
  %v293 = vperm.slane %v290, 1
  %v294 = vperm.slane %v290, 2
  %v442 = vunpack.c.l.b16 %v146
  %v443 = vunpack.c.h.b16 %v146
  %v444 = vunpack.c.l.b16 %v147
  %v445 = vunpack.c.l.b16 %v148
  %v446 = vunpack.c.h.b16 %v148
  %v447 = vunpack.c.l.b16 %v149
  %v448 = vunpack.c.l.b16 %v150
  %v449 = vunpack.c.h.b16 %v150
  %v450 = vunpack.c.l.b16 %v151
  %v451 = vunpack.c.l.b16 %v152
  %v452 = vunpack.c.h.b16 %v152
  %v453 = vunpack.c.l.b16 %v153
  %v454 = vunpack.c.l.b16 %v154
  %v455 = vunpack.c.h.b16 %v154
  %v456 = vunpack.c.l.b16 %v155
  %v457 = vunpack.c.l.b16 %v156
  %v458 = vunpack.c.h.b16 %v156
  %v459 = vunpack.c.l.b16 %v157
  %v460 = vunpack.c.l.b16 %v158
  %v461 = vunpack.c.h.b16 %v158
  %v462 = vunpack.c.l.b16 %v159
  %v463 = vunpack.c.l.b16 %v160
  %v464 = vunpack.c.h.b16 %v160
  %v465 = vunpack.c.l.b16 %v161
  %v466 = vunpack.c.l.b16 %v162
  %v467 = vunpack.c.h.b16 %v162
  %v468 = vunpack.c.l.b16 %v163
  %v469 = vunpack.c.l.b16 %v164
  %v470 = vunpack.c.h.b16 %v164
  %v471 = vunpack.c.l.b16 %v165
  %v472 = vunpack.c.l.b16 %v166
  %v473 = vunpack.c.h.b16 %v166
  %v474 = vunpack.c.l.b16 %v167
  %v475 = vunpack.c.l.b16 %v168
  %v476 = vunpack.c.h.b16 %v168
  %v477 = vunpack.c.l.b16 %v169
  %v478 = vunpack.c.l.b16 %v170
  %v479 = vunpack.c.h.b16 %v170
  %v480 = vunpack.c.l.b16 %v171
  %v481 = vunpack.c.l.b16 %v172
  %v482 = vunpack.c.h.b16 %v172
  %v483 = vunpack.c.l.b16 %v173
  %v484 = vunpack.c.l.b16 %v174
  %v485 = vunpack.c.h.b16 %v174
  %v486 = vunpack.c.l.b16 %v175
  %v487 = vunpack.c.l.b16 %v176
  %v488 = vunpack.c.h.b16 %v176
  %v489 = vunpack.c.l.b16 %v177
  %v490 = vunpack.c.l.b16 %v178
  %v491 = vunpack.c.h.b16 %v178
  %v492 = vunpack.c.l.b16 %v179
  %v493 = vunpack.c.l.b16 %v180
  %v494 = vunpack.c.h.b16 %v180
  %v495 = vunpack.c.l.b16 %v181
  %v496 = vunpack.c.l.b16 %v182
  %v497 = vunpack.c.h.b16 %v182
  %v498 = vunpack.c.l.b16 %v183
  %v499 = vunpack.c.l.b16 %v184
  %v500 = vunpack.c.h.b16 %v184
  %v501 = vunpack.c.l.b16 %v185
  %v502 = vunpack.c.l.b16 %v186
  %v503 = vunpack.c.h.b16 %v186
  %v504 = vunpack.c.l.b16 %v187
  %v505 = vunpack.c.l.b16 %v188
  %v506 = vunpack.c.h.b16 %v188
  %v507 = vunpack.c.l.b16 %v189
  %v508 = vunpack.c.l.b16 %v190
  %v509 = vunpack.c.h.b16 %v190
  %v510 = vunpack.c.l.b16 %v191
  %v511 = vunpack.c.l.b16 %v192
  %v512 = vunpack.c.h.b16 %v192
  %v513 = vunpack.c.l.b16 %v193
  %v514 = vunpack.c.l.b16 %v194
  %v515 = vunpack.c.h.b16 %v194
  %v516 = vunpack.c.l.b16 %v195
  %v517 = vunpack.c.l.b16 %v196
  %v518 = vunpack.c.h.b16 %v196
  %v519 = vunpack.c.l.b16 %v197
  %v520 = vunpack.c.l.b16 %v198
  %v521 = vunpack.c.h.b16 %v198
  %v522 = vunpack.c.l.b16 %v199
  %v523 = vunpack.c.l.b16 %v200
  %v524 = vunpack.c.h.b16 %v200
  %v525 = vunpack.c.l.b16 %v201
  %v526 = vunpack.c.l.b16 %v202
  %v527 = vunpack.c.h.b16 %v202
  %v528 = vunpack.c.l.b16 %v203
  %v529 = vunpack.c.l.b16 %v204
  %v530 = vunpack.c.h.b16 %v204
  %v531 = vunpack.c.l.b16 %v205
  %v532 = vunpack.c.l.b16 %v206
  %v533 = vunpack.c.h.b16 %v206
  %v534 = vunpack.c.l.b16 %v207
  %v535 = vunpack.c.l.b16 %v208
  %v536 = vunpack.c.h.b16 %v208
  %v537 = vunpack.c.l.b16 %v209
  %v538 = vunpack.c.l.b16 %v210
  %v539 = vunpack.c.h.b16 %v210
  %v540 = vunpack.c.l.b16 %v211
  %v541 = vunpack.c.l.b16 %v212
  %v542 = vunpack.c.h.b16 %v212
  %v543 = vunpack.c.l.b16 %v213
  %v544 = vunpack.c.l.b16 %v214
  %v545 = vunpack.c.h.b16 %v214
  %v546 = vunpack.c.l.b16 %v215
  %v547 = vunpack.c.l.b16 %v216
  %v548 = vunpack.c.h.b16 %v216
  %v549 = vunpack.c.l.b16 %v217
  %v550 = vunpack.c.l.b16 %v218
  %v551 = vunpack.c.h.b16 %v218
  %v552 = vunpack.c.l.b16 %v219
  %v553 = vunpack.c.l.b16 %v220
  %v554 = vunpack.c.h.b16 %v220
  %v555 = vunpack.c.l.b16 %v221
  %v556 = vunpack.c.l.b16 %v222
  %v557 = vunpack.c.h.b16 %v222
  %v558 = vunpack.c.l.b16 %v223
  %v559 = vunpack.c.l.b16 %v224
  %v560 = vunpack.c.h.b16 %v224
  %v561 = vunpack.c.l.b16 %v225
  %v562 = vunpack.c.l.b16 %v226
  %v563 = vunpack.c.h.b16 %v226
  %v564 = vunpack.c.l.b16 %v227
  %v565 = vunpack.c.l.b16 %v228
  %v566 = vunpack.c.h.b16 %v228
  %v567 = vunpack.c.l.b16 %v229
  %v568 = vunpack.c.l.b16 %v230
  %v569 = vunpack.c.h.b16 %v230
  %v570 = vunpack.c.l.b16 %v231
  %v571 = vunpack.c.l.b16 %v232
  %v572 = vunpack.c.h.b16 %v232
  %v573 = vunpack.c.l.b16 %v233
  %v574 = vunpack.c.l.b16 %v234
  %v575 = vunpack.c.h.b16 %v234
  %v576 = vunpack.c.l.b16 %v235
  %v577 = vunpack.c.l.b16 %v236
  %v578 = vunpack.c.h.b16 %v236
  %v579 = vunpack.c.l.b16 %v237
  %v580 = vunpack.c.l.b16 %v238
  %v581 = vunpack.c.h.b16 %v238
  %v582 = vunpack.c.l.b16 %v239
  %v583 = vunpack.c.l.b16 %v240
  %v584 = vunpack.c.h.b16 %v240
  %v585 = vunpack.c.l.b16 %v241
  %v586 = vunpack.c.l.b16 %v242
  %v587 = vunpack.c.h.b16 %v242
  %v588 = vunpack.c.l.b16 %v243
  %v589 = vunpack.c.l.b16 %v244
  %v590 = vunpack.c.h.b16 %v244
  %v591 = vunpack.c.l.b16 %v245
  %v592 = vunpack.c.l.b16 %v246
  %v593 = vunpack.c.h.b16 %v246
  %v594 = vunpack.c.l.b16 %v247
  %v595 = vunpack.c.l.b16 %v248
  %v596 = vunpack.c.h.b16 %v248
  %v597 = vunpack.c.l.b16 %v249
  %v598 = vunpack.c.l.b16 %v250
  %v599 = vunpack.c.h.b16 %v250
  %v600 = vunpack.c.l.b16 %v251
  %v601 = vunpack.c.l.b16 %v252
  %v602 = vunpack.c.h.b16 %v252
  %v603 = vunpack.c.l.b16 %v253
  %v604 = vunpack.c.l.b16 %v254
  %v605 = vunpack.c.h.b16 %v254
  %v606 = vunpack.c.l.b16 %v255
  %v607 = vunpack.c.l.b16 %v256
  %v608 = vunpack.c.h.b16 %v256
  %v609 = vunpack.c.l.b16 %v257
  %v610 = vunpack.c.l.b16 %v258
  %v611 = vunpack.c.h.b16 %v258
  %v612 = vunpack.c.l.b16 %v259
  %v613 = vunpack.c.l.b16 %v260
  %v614 = vunpack.c.h.b16 %v260
  %v615 = vunpack.c.l.b16 %v261
  %v616 = vunpack.c.l.b16 %v262
  %v617 = vunpack.c.h.b16 %v262
  %v618 = vunpack.c.l.b16 %v263
  %v619 = vunpack.c.l.b16 %v264
  %v620 = vunpack.c.h.b16 %v264
  %v621 = vunpack.c.l.b16 %v265
  %v622 = vunpack.c.l.b16 %v266
  %v623 = vunpack.c.h.b16 %v266
  %v624 = vunpack.c.l.b16 %v267
  %v625 = vunpack.c.l.b16 %v268
  %v626 = vunpack.c.h.b16 %v268
  %v627 = vunpack.c.l.b16 %v269
  %v628 = vunpack.c.l.b16 %v270
  %v629 = vunpack.c.h.b16 %v270
  %v630 = vunpack.c.l.b16 %v271
  %v631 = vunpack.c.l.b16 %v272
  %v632 = vunpack.c.h.b16 %v272
  %v633 = vunpack.c.l.b16 %v273
  %v634 = vunpack.c.l.b16 %v274
  %v635 = vunpack.c.h.b16 %v274
  %v636 = vunpack.c.l.b16 %v275
  %v637 = vunpack.c.l.b16 %v276
  %v638 = vunpack.c.h.b16 %v276
  %v639 = vunpack.c.l.b16 %v277
  %v640 = vunpack.c.l.b16 %v278
  %v641 = vunpack.c.h.b16 %v278
  %v642 = vunpack.c.l.b16 %v279
  %v643 = vunpack.c.l.b16 %v280
  %v644 = vunpack.c.h.b16 %v280
  %v645 = vunpack.c.l.b16 %v281
  %v646 = vunpack.c.l.b16 %v282
  %v647 = vunpack.c.h.b16 %v282
  %v648 = vunpack.c.l.b16 %v283
  %v649 = vunpack.c.l.b16 %v284
  %v650 = vunpack.c.h.b16 %v284
  %v651 = vunpack.c.l.b16 %v285
  %v652 = vunpack.c.l.b16 %v286
  %v653 = vunpack.c.h.b16 %v286
  %v654 = vunpack.c.l.b16 %v287
  %v655 = vunpack.c.l.b16 %v288
  %v656 = vunpack.c.h.b16 %v288
  %v657 = vunpack.c.l.b16 %v289
  %v658 = vpack.c.b16 %v445, %v442
  %v659 = vpack.c.b16 %v446, %v443
  %v660 = vpack.c.b16 %v447, %v444
  %v661 = vpack.c.b16 %v451, %v448
  %v662 = vpack.c.b16 %v452, %v449
  %v663 = vpack.c.b16 %v453, %v450
  %v664 = vpack.c.b16 %v457, %v454
  %v665 = vpack.c.b16 %v458, %v455
  %v666 = vpack.c.b16 %v459, %v456
  %v667 = vpack.c.b16 %v463, %v460
  %v668 = vpack.c.b16 %v464, %v461
  %v669 = vpack.c.b16 %v465, %v462
  %v670 = vpack.c.b16 %v469, %v466
  %v671 = vpack.c.b16 %v470, %v467
  %v672 = vpack.c.b16 %v471, %v468
  %v673 = vpack.c.b16 %v475, %v472
  %v674 = vpack.c.b16 %v476, %v473
  %v675 = vpack.c.b16 %v477, %v474
  %v676 = vpack.c.b16 %v481, %v478
  %v677 = vpack.c.b16 %v482, %v479
  %v678 = vpack.c.b16 %v483, %v480
  %v679 = vpack.c.b16 %v487, %v484
  %v680 = vpack.c.b16 %v488, %v485
  %v681 = vpack.c.b16 %v489, %v486
  %v682 = vpack.c.b16 %v493, %v490
  %v683 = vpack.c.b16 %v494, %v491
  %v684 = vpack.c.b16 %v495, %v492
  %v685 = vpack.c.b16 %v499, %v496
  %v686 = vpack.c.b16 %v500, %v497
  %v687 = vpack.c.b16 %v501, %v498
  %v688 = vpack.c.b16 %v505, %v502
  %v689 = vpack.c.b16 %v506, %v503
  %v690 = vpack.c.b16 %v507, %v504
  %v691 = vpack.c.b16 %v511, %v508
  %v692 = vpack.c.b16 %v512, %v509
  %v693 = vpack.c.b16 %v513, %v510
  %v694 = vpack.c.b16 %v517, %v514
  %v695 = vpack.c.b16 %v518, %v515
  %v696 = vpack.c.b16 %v519, %v516
  %v697 = vpack.c.b16 %v523, %v520
  %v698 = vpack.c.b16 %v524, %v521
  %v699 = vpack.c.b16 %v525, %v522
  %v700 = vpack.c.b16 %v529, %v526
  %v701 = vpack.c.b16 %v530, %v527
  %v702 = vpack.c.b16 %v531, %v528
  %v703 = vpack.c.b16 %v535, %v532
  %v704 = vpack.c.b16 %v536, %v533
  %v705 = vpack.c.b16 %v537, %v534
  %v706 = vpack.c.b16 %v541, %v538
  %v707 = vpack.c.b16 %v542, %v539
  %v708 = vpack.c.b16 %v543, %v540
  %v709 = vpack.c.b16 %v547, %v544
  %v710 = vpack.c.b16 %v548, %v545
  %v711 = vpack.c.b16 %v549, %v546
  %v712 = vpack.c.b16 %v553, %v550
  %v713 = vpack.c.b16 %v554, %v551
  %v714 = vpack.c.b16 %v555, %v552
  %v715 = vpack.c.b16 %v559, %v556
  %v716 = vpack.c.b16 %v560, %v557
  %v717 = vpack.c.b16 %v561, %v558
  %v718 = vpack.c.b16 %v565, %v562
  %v719 = vpack.c.b16 %v566, %v563
  %v720 = vpack.c.b16 %v567, %v564
  %v721 = vpack.c.b16 %v571, %v568
  %v722 = vpack.c.b16 %v572, %v569
  %v723 = vpack.c.b16 %v573, %v570
  %v724 = vpack.c.b16 %v577, %v574
  %v725 = vpack.c.b16 %v578, %v575
  %v726 = vpack.c.b16 %v579, %v576
  %v727 = vpack.c.b16 %v583, %v580
  %v728 = vpack.c.b16 %v584, %v581
  %v729 = vpack.c.b16 %v585, %v582
  %v730 = vpack.c.b16 %v589, %v586
  %v731 = vpack.c.b16 %v590, %v587
  %v732 = vpack.c.b16 %v591, %v588
  %v733 = vpack.c.b16 %v595, %v592
  %v734 = vpack.c.b16 %v596, %v593
  %v735 = vpack.c.b16 %v597, %v594
  %v736 = vpack.c.b16 %v601, %v598
  %v737 = vpack.c.b16 %v602, %v599
  %v738 = vpack.c.b16 %v603, %v600
  %v739 = vpack.c.b16 %v607, %v604
  %v740 = vpack.c.b16 %v608, %v605
  %v741 = vpack.c.b16 %v609, %v606
  %v742 = vpack.c.b16 %v613, %v610
  %v743 = vpack.c.b16 %v614, %v611
  %v744 = vpack.c.b16 %v615, %v612
  %v745 = vpack.c.b16 %v619, %v616
  %v746 = vpack.c.b16 %v620, %v617
  %v747 = vpack.c.b16 %v621, %v618
  %v748 = vpack.c.b16 %v625, %v622
  %v749 = vpack.c.b16 %v626, %v623
  %v750 = vpack.c.b16 %v627, %v624
  %v751 = vpack.c.b16 %v631, %v628
  %v752 = vpack.c.b16 %v632, %v629
  %v753 = vpack.c.b16 %v633, %v630
  %v754 = vpack.c.b16 %v637, %v634
  %v755 = vpack.c.b16 %v638, %v635
  %v756 = vpack.c.b16 %v639, %v636
  %v757 = vpack.c.b16 %v643, %v640
  %v758 = vpack.c.b16 %v644, %v641
  %v759 = vpack.c.b16 %v645, %v642
  %v760 = vpack.c.b16 %v649, %v646
  %v761 = vpack.c.b16 %v650, %v647
  %v762 = vpack.c.b16 %v651, %v648
  %v763 = vpack.c.b16 %v655, %v652
  %v764 = vpack.c.b16 %v656, %v653
  %v765 = vpack.c.b16 %v657, %v654
  %vm874 = vcmask 523264
  %v876 = vsel %vm874, %v145, 0
  %878 = vmatpush.bf16.msra.mxu0 %v679
  %879 = vmatpush.bf16.msra.mxu0 %v676
  %880 = vmatpush.bf16.msra.mxu0 %v673
  %881 = vmatpush.bf16.msra.mxu0 %v670
  %882 = vmatpush.bf16.msra.mxu0 %v667
  %883 = vmatpush.bf16.msra.mxu0 %v664
  %884 = vmatpush.bf16.msra.mxu0 %v661
  %885 = vmatpush.bf16.msra.mxu0 %v658
  %886 = vmatmul.bf16.gmra.mxu0 %v141
  %v887 = vpop.f32.mrf.mxu0
  %v888 = vadd.f32 %v292, %v887
  %v889 = vpop.f32.mrf.mxu0
  %890 = vdwg.mxu0
  %891 = vmatpush.bf16.msra.mxu0 %v703
  %892 = vmatpush.bf16.msra.mxu0 %v700
  %893 = vmatpush.bf16.msra.mxu0 %v697
  %894 = vmatpush.bf16.msra.mxu0 %v694
  %895 = vmatpush.bf16.msra.mxu0 %v691
  %896 = vmatpush.bf16.msra.mxu0 %v688
  %897 = vmatpush.bf16.msra.mxu0 %v685
  %898 = vmatpush.bf16.msra.mxu0 %v682
  %899 = vmatmul.bf16.gmra.mxu0 %v142
  %v900 = vpop.f32.mrf.mxu0
  %v901 = vadd.f32 %v888, %v900
  %v902 = vpop.f32.mrf.mxu0
  %903 = vdwg.mxu0
  %904 = vmatpush.bf16.msra.mxu0 %v727
  %905 = vmatpush.bf16.msra.mxu0 %v724
  %906 = vmatpush.bf16.msra.mxu0 %v721
  %907 = vmatpush.bf16.msra.mxu0 %v718
  %908 = vmatpush.bf16.msra.mxu0 %v715
  %909 = vmatpush.bf16.msra.mxu0 %v712
  %910 = vmatpush.bf16.msra.mxu0 %v709
  %911 = vmatpush.bf16.msra.mxu0 %v706
  %912 = vmatmul.bf16.gmra.mxu0 %v143
  %v913 = vpop.f32.mrf.mxu0
  %v914 = vadd.f32 %v901, %v913
  %v915 = vpop.f32.mrf.mxu0
  %916 = vdwg.mxu0
  %917 = vmatpush.bf16.msra.mxu0 %v751
  %918 = vmatpush.bf16.msra.mxu0 %v748
  %919 = vmatpush.bf16.msra.mxu0 %v745
  %920 = vmatpush.bf16.msra.mxu0 %v742
  %921 = vmatpush.bf16.msra.mxu0 %v739
  %922 = vmatpush.bf16.msra.mxu0 %v736
  %923 = vmatpush.bf16.msra.mxu0 %v733
  %924 = vmatpush.bf16.msra.mxu0 %v730
  %925 = vmatmul.bf16.gmra.mxu0 %v144
  %v926 = vpop.f32.mrf.mxu0
  %v927 = vadd.f32 %v914, %v926
  %v928 = vpop.f32.mrf.mxu0
  %929 = vdwg.mxu0
  %930 = vmatpush.bf16.msra.mxu0 0
  %931 = vmatpush.bf16.msra.mxu0 0
  %932 = vmatpush.bf16.msra.mxu0 0
  %933 = vmatpush.bf16.msra.mxu0 0
  %934 = vmatpush.bf16.msra.mxu0 %v763
  %935 = vmatpush.bf16.msra.mxu0 %v760
  %936 = vmatpush.bf16.msra.mxu0 %v757
  %937 = vmatpush.bf16.msra.mxu0 %v754
  %938 = vmatmul.bf16.gmra.mxu0 %v876
  %v939 = vpop.f32.mrf.mxu0
  %v940 = vadd.f32 %v927, %v939
  %v941 = vpop.f32.mrf.mxu0
  %942 = vdwg.mxu0
  %943 = vmatpush.bf16.msra.mxu0 %v680
  %944 = vmatpush.bf16.msra.mxu0 %v677
  %945 = vmatpush.bf16.msra.mxu0 %v674
  %946 = vmatpush.bf16.msra.mxu0 %v671
  %947 = vmatpush.bf16.msra.mxu0 %v668
  %948 = vmatpush.bf16.msra.mxu0 %v665
  %949 = vmatpush.bf16.msra.mxu0 %v662
  %950 = vmatpush.bf16.msra.mxu0 %v659
  %951 = vmatmul.bf16.gmra.mxu0 %v141
  %v952 = vpop.f32.mrf.mxu0
  %v953 = vadd.f32 %v293, %v952
  %v954 = vpop.f32.mrf.mxu0
  %955 = vdwg.mxu0
  %956 = vmatpush.bf16.msra.mxu0 %v704
  %957 = vmatpush.bf16.msra.mxu0 %v701
  %958 = vmatpush.bf16.msra.mxu0 %v698
  %959 = vmatpush.bf16.msra.mxu0 %v695
  %960 = vmatpush.bf16.msra.mxu0 %v692
  %961 = vmatpush.bf16.msra.mxu0 %v689
  %962 = vmatpush.bf16.msra.mxu0 %v686
  %963 = vmatpush.bf16.msra.mxu0 %v683
  %964 = vmatmul.bf16.gmra.mxu0 %v142
  %v965 = vpop.f32.mrf.mxu0
  %v966 = vadd.f32 %v953, %v965
  %v967 = vpop.f32.mrf.mxu0
  %968 = vdwg.mxu0
  %969 = vmatpush.bf16.msra.mxu0 %v728
  %970 = vmatpush.bf16.msra.mxu0 %v725
  %971 = vmatpush.bf16.msra.mxu0 %v722
  %972 = vmatpush.bf16.msra.mxu0 %v719
  %973 = vmatpush.bf16.msra.mxu0 %v716
  %974 = vmatpush.bf16.msra.mxu0 %v713
  %975 = vmatpush.bf16.msra.mxu0 %v710
  %976 = vmatpush.bf16.msra.mxu0 %v707
  %977 = vmatmul.bf16.gmra.mxu0 %v143
  %v978 = vpop.f32.mrf.mxu0
  %v979 = vadd.f32 %v966, %v978
  %v980 = vpop.f32.mrf.mxu0
  %981 = vdwg.mxu0
  %982 = vmatpush.bf16.msra.mxu0 %v752
  %983 = vmatpush.bf16.msra.mxu0 %v749
  %984 = vmatpush.bf16.msra.mxu0 %v746
  %985 = vmatpush.bf16.msra.mxu0 %v743
  %986 = vmatpush.bf16.msra.mxu0 %v740
  %987 = vmatpush.bf16.msra.mxu0 %v737
  %988 = vmatpush.bf16.msra.mxu0 %v734
  %989 = vmatpush.bf16.msra.mxu0 %v731
  %990 = vmatmul.bf16.gmra.mxu0 %v144
  %v991 = vpop.f32.mrf.mxu0
  %v992 = vadd.f32 %v979, %v991
  %v993 = vpop.f32.mrf.mxu0
  %994 = vdwg.mxu0
  %995 = vmatpush.bf16.msra.mxu0 0
  %996 = vmatpush.bf16.msra.mxu0 0
  %997 = vmatpush.bf16.msra.mxu0 0
  %998 = vmatpush.bf16.msra.mxu0 0
  %999 = vmatpush.bf16.msra.mxu0 %v764
  %1000 = vmatpush.bf16.msra.mxu0 %v761
  %1001 = vmatpush.bf16.msra.mxu0 %v758
  %1002 = vmatpush.bf16.msra.mxu0 %v755
  %1003 = vmatmul.bf16.gmra.mxu0 %v876
  %v1004 = vpop.f32.mrf.mxu0
  %v1005 = vadd.f32 %v992, %v1004
  %v1006 = vpop.f32.mrf.mxu0
  %1007 = vdwg.mxu0
  %1008 = vmatpush.bf16.msra.mxu0 %v681
  %1009 = vmatpush.bf16.msra.mxu0 %v678
  %1010 = vmatpush.bf16.msra.mxu0 %v675
  %1011 = vmatpush.bf16.msra.mxu0 %v672
  %1012 = vmatpush.bf16.msra.mxu0 %v669
  %1013 = vmatpush.bf16.msra.mxu0 %v666
  %1014 = vmatpush.bf16.msra.mxu0 %v663
  %1015 = vmatpush.bf16.msra.mxu0 %v660
  %1016 = vmatmul.bf16.gmra.mxu0 %v141
  %v1017 = vpop.f32.mrf.mxu0
  %v1018 = vadd.f32 %v294, %v1017
  %v1019 = vpop.f32.mrf.mxu0
  %1020 = vdwg.mxu0
  %1021 = vmatpush.bf16.msra.mxu0 %v705
  %1022 = vmatpush.bf16.msra.mxu0 %v702
  %1023 = vmatpush.bf16.msra.mxu0 %v699
  %1024 = vmatpush.bf16.msra.mxu0 %v696
  %1025 = vmatpush.bf16.msra.mxu0 %v693
  %1026 = vmatpush.bf16.msra.mxu0 %v690
  %1027 = vmatpush.bf16.msra.mxu0 %v687
  %1028 = vmatpush.bf16.msra.mxu0 %v684
  %1029 = vmatmul.bf16.gmra.mxu0 %v142
  %v1030 = vpop.f32.mrf.mxu0
  %v1031 = vadd.f32 %v1018, %v1030
  %v1032 = vpop.f32.mrf.mxu0
  %1033 = vdwg.mxu0
  %1034 = vmatpush.bf16.msra.mxu0 %v729
  %1035 = vmatpush.bf16.msra.mxu0 %v726
  %1036 = vmatpush.bf16.msra.mxu0 %v723
  %1037 = vmatpush.bf16.msra.mxu0 %v720
  %1038 = vmatpush.bf16.msra.mxu0 %v717
  %1039 = vmatpush.bf16.msra.mxu0 %v714
  %1040 = vmatpush.bf16.msra.mxu0 %v711
  %1041 = vmatpush.bf16.msra.mxu0 %v708
  %1042 = vmatmul.bf16.gmra.mxu0 %v143
  %v1043 = vpop.f32.mrf.mxu0
  %v1044 = vadd.f32 %v1031, %v1043
  %v1045 = vpop.f32.mrf.mxu0
  %1046 = vdwg.mxu0
  %1047 = vmatpush.bf16.msra.mxu0 %v753
  %1048 = vmatpush.bf16.msra.mxu0 %v750
  %1049 = vmatpush.bf16.msra.mxu0 %v747
  %1050 = vmatpush.bf16.msra.mxu0 %v744
  %1051 = vmatpush.bf16.msra.mxu0 %v741
  %1052 = vmatpush.bf16.msra.mxu0 %v738
  %1053 = vmatpush.bf16.msra.mxu0 %v735
  %1054 = vmatpush.bf16.msra.mxu0 %v732
  %1055 = vmatmul.bf16.gmra.mxu0 %v144
  %v1056 = vpop.f32.mrf.mxu0
  %v1057 = vadd.f32 %v1044, %v1056
  %v1058 = vpop.f32.mrf.mxu0
  %1059 = vdwg.mxu0
  %1060 = vmatpush.bf16.msra.mxu0 0
  %1061 = vmatpush.bf16.msra.mxu0 0
  %1062 = vmatpush.bf16.msra.mxu0 0
  %1063 = vmatpush.bf16.msra.mxu0 0
  %1064 = vmatpush.bf16.msra.mxu0 %v765
  %1065 = vmatpush.bf16.msra.mxu0 %v762
  %1066 = vmatpush.bf16.msra.mxu0 %v759
  %1067 = vmatpush.bf16.msra.mxu0 %v756
  %1068 = vmatmul.bf16.gmra.mxu0 %v876
  %v1069 = vpop.f32.mrf.mxu0
  %v1070 = vadd.f32 %v1057, %v1069
  %v1071 = vpop.f32.mrf.mxu0
  %1072 = vdwg.mxu0
  %v1073 = vpack.c.bf16 %v940, %v940
  %v1074 = vpack.c.bf16 %v1005, %v1005
  %v1075 = vpack.c.bf16 %v1070, %v1070
  %v1076 = vld [vmem:[%s8] sm:$0xff]
  %v1077 = vld [vmem:[%s8 + $0x8] sm:$0xf]
  %v1078 = vld [vmem:[%s8 + $0xc] sm:$0xff]
  %v1079 = vld [vmem:[%s8 + $0x14] sm:$0xf]
  %v1080 = vld [vmem:[%s8 + $0x18] sm:$0xff]
  %v1081 = vld [vmem:[%s8 + $0x20] sm:$0xf]
  %v1082 = vld [vmem:[%s8 + $0x24] sm:$0xff]
  %v1083 = vld [vmem:[%s8 + $0x2c] sm:$0xf]
  %v1084 = vld [vmem:[%s8 + $0x30] sm:$0xff]
  %v1085 = vld [vmem:[%s8 + $0x38] sm:$0xf]
  %v1086 = vld [vmem:[%s8 + $0x3c] sm:$0xff]
  %v1087 = vld [vmem:[%s8 + $0x44] sm:$0xf]
  %v1088 = vld [vmem:[%s8 + $0x48] sm:$0xff]
  %v1089 = vld [vmem:[%s8 + $0x50] sm:$0xf]
  %v1090 = vld [vmem:[%s8 + $0x54] sm:$0xff]
  %v1091 = vld [vmem:[%s8 + $0x5c] sm:$0xf]
  %v1092 = vld [vmem:[%s8 + $0x60] sm:$0xff]
  %v1093 = vld [vmem:[%s8 + $0x68] sm:$0xf]
  %v1094 = vld [vmem:[%s8 + $0x6c] sm:$0xff]
  %v1095 = vld [vmem:[%s8 + $0x74] sm:$0xf]
  %v1096 = vld [vmem:[%s8 + $0x78] sm:$0xff]
  %v1097 = vld [vmem:[%s8 + $0x80] sm:$0xf]
  %v1098 = vld [vmem:[%s8 + $0x84] sm:$0xff]
  %v1099 = vld [vmem:[%s8 + $0x8c] sm:$0xf]
  %v1100 = vld [vmem:[%s8 + $0x90] sm:$0xff]
  %v1101 = vld [vmem:[%s8 + $0x98] sm:$0xf]
  %v1102 = vld [vmem:[%s8 + $0x9c] sm:$0xff]
  %v1103 = vld [vmem:[%s8 + $0xa4] sm:$0xf]
  %v1104 = vld [vmem:[%s8 + $0xa8] sm:$0xff]
  %v1105 = vld [vmem:[%s8 + $0xb0] sm:$0xf]
  %v1106 = vld [vmem:[%s8 + $0xb4] sm:$0xff]
  %v1107 = vld [vmem:[%s8 + $0xbc] sm:$0xf]
  %v1108 = vld [vmem:[%s8 + $0xc0] sm:$0xff]
  %v1109 = vld [vmem:[%s8 + $0xc8] sm:$0xf]
  %v1110 = vld [vmem:[%s8 + $0xcc] sm:$0xff]
  %v1111 = vld [vmem:[%s8 + $0xd4] sm:$0xf]
  %v1112 = vld [vmem:[%s8 + $0xd8] sm:$0xff]
  %v1113 = vld [vmem:[%s8 + $0xe0] sm:$0xf]
  %v1114 = vld [vmem:[%s8 + $0xe4] sm:$0xff]
  %v1115 = vld [vmem:[%s8 + $0xec] sm:$0xf]
  %v1116 = vld [vmem:[%s8 + $0xf0] sm:$0xff]
  %v1117 = vld [vmem:[%s8 + $0xf8] sm:$0xf]
  %v1118 = vld [vmem:[%s8 + $0xfc] sm:$0xff]
  %v1119 = vld [vmem:[%s8 + $0x104] sm:$0xf]
  %v1120 = vld [vmem:[%s8 + $0x108] sm:$0xff]
  %v1121 = vld [vmem:[%s8 + $0x110] sm:$0xf]
  %v1122 = vld [vmem:[%s8 + $0x114] sm:$0xff]
  %v1123 = vld [vmem:[%s8 + $0x11c] sm:$0xf]
  %v1124 = vld [vmem:[%s8 + $0x120] sm:$0xff]
  %v1125 = vld [vmem:[%s8 + $0x128] sm:$0xf]
  %v1126 = vld [vmem:[%s8 + $0x12c] sm:$0xff]
  %v1127 = vld [vmem:[%s8 + $0x134] sm:$0xf]
  %v1128 = vld [vmem:[%s8 + $0x138] sm:$0xff]
  %v1129 = vld [vmem:[%s8 + $0x140] sm:$0xf]
  %v1130 = vld [vmem:[%s8 + $0x144] sm:$0xff]
  %v1131 = vld [vmem:[%s8 + $0x14c] sm:$0xf]
  %v1132 = vld [vmem:[%s8 + $0x150] sm:$0xff]
  %v1133 = vld [vmem:[%s8 + $0x158] sm:$0xf]
  %v1134 = vld [vmem:[%s8 + $0x15c] sm:$0xff]
  %v1135 = vld [vmem:[%s8 + $0x164] sm:$0xf]
  %v1136 = vld [vmem:[%s8 + $0x168] sm:$0xff]
  %v1137 = vld [vmem:[%s8 + $0x170] sm:$0xf]
  %v1138 = vld [vmem:[%s8 + $0x174] sm:$0xff]
  %v1139 = vld [vmem:[%s8 + $0x17c] sm:$0xf]
  %v1140 = vld [vmem:[%s8 + $0x180] sm:$0xff]
  %v1141 = vld [vmem:[%s8 + $0x188] sm:$0xf]
  %v1142 = vld [vmem:[%s8 + $0x18c] sm:$0xff]
  %v1143 = vld [vmem:[%s8 + $0x194] sm:$0xf]
  %v1144 = vld [vmem:[%s8 + $0x198] sm:$0xff]
  %v1145 = vld [vmem:[%s8 + $0x1a0] sm:$0xf]
  %v1146 = vld [vmem:[%s8 + $0x1a4] sm:$0xff]
  %v1147 = vld [vmem:[%s8 + $0x1ac] sm:$0xf]
  %v1148 = vld [vmem:[%s9] sm:$0x7]
  %v1150 = vperm.slane %v1148, 0
  %v1151 = vperm.slane %v1148, 1
  %v1152 = vperm.slane %v1148, 2
  %v1228 = vunpack.c.l.b16 %v1076
  %v1229 = vunpack.c.h.b16 %v1076
  %v1230 = vunpack.c.l.b16 %v1077
  %v1231 = vunpack.c.l.b16 %v1078
  %v1232 = vunpack.c.h.b16 %v1078
  %v1233 = vunpack.c.l.b16 %v1079
  %v1234 = vunpack.c.l.b16 %v1080
  %v1235 = vunpack.c.h.b16 %v1080
  %v1236 = vunpack.c.l.b16 %v1081
  %v1237 = vunpack.c.l.b16 %v1082
  %v1238 = vunpack.c.h.b16 %v1082
  %v1239 = vunpack.c.l.b16 %v1083
  %v1240 = vunpack.c.l.b16 %v1084
  %v1241 = vunpack.c.h.b16 %v1084
  %v1242 = vunpack.c.l.b16 %v1085
  %v1243 = vunpack.c.l.b16 %v1086
  %v1244 = vunpack.c.h.b16 %v1086
  %v1245 = vunpack.c.l.b16 %v1087
  %v1246 = vunpack.c.l.b16 %v1088
  %v1247 = vunpack.c.h.b16 %v1088
  %v1248 = vunpack.c.l.b16 %v1089
  %v1249 = vunpack.c.l.b16 %v1090
  %v1250 = vunpack.c.h.b16 %v1090
  %v1251 = vunpack.c.l.b16 %v1091
  %v1252 = vunpack.c.l.b16 %v1092
  %v1253 = vunpack.c.h.b16 %v1092
  %v1254 = vunpack.c.l.b16 %v1093
  %v1255 = vunpack.c.l.b16 %v1094
  %v1256 = vunpack.c.h.b16 %v1094
  %v1257 = vunpack.c.l.b16 %v1095
  %v1258 = vunpack.c.l.b16 %v1096
  %v1259 = vunpack.c.h.b16 %v1096
  %v1260 = vunpack.c.l.b16 %v1097
  %v1261 = vunpack.c.l.b16 %v1098
  %v1262 = vunpack.c.h.b16 %v1098
  %v1263 = vunpack.c.l.b16 %v1099
  %v1264 = vunpack.c.l.b16 %v1100
  %v1265 = vunpack.c.h.b16 %v1100
  %v1266 = vunpack.c.l.b16 %v1101
  %v1267 = vunpack.c.l.b16 %v1102
  %v1268 = vunpack.c.h.b16 %v1102
  %v1269 = vunpack.c.l.b16 %v1103
  %v1270 = vunpack.c.l.b16 %v1104
  %v1271 = vunpack.c.h.b16 %v1104
  %v1272 = vunpack.c.l.b16 %v1105
  %v1273 = vunpack.c.l.b16 %v1106
  %v1274 = vunpack.c.h.b16 %v1106
  %v1275 = vunpack.c.l.b16 %v1107
  %v1276 = vunpack.c.l.b16 %v1108
  %v1277 = vunpack.c.h.b16 %v1108
  %v1278 = vunpack.c.l.b16 %v1109
  %v1279 = vunpack.c.l.b16 %v1110
  %v1280 = vunpack.c.h.b16 %v1110
  %v1281 = vunpack.c.l.b16 %v1111
  %v1282 = vunpack.c.l.b16 %v1112
  %v1283 = vunpack.c.h.b16 %v1112
  %v1284 = vunpack.c.l.b16 %v1113
  %v1285 = vunpack.c.l.b16 %v1114
  %v1286 = vunpack.c.h.b16 %v1114
  %v1287 = vunpack.c.l.b16 %v1115
  %v1288 = vunpack.c.l.b16 %v1116
  %v1289 = vunpack.c.h.b16 %v1116
  %v1290 = vunpack.c.l.b16 %v1117
  %v1291 = vunpack.c.l.b16 %v1118
  %v1292 = vunpack.c.h.b16 %v1118
  %v1293 = vunpack.c.l.b16 %v1119
  %v1294 = vunpack.c.l.b16 %v1120
  %v1295 = vunpack.c.h.b16 %v1120
  %v1296 = vunpack.c.l.b16 %v1121
  %v1297 = vunpack.c.l.b16 %v1122
  %v1298 = vunpack.c.h.b16 %v1122
  %v1299 = vunpack.c.l.b16 %v1123
  %v1300 = vunpack.c.l.b16 %v1124
  %v1301 = vunpack.c.h.b16 %v1124
  %v1302 = vunpack.c.l.b16 %v1125
  %v1303 = vunpack.c.l.b16 %v1126
  %v1304 = vunpack.c.h.b16 %v1126
  %v1305 = vunpack.c.l.b16 %v1127
  %v1306 = vunpack.c.l.b16 %v1128
  %v1307 = vunpack.c.h.b16 %v1128
  %v1308 = vunpack.c.l.b16 %v1129
  %v1309 = vunpack.c.l.b16 %v1130
  %v1310 = vunpack.c.h.b16 %v1130
  %v1311 = vunpack.c.l.b16 %v1131
  %v1312 = vunpack.c.l.b16 %v1132
  %v1313 = vunpack.c.h.b16 %v1132
  %v1314 = vunpack.c.l.b16 %v1133
  %v1315 = vunpack.c.l.b16 %v1134
  %v1316 = vunpack.c.h.b16 %v1134
  %v1317 = vunpack.c.l.b16 %v1135
  %v1318 = vunpack.c.l.b16 %v1136
  %v1319 = vunpack.c.h.b16 %v1136
  %v1320 = vunpack.c.l.b16 %v1137
  %v1321 = vunpack.c.l.b16 %v1138
  %v1322 = vunpack.c.h.b16 %v1138
  %v1323 = vunpack.c.l.b16 %v1139
  %v1324 = vunpack.c.l.b16 %v1140
  %v1325 = vunpack.c.h.b16 %v1140
  %v1326 = vunpack.c.l.b16 %v1141
  %v1327 = vunpack.c.l.b16 %v1142
  %v1328 = vunpack.c.h.b16 %v1142
  %v1329 = vunpack.c.l.b16 %v1143
  %v1330 = vunpack.c.l.b16 %v1144
  %v1331 = vunpack.c.h.b16 %v1144
  %v1332 = vunpack.c.l.b16 %v1145
  %v1333 = vunpack.c.l.b16 %v1146
  %v1334 = vunpack.c.h.b16 %v1146
  %v1335 = vunpack.c.l.b16 %v1147
  %v1336 = vpack.c.b16 %v1231, %v1228
  %v1337 = vpack.c.b16 %v1232, %v1229
  %v1338 = vpack.c.b16 %v1233, %v1230
  %v1339 = vpack.c.b16 %v1237, %v1234
  %v1340 = vpack.c.b16 %v1238, %v1235
  %v1341 = vpack.c.b16 %v1239, %v1236
  %v1342 = vpack.c.b16 %v1243, %v1240
  %v1343 = vpack.c.b16 %v1244, %v1241
  %v1344 = vpack.c.b16 %v1245, %v1242
  %v1345 = vpack.c.b16 %v1249, %v1246
  %v1346 = vpack.c.b16 %v1250, %v1247
  %v1347 = vpack.c.b16 %v1251, %v1248
  %v1348 = vpack.c.b16 %v1255, %v1252
  %v1349 = vpack.c.b16 %v1256, %v1253
  %v1350 = vpack.c.b16 %v1257, %v1254
  %v1351 = vpack.c.b16 %v1261, %v1258
  %v1352 = vpack.c.b16 %v1262, %v1259
  %v1353 = vpack.c.b16 %v1263, %v1260
  %v1354 = vpack.c.b16 %v1267, %v1264
  %v1355 = vpack.c.b16 %v1268, %v1265
  %v1356 = vpack.c.b16 %v1269, %v1266
  %v1357 = vpack.c.b16 %v1273, %v1270
  %v1358 = vpack.c.b16 %v1274, %v1271
  %v1359 = vpack.c.b16 %v1275, %v1272
  %v1360 = vpack.c.b16 %v1279, %v1276
  %v1361 = vpack.c.b16 %v1280, %v1277
  %v1362 = vpack.c.b16 %v1281, %v1278
  %v1363 = vpack.c.b16 %v1285, %v1282
  %v1364 = vpack.c.b16 %v1286, %v1283
  %v1365 = vpack.c.b16 %v1287, %v1284
  %v1366 = vpack.c.b16 %v1291, %v1288
  %v1367 = vpack.c.b16 %v1292, %v1289
  %v1368 = vpack.c.b16 %v1293, %v1290
  %v1369 = vpack.c.b16 %v1297, %v1294
  %v1370 = vpack.c.b16 %v1298, %v1295
  %v1371 = vpack.c.b16 %v1299, %v1296
  %v1372 = vpack.c.b16 %v1303, %v1300
  %v1373 = vpack.c.b16 %v1304, %v1301
  %v1374 = vpack.c.b16 %v1305, %v1302
  %v1375 = vpack.c.b16 %v1309, %v1306
  %v1376 = vpack.c.b16 %v1310, %v1307
  %v1377 = vpack.c.b16 %v1311, %v1308
  %v1378 = vpack.c.b16 %v1315, %v1312
  %v1379 = vpack.c.b16 %v1316, %v1313
  %v1380 = vpack.c.b16 %v1317, %v1314
  %v1381 = vpack.c.b16 %v1321, %v1318
  %v1382 = vpack.c.b16 %v1322, %v1319
  %v1383 = vpack.c.b16 %v1323, %v1320
  %v1384 = vpack.c.b16 %v1327, %v1324
  %v1385 = vpack.c.b16 %v1328, %v1325
  %v1386 = vpack.c.b16 %v1329, %v1326
  %v1387 = vpack.c.b16 %v1333, %v1330
  %v1388 = vpack.c.b16 %v1334, %v1331
  %v1389 = vpack.c.b16 %v1335, %v1332
  %v1445 = vsel %vm47, %v1075, 0
  %1447 = vmatpush.bf16.msra.mxu0 %v1357
  %1448 = vmatpush.bf16.msra.mxu0 %v1354
  %1449 = vmatpush.bf16.msra.mxu0 %v1351
  %1450 = vmatpush.bf16.msra.mxu0 %v1348
  %1451 = vmatpush.bf16.msra.mxu0 %v1345
  %1452 = vmatpush.bf16.msra.mxu0 %v1342
  %1453 = vmatpush.bf16.msra.mxu0 %v1339
  %1454 = vmatpush.bf16.msra.mxu0 %v1336
  %1455 = vmatmul.bf16.gmra.mxu0 %v1073
  %v1456 = vpop.f32.mrf.mxu0
  %v1457 = vadd.f32 %v1150, %v1456
  %v1458 = vpop.f32.mrf.mxu0
  %1459 = vdwg.mxu0
  %1460 = vmatpush.bf16.msra.mxu0 %v1381
  %1461 = vmatpush.bf16.msra.mxu0 %v1378
  %1462 = vmatpush.bf16.msra.mxu0 %v1375
  %1463 = vmatpush.bf16.msra.mxu0 %v1372
  %1464 = vmatpush.bf16.msra.mxu0 %v1369
  %1465 = vmatpush.bf16.msra.mxu0 %v1366
  %1466 = vmatpush.bf16.msra.mxu0 %v1363
  %1467 = vmatpush.bf16.msra.mxu0 %v1360
  %1468 = vmatmul.bf16.gmra.mxu0 %v1074
  %v1469 = vpop.f32.mrf.mxu0
  %v1470 = vadd.f32 %v1457, %v1469
  %v1471 = vpop.f32.mrf.mxu0
  %1472 = vdwg.mxu0
  %1473 = vmatpush.bf16.msra.mxu0 0
  %1474 = vmatpush.bf16.msra.mxu0 0
  %1475 = vmatpush.bf16.msra.mxu0 0
  %1476 = vmatpush.bf16.msra.mxu0 0
  %1477 = vmatpush.bf16.msra.mxu0 0
  %1478 = vmatpush.bf16.msra.mxu0 0
  %1479 = vmatpush.bf16.msra.mxu0 %v1387
  %1480 = vmatpush.bf16.msra.mxu0 %v1384
  %1481 = vmatmul.bf16.gmra.mxu0 %v1445
  %v1482 = vpop.f32.mrf.mxu0
  %v1483 = vadd.f32 %v1470, %v1482
  %v1484 = vpop.f32.mrf.mxu0
  %1485 = vdwg.mxu0
  %1486 = vmatpush.bf16.msra.mxu0 %v1358
  %1487 = vmatpush.bf16.msra.mxu0 %v1355
  %1488 = vmatpush.bf16.msra.mxu0 %v1352
  %1489 = vmatpush.bf16.msra.mxu0 %v1349
  %1490 = vmatpush.bf16.msra.mxu0 %v1346
  %1491 = vmatpush.bf16.msra.mxu0 %v1343
  %1492 = vmatpush.bf16.msra.mxu0 %v1340
  %1493 = vmatpush.bf16.msra.mxu0 %v1337
  %1494 = vmatmul.bf16.gmra.mxu0 %v1073
  %v1495 = vpop.f32.mrf.mxu0
  %v1496 = vadd.f32 %v1151, %v1495
  %v1497 = vpop.f32.mrf.mxu0
  %1498 = vdwg.mxu0
  %1499 = vmatpush.bf16.msra.mxu0 %v1382
  %1500 = vmatpush.bf16.msra.mxu0 %v1379
  %1501 = vmatpush.bf16.msra.mxu0 %v1376
  %1502 = vmatpush.bf16.msra.mxu0 %v1373
  %1503 = vmatpush.bf16.msra.mxu0 %v1370
  %1504 = vmatpush.bf16.msra.mxu0 %v1367
  %1505 = vmatpush.bf16.msra.mxu0 %v1364
  %1506 = vmatpush.bf16.msra.mxu0 %v1361
  %1507 = vmatmul.bf16.gmra.mxu0 %v1074
  %v1508 = vpop.f32.mrf.mxu0
  %v1509 = vadd.f32 %v1496, %v1508
  %v1510 = vpop.f32.mrf.mxu0
  %1511 = vdwg.mxu0
  %1512 = vmatpush.bf16.msra.mxu0 0
  %1513 = vmatpush.bf16.msra.mxu0 0
  %1514 = vmatpush.bf16.msra.mxu0 0
  %1515 = vmatpush.bf16.msra.mxu0 0
  %1516 = vmatpush.bf16.msra.mxu0 0
  %1517 = vmatpush.bf16.msra.mxu0 0
  %1518 = vmatpush.bf16.msra.mxu0 %v1388
  %1519 = vmatpush.bf16.msra.mxu0 %v1385
  %1520 = vmatmul.bf16.gmra.mxu0 %v1445
  %v1521 = vpop.f32.mrf.mxu0
  %v1522 = vadd.f32 %v1509, %v1521
  %v1523 = vpop.f32.mrf.mxu0
  %1524 = vdwg.mxu0
  %1525 = vmatpush.bf16.msra.mxu0 %v1359
  %1526 = vmatpush.bf16.msra.mxu0 %v1356
  %1527 = vmatpush.bf16.msra.mxu0 %v1353
  %1528 = vmatpush.bf16.msra.mxu0 %v1350
  %1529 = vmatpush.bf16.msra.mxu0 %v1347
  %1530 = vmatpush.bf16.msra.mxu0 %v1344
  %1531 = vmatpush.bf16.msra.mxu0 %v1341
  %1532 = vmatpush.bf16.msra.mxu0 %v1338
  %1533 = vmatmul.bf16.gmra.mxu0 %v1073
  %v1534 = vpop.f32.mrf.mxu0
  %v1535 = vadd.f32 %v1152, %v1534
  %v1536 = vpop.f32.mrf.mxu0
  %1537 = vdwg.mxu0
  %1538 = vmatpush.bf16.msra.mxu0 %v1383
  %1539 = vmatpush.bf16.msra.mxu0 %v1380
  %1540 = vmatpush.bf16.msra.mxu0 %v1377
  %1541 = vmatpush.bf16.msra.mxu0 %v1374
  %1542 = vmatpush.bf16.msra.mxu0 %v1371
  %1543 = vmatpush.bf16.msra.mxu0 %v1368
  %1544 = vmatpush.bf16.msra.mxu0 %v1365
  %1545 = vmatpush.bf16.msra.mxu0 %v1362
  %1546 = vmatmul.bf16.gmra.mxu0 %v1074
  %v1547 = vpop.f32.mrf.mxu0
  %v1548 = vadd.f32 %v1535, %v1547
  %v1549 = vpop.f32.mrf.mxu0
  %1550 = vdwg.mxu0
  %1551 = vmatpush.bf16.msra.mxu0 0
  %1552 = vmatpush.bf16.msra.mxu0 0
  %1553 = vmatpush.bf16.msra.mxu0 0
  %1554 = vmatpush.bf16.msra.mxu0 0
  %1555 = vmatpush.bf16.msra.mxu0 0
  %1556 = vmatpush.bf16.msra.mxu0 0
  %1557 = vmatpush.bf16.msra.mxu0 %v1389
  %1558 = vmatpush.bf16.msra.mxu0 %v1386
  %1559 = vmatmul.bf16.gmra.mxu0 %v1445
  %v1560 = vpop.f32.mrf.mxu0
  %v1561 = vadd.f32 %v1548, %v1560
  %v1562 = vpop.f32.mrf.mxu0
  %1563 = vdwg.mxu0
  %v1567 = vrot.slane %v1522, 6
  %v1568 = vrot.slane %v1561, 4
  %vm1569 = vcmask 1041408
  %v1570 = vsel %vm1569, %v1483, %v1567
  %vm1571 = vcmask 1043456
  %v1572 = vsel %vm1571, %v1570, %v1568
  %vm1574 = vcmask 1043458
  %vm1575 = vmor %vm1574, %vm1569
  %vm1576 = vcmask 259076
  %vm1577 = vmor %vm1576, %vm1575
  %1578 = vst.msk [vmem:[%s11] sm:$0x3f] %vm1577, %v1572
  // Predicated region
  $region42: #{transformer_forward.2} parent=0 // pred_check
    _
  $region43: #{transformer_forward.2} parent=0 // pred_check_branch
    %1580 = sbr.rel (0) target = $region45
  $region44: #{transformer_forward.2} parent=0 // pred_region
    _
  $region45: #{transformer_forward.2} parent=0 // pred_fallthru
    _
  // Predicated region
  $region46: #{transformer_forward.2} parent=0 // pred_check
    _
  $region47: #{transformer_forward.2} parent=0 // pred_check_branch
    %1582 = sbr.rel (0) target = $region49
  $region48: #{transformer_forward.2} parent=0 // pred_region
    _
  $region49: #{transformer_forward.2} parent=0 // pred_fallthru
    _
  // Predicated region
  $region50: #{transformer_forward.2} parent=0 // pred_check
    _
  $region51: #{transformer_forward.2} parent=0 // pred_check_branch
    %1584 = sbr.rel (0) target = $region53
  $region52: #{transformer_forward.2} parent=0 // pred_region
    _
  $region53: #{transformer_forward.2} parent=0 // pred_fallthru
    _
  // Predicated region
  $region54: #{transformer_forward.2} parent=0 // pred_check
    _
  $region55: #{transformer_forward.2} parent=0 // pred_check_branch
    %1586 = sbr.rel (0) target = $region57
  $region56: #{transformer_forward.2} parent=0 // pred_region
    _
  $region57: #{transformer_forward.2} parent=0 // pred_fallthru
    _

// kernel: transformer_forward.3
$region0: #{transformer_forward.3}
  #allocation0 [shape = 'u32[]', space=smem, size = 0x4, offset = 0x4, fixed_abs, tag = 'smem constant byte address 0x4 - core index']
  #allocation1 [shape = 'u32[72,128]{1,0:T(1,128)}', space=vmem, size = 0x9000, scoped, tag = 'internal scratch']
  %s0 = inlined_call_operand.vmem [shape: f32[64,9], index: 0, kind: input, shape index: {}]
  %s1 = inlined_call_operand.vmem [shape: f32[64,32], index: 1, kind: input, shape index: {}]
  %s2 = inlined_call_operand.vmem [shape: f32[9,32], index: 2, kind: input, shape index: {}]
  %s3 = inlined_call_operand.vmem [shape: f32[1,32], index: 3, kind: input, shape index: {}]
  %s4 = inlined_call_operand.vmem [shape: f32[1,32,32], index: 4, kind: input, shape index: {}]
  %s5 = inlined_call_operand.vmem [shape: f32[2,32,32], index: 5, kind: input, shape index: {}]
  %s6 = inlined_call_operand.vmem [shape: f32[2,1,32], index: 6, kind: input, shape index: {}]
  %s7 = inlined_call_operand.vmem [shape: f32[2,32,32], index: 7, kind: input, shape index: {}]
  %s8 = inlined_call_operand.vmem [shape: f32[2,1,32], index: 8, kind: input, shape index: {}]
  %s9 = inlined_call_operand.vmem [shape: f32[2,32,32], index: 9, kind: input, shape index: {}]
  %s10 = inlined_call_operand.vmem [shape: f32[2,1,32], index: 10, kind: input, shape index: {}]
  %s11 = inlined_call_operand.vmem [shape: f32[2,16,32], index: 11, kind: input, shape index: {}]
  %s12 = inlined_call_operand.vmem [shape: f32[2,16,32], index: 12, kind: input, shape index: {}]
  %s13 = inlined_call_operand.vmem [shape: f32[2,32,32], index: 13, kind: input, shape index: {}]
  %s14 = inlined_call_operand.vmem [shape: f32[2,1,32], index: 14, kind: input, shape index: {}]
  %s15 = inlined_call_operand.vmem [shape: f32[2,32,64], index: 15, kind: input, shape index: {}]
  %s16 = inlined_call_operand.vmem [shape: f32[2,1,64], index: 16, kind: input, shape index: {}]
  %s17 = inlined_call_operand.vmem [shape: f32[2,64,32], index: 17, kind: input, shape index: {}]
  %s18 = inlined_call_operand.vmem [shape: f32[2,1,32], index: 18, kind: input, shape index: {}]
  %s19 = inlined_call_operand.vmem [shape: f32[2,32,192], index: 19, kind: input, shape index: {}]
  %s20 = inlined_call_operand.vmem [shape: f32[2,1,192], index: 20, kind: input, shape index: {}]
  %s21 = inlined_call_operand.vmem [shape: f32[32,32], index: 21, kind: input, shape index: {}]
  %s22 = inlined_call_operand.vmem [shape: f32[1,32], index: 22, kind: input, shape index: {}]
  %s23 = inlined_call_operand.vmem [shape: f32[32,32], index: 23, kind: input, shape index: {}]
  %s24 = inlined_call_operand.vmem [shape: f32[1,32], index: 24, kind: input, shape index: {}]
  %s25 = inlined_call_operand.vmem [shape: f32[32,9], index: 25, kind: input, shape index: {}]
  %s26 = inlined_call_operand.vmem [shape: f32[1,9], index: 26, kind: input, shape index: {}]
  %s27 = inlined_call_operand.vmem [shape: f32[64,9], index: 27, kind: output, shape index: {}]
  %s28 = sld [smem:[#allocation0]]
  $region118: #{transformer_forward.3} parent=0
    _
  %s30 = ssub.s32 1, %s28
  %s31 = scalar_select 0, %s30, %s28
  // Predicated region
  $region2: #{transformer_forward.3} parent=0 // pred_check
    _
  $region3: #{transformer_forward.3} parent=0 // pred_check_branch
    %33 = sbr.rel (0) target = $region5
  $region4: #{transformer_forward.3} parent=0 // pred_region
    _
  $region5: #{transformer_forward.3} parent=0 // pred_fallthru
    _
  // Predicated region
  $region6: #{transformer_forward.3} parent=0 // pred_check
    _
  $region7: #{transformer_forward.3} parent=0 // pred_check_branch
    %35 = sbr.rel (0) target = $region9
  $region8: #{transformer_forward.3} parent=0 // pred_region
    _
  $region9: #{transformer_forward.3} parent=0 // pred_fallthru
    _
  // Predicated region
  $region10: #{transformer_forward.3} parent=0 // pred_check
    _
  $region11: #{transformer_forward.3} parent=0 // pred_check_branch
    %37 = sbr.rel (0) target = $region13
  $region12: #{transformer_forward.3} parent=0 // pred_region
    _
  $region13: #{transformer_forward.3} parent=0 // pred_fallthru
    _
  // Predicated region
  $region14: #{transformer_forward.3} parent=0 // pred_check
    _
  $region15: #{transformer_forward.3} parent=0 // pred_check_branch
    %39 = sbr.rel (0) target = $region17
  $region16: #{transformer_forward.3} parent=0 // pred_region
    _
  $region17: #{transformer_forward.3} parent=0 // pred_fallthru
    _
  // Predicated region
  $region18: #{transformer_forward.3} parent=0 // pred_check
    _
  $region19: #{transformer_forward.3} parent=0 // pred_check_branch
    %41 = sbr.rel (0) target = $region21
  $region20: #{transformer_forward.3} parent=0 // pred_region
    _
  $region21: #{transformer_forward.3} parent=0 // pred_fallthru
    _
  // Predicated region
  $region22: #{transformer_forward.3} parent=0 // pred_check
    _
  $region23: #{transformer_forward.3} parent=0 // pred_check_branch
    %43 = sbr.rel (0) target = $region25
  $region24: #{transformer_forward.3} parent=0 // pred_region
    _
  $region25: #{transformer_forward.3} parent=0 // pred_fallthru
    _
  // Predicated region
  $region26: #{transformer_forward.3} parent=0 // pred_check
    _
  $region27: #{transformer_forward.3} parent=0 // pred_check_branch
    %45 = sbr.rel (0) target = $region29
  $region28: #{transformer_forward.3} parent=0 // pred_region
    _
  $region29: #{transformer_forward.3} parent=0 // pred_fallthru
    _
  // Predicated region
  $region30: #{transformer_forward.3} parent=0 // pred_check
    _
  $region31: #{transformer_forward.3} parent=0 // pred_check_branch
    %47 = sbr.rel (0) target = $region33
  $region32: #{transformer_forward.3} parent=0 // pred_region
    _
  $region33: #{transformer_forward.3} parent=0 // pred_fallthru
    _
  // Predicated region
  $region34: #{transformer_forward.3} parent=0 // pred_check
    _
  $region35: #{transformer_forward.3} parent=0 // pred_check_branch
    %49 = sbr.rel (0) target = $region37
  $region36: #{transformer_forward.3} parent=0 // pred_region
    _
  $region37: #{transformer_forward.3} parent=0 // pred_fallthru
    _
  // Predicated region
  $region38: #{transformer_forward.3} parent=0 // pred_check
    _
  $region39: #{transformer_forward.3} parent=0 // pred_check_branch
    %51 = sbr.rel (0) target = $region41
  $region40: #{transformer_forward.3} parent=0 // pred_region
    _
  $region41: #{transformer_forward.3} parent=0 // pred_fallthru
    _
  // Predicated region
  $region42: #{transformer_forward.3} parent=0 // pred_check
    _
  $region43: #{transformer_forward.3} parent=0 // pred_check_branch
    %53 = sbr.rel (0) target = $region45
  $region44: #{transformer_forward.3} parent=0 // pred_region
    _
  $region45: #{transformer_forward.3} parent=0 // pred_fallthru
    _
  // Predicated region
  $region46: #{transformer_forward.3} parent=0 // pred_check
    _
  $region47: #{transformer_forward.3} parent=0 // pred_check_branch
    %55 = sbr.rel (0) target = $region49
  $region48: #{transformer_forward.3} parent=0 // pred_region
    _
  $region49: #{transformer_forward.3} parent=0 // pred_fallthru
    _
  // Predicated region
  $region50: #{transformer_forward.3} parent=0 // pred_check
    _
  $region51: #{transformer_forward.3} parent=0 // pred_check_branch
    %57 = sbr.rel (0) target = $region53
  $region52: #{transformer_forward.3} parent=0 // pred_region
    _
  $region53: #{transformer_forward.3} parent=0 // pred_fallthru
    _
  // Predicated region
  $region54: #{transformer_forward.3} parent=0 // pred_check
    _
  $region55: #{transformer_forward.3} parent=0 // pred_check_branch
    %59 = sbr.rel (0) target = $region57
  $region56: #{transformer_forward.3} parent=0 // pred_region
    _
  $region57: #{transformer_forward.3} parent=0 // pred_fallthru
    _
  // Predicated region
  $region58: #{transformer_forward.3} parent=0 // pred_check
    _
  $region59: #{transformer_forward.3} parent=0 // pred_check_branch
    %61 = sbr.rel (0) target = $region61
  $region60: #{transformer_forward.3} parent=0 // pred_region
    _
  $region61: #{transformer_forward.3} parent=0 // pred_fallthru
    _
  // Predicated region
  $region62: #{transformer_forward.3} parent=0 // pred_check
    _
  $region63: #{transformer_forward.3} parent=0 // pred_check_branch
    %63 = sbr.rel (0) target = $region65
  $region64: #{transformer_forward.3} parent=0 // pred_region
    _
  $region65: #{transformer_forward.3} parent=0 // pred_fallthru
    _
  // Predicated region
  $region66: #{transformer_forward.3} parent=0 // pred_check
    _
  $region67: #{transformer_forward.3} parent=0 // pred_check_branch
    %65 = sbr.rel (0) target = $region69
  $region68: #{transformer_forward.3} parent=0 // pred_region
    _
  $region69: #{transformer_forward.3} parent=0 // pred_fallthru
    _
  // Predicated region
  $region70: #{transformer_forward.3} parent=0 // pred_check
    _
  $region71: #{transformer_forward.3} parent=0 // pred_check_branch
    %67 = sbr.rel (0) target = $region73
  $region72: #{transformer_forward.3} parent=0 // pred_region
    _
  $region73: #{transformer_forward.3} parent=0 // pred_fallthru
    _
  // Predicated region
  $region74: #{transformer_forward.3} parent=0 // pred_check
    _
  $region75: #{transformer_forward.3} parent=0 // pred_check_branch
    %69 = sbr.rel (0) target = $region77
  $region76: #{transformer_forward.3} parent=0 // pred_region
    _
  $region77: #{transformer_forward.3} parent=0 // pred_fallthru
    _
  // Predicated region
  $region78: #{transformer_forward.3} parent=0 // pred_check
    _
  $region79: #{transformer_forward.3} parent=0 // pred_check_branch
    %71 = sbr.rel (0) target = $region81
  $region80: #{transformer_forward.3} parent=0 // pred_region
    _
  $region81: #{transformer_forward.3} parent=0 // pred_fallthru
    _
  // Predicated region
  $region82: #{transformer_forward.3} parent=0 // pred_check
    _
  $region83: #{transformer_forward.3} parent=0 // pred_check_branch
    %73 = sbr.rel (0) target = $region85
  $region84: #{transformer_forward.3} parent=0 // pred_region
    _
  $region85: #{transformer_forward.3} parent=0 // pred_fallthru
    _
  // Predicated region
  $region86: #{transformer_forward.3} parent=0 // pred_check
    _
  $region87: #{transformer_forward.3} parent=0 // pred_check_branch
    %75 = sbr.rel (0) target = $region89
  $region88: #{transformer_forward.3} parent=0 // pred_region
    _
  $region89: #{transformer_forward.3} parent=0 // pred_fallthru
    _
  // Predicated region
  $region90: #{transformer_forward.3} parent=0 // pred_check
    _
  $region91: #{transformer_forward.3} parent=0 // pred_check_branch
    %77 = sbr.rel (0) target = $region93
  $region92: #{transformer_forward.3} parent=0 // pred_region
    _
  $region93: #{transformer_forward.3} parent=0 // pred_fallthru
    _
  // Predicated region
  $region94: #{transformer_forward.3} parent=0 // pred_check
    _
  $region95: #{transformer_forward.3} parent=0 // pred_check_branch
    %79 = sbr.rel (0) target = $region97
  $region96: #{transformer_forward.3} parent=0 // pred_region
    _
  $region97: #{transformer_forward.3} parent=0 // pred_fallthru
    _
  // Predicated region
  $region98: #{transformer_forward.3} parent=0 // pred_check
    _
  $region99: #{transformer_forward.3} parent=0 // pred_check_branch
    %81 = sbr.rel (0) target = $region101
  $region100: #{transformer_forward.3} parent=0 // pred_region
    _
  $region101: #{transformer_forward.3} parent=0 // pred_fallthru
    _
  // Predicated region
  $region102: #{transformer_forward.3} parent=0 // pred_check
    _
  $region103: #{transformer_forward.3} parent=0 // pred_check_branch
    %83 = sbr.rel (0) target = $region105
  $region104: #{transformer_forward.3} parent=0 // pred_region
    _
  $region105: #{transformer_forward.3} parent=0 // pred_fallthru
    _
  // Predicated region
  $region106: #{transformer_forward.3} parent=0 // pred_check
    _
  $region107: #{transformer_forward.3} parent=0 // pred_check_branch
    %85 = sbr.rel (0) target = $region109
  $region108: #{transformer_forward.3} parent=0 // pred_region
    _
  $region109: #{transformer_forward.3} parent=0 // pred_fallthru
    _
  %v86 = vld [vmem:[%s1] sm:$0xff]
  %v87 = vld [vmem:[%s1 + $0x8] sm:$0xff]
  %v88 = vld [vmem:[%s1 + $0x10] sm:$0xff]
  %v89 = vld [vmem:[%s1 + $0x18] sm:$0xff]
  %v90 = vld [vmem:[%s1 + $0x20] sm:$0xff]
  %v91 = vld [vmem:[%s1 + $0x28] sm:$0xff]
  %v92 = vld [vmem:[%s1 + $0x30] sm:$0xff]
  %v93 = vld [vmem:[%s1 + $0x38] sm:$0xff]
  %v94 = vld [vmem:[%s0] sm:$0xff]
  %v95 = vld [vmem:[%s0 + $0x8] sm:$0xff]
  %v96 = vld [vmem:[%s0 + $0x10] sm:$0xff]
  %v97 = vld [vmem:[%s0 + $0x18] sm:$0xff]
  %v98 = vld [vmem:[%s0 + $0x20] sm:$0xff]
  %v99 = vld [vmem:[%s0 + $0x28] sm:$0xff]
  %v100 = vld [vmem:[%s0 + $0x30] sm:$0xff]
  %v101 = vld [vmem:[%s0 + $0x38] sm:$0xff]
  %v102 = vld [vmem:[%s2] sm:$0xff]
  %v103 = vld [vmem:[%s2 + $0x8] sm:$0x1]
  %v104 = vld [vmem:[%s3] sm:$0x1]
  %v106 = vperm.slane %v104, 0
  %vm108 = vcmask 72704
  %v110 = vsel %vm108, %v94, 0
  %v113 = vsel %vm108, %v95, 0
  %v116 = vsel %vm108, %v96, 0
  %v119 = vsel %vm108, %v97, 0
  %v122 = vsel %vm108, %v98, 0
  %v125 = vsel %vm108, %v99, 0
  %v128 = vsel %vm108, %v100, 0
  %v131 = vsel %vm108, %v101, 0
  %vm133 = vcmask 1040384
  %v135 = vsel %vm133, %v103, 0
  %137 = vmatpush.msra.mxu0 0.0
  %138 = vmatpush.msra.mxu0 0.0
  %139 = vmatpush.msra.mxu0 0.0
  %140 = vmatpush.msra.mxu0 0.0
  %141 = vmatpush.msra.mxu0 0.0
  %142 = vmatpush.msra.mxu0 0.0
  %143 = vmatpush.msra.mxu0 0.0
  %144 = vmatpush.msra.mxu0 0.0
  %145 = vmatpush.msra.mxu0 0.0
  %146 = vmatpush.msra.mxu0 0.0
  %147 = vmatpush.msra.mxu0 0.0
  %148 = vmatpush.msra.mxu0 0.0
  %149 = vmatpush.msra.mxu0 0.0
  %150 = vmatpush.msra.mxu0 0.0
  %151 = vmatpush.msra.mxu0 %v135
  %152 = vmatpush.msra.mxu0 %v102
  %153 = vmatmul.f32.gmra.mxu0 %v110
  %v154 = vpop.f32.mrf.mxu0
  %v155 = vadd.f32 %v106, %v154
  %156 = vmatmul.f32.gmra.mxu0 %v113
  %v157 = vpop.f32.mrf.mxu0
  %v158 = vadd.f32 %v106, %v157
  %159 = vmatmul.f32.gmra.mxu0 %v116
  %v160 = vpop.f32.mrf.mxu0
  %v161 = vadd.f32 %v106, %v160
  %162 = vmatmul.f32.gmra.mxu0 %v119
  %v163 = vpop.f32.mrf.mxu0
  %v164 = vadd.f32 %v106, %v163
  %165 = vmatmul.f32.gmra.mxu0 %v122
  %v166 = vpop.f32.mrf.mxu0
  %v167 = vadd.f32 %v106, %v166
  %168 = vmatmul.f32.gmra.mxu0 %v125
  %v169 = vpop.f32.mrf.mxu0
  %v170 = vadd.f32 %v106, %v169
  %171 = vmatmul.f32.gmra.mxu0 %v128
  %v172 = vpop.f32.mrf.mxu0
  %v173 = vadd.f32 %v106, %v172
  %174 = vmatmul.f32.gmra.mxu0 %v131
  %v175 = vpop.f32.mrf.mxu0
  %v176 = vadd.f32 %v106, %v175
  %177 = vdwg.mxu0
  %v178 = vld [vmem:[%s4] sm:$0xff]
  %v179 = vld [vmem:[%s4 + $0x8] sm:$0xff]
  %v180 = vld [vmem:[%s4 + $0x10] sm:$0xff]
  %v181 = vld [vmem:[%s4 + $0x18] sm:$0xff]
  %v182 = vadd.f32 %v155, %v178
  %v183 = vadd.f32 %v158, %v179
  %v184 = vadd.f32 %v161, %v180
  %v185 = vadd.f32 %v164, %v181
  %v186 = vadd.f32 %v167, %v178
  %v187 = vadd.f32 %v170, %v179
  %v188 = vadd.f32 %v173, %v180
  %v189 = vadd.f32 %v176, %v181
  %v190 = vld [vmem:[%s19] sm:$0xff]
  %v191 = vld [vmem:[%s19 + $0x8] sm:$0xff]
  %v192 = vld [vmem:[%s19 + $0x10] sm:$0xff]
  %v193 = vld [vmem:[%s19 + $0x18] sm:$0xff]
  %v194 = vld [vmem:[%s19 + $0x20] sm:$0xff]
  %v195 = vld [vmem:[%s19 + $0x28] sm:$0xff]
  %v196 = vld [vmem:[%s19 + $0x30] sm:$0xff]
  %v197 = vld [vmem:[%s19 + $0x38] sm:$0xff]
  %v198 = vld [vmem:[%s20] sm:$0x3]
  %v200 = vperm.slane %v198, 0
  %v201 = vperm.slane %v198, 1
  %vm204 = vcmask 261120
  %v206 = vsel %vm204, %v86, 0
  %v209 = vsel %vm204, %v87, 0
  %v212 = vsel %vm204, %v88, 0
  %v215 = vsel %vm204, %v89, 0
  %v218 = vsel %vm204, %v90, 0
  %v221 = vsel %vm204, %v91, 0
  %v224 = vsel %vm204, %v92, 0
  %v227 = vsel %vm204, %v93, 0
  %229 = vmatpush.msra.mxu0 0.0
  %230 = vmatpush.msra.mxu0 0.0
  %231 = vmatpush.msra.mxu0 0.0
  %232 = vmatpush.msra.mxu0 0.0
  %233 = vmatpush.msra.mxu0 0.0
  %234 = vmatpush.msra.mxu0 0.0
  %235 = vmatpush.msra.mxu0 0.0
  %236 = vmatpush.msra.mxu0 0.0
  %237 = vmatpush.msra.mxu0 0.0
  %238 = vmatpush.msra.mxu0 0.0
  %239 = vmatpush.msra.mxu0 0.0
  %240 = vmatpush.msra.mxu0 0.0
  %241 = vmatpush.msra.mxu0 %v196
  %242 = vmatpush.msra.mxu0 %v194
  %243 = vmatpush.msra.mxu0 %v192
  %244 = vmatpush.msra.mxu0 %v190
  %245 = vmatmul.f32.gmra.mxu0 %v206
  %v246 = vpop.f32.mrf.mxu0
  %v247 = vadd.f32 %v200, %v246
  %248 = vmatmul.f32.gmra.mxu0 %v209
  %v249 = vpop.f32.mrf.mxu0
  %v250 = vadd.f32 %v200, %v249
  %251 = vmatmul.f32.gmra.mxu0 %v212
  %v252 = vpop.f32.mrf.mxu0
  %v253 = vadd.f32 %v200, %v252
  %254 = vmatmul.f32.gmra.mxu0 %v215
  %v255 = vpop.f32.mrf.mxu0
  %v256 = vadd.f32 %v200, %v255
  %257 = vmatmul.f32.gmra.mxu0 %v218
  %v258 = vpop.f32.mrf.mxu0
  %v259 = vadd.f32 %v200, %v258
  %260 = vmatmul.f32.gmra.mxu0 %v221
  %v261 = vpop.f32.mrf.mxu0
  %v262 = vadd.f32 %v200, %v261
  %263 = vmatmul.f32.gmra.mxu0 %v224
  %v264 = vpop.f32.mrf.mxu0
  %v265 = vadd.f32 %v200, %v264
  %266 = vmatmul.f32.gmra.mxu0 %v227
  %v267 = vpop.f32.mrf.mxu0
  %v268 = vadd.f32 %v200, %v267
  %269 = vdwg.mxu0
  %270 = vmatpush.msra.mxu0 0.0
  %271 = vmatpush.msra.mxu0 0.0
  %272 = vmatpush.msra.mxu0 0.0
  %273 = vmatpush.msra.mxu0 0.0
  %274 = vmatpush.msra.mxu0 0.0
  %275 = vmatpush.msra.mxu0 0.0
  %276 = vmatpush.msra.mxu0 0.0
  %277 = vmatpush.msra.mxu0 0.0
  %278 = vmatpush.msra.mxu0 0.0
  %279 = vmatpush.msra.mxu0 0.0
  %280 = vmatpush.msra.mxu0 0.0
  %281 = vmatpush.msra.mxu0 0.0
  %282 = vmatpush.msra.mxu0 %v197
  %283 = vmatpush.msra.mxu0 %v195
  %284 = vmatpush.msra.mxu0 %v193
  %285 = vmatpush.msra.mxu0 %v191
  %286 = vmatmul.f32.gmra.mxu0 %v206
  %v287 = vpop.f32.mrf.mxu0
  %v288 = vadd.f32 %v201, %v287
  %289 = vmatmul.f32.gmra.mxu0 %v209
  %v290 = vpop.f32.mrf.mxu0
  %v291 = vadd.f32 %v201, %v290
  %292 = vmatmul.f32.gmra.mxu0 %v212
  %v293 = vpop.f32.mrf.mxu0
  %v294 = vadd.f32 %v201, %v293
  %295 = vmatmul.f32.gmra.mxu0 %v215
  %v296 = vpop.f32.mrf.mxu0
  %v297 = vadd.f32 %v201, %v296
  %298 = vmatmul.f32.gmra.mxu0 %v218
  %v299 = vpop.f32.mrf.mxu0
  %v300 = vadd.f32 %v201, %v299
  %301 = vmatmul.f32.gmra.mxu0 %v221
  %v302 = vpop.f32.mrf.mxu0
  %v303 = vadd.f32 %v201, %v302
  %304 = vmatmul.f32.gmra.mxu0 %v224
  %v305 = vpop.f32.mrf.mxu0
  %v306 = vadd.f32 %v201, %v305
  %307 = vmatmul.f32.gmra.mxu0 %v227
  %v308 = vpop.f32.mrf.mxu0
  %v309 = vadd.f32 %v201, %v308
  %310 = vdwg.mxu0
  %v311 = vsel %vm204, %v182, 0.0
  %312 = vadd.xlane.f32.xlu0 %v311
  %v313 = vpop.xlane.xlu0 %312
  %v314 = vsel %vm204, %v183, 0.0
  %315 = vadd.xlane.f32.xlu0 %v314
  %v316 = vpop.xlane.xlu0 %315
  %v317 = vsel %vm204, %v184, 0.0
  %318 = vadd.xlane.f32.xlu0 %v317
  %v319 = vpop.xlane.xlu0 %318
  %v320 = vsel %vm204, %v185, 0.0
  %321 = vadd.xlane.f32.xlu0 %v320
  %v322 = vpop.xlane.xlu0 %321
  %v323 = vsel %vm204, %v186, 0.0
  %324 = vadd.xlane.f32.xlu0 %v323
  %v325 = vpop.xlane.xlu0 %324
  %v326 = vsel %vm204, %v187, 0.0
  %327 = vadd.xlane.f32.xlu0 %v326
  %v328 = vpop.xlane.xlu0 %327
  %v329 = vsel %vm204, %v188, 0.0
  %330 = vadd.xlane.f32.xlu0 %v329
  %v331 = vpop.xlane.xlu0 %330
  %v332 = vsel %vm204, %v189, 0.0
  %333 = vadd.xlane.f32.xlu0 %v332
  %v334 = vpop.xlane.xlu0 %333
  %v335 = vrcp.pop 32.0
  %v336 = vmul.f32 32.0, %v335
  %v337 = vsub.f32 1.0, %v336
  %v338 = vmul.f32 %v335, %v337
  %v339 = vadd.f32 %v335, %v338
  %vm340 = vweird.f32 %v335
  %v341 = vsel %vm340, %v335, %v339
  %v342 = vmul.f32 %v313, %v341
  %v343 = vmul.f32 %v316, %v341
  %v344 = vmul.f32 %v319, %v341
  %v345 = vmul.f32 %v322, %v341
  %v346 = vmul.f32 %v325, %v341
  %v347 = vmul.f32 %v328, %v341
  %v348 = vmul.f32 %v331, %v341
  %v349 = vmul.f32 %v334, %v341
  %v350 = vsub.f32 %v182, %v342
  %v351 = vsub.f32 %v183, %v343
  %v352 = vsub.f32 %v184, %v344
  %v353 = vsub.f32 %v185, %v345
  %v354 = vsub.f32 %v186, %v346
  %v355 = vsub.f32 %v187, %v347
  %v356 = vsub.f32 %v188, %v348
  %v357 = vsub.f32 %v189, %v349
  %v358 = vmul.f32 %v350, %v350
  %v359 = vmul.f32 %v351, %v351
  %v360 = vmul.f32 %v352, %v352
  %v361 = vmul.f32 %v353, %v353
  %v362 = vmul.f32 %v354, %v354
  %v363 = vmul.f32 %v355, %v355
  %v364 = vmul.f32 %v356, %v356
  %v365 = vmul.f32 %v357, %v357
  %v366 = vsel %vm204, %v358, 0.0
  %367 = vadd.xlane.f32.xlu0 %v366
  %v368 = vpop.xlane.xlu0 %367
  %v369 = vsel %vm204, %v359, 0.0
  %370 = vadd.xlane.f32.xlu0 %v369
  %v371 = vpop.xlane.xlu0 %370
  %v372 = vsel %vm204, %v360, 0.0
  %373 = vadd.xlane.f32.xlu0 %v372
  %v374 = vpop.xlane.xlu0 %373
  %v375 = vsel %vm204, %v361, 0.0
  %376 = vadd.xlane.f32.xlu0 %v375
  %v377 = vpop.xlane.xlu0 %376
  %v378 = vsel %vm204, %v362, 0.0
  %379 = vadd.xlane.f32.xlu0 %v378
  %v380 = vpop.xlane.xlu0 %379
  %v381 = vsel %vm204, %v363, 0.0
  %382 = vadd.xlane.f32.xlu0 %v381
  %v383 = vpop.xlane.xlu0 %382
  %v384 = vsel %vm204, %v364, 0.0
  %385 = vadd.xlane.f32.xlu0 %v384
  %v386 = vpop.xlane.xlu0 %385
  %v387 = vsel %vm204, %v365, 0.0
  %388 = vadd.xlane.f32.xlu0 %v387
  %v389 = vpop.xlane.xlu0 %388
  %v390 = vmul.f32 %v368, %v341
  %v391 = vmul.f32 %v371, %v341
  %v392 = vmul.f32 %v374, %v341
  %v393 = vmul.f32 %v377, %v341
  %v394 = vmul.f32 %v380, %v341
  %v395 = vmul.f32 %v383, %v341
  %v396 = vmul.f32 %v386, %v341
  %v397 = vmul.f32 %v389, %v341
  %v398 = vadd.f32 %v390, 1e-06
  %v399 = vadd.f32 %v391, 1e-06
  %v400 = vadd.f32 %v392, 1e-06
  %v401 = vadd.f32 %v393, 1e-06
  %v402 = vadd.f32 %v394, 1e-06
  %v403 = vadd.f32 %v395, 1e-06
  %v404 = vadd.f32 %v396, 1e-06
  %v405 = vadd.f32 %v397, 1e-06
  %v406 = vrsqrt.pop %v398
  %v407 = vmul.f32 %v406, %v398
  %v408 = vmul.f32 %v407, %v406
  %v409 = vmul.f32 0.5, %v408
  %v410 = vsub.f32 1.5, %v409
  %v411 = vmul.f32 %v406, %v410
  %vm412 = vweird.f32 %v398
  %vm413 = vweird.f32 %v406
  %vm414 = vmor %vm412, %vm413
  %v415 = vsel %vm414, %v406, %v411
  %v416 = vrsqrt.pop %v399
  %v417 = vmul.f32 %v416, %v399
  %v418 = vmul.f32 %v417, %v416
  %v419 = vmul.f32 0.5, %v418
  %v420 = vsub.f32 1.5, %v419
  %v421 = vmul.f32 %v416, %v420
  %vm422 = vweird.f32 %v399
  %vm423 = vweird.f32 %v416
  %vm424 = vmor %vm422, %vm423
  %v425 = vsel %vm424, %v416, %v421
  %v426 = vrsqrt.pop %v400
  %v427 = vmul.f32 %v426, %v400
  %v428 = vmul.f32 %v427, %v426
  %v429 = vmul.f32 0.5, %v428
  %v430 = vsub.f32 1.5, %v429
  %v431 = vmul.f32 %v426, %v430
  %vm432 = vweird.f32 %v400
  %vm433 = vweird.f32 %v426
  %vm434 = vmor %vm432, %vm433
  %v435 = vsel %vm434, %v426, %v431
  %v436 = vrsqrt.pop %v401
  %v437 = vmul.f32 %v436, %v401
  %v438 = vmul.f32 %v437, %v436
  %v439 = vmul.f32 0.5, %v438
  %v440 = vsub.f32 1.5, %v439
  %v441 = vmul.f32 %v436, %v440
  %vm442 = vweird.f32 %v401
  %vm443 = vweird.f32 %v436
  %vm444 = vmor %vm442, %vm443
  %v445 = vsel %vm444, %v436, %v441
  %v446 = vrsqrt.pop %v402
  %v447 = vmul.f32 %v446, %v402
  %v448 = vmul.f32 %v447, %v446
  %v449 = vmul.f32 0.5, %v448
  %v450 = vsub.f32 1.5, %v449
  %v451 = vmul.f32 %v446, %v450
  %vm452 = vweird.f32 %v402
  %vm453 = vweird.f32 %v446
  %vm454 = vmor %vm452, %vm453
  %v455 = vsel %vm454, %v446, %v451
  %v456 = vrsqrt.pop %v403
  %v457 = vmul.f32 %v456, %v403
  %v458 = vmul.f32 %v457, %v456
  %v459 = vmul.f32 0.5, %v458
  %v460 = vsub.f32 1.5, %v459
  %v461 = vmul.f32 %v456, %v460
  %vm462 = vweird.f32 %v403
  %vm463 = vweird.f32 %v456
  %vm464 = vmor %vm462, %vm463
  %v465 = vsel %vm464, %v456, %v461
  %v466 = vrsqrt.pop %v404
  %v467 = vmul.f32 %v466, %v404
  %v468 = vmul.f32 %v467, %v466
  %v469 = vmul.f32 0.5, %v468
  %v470 = vsub.f32 1.5, %v469
  %v471 = vmul.f32 %v466, %v470
  %vm472 = vweird.f32 %v404
  %vm473 = vweird.f32 %v466
  %vm474 = vmor %vm472, %vm473
  %v475 = vsel %vm474, %v466, %v471
  %v476 = vrsqrt.pop %v405
  %v477 = vmul.f32 %v476, %v405
  %v478 = vmul.f32 %v477, %v476
  %v479 = vmul.f32 0.5, %v478
  %v480 = vsub.f32 1.5, %v479
  %v481 = vmul.f32 %v476, %v480
  %vm482 = vweird.f32 %v405
  %vm483 = vweird.f32 %v476
  %vm484 = vmor %vm482, %vm483
  %v485 = vsel %vm484, %v476, %v481
  %v486 = vmul.f32 %v350, %v415
  %v487 = vmul.f32 %v351, %v425
  %v488 = vmul.f32 %v352, %v435
  %v489 = vmul.f32 %v353, %v445
  %v490 = vmul.f32 %v354, %v455
  %v491 = vmul.f32 %v355, %v465
  %v492 = vmul.f32 %v356, %v475
  %v493 = vmul.f32 %v357, %v485
  %v494 = vadd.f32 %v247, 1.0
  %v495 = vadd.f32 %v250, 1.0
  %v496 = vadd.f32 %v253, 1.0
  %v497 = vadd.f32 %v256, 1.0
  %v498 = vadd.f32 %v259, 1.0
  %v499 = vadd.f32 %v262, 1.0
  %v500 = vadd.f32 %v265, 1.0
  %v501 = vadd.f32 %v268, 1.0
  %v502 = vmul.f32 %v486, %v494
  %v503 = vmul.f32 %v487, %v495
  %v504 = vmul.f32 %v488, %v496
  %v505 = vmul.f32 %v489, %v497
  %v506 = vmul.f32 %v490, %v498
  %v507 = vmul.f32 %v491, %v499
  %v508 = vmul.f32 %v492, %v500
  %v509 = vmul.f32 %v493, %v501
  %518 = vrot.lane.b32.xlu0 %v247, 96
  %v519 = vpop.permute.xlu0 %518
  %520 = vrot.lane.b32.xlu0 %v250, 96
  %v521 = vpop.permute.xlu0 %520
  %522 = vrot.lane.b32.xlu0 %v253, 96
  %v523 = vpop.permute.xlu0 %522
  %524 = vrot.lane.b32.xlu0 %v256, 96
  %v525 = vpop.permute.xlu0 %524
  %526 = vrot.lane.b32.xlu0 %v259, 96
  %v527 = vpop.permute.xlu0 %526
  %528 = vrot.lane.b32.xlu0 %v262, 96
  %v529 = vpop.permute.xlu0 %528
  %530 = vrot.lane.b32.xlu0 %v265, 96
  %v531 = vpop.permute.xlu0 %530
  %532 = vrot.lane.b32.xlu0 %v268, 96
  %v533 = vpop.permute.xlu0 %532
  %v542 = vadd.f32 %v502, %v519
  %v543 = vadd.f32 %v503, %v521
  %v544 = vadd.f32 %v504, %v523
  %v545 = vadd.f32 %v505, %v525
  %v546 = vadd.f32 %v506, %v527
  %v547 = vadd.f32 %v507, %v529
  %v548 = vadd.f32 %v508, %v531
  %v549 = vadd.f32 %v509, %v533
  %v550 = vld [vmem:[%s5] sm:$0xff]
  %v551 = vld [vmem:[%s5 + $0x8] sm:$0xff]
  %v552 = vld [vmem:[%s5 + $0x10] sm:$0xff]
  %v553 = vld [vmem:[%s5 + $0x18] sm:$0xff]
  %v554 = vld [vmem:[%s6] sm:$0x1]
  %v556 = vperm.slane %v554, 0
  %v559 = vsel %vm204, %v542, 0
  %v562 = vsel %vm204, %v543, 0
  %v565 = vsel %vm204, %v544, 0
  %v568 = vsel %vm204, %v545, 0
  %v571 = vsel %vm204, %v546, 0
  %v574 = vsel %vm204, %v547, 0
  %v577 = vsel %vm204, %v548, 0
  %v580 = vsel %vm204, %v549, 0
  %582 = vmatpush.msra.mxu0 0.0
  %583 = vmatpush.msra.mxu0 0.0
  %584 = vmatpush.msra.mxu0 0.0
  %585 = vmatpush.msra.mxu0 0.0
  %586 = vmatpush.msra.mxu0 0.0
  %587 = vmatpush.msra.mxu0 0.0
  %588 = vmatpush.msra.mxu0 0.0
  %589 = vmatpush.msra.mxu0 0.0
  %590 = vmatpush.msra.mxu0 0.0
  %591 = vmatpush.msra.mxu0 0.0
  %592 = vmatpush.msra.mxu0 0.0
  %593 = vmatpush.msra.mxu0 0.0
  %594 = vmatpush.msra.mxu0 %v553
  %595 = vmatpush.msra.mxu0 %v552
  %596 = vmatpush.msra.mxu0 %v551
  %597 = vmatpush.msra.mxu0 %v550
  %598 = vmatmul.f32.gmra.mxu0 %v559
  %v599 = vpop.f32.mrf.mxu0
  %v600 = vadd.f32 %v556, %v599
  %601 = vmatmul.f32.gmra.mxu0 %v562
  %v602 = vpop.f32.mrf.mxu0
  %v603 = vadd.f32 %v556, %v602
  %604 = vmatmul.f32.gmra.mxu0 %v565
  %v605 = vpop.f32.mrf.mxu0
  %v606 = vadd.f32 %v556, %v605
  %607 = vmatmul.f32.gmra.mxu0 %v568
  %v608 = vpop.f32.mrf.mxu0
  %v609 = vadd.f32 %v556, %v608
  %610 = vmatmul.f32.gmra.mxu0 %v571
  %v611 = vpop.f32.mrf.mxu0
  %v612 = vadd.f32 %v556, %v611
  %613 = vmatmul.f32.gmra.mxu0 %v574
  %v614 = vpop.f32.mrf.mxu0
  %v615 = vadd.f32 %v556, %v614
  %616 = vmatmul.f32.gmra.mxu0 %v577
  %v617 = vpop.f32.mrf.mxu0
  %v618 = vadd.f32 %v556, %v617
  %619 = vmatmul.f32.gmra.mxu0 %v580
  %v620 = vpop.f32.mrf.mxu0
  %v621 = vadd.f32 %v556, %v620
  %622 = vdwg.mxu0
  %v623 = vld [vmem:[%s7] sm:$0xff]
  %v624 = vld [vmem:[%s7 + $0x8] sm:$0xff]
  %v625 = vld [vmem:[%s7 + $0x10] sm:$0xff]
  %v626 = vld [vmem:[%s7 + $0x18] sm:$0xff]
  %v627 = vld [vmem:[%s8] sm:$0x1]
  %v629 = vperm.slane %v627, 0
  %631 = vmatpush.msra.mxu0 0.0
  %632 = vmatpush.msra.mxu0 0.0
  %633 = vmatpush.msra.mxu0 0.0
  %634 = vmatpush.msra.mxu0 0.0
  %635 = vmatpush.msra.mxu0 0.0
  %636 = vmatpush.msra.mxu0 0.0
  %637 = vmatpush.msra.mxu0 0.0
  %638 = vmatpush.msra.mxu0 0.0
  %639 = vmatpush.msra.mxu0 0.0
  %640 = vmatpush.msra.mxu0 0.0
  %641 = vmatpush.msra.mxu0 0.0
  %642 = vmatpush.msra.mxu0 0.0
  %643 = vmatpush.msra.mxu0 %v626
  %644 = vmatpush.msra.mxu0 %v625
  %645 = vmatpush.msra.mxu0 %v624
  %646 = vmatpush.msra.mxu0 %v623
  %647 = vmatmul.f32.gmra.mxu0 %v559
  %v648 = vpop.f32.mrf.mxu0
  %v649 = vadd.f32 %v629, %v648
  %650 = vmatmul.f32.gmra.mxu0 %v562
  %v651 = vpop.f32.mrf.mxu0
  %v652 = vadd.f32 %v629, %v651
  %653 = vmatmul.f32.gmra.mxu0 %v565
  %v654 = vpop.f32.mrf.mxu0
  %v655 = vadd.f32 %v629, %v654
  %656 = vmatmul.f32.gmra.mxu0 %v568
  %v657 = vpop.f32.mrf.mxu0
  %v658 = vadd.f32 %v629, %v657
  %659 = vmatmul.f32.gmra.mxu0 %v571
  %v660 = vpop.f32.mrf.mxu0
  %v661 = vadd.f32 %v629, %v660
  %662 = vmatmul.f32.gmra.mxu0 %v574
  %v663 = vpop.f32.mrf.mxu0
  %v664 = vadd.f32 %v629, %v663
  %665 = vmatmul.f32.gmra.mxu0 %v577
  %v666 = vpop.f32.mrf.mxu0
  %v667 = vadd.f32 %v629, %v666
  %668 = vmatmul.f32.gmra.mxu0 %v580
  %v669 = vpop.f32.mrf.mxu0
  %v670 = vadd.f32 %v629, %v669
  %671 = vdwg.mxu0
  %v672 = vld [vmem:[%s9] sm:$0xff]
  %v673 = vld [vmem:[%s9 + $0x8] sm:$0xff]
  %v674 = vld [vmem:[%s9 + $0x10] sm:$0xff]
  %v675 = vld [vmem:[%s9 + $0x18] sm:$0xff]
  %v676 = vld [vmem:[%s10] sm:$0x1]
  %v678 = vperm.slane %v676, 0
  %680 = vmatpush.msra.mxu0 0.0
  %681 = vmatpush.msra.mxu0 0.0
  %682 = vmatpush.msra.mxu0 0.0
  %683 = vmatpush.msra.mxu0 0.0
  %684 = vmatpush.msra.mxu0 0.0
  %685 = vmatpush.msra.mxu0 0.0
  %686 = vmatpush.msra.mxu0 0.0
  %687 = vmatpush.msra.mxu0 0.0
  %688 = vmatpush.msra.mxu0 0.0
  %689 = vmatpush.msra.mxu0 0.0
  %690 = vmatpush.msra.mxu0 0.0
  %691 = vmatpush.msra.mxu0 0.0
  %692 = vmatpush.msra.mxu0 %v675
  %693 = vmatpush.msra.mxu0 %v674
  %694 = vmatpush.msra.mxu0 %v673
  %695 = vmatpush.msra.mxu0 %v672
  %696 = vmatmul.f32.gmra.mxu0 %v559
  %v697 = vpop.f32.mrf.mxu0
  %v698 = vadd.f32 %v678, %v697
  %699 = vmatmul.f32.gmra.mxu0 %v562
  %v700 = vpop.f32.mrf.mxu0
  %v701 = vadd.f32 %v678, %v700
  %702 = vmatmul.f32.gmra.mxu0 %v565
  %v703 = vpop.f32.mrf.mxu0
  %v704 = vadd.f32 %v678, %v703
  %705 = vmatmul.f32.gmra.mxu0 %v568
  %v706 = vpop.f32.mrf.mxu0
  %v707 = vadd.f32 %v678, %v706
  %708 = vmatmul.f32.gmra.mxu0 %v571
  %v709 = vpop.f32.mrf.mxu0
  %v710 = vadd.f32 %v678, %v709
  %711 = vmatmul.f32.gmra.mxu0 %v574
  %v712 = vpop.f32.mrf.mxu0
  %v713 = vadd.f32 %v678, %v712
  %714 = vmatmul.f32.gmra.mxu0 %v577
  %v715 = vpop.f32.mrf.mxu0
  %v716 = vadd.f32 %v678, %v715
  %717 = vmatmul.f32.gmra.mxu0 %v580
  %v718 = vpop.f32.mrf.mxu0
  %v719 = vadd.f32 %v678, %v718
  %720 = vdwg.mxu0
  %725 = vrot.lane.b32.xlu0 %v661, 32
  %v726 = vpop.permute.xlu0 %725
  %727 = vrot.lane.b32.xlu0 %v664, 32
  %v728 = vpop.permute.xlu0 %727
  %729 = vrot.lane.b32.xlu0 %v667, 32
  %v730 = vpop.permute.xlu0 %729
  %731 = vrot.lane.b32.xlu0 %v670, 32
  %v732 = vpop.permute.xlu0 %731
  %v737 = vsel %vm204, %v649, %v726
  %v738 = vsel %vm204, %v652, %v728
  %v739 = vsel %vm204, %v655, %v730
  %v740 = vsel %vm204, %v658, %v732
  %745 = vrot.lane.b32.xlu0 %v710, 32
  %v746 = vpop.permute.xlu0 %745
  %747 = vrot.lane.b32.xlu0 %v713, 32
  %v748 = vpop.permute.xlu0 %747
  %749 = vrot.lane.b32.xlu0 %v716, 32
  %v750 = vpop.permute.xlu0 %749
  %751 = vrot.lane.b32.xlu0 %v719, 32
  %v752 = vpop.permute.xlu0 %751
  %v757 = vsel %vm204, %v698, %v746
  %v758 = vsel %vm204, %v701, %v748
  %v759 = vsel %vm204, %v704, %v750
  %v760 = vsel %vm204, %v707, %v752
  %v761 = vld [vmem:[%s11] sm:$0xff]
  %v762 = vld [vmem:[%s11 + $0x8] sm:$0xff]
  %v764 = vsel %vm204, %v761, 0
  %v767 = vsel %vm204, %v762, 0
  %769 = vmatpush.msra.mxu0 0.0
  %770 = vmatpush.msra.mxu0 0.0
  %771 = vmatpush.msra.mxu0 0.0
  %772 = vmatpush.msra.mxu0 0.0
  %773 = vmatpush.msra.mxu0 0.0
  %774 = vmatpush.msra.mxu0 0.0
  %775 = vmatpush.msra.mxu0 0.0
  %776 = vmatpush.msra.mxu0 0.0
  %777 = vmatpush.msra.mxu0 0.0
  %778 = vmatpush.msra.mxu0 0.0
  %779 = vmatpush.msra.mxu0 0.0
  %780 = vmatpush.msra.mxu0 0.0
  %781 = vmatpush.msra.mxu0 %v740
  %782 = vmatpush.msra.mxu0 %v739
  %783 = vmatpush.msra.mxu0 %v738
  %784 = vmatpush.msra.mxu0 %v737
  %785 = vmatmul.f32.gmra.mxu0 %v764
  %v786 = vpop.f32.mrf.mxu0
  %v787 = vadd.f32 0.0, %v786
  %788 = vmatmul.f32.gmra.mxu0 %v767
  %v789 = vpop.f32.mrf.mxu0
  %v790 = vadd.f32 0.0, %v789
  %791 = vdwg.mxu0
  %v792 = vld [vmem:[%s12] sm:$0xff]
  %v793 = vld [vmem:[%s12 + $0x8] sm:$0xff]
  %v795 = vsel %vm204, %v792, 0
  %v798 = vsel %vm204, %v793, 0
  %800 = vmatpush.msra.mxu0 0.0
  %801 = vmatpush.msra.mxu0 0.0
  %802 = vmatpush.msra.mxu0 0.0
  %803 = vmatpush.msra.mxu0 0.0
  %804 = vmatpush.msra.mxu0 0.0
  %805 = vmatpush.msra.mxu0 0.0
  %806 = vmatpush.msra.mxu0 0.0
  %807 = vmatpush.msra.mxu0 0.0
  %808 = vmatpush.msra.mxu0 0.0
  %809 = vmatpush.msra.mxu0 0.0
  %810 = vmatpush.msra.mxu0 0.0
  %811 = vmatpush.msra.mxu0 0.0
  %812 = vmatpush.msra.mxu0 %v760
  %813 = vmatpush.msra.mxu0 %v759
  %814 = vmatpush.msra.mxu0 %v758
  %815 = vmatpush.msra.mxu0 %v757
  %816 = vmatmul.f32.gmra.mxu0 %v795
  %v817 = vpop.f32.mrf.mxu0
  %v818 = vadd.f32 0.0, %v817
  %819 = vmatmul.f32.gmra.mxu0 %v798
  %v820 = vpop.f32.mrf.mxu0
  %v821 = vadd.f32 0.0, %v820
  %822 = vdwg.mxu0
  %827 = vrot.lane.b32.xlu0 %v600, 120
  %v828 = vpop.permute.xlu0 %827
  %829 = vrot.lane.b32.xlu0 %v603, 120
  %v830 = vpop.permute.xlu0 %829
  %831 = vrot.lane.b32.xlu0 %v606, 120
  %v832 = vpop.permute.xlu0 %831
  %833 = vrot.lane.b32.xlu0 %v609, 120
  %v834 = vpop.permute.xlu0 %833
  %835 = vrot.lane.b32.xlu0 %v600, 112
  %v836 = vpop.permute.xlu0 %835
  %837 = vrot.lane.b32.xlu0 %v603, 112
  %v838 = vpop.permute.xlu0 %837
  %839 = vrot.lane.b32.xlu0 %v606, 112
  %v840 = vpop.permute.xlu0 %839
  %841 = vrot.lane.b32.xlu0 %v609, 112
  %v842 = vpop.permute.xlu0 %841
  %843 = vrot.lane.b32.xlu0 %v600, 104
  %v844 = vpop.permute.xlu0 %843
  %845 = vrot.lane.b32.xlu0 %v603, 104
  %v846 = vpop.permute.xlu0 %845
  %847 = vrot.lane.b32.xlu0 %v606, 104
  %v848 = vpop.permute.xlu0 %847
  %849 = vrot.lane.b32.xlu0 %v609, 104
  %v850 = vpop.permute.xlu0 %849
  %855 = vrot.lane.b32.xlu0 %v612, 120
  %v856 = vpop.permute.xlu0 %855
  %857 = vrot.lane.b32.xlu0 %v615, 120
  %v858 = vpop.permute.xlu0 %857
  %859 = vrot.lane.b32.xlu0 %v618, 120
  %v860 = vpop.permute.xlu0 %859
  %861 = vrot.lane.b32.xlu0 %v621, 120
  %v862 = vpop.permute.xlu0 %861
  %863 = vrot.lane.b32.xlu0 %v612, 112
  %v864 = vpop.permute.xlu0 %863
  %865 = vrot.lane.b32.xlu0 %v615, 112
  %v866 = vpop.permute.xlu0 %865
  %867 = vrot.lane.b32.xlu0 %v618, 112
  %v868 = vpop.permute.xlu0 %867
  %869 = vrot.lane.b32.xlu0 %v621, 112
  %v870 = vpop.permute.xlu0 %869
  %871 = vrot.lane.b32.xlu0 %v612, 104
  %v872 = vpop.permute.xlu0 %871
  %873 = vrot.lane.b32.xlu0 %v615, 104
  %v874 = vpop.permute.xlu0 %873
  %875 = vrot.lane.b32.xlu0 %v618, 104
  %v876 = vpop.permute.xlu0 %875
  %877 = vrot.lane.b32.xlu0 %v621, 104
  %v878 = vpop.permute.xlu0 %877
  %881 = vrot.lane.b32.xlu0 %v787, 120
  %v882 = vpop.permute.xlu0 %881
  %883 = vrot.lane.b32.xlu0 %v790, 120
  %v884 = vpop.permute.xlu0 %883
  %885 = vrot.lane.b32.xlu0 %v787, 112
  %v886 = vpop.permute.xlu0 %885
  %887 = vrot.lane.b32.xlu0 %v790, 112
  %v888 = vpop.permute.xlu0 %887
  %889 = vrot.lane.b32.xlu0 %v787, 104
  %v890 = vpop.permute.xlu0 %889
  %891 = vrot.lane.b32.xlu0 %v790, 104
  %v892 = vpop.permute.xlu0 %891
  %893 = vrot.lane.b32.xlu0 %v787, 96
  %v894 = vpop.permute.xlu0 %893
  %895 = vrot.lane.b32.xlu0 %v790, 96
  %v896 = vpop.permute.xlu0 %895
  %897 = vrot.lane.b32.xlu0 %v787, 88
  %v898 = vpop.permute.xlu0 %897
  %899 = vrot.lane.b32.xlu0 %v790, 88
  %v900 = vpop.permute.xlu0 %899
  %901 = vrot.lane.b32.xlu0 %v787, 80
  %v902 = vpop.permute.xlu0 %901
  %903 = vrot.lane.b32.xlu0 %v790, 80
  %v904 = vpop.permute.xlu0 %903
  %905 = vrot.lane.b32.xlu0 %v787, 72
  %v906 = vpop.permute.xlu0 %905
  %907 = vrot.lane.b32.xlu0 %v790, 72
  %v908 = vpop.permute.xlu0 %907
  %911 = vrot.lane.b32.xlu0 %v818, 120
  %v912 = vpop.permute.xlu0 %911
  %913 = vrot.lane.b32.xlu0 %v821, 120
  %v914 = vpop.permute.xlu0 %913
  %917 = vrot.lane.b32.xlu0 %v818, 112
  %v918 = vpop.permute.xlu0 %917
  %919 = vrot.lane.b32.xlu0 %v821, 112
  %v920 = vpop.permute.xlu0 %919
  %923 = vrot.lane.b32.xlu0 %v818, 104
  %v924 = vpop.permute.xlu0 %923
  %925 = vrot.lane.b32.xlu0 %v821, 104
  %v926 = vpop.permute.xlu0 %925
  %929 = vrot.lane.b32.xlu0 %v818, 96
  %v930 = vpop.permute.xlu0 %929
  %931 = vrot.lane.b32.xlu0 %v821, 96
  %v932 = vpop.permute.xlu0 %931
  %935 = vrot.lane.b32.xlu0 %v818, 88
  %v936 = vpop.permute.xlu0 %935
  %937 = vrot.lane.b32.xlu0 %v821, 88
  %v938 = vpop.permute.xlu0 %937
  %941 = vrot.lane.b32.xlu0 %v818, 80
  %v942 = vpop.permute.xlu0 %941
  %943 = vrot.lane.b32.xlu0 %v821, 80
  %v944 = vpop.permute.xlu0 %943
  %947 = vrot.lane.b32.xlu0 %v818, 72
  %v948 = vpop.permute.xlu0 %947
  %949 = vrot.lane.b32.xlu0 %v821, 72
  %v950 = vpop.permute.xlu0 %949
  %vm953 = vcmask 64512
  %v954 = vsel %vm953, %v600, 0
  %v956 = vsel %vm953, %v603, 0
  %v958 = vsel %vm953, %v606, 0
  %v960 = vsel %vm953, %v609, 0
  %v962 = vsel %vm953, %v787, 0
  %v964 = vsel %vm953, %v790, 0
  %966 = vmatpush.xpose.msra.mxu0 0.0
  %967 = vmatpush.xpose.msra.mxu0 0.0
  %968 = vmatpush.xpose.msra.mxu0 0.0
  %969 = vmatpush.xpose.msra.mxu0 0.0
  %970 = vmatpush.xpose.msra.mxu0 0.0
  %971 = vmatpush.xpose.msra.mxu0 0.0
  %972 = vmatpush.xpose.msra.mxu0 0.0
  %973 = vmatpush.xpose.msra.mxu0 0.0
  %974 = vmatpush.xpose.msra.mxu0 0.0
  %975 = vmatpush.xpose.msra.mxu0 0.0
  %976 = vmatpush.xpose.msra.mxu0 0.0
  %977 = vmatpush.xpose.msra.mxu0 0.0
  %978 = vmatpush.xpose.msra.mxu0 0.0
  %979 = vmatpush.xpose.msra.mxu0 0.0
  %980 = vmatpush.xpose.msra.mxu0 %v964
  %981 = vmatpush.xpose.msra.mxu0 %v962
  %982 = vmatmul.f32.gmra.mxu0 %v954
  %v983 = vpop.f32.mrf.mxu0
  %v984 = vadd.f32 0.0, %v983
  %985 = vmatmul.f32.gmra.mxu0 %v956
  %v986 = vpop.f32.mrf.mxu0
  %v987 = vadd.f32 0.0, %v986
  %988 = vmatmul.f32.gmra.mxu0 %v958
  %v989 = vpop.f32.mrf.mxu0
  %v990 = vadd.f32 0.0, %v989
  %991 = vmatmul.f32.gmra.mxu0 %v960
  %v992 = vpop.f32.mrf.mxu0
  %v993 = vadd.f32 0.0, %v992
  %994 = vdwg.mxu0
  %v995 = vsel %vm953, %v828, 0
  %v997 = vsel %vm953, %v830, 0
  %v999 = vsel %vm953, %v832, 0
  %v1001 = vsel %vm953, %v834, 0
  %v1003 = vsel %vm953, %v882, 0
  %v1005 = vsel %vm953, %v884, 0
  %1007 = vmatpush.xpose.msra.mxu0 0.0
  %1008 = vmatpush.xpose.msra.mxu0 0.0
  %1009 = vmatpush.xpose.msra.mxu0 0.0
  %1010 = vmatpush.xpose.msra.mxu0 0.0
  %1011 = vmatpush.xpose.msra.mxu0 0.0
  %1012 = vmatpush.xpose.msra.mxu0 0.0
  %1013 = vmatpush.xpose.msra.mxu0 0.0
  %1014 = vmatpush.xpose.msra.mxu0 0.0
  %1015 = vmatpush.xpose.msra.mxu0 0.0
  %1016 = vmatpush.xpose.msra.mxu0 0.0
  %1017 = vmatpush.xpose.msra.mxu0 0.0
  %1018 = vmatpush.xpose.msra.mxu0 0.0
  %1019 = vmatpush.xpose.msra.mxu0 0.0
  %1020 = vmatpush.xpose.msra.mxu0 0.0
  %1021 = vmatpush.xpose.msra.mxu0 %v1005
  %1022 = vmatpush.xpose.msra.mxu0 %v1003
  %1023 = vmatmul.f32.gmra.mxu0 %v995
  %v1024 = vpop.f32.mrf.mxu0
  %v1025 = vadd.f32 0.0, %v1024
  %1026 = vmatmul.f32.gmra.mxu0 %v997
  %v1027 = vpop.f32.mrf.mxu0
  %v1028 = vadd.f32 0.0, %v1027
  %1029 = vmatmul.f32.gmra.mxu0 %v999
  %v1030 = vpop.f32.mrf.mxu0
  %v1031 = vadd.f32 0.0, %v1030
  %1032 = vmatmul.f32.gmra.mxu0 %v1001
  %v1033 = vpop.f32.mrf.mxu0
  %v1034 = vadd.f32 0.0, %v1033
  %1035 = vdwg.mxu0
  %v1036 = vsel %vm953, %v836, 0
  %v1038 = vsel %vm953, %v838, 0
  %v1040 = vsel %vm953, %v840, 0
  %v1042 = vsel %vm953, %v842, 0
  %v1044 = vsel %vm953, %v886, 0
  %v1046 = vsel %vm953, %v888, 0
  %1048 = vmatpush.xpose.msra.mxu0 0.0
  %1049 = vmatpush.xpose.msra.mxu0 0.0
  %1050 = vmatpush.xpose.msra.mxu0 0.0
  %1051 = vmatpush.xpose.msra.mxu0 0.0
  %1052 = vmatpush.xpose.msra.mxu0 0.0
  %1053 = vmatpush.xpose.msra.mxu0 0.0
  %1054 = vmatpush.xpose.msra.mxu0 0.0
  %1055 = vmatpush.xpose.msra.mxu0 0.0
  %1056 = vmatpush.xpose.msra.mxu0 0.0
  %1057 = vmatpush.xpose.msra.mxu0 0.0
  %1058 = vmatpush.xpose.msra.mxu0 0.0
  %1059 = vmatpush.xpose.msra.mxu0 0.0
  %1060 = vmatpush.xpose.msra.mxu0 0.0
  %1061 = vmatpush.xpose.msra.mxu0 0.0
  %1062 = vmatpush.xpose.msra.mxu0 %v1046
  %1063 = vmatpush.xpose.msra.mxu0 %v1044
  %1064 = vmatmul.f32.gmra.mxu0 %v1036
  %v1065 = vpop.f32.mrf.mxu0
  %v1066 = vadd.f32 0.0, %v1065
  %1067 = vmatmul.f32.gmra.mxu0 %v1038
  %v1068 = vpop.f32.mrf.mxu0
  %v1069 = vadd.f32 0.0, %v1068
  %1070 = vmatmul.f32.gmra.mxu0 %v1040
  %v1071 = vpop.f32.mrf.mxu0
  %v1072 = vadd.f32 0.0, %v1071
  %1073 = vmatmul.f32.gmra.mxu0 %v1042
  %v1074 = vpop.f32.mrf.mxu0
  %v1075 = vadd.f32 0.0, %v1074
  %1076 = vdwg.mxu0
  %v1077 = vsel %vm953, %v844, 0
  %v1079 = vsel %vm953, %v846, 0
  %v1081 = vsel %vm953, %v848, 0
  %v1083 = vsel %vm953, %v850, 0
  %v1085 = vsel %vm953, %v890, 0
  %v1087 = vsel %vm953, %v892, 0
  %1089 = vmatpush.xpose.msra.mxu0 0.0
  %1090 = vmatpush.xpose.msra.mxu0 0.0
  %1091 = vmatpush.xpose.msra.mxu0 0.0
  %1092 = vmatpush.xpose.msra.mxu0 0.0
  %1093 = vmatpush.xpose.msra.mxu0 0.0
  %1094 = vmatpush.xpose.msra.mxu0 0.0
  %1095 = vmatpush.xpose.msra.mxu0 0.0
  %1096 = vmatpush.xpose.msra.mxu0 0.0
  %1097 = vmatpush.xpose.msra.mxu0 0.0
  %1098 = vmatpush.xpose.msra.mxu0 0.0
  %1099 = vmatpush.xpose.msra.mxu0 0.0
  %1100 = vmatpush.xpose.msra.mxu0 0.0
  %1101 = vmatpush.xpose.msra.mxu0 0.0
  %1102 = vmatpush.xpose.msra.mxu0 0.0
  %1103 = vmatpush.xpose.msra.mxu0 %v1087
  %1104 = vmatpush.xpose.msra.mxu0 %v1085
  %1105 = vmatmul.f32.gmra.mxu0 %v1077
  %v1106 = vpop.f32.mrf.mxu0
  %v1107 = vadd.f32 0.0, %v1106
  %1108 = vmatmul.f32.gmra.mxu0 %v1079
  %v1109 = vpop.f32.mrf.mxu0
  %v1110 = vadd.f32 0.0, %v1109
  %1111 = vmatmul.f32.gmra.mxu0 %v1081
  %v1112 = vpop.f32.mrf.mxu0
  %v1113 = vadd.f32 0.0, %v1112
  %1114 = vmatmul.f32.gmra.mxu0 %v1083
  %v1115 = vpop.f32.mrf.mxu0
  %v1116 = vadd.f32 0.0, %v1115
  %1117 = vdwg.mxu0
  %v1118 = vsel %vm953, %v612, 0
  %v1120 = vsel %vm953, %v615, 0
  %v1122 = vsel %vm953, %v618, 0
  %v1124 = vsel %vm953, %v621, 0
  %v1126 = vsel %vm953, %v894, 0
  %v1128 = vsel %vm953, %v896, 0
  %1130 = vmatpush.xpose.msra.mxu0 0.0
  %1131 = vmatpush.xpose.msra.mxu0 0.0
  %1132 = vmatpush.xpose.msra.mxu0 0.0
  %1133 = vmatpush.xpose.msra.mxu0 0.0
  %1134 = vmatpush.xpose.msra.mxu0 0.0
  %1135 = vmatpush.xpose.msra.mxu0 0.0
  %1136 = vmatpush.xpose.msra.mxu0 0.0
  %1137 = vmatpush.xpose.msra.mxu0 0.0
  %1138 = vmatpush.xpose.msra.mxu0 0.0
  %1139 = vmatpush.xpose.msra.mxu0 0.0
  %1140 = vmatpush.xpose.msra.mxu0 0.0
  %1141 = vmatpush.xpose.msra.mxu0 0.0
  %1142 = vmatpush.xpose.msra.mxu0 0.0
  %1143 = vmatpush.xpose.msra.mxu0 0.0
  %1144 = vmatpush.xpose.msra.mxu0 %v1128
  %1145 = vmatpush.xpose.msra.mxu0 %v1126
  %1146 = vmatmul.f32.gmra.mxu0 %v1118
  %v1147 = vpop.f32.mrf.mxu0
  %v1148 = vadd.f32 0.0, %v1147
  %1149 = vmatmul.f32.gmra.mxu0 %v1120
  %v1150 = vpop.f32.mrf.mxu0
  %v1151 = vadd.f32 0.0, %v1150
  %1152 = vmatmul.f32.gmra.mxu0 %v1122
  %v1153 = vpop.f32.mrf.mxu0
  %v1154 = vadd.f32 0.0, %v1153
  %1155 = vmatmul.f32.gmra.mxu0 %v1124
  %v1156 = vpop.f32.mrf.mxu0
  %v1157 = vadd.f32 0.0, %v1156
  %1158 = vdwg.mxu0
  %v1159 = vsel %vm953, %v856, 0
  %v1161 = vsel %vm953, %v858, 0
  %v1163 = vsel %vm953, %v860, 0
  %v1165 = vsel %vm953, %v862, 0
  %v1167 = vsel %vm953, %v898, 0
  %v1169 = vsel %vm953, %v900, 0
  %1171 = vmatpush.xpose.msra.mxu0 0.0
  %1172 = vmatpush.xpose.msra.mxu0 0.0
  %1173 = vmatpush.xpose.msra.mxu0 0.0
  %1174 = vmatpush.xpose.msra.mxu0 0.0
  %1175 = vmatpush.xpose.msra.mxu0 0.0
  %1176 = vmatpush.xpose.msra.mxu0 0.0
  %1177 = vmatpush.xpose.msra.mxu0 0.0
  %1178 = vmatpush.xpose.msra.mxu0 0.0
  %1179 = vmatpush.xpose.msra.mxu0 0.0
  %1180 = vmatpush.xpose.msra.mxu0 0.0
  %1181 = vmatpush.xpose.msra.mxu0 0.0
  %1182 = vmatpush.xpose.msra.mxu0 0.0
  %1183 = vmatpush.xpose.msra.mxu0 0.0
  %1184 = vmatpush.xpose.msra.mxu0 0.0
  %1185 = vmatpush.xpose.msra.mxu0 %v1169
  %1186 = vmatpush.xpose.msra.mxu0 %v1167
  %1187 = vmatmul.f32.gmra.mxu0 %v1159
  %v1188 = vpop.f32.mrf.mxu0
  %v1189 = vadd.f32 0.0, %v1188
  %1190 = vmatmul.f32.gmra.mxu0 %v1161
  %v1191 = vpop.f32.mrf.mxu0
  %v1192 = vadd.f32 0.0, %v1191
  %1193 = vmatmul.f32.gmra.mxu0 %v1163
  %v1194 = vpop.f32.mrf.mxu0
  %v1195 = vadd.f32 0.0, %v1194
  %1196 = vmatmul.f32.gmra.mxu0 %v1165
  %v1197 = vpop.f32.mrf.mxu0
  %v1198 = vadd.f32 0.0, %v1197
  %1199 = vdwg.mxu0
  %v1200 = vsel %vm953, %v864, 0
  %v1202 = vsel %vm953, %v866, 0
  %v1204 = vsel %vm953, %v868, 0
  %v1206 = vsel %vm953, %v870, 0
  %v1208 = vsel %vm953, %v902, 0
  %v1210 = vsel %vm953, %v904, 0
  %1212 = vmatpush.xpose.msra.mxu0 0.0
  %1213 = vmatpush.xpose.msra.mxu0 0.0
  %1214 = vmatpush.xpose.msra.mxu0 0.0
  %1215 = vmatpush.xpose.msra.mxu0 0.0
  %1216 = vmatpush.xpose.msra.mxu0 0.0
  %1217 = vmatpush.xpose.msra.mxu0 0.0
  %1218 = vmatpush.xpose.msra.mxu0 0.0
  %1219 = vmatpush.xpose.msra.mxu0 0.0
  %1220 = vmatpush.xpose.msra.mxu0 0.0
  %1221 = vmatpush.xpose.msra.mxu0 0.0
  %1222 = vmatpush.xpose.msra.mxu0 0.0
  %1223 = vmatpush.xpose.msra.mxu0 0.0
  %1224 = vmatpush.xpose.msra.mxu0 0.0
  %1225 = vmatpush.xpose.msra.mxu0 0.0
  %1226 = vmatpush.xpose.msra.mxu0 %v1210
  %1227 = vmatpush.xpose.msra.mxu0 %v1208
  %1228 = vmatmul.f32.gmra.mxu0 %v1200
  %v1229 = vpop.f32.mrf.mxu0
  %v1230 = vadd.f32 0.0, %v1229
  %1231 = vmatmul.f32.gmra.mxu0 %v1202
  %v1232 = vpop.f32.mrf.mxu0
  %v1233 = vadd.f32 0.0, %v1232
  %1234 = vmatmul.f32.gmra.mxu0 %v1204
  %v1235 = vpop.f32.mrf.mxu0
  %v1236 = vadd.f32 0.0, %v1235
  %1237 = vmatmul.f32.gmra.mxu0 %v1206
  %v1238 = vpop.f32.mrf.mxu0
  %v1239 = vadd.f32 0.0, %v1238
  %1240 = vdwg.mxu0
  %v1241 = vsel %vm953, %v872, 0
  %v1243 = vsel %vm953, %v874, 0
  %v1245 = vsel %vm953, %v876, 0
  %v1247 = vsel %vm953, %v878, 0
  %v1249 = vsel %vm953, %v906, 0
  %v1251 = vsel %vm953, %v908, 0
  %1253 = vmatpush.xpose.msra.mxu0 0.0
  %1254 = vmatpush.xpose.msra.mxu0 0.0
  %1255 = vmatpush.xpose.msra.mxu0 0.0
  %1256 = vmatpush.xpose.msra.mxu0 0.0
  %1257 = vmatpush.xpose.msra.mxu0 0.0
  %1258 = vmatpush.xpose.msra.mxu0 0.0
  %1259 = vmatpush.xpose.msra.mxu0 0.0
  %1260 = vmatpush.xpose.msra.mxu0 0.0
  %1261 = vmatpush.xpose.msra.mxu0 0.0
  %1262 = vmatpush.xpose.msra.mxu0 0.0
  %1263 = vmatpush.xpose.msra.mxu0 0.0
  %1264 = vmatpush.xpose.msra.mxu0 0.0
  %1265 = vmatpush.xpose.msra.mxu0 0.0
  %1266 = vmatpush.xpose.msra.mxu0 0.0
  %1267 = vmatpush.xpose.msra.mxu0 %v1251
  %1268 = vmatpush.xpose.msra.mxu0 %v1249
  %1269 = vmatmul.f32.gmra.mxu0 %v1241
  %v1270 = vpop.f32.mrf.mxu0
  %v1271 = vadd.f32 0.0, %v1270
  %1272 = vmatmul.f32.gmra.mxu0 %v1243
  %v1273 = vpop.f32.mrf.mxu0
  %v1274 = vadd.f32 0.0, %v1273
  %1275 = vmatmul.f32.gmra.mxu0 %v1245
  %v1276 = vpop.f32.mrf.mxu0
  %v1277 = vadd.f32 0.0, %v1276
  %1278 = vmatmul.f32.gmra.mxu0 %v1247
  %v1279 = vpop.f32.mrf.mxu0
  %v1280 = vadd.f32 0.0, %v1279
  %1281 = vdwg.mxu0
  %v1282 = vmul.f32 %v984, 0.35355338
  %v1283 = vmul.f32 %v987, 0.35355338
  %v1284 = vmul.f32 %v990, 0.35355338
  %v1285 = vmul.f32 %v993, 0.35355338
  %v1286 = vmul.f32 %v1025, 0.35355338
  %v1287 = vmul.f32 %v1028, 0.35355338
  %v1288 = vmul.f32 %v1031, 0.35355338
  %v1289 = vmul.f32 %v1034, 0.35355338
  %v1290 = vmul.f32 %v1066, 0.35355338
  %v1291 = vmul.f32 %v1069, 0.35355338
  %v1292 = vmul.f32 %v1072, 0.35355338
  %v1293 = vmul.f32 %v1075, 0.35355338
  %v1294 = vmul.f32 %v1107, 0.35355338
  %v1295 = vmul.f32 %v1110, 0.35355338
  %v1296 = vmul.f32 %v1113, 0.35355338
  %v1297 = vmul.f32 %v1116, 0.35355338
  %v1298 = vmul.f32 %v1148, 0.35355338
  %v1299 = vmul.f32 %v1151, 0.35355338
  %v1300 = vmul.f32 %v1154, 0.35355338
  %v1301 = vmul.f32 %v1157, 0.35355338
  %v1302 = vmul.f32 %v1189, 0.35355338
  %v1303 = vmul.f32 %v1192, 0.35355338
  %v1304 = vmul.f32 %v1195, 0.35355338
  %v1305 = vmul.f32 %v1198, 0.35355338
  %v1306 = vmul.f32 %v1230, 0.35355338
  %v1307 = vmul.f32 %v1233, 0.35355338
  %v1308 = vmul.f32 %v1236, 0.35355338
  %v1309 = vmul.f32 %v1239, 0.35355338
  %v1310 = vmul.f32 %v1271, 0.35355338
  %v1311 = vmul.f32 %v1274, 0.35355338
  %v1312 = vmul.f32 %v1277, 0.35355338
  %v1313 = vmul.f32 %v1280, 0.35355338
  %vm1314 = vcmask 130048
  %v1315 = vsel %vm1314, %v1282, -inf
  %1316 = vmax.xlane.f32.xlu0 %v1315
  %v1317 = vpop.xlane.xlu0 %1316
  %v1318 = vsel %vm1314, %v1283, -inf
  %1319 = vmax.xlane.f32.xlu0 %v1318
  %v1320 = vpop.xlane.xlu0 %1319
  %v1321 = vsel %vm1314, %v1284, -inf
  %1322 = vmax.xlane.f32.xlu0 %v1321
  %v1323 = vpop.xlane.xlu0 %1322
  %v1324 = vsel %vm1314, %v1285, -inf
  %1325 = vmax.xlane.f32.xlu0 %v1324
  %v1326 = vpop.xlane.xlu0 %1325
  %v1327 = vsel %vm1314, %v1286, -inf
  %1328 = vmax.xlane.f32.xlu0 %v1327
  %v1329 = vpop.xlane.xlu0 %1328
  %v1330 = vsel %vm1314, %v1287, -inf
  %1331 = vmax.xlane.f32.xlu0 %v1330
  %v1332 = vpop.xlane.xlu0 %1331
  %v1333 = vsel %vm1314, %v1288, -inf
  %1334 = vmax.xlane.f32.xlu0 %v1333
  %v1335 = vpop.xlane.xlu0 %1334
  %v1336 = vsel %vm1314, %v1289, -inf
  %1337 = vmax.xlane.f32.xlu0 %v1336
  %v1338 = vpop.xlane.xlu0 %1337
  %v1339 = vsel %vm1314, %v1290, -inf
  %1340 = vmax.xlane.f32.xlu0 %v1339
  %v1341 = vpop.xlane.xlu0 %1340
  %v1342 = vsel %vm1314, %v1291, -inf
  %1343 = vmax.xlane.f32.xlu0 %v1342
  %v1344 = vpop.xlane.xlu0 %1343
  %v1345 = vsel %vm1314, %v1292, -inf
  %1346 = vmax.xlane.f32.xlu0 %v1345
  %v1347 = vpop.xlane.xlu0 %1346
  %v1348 = vsel %vm1314, %v1293, -inf
  %1349 = vmax.xlane.f32.xlu0 %v1348
  %v1350 = vpop.xlane.xlu0 %1349
  %v1351 = vsel %vm1314, %v1294, -inf
  %1352 = vmax.xlane.f32.xlu0 %v1351
  %v1353 = vpop.xlane.xlu0 %1352
  %v1354 = vsel %vm1314, %v1295, -inf
  %1355 = vmax.xlane.f32.xlu0 %v1354
  %v1356 = vpop.xlane.xlu0 %1355
  %v1357 = vsel %vm1314, %v1296, -inf
  %1358 = vmax.xlane.f32.xlu0 %v1357
  %v1359 = vpop.xlane.xlu0 %1358
  %v1360 = vsel %vm1314, %v1297, -inf
  %1361 = vmax.xlane.f32.xlu0 %v1360
  %v1362 = vpop.xlane.xlu0 %1361
  %v1363 = vsel %vm1314, %v1298, -inf
  %1364 = vmax.xlane.f32.xlu0 %v1363
  %v1365 = vpop.xlane.xlu0 %1364
  %v1366 = vsel %vm1314, %v1299, -inf
  %1367 = vmax.xlane.f32.xlu0 %v1366
  %v1368 = vpop.xlane.xlu0 %1367
  %v1369 = vsel %vm1314, %v1300, -inf
  %1370 = vmax.xlane.f32.xlu0 %v1369
  %v1371 = vpop.xlane.xlu0 %1370
  %v1372 = vsel %vm1314, %v1301, -inf
  %1373 = vmax.xlane.f32.xlu0 %v1372
  %v1374 = vpop.xlane.xlu0 %1373
  %v1375 = vsel %vm1314, %v1302, -inf
  %1376 = vmax.xlane.f32.xlu0 %v1375
  %v1377 = vpop.xlane.xlu0 %1376
  %v1378 = vsel %vm1314, %v1303, -inf
  %1379 = vmax.xlane.f32.xlu0 %v1378
  %v1380 = vpop.xlane.xlu0 %1379
  %v1381 = vsel %vm1314, %v1304, -inf
  %1382 = vmax.xlane.f32.xlu0 %v1381
  %v1383 = vpop.xlane.xlu0 %1382
  %v1384 = vsel %vm1314, %v1305, -inf
  %1385 = vmax.xlane.f32.xlu0 %v1384
  %v1386 = vpop.xlane.xlu0 %1385
  %v1387 = vsel %vm1314, %v1306, -inf
  %1388 = vmax.xlane.f32.xlu0 %v1387
  %v1389 = vpop.xlane.xlu0 %1388
  %v1390 = vsel %vm1314, %v1307, -inf
  %1391 = vmax.xlane.f32.xlu0 %v1390
  %v1392 = vpop.xlane.xlu0 %1391
  %v1393 = vsel %vm1314, %v1308, -inf
  %1394 = vmax.xlane.f32.xlu0 %v1393
  %v1395 = vpop.xlane.xlu0 %1394
  %v1396 = vsel %vm1314, %v1309, -inf
  %1397 = vmax.xlane.f32.xlu0 %v1396
  %v1398 = vpop.xlane.xlu0 %1397
  %v1399 = vsel %vm1314, %v1310, -inf
  %1400 = vmax.xlane.f32.xlu0 %v1399
  %v1401 = vpop.xlane.xlu0 %1400
  %v1402 = vsel %vm1314, %v1311, -inf
  %1403 = vmax.xlane.f32.xlu0 %v1402
  %v1404 = vpop.xlane.xlu0 %1403
  %v1405 = vsel %vm1314, %v1312, -inf
  %1406 = vmax.xlane.f32.xlu0 %v1405
  %v1407 = vpop.xlane.xlu0 %1406
  %v1408 = vsel %vm1314, %v1313, -inf
  %1409 = vmax.xlane.f32.xlu0 %v1408
  %v1410 = vpop.xlane.xlu0 %1409
  %v1411 = vsub.f32 %v1282, %v1317
  %v1412 = vsub.f32 %v1283, %v1320
  %v1413 = vsub.f32 %v1284, %v1323
  %v1414 = vsub.f32 %v1285, %v1326
  %v1415 = vsub.f32 %v1286, %v1329
  %v1416 = vsub.f32 %v1287, %v1332
  %v1417 = vsub.f32 %v1288, %v1335
  %v1418 = vsub.f32 %v1289, %v1338
  %v1419 = vsub.f32 %v1290, %v1341
  %v1420 = vsub.f32 %v1291, %v1344
  %v1421 = vsub.f32 %v1292, %v1347
  %v1422 = vsub.f32 %v1293, %v1350
  %v1423 = vsub.f32 %v1294, %v1353
  %v1424 = vsub.f32 %v1295, %v1356
  %v1425 = vsub.f32 %v1296, %v1359
  %v1426 = vsub.f32 %v1297, %v1362
  %v1427 = vsub.f32 %v1298, %v1365
  %v1428 = vsub.f32 %v1299, %v1368
  %v1429 = vsub.f32 %v1300, %v1371
  %v1430 = vsub.f32 %v1301, %v1374
  %v1431 = vsub.f32 %v1302, %v1377
  %v1432 = vsub.f32 %v1303, %v1380
  %v1433 = vsub.f32 %v1304, %v1383
  %v1434 = vsub.f32 %v1305, %v1386
  %v1435 = vsub.f32 %v1306, %v1389
  %v1436 = vsub.f32 %v1307, %v1392
  %v1437 = vsub.f32 %v1308, %v1395
  %v1438 = vsub.f32 %v1309, %v1398
  %v1439 = vsub.f32 %v1310, %v1401
  %v1440 = vsub.f32 %v1311, %v1404
  %v1441 = vsub.f32 %v1312, %v1407
  %v1442 = vsub.f32 %v1313, %v1410
  %v1443 = vmul.f32 %v1411, 1.442695
  %v1444 = vpow.pop %v1443
  %v1445 = vmul.f32 %v1412, 1.442695
  %v1446 = vpow.pop %v1445
  %v1447 = vmul.f32 %v1413, 1.442695
  %v1448 = vpow.pop %v1447
  %v1449 = vmul.f32 %v1414, 1.442695
  %v1450 = vpow.pop %v1449
  %v1451 = vmul.f32 %v1415, 1.442695
  %v1452 = vpow.pop %v1451
  %v1453 = vmul.f32 %v1416, 1.442695
  %v1454 = vpow.pop %v1453
  %v1455 = vmul.f32 %v1417, 1.442695
  %v1456 = vpow.pop %v1455
  %v1457 = vmul.f32 %v1418, 1.442695
  %v1458 = vpow.pop %v1457
  %v1459 = vmul.f32 %v1419, 1.442695
  %v1460 = vpow.pop %v1459
  %v1461 = vmul.f32 %v1420, 1.442695
  %v1462 = vpow.pop %v1461
  %v1463 = vmul.f32 %v1421, 1.442695
  %v1464 = vpow.pop %v1463
  %v1465 = vmul.f32 %v1422, 1.442695
  %v1466 = vpow.pop %v1465
  %v1467 = vmul.f32 %v1423, 1.442695
  %v1468 = vpow.pop %v1467
  %v1469 = vmul.f32 %v1424, 1.442695
  %v1470 = vpow.pop %v1469
  %v1471 = vmul.f32 %v1425, 1.442695
  %v1472 = vpow.pop %v1471
  %v1473 = vmul.f32 %v1426, 1.442695
  %v1474 = vpow.pop %v1473
  %v1475 = vmul.f32 %v1427, 1.442695
  %v1476 = vpow.pop %v1475
  %v1477 = vmul.f32 %v1428, 1.442695
  %v1478 = vpow.pop %v1477
  %v1479 = vmul.f32 %v1429, 1.442695
  %v1480 = vpow.pop %v1479
  %v1481 = vmul.f32 %v1430, 1.442695
  %v1482 = vpow.pop %v1481
  %v1483 = vmul.f32 %v1431, 1.442695
  %v1484 = vpow.pop %v1483
  %v1485 = vmul.f32 %v1432, 1.442695
  %v1486 = vpow.pop %v1485
  %v1487 = vmul.f32 %v1433, 1.442695
  %v1488 = vpow.pop %v1487
  %v1489 = vmul.f32 %v1434, 1.442695
  %v1490 = vpow.pop %v1489
  %v1491 = vmul.f32 %v1435, 1.442695
  %v1492 = vpow.pop %v1491
  %v1493 = vmul.f32 %v1436, 1.442695
  %v1494 = vpow.pop %v1493
  %v1495 = vmul.f32 %v1437, 1.442695
  %v1496 = vpow.pop %v1495
  %v1497 = vmul.f32 %v1438, 1.442695
  %v1498 = vpow.pop %v1497
  %v1499 = vmul.f32 %v1439, 1.442695
  %v1500 = vpow.pop %v1499
  %v1501 = vmul.f32 %v1440, 1.442695
  %v1502 = vpow.pop %v1501
  %v1503 = vmul.f32 %v1441, 1.442695
  %v1504 = vpow.pop %v1503
  %v1505 = vmul.f32 %v1442, 1.442695
  %v1506 = vpow.pop %v1505
  %v1507 = vsel %vm1314, %v1444, 0.0
  %1508 = vadd.xlane.f32.xlu0 %v1507
  %v1509 = vpop.xlane.xlu0 %1508
  %v1510 = vsel %vm1314, %v1446, 0.0
  %1511 = vadd.xlane.f32.xlu0 %v1510
  %v1512 = vpop.xlane.xlu0 %1511
  %v1513 = vsel %vm1314, %v1448, 0.0
  %1514 = vadd.xlane.f32.xlu0 %v1513
  %v1515 = vpop.xlane.xlu0 %1514
  %v1516 = vsel %vm1314, %v1450, 0.0
  %1517 = vadd.xlane.f32.xlu0 %v1516
  %v1518 = vpop.xlane.xlu0 %1517
  %v1519 = vsel %vm1314, %v1452, 0.0
  %1520 = vadd.xlane.f32.xlu0 %v1519
  %v1521 = vpop.xlane.xlu0 %1520
  %v1522 = vsel %vm1314, %v1454, 0.0
  %1523 = vadd.xlane.f32.xlu0 %v1522
  %v1524 = vpop.xlane.xlu0 %1523
  %v1525 = vsel %vm1314, %v1456, 0.0
  %1526 = vadd.xlane.f32.xlu0 %v1525
  %v1527 = vpop.xlane.xlu0 %1526
  %v1528 = vsel %vm1314, %v1458, 0.0
  %1529 = vadd.xlane.f32.xlu0 %v1528
  %v1530 = vpop.xlane.xlu0 %1529
  %v1531 = vsel %vm1314, %v1460, 0.0
  %1532 = vadd.xlane.f32.xlu0 %v1531
  %v1533 = vpop.xlane.xlu0 %1532
  %v1534 = vsel %vm1314, %v1462, 0.0
  %1535 = vadd.xlane.f32.xlu0 %v1534
  %v1536 = vpop.xlane.xlu0 %1535
  %v1537 = vsel %vm1314, %v1464, 0.0
  %1538 = vadd.xlane.f32.xlu0 %v1537
  %v1539 = vpop.xlane.xlu0 %1538
  %v1540 = vsel %vm1314, %v1466, 0.0
  %1541 = vadd.xlane.f32.xlu0 %v1540
  %v1542 = vpop.xlane.xlu0 %1541
  %v1543 = vsel %vm1314, %v1468, 0.0
  %1544 = vadd.xlane.f32.xlu0 %v1543
  %v1545 = vpop.xlane.xlu0 %1544
  %v1546 = vsel %vm1314, %v1470, 0.0
  %1547 = vadd.xlane.f32.xlu0 %v1546
  %v1548 = vpop.xlane.xlu0 %1547
  %v1549 = vsel %vm1314, %v1472, 0.0
  %1550 = vadd.xlane.f32.xlu0 %v1549
  %v1551 = vpop.xlane.xlu0 %1550
  %v1552 = vsel %vm1314, %v1474, 0.0
  %1553 = vadd.xlane.f32.xlu0 %v1552
  %v1554 = vpop.xlane.xlu0 %1553
  %v1555 = vsel %vm1314, %v1476, 0.0
  %1556 = vadd.xlane.f32.xlu0 %v1555
  %v1557 = vpop.xlane.xlu0 %1556
  %v1558 = vsel %vm1314, %v1478, 0.0
  %1559 = vadd.xlane.f32.xlu0 %v1558
  %v1560 = vpop.xlane.xlu0 %1559
  %v1561 = vsel %vm1314, %v1480, 0.0
  %1562 = vadd.xlane.f32.xlu0 %v1561
  %v1563 = vpop.xlane.xlu0 %1562
  %v1564 = vsel %vm1314, %v1482, 0.0
  %1565 = vadd.xlane.f32.xlu0 %v1564
  %v1566 = vpop.xlane.xlu0 %1565
  %v1567 = vsel %vm1314, %v1484, 0.0
  %1568 = vadd.xlane.f32.xlu0 %v1567
  %v1569 = vpop.xlane.xlu0 %1568
  %v1570 = vsel %vm1314, %v1486, 0.0
  %1571 = vadd.xlane.f32.xlu0 %v1570
  %v1572 = vpop.xlane.xlu0 %1571
  %v1573 = vsel %vm1314, %v1488, 0.0
  %1574 = vadd.xlane.f32.xlu0 %v1573
  %v1575 = vpop.xlane.xlu0 %1574
  %v1576 = vsel %vm1314, %v1490, 0.0
  %1577 = vadd.xlane.f32.xlu0 %v1576
  %v1578 = vpop.xlane.xlu0 %1577
  %v1579 = vsel %vm1314, %v1492, 0.0
  %1580 = vadd.xlane.f32.xlu0 %v1579
  %v1581 = vpop.xlane.xlu0 %1580
  %v1582 = vsel %vm1314, %v1494, 0.0
  %1583 = vadd.xlane.f32.xlu0 %v1582
  %v1584 = vpop.xlane.xlu0 %1583
  %v1585 = vsel %vm1314, %v1496, 0.0
  %1586 = vadd.xlane.f32.xlu0 %v1585
  %v1587 = vpop.xlane.xlu0 %1586
  %v1588 = vsel %vm1314, %v1498, 0.0
  %1589 = vadd.xlane.f32.xlu0 %v1588
  %v1590 = vpop.xlane.xlu0 %1589
  %v1591 = vsel %vm1314, %v1500, 0.0
  %1592 = vadd.xlane.f32.xlu0 %v1591
  %v1593 = vpop.xlane.xlu0 %1592
  %v1594 = vsel %vm1314, %v1502, 0.0
  %1595 = vadd.xlane.f32.xlu0 %v1594
  %v1596 = vpop.xlane.xlu0 %1595
  %v1597 = vsel %vm1314, %v1504, 0.0
  %1598 = vadd.xlane.f32.xlu0 %v1597
  %v1599 = vpop.xlane.xlu0 %1598
  %v1600 = vsel %vm1314, %v1506, 0.0
  %1601 = vadd.xlane.f32.xlu0 %v1600
  %v1602 = vpop.xlane.xlu0 %1601
  %v1603 = vrcp.pop %v1509
  %v1604 = vmul.f32 %v1509, %v1603
  %v1605 = vsub.f32 1.0, %v1604
  %v1606 = vmul.f32 %v1603, %v1605
  %v1607 = vadd.f32 %v1603, %v1606
  %vm1608 = vweird.f32 %v1509
  %vm1609 = vweird.f32 %v1603
  %vm1610 = vmor %vm1608, %vm1609
  %v1611 = vsel %vm1610, %v1603, %v1607
  %v1612 = vand.u32 2147483647, %v1509
  %vm1613 = vcmp.eq.f32.partialorder %v1612, 8.507059e+37
  %v1614 = vand.u32 %v1509, 2147483648
  %v1615 = vor.u32 1.1754944e-38, %v1614
  %v1616 = vsel %vm1613, %v1615, %v1611
  %v1617 = vmul.f32 %v1444, %v1616
  %v1618 = vrcp.pop %v1512
  %v1619 = vmul.f32 %v1512, %v1618
  %v1620 = vsub.f32 1.0, %v1619
  %v1621 = vmul.f32 %v1618, %v1620
  %v1622 = vadd.f32 %v1618, %v1621
  %vm1623 = vweird.f32 %v1512
  %vm1624 = vweird.f32 %v1618
  %vm1625 = vmor %vm1623, %vm1624
  %v1626 = vsel %vm1625, %v1618, %v1622
  %v1627 = vand.u32 2147483647, %v1512
  %vm1628 = vcmp.eq.f32.partialorder %v1627, 8.507059e+37
  %v1629 = vand.u32 %v1512, 2147483648
  %v1630 = vor.u32 1.1754944e-38, %v1629
  %v1631 = vsel %vm1628, %v1630, %v1626
  %v1632 = vmul.f32 %v1446, %v1631
  %v1633 = vrcp.pop %v1515
  %v1634 = vmul.f32 %v1515, %v1633
  %v1635 = vsub.f32 1.0, %v1634
  %v1636 = vmul.f32 %v1633, %v1635
  %v1637 = vadd.f32 %v1633, %v1636
  %vm1638 = vweird.f32 %v1515
  %vm1639 = vweird.f32 %v1633
  %vm1640 = vmor %vm1638, %vm1639
  %v1641 = vsel %vm1640, %v1633, %v1637
  %v1642 = vand.u32 2147483647, %v1515
  %vm1643 = vcmp.eq.f32.partialorder %v1642, 8.507059e+37
  %v1644 = vand.u32 %v1515, 2147483648
  %v1645 = vor.u32 1.1754944e-38, %v1644
  %v1646 = vsel %vm1643, %v1645, %v1641
  %v1647 = vmul.f32 %v1448, %v1646
  %v1648 = vrcp.pop %v1518
  %v1649 = vmul.f32 %v1518, %v1648
  %v1650 = vsub.f32 1.0, %v1649
  %v1651 = vmul.f32 %v1648, %v1650
  %v1652 = vadd.f32 %v1648, %v1651
  %vm1653 = vweird.f32 %v1518
  %vm1654 = vweird.f32 %v1648
  %vm1655 = vmor %vm1653, %vm1654
  %v1656 = vsel %vm1655, %v1648, %v1652
  %v1657 = vand.u32 2147483647, %v1518
  %vm1658 = vcmp.eq.f32.partialorder %v1657, 8.507059e+37
  %v1659 = vand.u32 %v1518, 2147483648
  %v1660 = vor.u32 1.1754944e-38, %v1659
  %v1661 = vsel %vm1658, %v1660, %v1656
  %v1662 = vmul.f32 %v1450, %v1661
  %v1663 = vrcp.pop %v1521
  %v1664 = vmul.f32 %v1521, %v1663
  %v1665 = vsub.f32 1.0, %v1664
  %v1666 = vmul.f32 %v1663, %v1665
  %v1667 = vadd.f32 %v1663, %v1666
  %vm1668 = vweird.f32 %v1521
  %vm1669 = vweird.f32 %v1663
  %vm1670 = vmor %vm1668, %vm1669
  %v1671 = vsel %vm1670, %v1663, %v1667
  %v1672 = vand.u32 2147483647, %v1521
  %vm1673 = vcmp.eq.f32.partialorder %v1672, 8.507059e+37
  %v1674 = vand.u32 %v1521, 2147483648
  %v1675 = vor.u32 1.1754944e-38, %v1674
  %v1676 = vsel %vm1673, %v1675, %v1671
  %v1677 = vmul.f32 %v1452, %v1676
  %v1678 = vrcp.pop %v1524
  %v1679 = vmul.f32 %v1524, %v1678
  %v1680 = vsub.f32 1.0, %v1679
  %v1681 = vmul.f32 %v1678, %v1680
  %v1682 = vadd.f32 %v1678, %v1681
  %vm1683 = vweird.f32 %v1524
  %vm1684 = vweird.f32 %v1678
  %vm1685 = vmor %vm1683, %vm1684
  %v1686 = vsel %vm1685, %v1678, %v1682
  %v1687 = vand.u32 2147483647, %v1524
  %vm1688 = vcmp.eq.f32.partialorder %v1687, 8.507059e+37
  %v1689 = vand.u32 %v1524, 2147483648
  %v1690 = vor.u32 1.1754944e-38, %v1689
  %v1691 = vsel %vm1688, %v1690, %v1686
  %v1692 = vmul.f32 %v1454, %v1691
  %v1693 = vrcp.pop %v1527
  %v1694 = vmul.f32 %v1527, %v1693
  %v1695 = vsub.f32 1.0, %v1694
  %v1696 = vmul.f32 %v1693, %v1695
  %v1697 = vadd.f32 %v1693, %v1696
  %vm1698 = vweird.f32 %v1527
  %vm1699 = vweird.f32 %v1693
  %vm1700 = vmor %vm1698, %vm1699
  %v1701 = vsel %vm1700, %v1693, %v1697
  %v1702 = vand.u32 2147483647, %v1527
  %vm1703 = vcmp.eq.f32.partialorder %v1702, 8.507059e+37
  %v1704 = vand.u32 %v1527, 2147483648
  %v1705 = vor.u32 1.1754944e-38, %v1704
  %v1706 = vsel %vm1703, %v1705, %v1701
  %v1707 = vmul.f32 %v1456, %v1706
  %v1708 = vrcp.pop %v1530
  %v1709 = vmul.f32 %v1530, %v1708
  %v1710 = vsub.f32 1.0, %v1709
  %v1711 = vmul.f32 %v1708, %v1710
  %v1712 = vadd.f32 %v1708, %v1711
  %vm1713 = vweird.f32 %v1530
  %vm1714 = vweird.f32 %v1708
  %vm1715 = vmor %vm1713, %vm1714
  %v1716 = vsel %vm1715, %v1708, %v1712
  %v1717 = vand.u32 2147483647, %v1530
  %vm1718 = vcmp.eq.f32.partialorder %v1717, 8.507059e+37
  %v1719 = vand.u32 %v1530, 2147483648
  %v1720 = vor.u32 1.1754944e-38, %v1719
  %v1721 = vsel %vm1718, %v1720, %v1716
  %v1722 = vmul.f32 %v1458, %v1721
  %v1723 = vrcp.pop %v1533
  %v1724 = vmul.f32 %v1533, %v1723
  %v1725 = vsub.f32 1.0, %v1724
  %v1726 = vmul.f32 %v1723, %v1725
  %v1727 = vadd.f32 %v1723, %v1726
  %vm1728 = vweird.f32 %v1533
  %vm1729 = vweird.f32 %v1723
  %vm1730 = vmor %vm1728, %vm1729
  %v1731 = vsel %vm1730, %v1723, %v1727
  %v1732 = vand.u32 2147483647, %v1533
  %vm1733 = vcmp.eq.f32.partialorder %v1732, 8.507059e+37
  %v1734 = vand.u32 %v1533, 2147483648
  %v1735 = vor.u32 1.1754944e-38, %v1734
  %v1736 = vsel %vm1733, %v1735, %v1731
  %v1737 = vmul.f32 %v1460, %v1736
  %v1738 = vrcp.pop %v1536
  %v1739 = vmul.f32 %v1536, %v1738
  %v1740 = vsub.f32 1.0, %v1739
  %v1741 = vmul.f32 %v1738, %v1740
  %v1742 = vadd.f32 %v1738, %v1741
  %vm1743 = vweird.f32 %v1536
  %vm1744 = vweird.f32 %v1738
  %vm1745 = vmor %vm1743, %vm1744
  %v1746 = vsel %vm1745, %v1738, %v1742
  %v1747 = vand.u32 2147483647, %v1536
  %vm1748 = vcmp.eq.f32.partialorder %v1747, 8.507059e+37
  %v1749 = vand.u32 %v1536, 2147483648
  %v1750 = vor.u32 1.1754944e-38, %v1749
  %v1751 = vsel %vm1748, %v1750, %v1746
  %v1752 = vmul.f32 %v1462, %v1751
  %v1753 = vrcp.pop %v1539
  %v1754 = vmul.f32 %v1539, %v1753
  %v1755 = vsub.f32 1.0, %v1754
  %v1756 = vmul.f32 %v1753, %v1755
  %v1757 = vadd.f32 %v1753, %v1756
  %vm1758 = vweird.f32 %v1539
  %vm1759 = vweird.f32 %v1753
  %vm1760 = vmor %vm1758, %vm1759
  %v1761 = vsel %vm1760, %v1753, %v1757
  %v1762 = vand.u32 2147483647, %v1539
  %vm1763 = vcmp.eq.f32.partialorder %v1762, 8.507059e+37
  %v1764 = vand.u32 %v1539, 2147483648
  %v1765 = vor.u32 1.1754944e-38, %v1764
  %v1766 = vsel %vm1763, %v1765, %v1761
  %v1767 = vmul.f32 %v1464, %v1766
  %v1768 = vrcp.pop %v1542
  %v1769 = vmul.f32 %v1542, %v1768
  %v1770 = vsub.f32 1.0, %v1769
  %v1771 = vmul.f32 %v1768, %v1770
  %v1772 = vadd.f32 %v1768, %v1771
  %vm1773 = vweird.f32 %v1542
  %vm1774 = vweird.f32 %v1768
  %vm1775 = vmor %vm1773, %vm1774
  %v1776 = vsel %vm1775, %v1768, %v1772
  %v1777 = vand.u32 2147483647, %v1542
  %vm1778 = vcmp.eq.f32.partialorder %v1777, 8.507059e+37
  %v1779 = vand.u32 %v1542, 2147483648
  %v1780 = vor.u32 1.1754944e-38, %v1779
  %v1781 = vsel %vm1778, %v1780, %v1776
  %v1782 = vmul.f32 %v1466, %v1781
  %v1783 = vrcp.pop %v1545
  %v1784 = vmul.f32 %v1545, %v1783
  %v1785 = vsub.f32 1.0, %v1784
  %v1786 = vmul.f32 %v1783, %v1785
  %v1787 = vadd.f32 %v1783, %v1786
  %vm1788 = vweird.f32 %v1545
  %vm1789 = vweird.f32 %v1783
  %vm1790 = vmor %vm1788, %vm1789
  %v1791 = vsel %vm1790, %v1783, %v1787
  %v1792 = vand.u32 2147483647, %v1545
  %vm1793 = vcmp.eq.f32.partialorder %v1792, 8.507059e+37
  %v1794 = vand.u32 %v1545, 2147483648
  %v1795 = vor.u32 1.1754944e-38, %v1794
  %v1796 = vsel %vm1793, %v1795, %v1791
  %v1797 = vmul.f32 %v1468, %v1796
  %v1798 = vrcp.pop %v1548
  %v1799 = vmul.f32 %v1548, %v1798
  %v1800 = vsub.f32 1.0, %v1799
  %v1801 = vmul.f32 %v1798, %v1800
  %v1802 = vadd.f32 %v1798, %v1801
  %vm1803 = vweird.f32 %v1548
  %vm1804 = vweird.f32 %v1798
  %vm1805 = vmor %vm1803, %vm1804
  %v1806 = vsel %vm1805, %v1798, %v1802
  %v1807 = vand.u32 2147483647, %v1548
  %vm1808 = vcmp.eq.f32.partialorder %v1807, 8.507059e+37
  %v1809 = vand.u32 %v1548, 2147483648
  %v1810 = vor.u32 1.1754944e-38, %v1809
  %v1811 = vsel %vm1808, %v1810, %v1806
  %v1812 = vmul.f32 %v1470, %v1811
  %v1813 = vrcp.pop %v1551
  %v1814 = vmul.f32 %v1551, %v1813
  %v1815 = vsub.f32 1.0, %v1814
  %v1816 = vmul.f32 %v1813, %v1815
  %v1817 = vadd.f32 %v1813, %v1816
  %vm1818 = vweird.f32 %v1551
  %vm1819 = vweird.f32 %v1813
  %vm1820 = vmor %vm1818, %vm1819
  %v1821 = vsel %vm1820, %v1813, %v1817
  %v1822 = vand.u32 2147483647, %v1551
  %vm1823 = vcmp.eq.f32.partialorder %v1822, 8.507059e+37
  %v1824 = vand.u32 %v1551, 2147483648
  %v1825 = vor.u32 1.1754944e-38, %v1824
  %v1826 = vsel %vm1823, %v1825, %v1821
  %v1827 = vmul.f32 %v1472, %v1826
  %v1828 = vrcp.pop %v1554
  %v1829 = vmul.f32 %v1554, %v1828
  %v1830 = vsub.f32 1.0, %v1829
  %v1831 = vmul.f32 %v1828, %v1830
  %v1832 = vadd.f32 %v1828, %v1831
  %vm1833 = vweird.f32 %v1554
  %vm1834 = vweird.f32 %v1828
  %vm1835 = vmor %vm1833, %vm1834
  %v1836 = vsel %vm1835, %v1828, %v1832
  %v1837 = vand.u32 2147483647, %v1554
  %vm1838 = vcmp.eq.f32.partialorder %v1837, 8.507059e+37
  %v1839 = vand.u32 %v1554, 2147483648
  %v1840 = vor.u32 1.1754944e-38, %v1839
  %v1841 = vsel %vm1838, %v1840, %v1836
  %v1842 = vmul.f32 %v1474, %v1841
  %v1843 = vrcp.pop %v1557
  %v1844 = vmul.f32 %v1557, %v1843
  %v1845 = vsub.f32 1.0, %v1844
  %v1846 = vmul.f32 %v1843, %v1845
  %v1847 = vadd.f32 %v1843, %v1846
  %vm1848 = vweird.f32 %v1557
  %vm1849 = vweird.f32 %v1843
  %vm1850 = vmor %vm1848, %vm1849
  %v1851 = vsel %vm1850, %v1843, %v1847
  %v1852 = vand.u32 2147483647, %v1557
  %vm1853 = vcmp.eq.f32.partialorder %v1852, 8.507059e+37
  %v1854 = vand.u32 %v1557, 2147483648
  %v1855 = vor.u32 1.1754944e-38, %v1854
  %v1856 = vsel %vm1853, %v1855, %v1851
  %v1857 = vmul.f32 %v1476, %v1856
  %v1858 = vrcp.pop %v1560
  %v1859 = vmul.f32 %v1560, %v1858
  %v1860 = vsub.f32 1.0, %v1859
  %v1861 = vmul.f32 %v1858, %v1860
  %v1862 = vadd.f32 %v1858, %v1861
  %vm1863 = vweird.f32 %v1560
  %vm1864 = vweird.f32 %v1858
  %vm1865 = vmor %vm1863, %vm1864
  %v1866 = vsel %vm1865, %v1858, %v1862
  %v1867 = vand.u32 2147483647, %v1560
  %vm1868 = vcmp.eq.f32.partialorder %v1867, 8.507059e+37
  %v1869 = vand.u32 %v1560, 2147483648
  %v1870 = vor.u32 1.1754944e-38, %v1869
  %v1871 = vsel %vm1868, %v1870, %v1866
  %v1872 = vmul.f32 %v1478, %v1871
  %v1873 = vrcp.pop %v1563
  %v1874 = vmul.f32 %v1563, %v1873
  %v1875 = vsub.f32 1.0, %v1874
  %v1876 = vmul.f32 %v1873, %v1875
  %v1877 = vadd.f32 %v1873, %v1876
  %vm1878 = vweird.f32 %v1563
  %vm1879 = vweird.f32 %v1873
  %vm1880 = vmor %vm1878, %vm1879
  %v1881 = vsel %vm1880, %v1873, %v1877
  %v1882 = vand.u32 2147483647, %v1563
  %vm1883 = vcmp.eq.f32.partialorder %v1882, 8.507059e+37
  %v1884 = vand.u32 %v1563, 2147483648
  %v1885 = vor.u32 1.1754944e-38, %v1884
  %v1886 = vsel %vm1883, %v1885, %v1881
  %v1887 = vmul.f32 %v1480, %v1886
  %v1888 = vrcp.pop %v1566
  %v1889 = vmul.f32 %v1566, %v1888
  %v1890 = vsub.f32 1.0, %v1889
  %v1891 = vmul.f32 %v1888, %v1890
  %v1892 = vadd.f32 %v1888, %v1891
  %vm1893 = vweird.f32 %v1566
  %vm1894 = vweird.f32 %v1888
  %vm1895 = vmor %vm1893, %vm1894
  %v1896 = vsel %vm1895, %v1888, %v1892
  %v1897 = vand.u32 2147483647, %v1566
  %vm1898 = vcmp.eq.f32.partialorder %v1897, 8.507059e+37
  %v1899 = vand.u32 %v1566, 2147483648
  %v1900 = vor.u32 1.1754944e-38, %v1899
  %v1901 = vsel %vm1898, %v1900, %v1896
  %v1902 = vmul.f32 %v1482, %v1901
  %v1903 = vrcp.pop %v1569
  %v1904 = vmul.f32 %v1569, %v1903
  %v1905 = vsub.f32 1.0, %v1904
  %v1906 = vmul.f32 %v1903, %v1905
  %v1907 = vadd.f32 %v1903, %v1906
  %vm1908 = vweird.f32 %v1569
  %vm1909 = vweird.f32 %v1903
  %vm1910 = vmor %vm1908, %vm1909
  %v1911 = vsel %vm1910, %v1903, %v1907
  %v1912 = vand.u32 2147483647, %v1569
  %vm1913 = vcmp.eq.f32.partialorder %v1912, 8.507059e+37
  %v1914 = vand.u32 %v1569, 2147483648
  %v1915 = vor.u32 1.1754944e-38, %v1914
  %v1916 = vsel %vm1913, %v1915, %v1911
  %v1917 = vmul.f32 %v1484, %v1916
  %v1918 = vrcp.pop %v1572
  %v1919 = vmul.f32 %v1572, %v1918
  %v1920 = vsub.f32 1.0, %v1919
  %v1921 = vmul.f32 %v1918, %v1920
  %v1922 = vadd.f32 %v1918, %v1921
  %vm1923 = vweird.f32 %v1572
  %vm1924 = vweird.f32 %v1918
  %vm1925 = vmor %vm1923, %vm1924
  %v1926 = vsel %vm1925, %v1918, %v1922
  %v1927 = vand.u32 2147483647, %v1572
  %vm1928 = vcmp.eq.f32.partialorder %v1927, 8.507059e+37
  %v1929 = vand.u32 %v1572, 2147483648
  %v1930 = vor.u32 1.1754944e-38, %v1929
  %v1931 = vsel %vm1928, %v1930, %v1926
  %v1932 = vmul.f32 %v1486, %v1931
  %v1933 = vrcp.pop %v1575
  %v1934 = vmul.f32 %v1575, %v1933
  %v1935 = vsub.f32 1.0, %v1934
  %v1936 = vmul.f32 %v1933, %v1935
  %v1937 = vadd.f32 %v1933, %v1936
  %vm1938 = vweird.f32 %v1575
  %vm1939 = vweird.f32 %v1933
  %vm1940 = vmor %vm1938, %vm1939
  %v1941 = vsel %vm1940, %v1933, %v1937
  %v1942 = vand.u32 2147483647, %v1575
  %vm1943 = vcmp.eq.f32.partialorder %v1942, 8.507059e+37
  %v1944 = vand.u32 %v1575, 2147483648
  %v1945 = vor.u32 1.1754944e-38, %v1944
  %v1946 = vsel %vm1943, %v1945, %v1941
  %v1947 = vmul.f32 %v1488, %v1946
  %v1948 = vrcp.pop %v1578
  %v1949 = vmul.f32 %v1578, %v1948
  %v1950 = vsub.f32 1.0, %v1949
  %v1951 = vmul.f32 %v1948, %v1950
  %v1952 = vadd.f32 %v1948, %v1951
  %vm1953 = vweird.f32 %v1578
  %vm1954 = vweird.f32 %v1948
  %vm1955 = vmor %vm1953, %vm1954
  %v1956 = vsel %vm1955, %v1948, %v1952
  %v1957 = vand.u32 2147483647, %v1578
  %vm1958 = vcmp.eq.f32.partialorder %v1957, 8.507059e+37
  %v1959 = vand.u32 %v1578, 2147483648
  %v1960 = vor.u32 1.1754944e-38, %v1959
  %v1961 = vsel %vm1958, %v1960, %v1956
  %v1962 = vmul.f32 %v1490, %v1961
  %v1963 = vrcp.pop %v1581
  %v1964 = vmul.f32 %v1581, %v1963
  %v1965 = vsub.f32 1.0, %v1964
  %v1966 = vmul.f32 %v1963, %v1965
  %v1967 = vadd.f32 %v1963, %v1966
  %vm1968 = vweird.f32 %v1581
  %vm1969 = vweird.f32 %v1963
  %vm1970 = vmor %vm1968, %vm1969
  %v1971 = vsel %vm1970, %v1963, %v1967
  %v1972 = vand.u32 2147483647, %v1581
  %vm1973 = vcmp.eq.f32.partialorder %v1972, 8.507059e+37
  %v1974 = vand.u32 %v1581, 2147483648
  %v1975 = vor.u32 1.1754944e-38, %v1974
  %v1976 = vsel %vm1973, %v1975, %v1971
  %v1977 = vmul.f32 %v1492, %v1976
  %v1978 = vrcp.pop %v1584
  %v1979 = vmul.f32 %v1584, %v1978
  %v1980 = vsub.f32 1.0, %v1979
  %v1981 = vmul.f32 %v1978, %v1980
  %v1982 = vadd.f32 %v1978, %v1981
  %vm1983 = vweird.f32 %v1584
  %vm1984 = vweird.f32 %v1978
  %vm1985 = vmor %vm1983, %vm1984
  %v1986 = vsel %vm1985, %v1978, %v1982
  %v1987 = vand.u32 2147483647, %v1584
  %vm1988 = vcmp.eq.f32.partialorder %v1987, 8.507059e+37
  %v1989 = vand.u32 %v1584, 2147483648
  %v1990 = vor.u32 1.1754944e-38, %v1989
  %v1991 = vsel %vm1988, %v1990, %v1986
  %v1992 = vmul.f32 %v1494, %v1991
  %v1993 = vrcp.pop %v1587
  %v1994 = vmul.f32 %v1587, %v1993
  %v1995 = vsub.f32 1.0, %v1994
  %v1996 = vmul.f32 %v1993, %v1995
  %v1997 = vadd.f32 %v1993, %v1996
  %vm1998 = vweird.f32 %v1587
  %vm1999 = vweird.f32 %v1993
  %vm2000 = vmor %vm1998, %vm1999
  %v2001 = vsel %vm2000, %v1993, %v1997
  %v2002 = vand.u32 2147483647, %v1587
  %vm2003 = vcmp.eq.f32.partialorder %v2002, 8.507059e+37
  %v2004 = vand.u32 %v1587, 2147483648
  %v2005 = vor.u32 1.1754944e-38, %v2004
  %v2006 = vsel %vm2003, %v2005, %v2001
  %v2007 = vmul.f32 %v1496, %v2006
  %v2008 = vrcp.pop %v1590
  %v2009 = vmul.f32 %v1590, %v2008
  %v2010 = vsub.f32 1.0, %v2009
  %v2011 = vmul.f32 %v2008, %v2010
  %v2012 = vadd.f32 %v2008, %v2011
  %vm2013 = vweird.f32 %v1590
  %vm2014 = vweird.f32 %v2008
  %vm2015 = vmor %vm2013, %vm2014
  %v2016 = vsel %vm2015, %v2008, %v2012
  %v2017 = vand.u32 2147483647, %v1590
  %vm2018 = vcmp.eq.f32.partialorder %v2017, 8.507059e+37
  %v2019 = vand.u32 %v1590, 2147483648
  %v2020 = vor.u32 1.1754944e-38, %v2019
  %v2021 = vsel %vm2018, %v2020, %v2016
  %v2022 = vmul.f32 %v1498, %v2021
  %v2023 = vrcp.pop %v1593
  %v2024 = vmul.f32 %v1593, %v2023
  %v2025 = vsub.f32 1.0, %v2024
  %v2026 = vmul.f32 %v2023, %v2025
  %v2027 = vadd.f32 %v2023, %v2026
  %vm2028 = vweird.f32 %v1593
  %vm2029 = vweird.f32 %v2023
  %vm2030 = vmor %vm2028, %vm2029
  %v2031 = vsel %vm2030, %v2023, %v2027
  %v2032 = vand.u32 2147483647, %v1593
  %vm2033 = vcmp.eq.f32.partialorder %v2032, 8.507059e+37
  %v2034 = vand.u32 %v1593, 2147483648
  %v2035 = vor.u32 1.1754944e-38, %v2034
  %v2036 = vsel %vm2033, %v2035, %v2031
  %v2037 = vmul.f32 %v1500, %v2036
  %v2038 = vrcp.pop %v1596
  %v2039 = vmul.f32 %v1596, %v2038
  %v2040 = vsub.f32 1.0, %v2039
  %v2041 = vmul.f32 %v2038, %v2040
  %v2042 = vadd.f32 %v2038, %v2041
  %vm2043 = vweird.f32 %v1596
  %vm2044 = vweird.f32 %v2038
  %vm2045 = vmor %vm2043, %vm2044
  %v2046 = vsel %vm2045, %v2038, %v2042
  %v2047 = vand.u32 2147483647, %v1596
  %vm2048 = vcmp.eq.f32.partialorder %v2047, 8.507059e+37
  %v2049 = vand.u32 %v1596, 2147483648
  %v2050 = vor.u32 1.1754944e-38, %v2049
  %v2051 = vsel %vm2048, %v2050, %v2046
  %v2052 = vmul.f32 %v1502, %v2051
  %v2053 = vrcp.pop %v1599
  %v2054 = vmul.f32 %v1599, %v2053
  %v2055 = vsub.f32 1.0, %v2054
  %v2056 = vmul.f32 %v2053, %v2055
  %v2057 = vadd.f32 %v2053, %v2056
  %vm2058 = vweird.f32 %v1599
  %vm2059 = vweird.f32 %v2053
  %vm2060 = vmor %vm2058, %vm2059
  %v2061 = vsel %vm2060, %v2053, %v2057
  %v2062 = vand.u32 2147483647, %v1599
  %vm2063 = vcmp.eq.f32.partialorder %v2062, 8.507059e+37
  %v2064 = vand.u32 %v1599, 2147483648
  %v2065 = vor.u32 1.1754944e-38, %v2064
  %v2066 = vsel %vm2063, %v2065, %v2061
  %v2067 = vmul.f32 %v1504, %v2066
  %v2068 = vrcp.pop %v1602
  %v2069 = vmul.f32 %v1602, %v2068
  %v2070 = vsub.f32 1.0, %v2069
  %v2071 = vmul.f32 %v2068, %v2070
  %v2072 = vadd.f32 %v2068, %v2071
  %vm2073 = vweird.f32 %v1602
  %vm2074 = vweird.f32 %v2068
  %vm2075 = vmor %vm2073, %vm2074
  %v2076 = vsel %vm2075, %v2068, %v2072
  %v2077 = vand.u32 2147483647, %v1602
  %vm2078 = vcmp.eq.f32.partialorder %v2077, 8.507059e+37
  %v2079 = vand.u32 %v1602, 2147483648
  %v2080 = vor.u32 1.1754944e-38, %v2079
  %v2081 = vsel %vm2078, %v2080, %v2076
  %v2082 = vmul.f32 %v1506, %v2081
  %v2084 = vsel %vm1314, %v1617, 0
  %v2087 = vsel %vm1314, %v1632, 0
  %v2090 = vsel %vm1314, %v1647, 0
  %v2093 = vsel %vm1314, %v1662, 0
  %2095 = vmatpush.msra.mxu0 0.0
  %2096 = vmatpush.msra.mxu0 0.0
  %2097 = vmatpush.msra.mxu0 0.0
  %2098 = vmatpush.msra.mxu0 0.0
  %2099 = vmatpush.msra.mxu0 0.0
  %2100 = vmatpush.msra.mxu0 0.0
  %2101 = vmatpush.msra.mxu0 0.0
  %2102 = vmatpush.msra.mxu0 0.0
  %2103 = vmatpush.msra.mxu0 0.0
  %2104 = vmatpush.msra.mxu0 0.0
  %2105 = vmatpush.msra.mxu0 0.0
  %2106 = vmatpush.msra.mxu0 0.0
  %2107 = vmatpush.msra.mxu0 0.0
  %2108 = vmatpush.msra.mxu0 0.0
  %2109 = vmatpush.msra.mxu0 %v821
  %2110 = vmatpush.msra.mxu0 %v818
  %2111 = vmatmul.f32.gmra.mxu0 %v2084
  %v2112 = vpop.f32.mrf.mxu0
  %v2113 = vadd.f32 0.0, %v2112
  %2114 = vmatmul.f32.gmra.mxu0 %v2087
  %v2115 = vpop.f32.mrf.mxu0
  %v2116 = vadd.f32 0.0, %v2115
  %2117 = vmatmul.f32.gmra.mxu0 %v2090
  %v2118 = vpop.f32.mrf.mxu0
  %v2119 = vadd.f32 0.0, %v2118
  %2120 = vmatmul.f32.gmra.mxu0 %v2093
  %v2121 = vpop.f32.mrf.mxu0
  %v2122 = vadd.f32 0.0, %v2121
  %2123 = vdwg.mxu0
  %v2125 = vsel %vm1314, %v1677, 0
  %v2128 = vsel %vm1314, %v1692, 0
  %v2131 = vsel %vm1314, %v1707, 0
  %v2134 = vsel %vm1314, %v1722, 0
  %2136 = vmatpush.msra.mxu0 0.0
  %2137 = vmatpush.msra.mxu0 0.0
  %2138 = vmatpush.msra.mxu0 0.0
  %2139 = vmatpush.msra.mxu0 0.0
  %2140 = vmatpush.msra.mxu0 0.0
  %2141 = vmatpush.msra.mxu0 0.0
  %2142 = vmatpush.msra.mxu0 0.0
  %2143 = vmatpush.msra.mxu0 0.0
  %2144 = vmatpush.msra.mxu0 0.0
  %2145 = vmatpush.msra.mxu0 0.0
  %2146 = vmatpush.msra.mxu0 0.0
  %2147 = vmatpush.msra.mxu0 0.0
  %2148 = vmatpush.msra.mxu0 0.0
  %2149 = vmatpush.msra.mxu0 0.0
  %2150 = vmatpush.msra.mxu0 %v914
  %2151 = vmatpush.msra.mxu0 %v912
  %2152 = vmatmul.f32.gmra.mxu0 %v2125
  %v2153 = vpop.f32.mrf.mxu0
  %v2154 = vadd.f32 0.0, %v2153
  %2155 = vmatmul.f32.gmra.mxu0 %v2128
  %v2156 = vpop.f32.mrf.mxu0
  %v2157 = vadd.f32 0.0, %v2156
  %2158 = vmatmul.f32.gmra.mxu0 %v2131
  %v2159 = vpop.f32.mrf.mxu0
  %v2160 = vadd.f32 0.0, %v2159
  %2161 = vmatmul.f32.gmra.mxu0 %v2134
  %v2162 = vpop.f32.mrf.mxu0
  %v2163 = vadd.f32 0.0, %v2162
  %2164 = vdwg.mxu0
  %v2166 = vsel %vm1314, %v1737, 0
  %v2169 = vsel %vm1314, %v1752, 0
  %v2172 = vsel %vm1314, %v1767, 0
  %v2175 = vsel %vm1314, %v1782, 0
  %2177 = vmatpush.msra.mxu0 0.0
  %2178 = vmatpush.msra.mxu0 0.0
  %2179 = vmatpush.msra.mxu0 0.0
  %2180 = vmatpush.msra.mxu0 0.0
  %2181 = vmatpush.msra.mxu0 0.0
  %2182 = vmatpush.msra.mxu0 0.0
  %2183 = vmatpush.msra.mxu0 0.0
  %2184 = vmatpush.msra.mxu0 0.0
  %2185 = vmatpush.msra.mxu0 0.0
  %2186 = vmatpush.msra.mxu0 0.0
  %2187 = vmatpush.msra.mxu0 0.0
  %2188 = vmatpush.msra.mxu0 0.0
  %2189 = vmatpush.msra.mxu0 0.0
  %2190 = vmatpush.msra.mxu0 0.0
  %2191 = vmatpush.msra.mxu0 %v920
  %2192 = vmatpush.msra.mxu0 %v918
  %2193 = vmatmul.f32.gmra.mxu0 %v2166
  %v2194 = vpop.f32.mrf.mxu0
  %v2195 = vadd.f32 0.0, %v2194
  %2196 = vmatmul.f32.gmra.mxu0 %v2169
  %v2197 = vpop.f32.mrf.mxu0
  %v2198 = vadd.f32 0.0, %v2197
  %2199 = vmatmul.f32.gmra.mxu0 %v2172
  %v2200 = vpop.f32.mrf.mxu0
  %v2201 = vadd.f32 0.0, %v2200
  %2202 = vmatmul.f32.gmra.mxu0 %v2175
  %v2203 = vpop.f32.mrf.mxu0
  %v2204 = vadd.f32 0.0, %v2203
  %2205 = vdwg.mxu0
  %v2207 = vsel %vm1314, %v1797, 0
  %v2210 = vsel %vm1314, %v1812, 0
  %v2213 = vsel %vm1314, %v1827, 0
  %v2216 = vsel %vm1314, %v1842, 0
  %2218 = vmatpush.msra.mxu0 0.0
  %2219 = vmatpush.msra.mxu0 0.0
  %2220 = vmatpush.msra.mxu0 0.0
  %2221 = vmatpush.msra.mxu0 0.0
  %2222 = vmatpush.msra.mxu0 0.0
  %2223 = vmatpush.msra.mxu0 0.0
  %2224 = vmatpush.msra.mxu0 0.0
  %2225 = vmatpush.msra.mxu0 0.0
  %2226 = vmatpush.msra.mxu0 0.0
  %2227 = vmatpush.msra.mxu0 0.0
  %2228 = vmatpush.msra.mxu0 0.0
  %2229 = vmatpush.msra.mxu0 0.0
  %2230 = vmatpush.msra.mxu0 0.0
  %2231 = vmatpush.msra.mxu0 0.0
  %2232 = vmatpush.msra.mxu0 %v926
  %2233 = vmatpush.msra.mxu0 %v924
  %2234 = vmatmul.f32.gmra.mxu0 %v2207
  %v2235 = vpop.f32.mrf.mxu0
  %v2236 = vadd.f32 0.0, %v2235
  %2237 = vmatmul.f32.gmra.mxu0 %v2210
  %v2238 = vpop.f32.mrf.mxu0
  %v2239 = vadd.f32 0.0, %v2238
  %2240 = vmatmul.f32.gmra.mxu0 %v2213
  %v2241 = vpop.f32.mrf.mxu0
  %v2242 = vadd.f32 0.0, %v2241
  %2243 = vmatmul.f32.gmra.mxu0 %v2216
  %v2244 = vpop.f32.mrf.mxu0
  %v2245 = vadd.f32 0.0, %v2244
  %2246 = vdwg.mxu0
  %v2248 = vsel %vm1314, %v1857, 0
  %v2251 = vsel %vm1314, %v1872, 0
  %v2254 = vsel %vm1314, %v1887, 0
  %v2257 = vsel %vm1314, %v1902, 0
  %2259 = vmatpush.msra.mxu0 0.0
  %2260 = vmatpush.msra.mxu0 0.0
  %2261 = vmatpush.msra.mxu0 0.0
  %2262 = vmatpush.msra.mxu0 0.0
  %2263 = vmatpush.msra.mxu0 0.0
  %2264 = vmatpush.msra.mxu0 0.0
  %2265 = vmatpush.msra.mxu0 0.0
  %2266 = vmatpush.msra.mxu0 0.0
  %2267 = vmatpush.msra.mxu0 0.0
  %2268 = vmatpush.msra.mxu0 0.0
  %2269 = vmatpush.msra.mxu0 0.0
  %2270 = vmatpush.msra.mxu0 0.0
  %2271 = vmatpush.msra.mxu0 0.0
  %2272 = vmatpush.msra.mxu0 0.0
  %2273 = vmatpush.msra.mxu0 %v932
  %2274 = vmatpush.msra.mxu0 %v930
  %2275 = vmatmul.f32.gmra.mxu0 %v2248
  %v2276 = vpop.f32.mrf.mxu0
  %v2277 = vadd.f32 0.0, %v2276
  %2278 = vmatmul.f32.gmra.mxu0 %v2251
  %v2279 = vpop.f32.mrf.mxu0
  %v2280 = vadd.f32 0.0, %v2279
  %2281 = vmatmul.f32.gmra.mxu0 %v2254
  %v2282 = vpop.f32.mrf.mxu0
  %v2283 = vadd.f32 0.0, %v2282
  %2284 = vmatmul.f32.gmra.mxu0 %v2257
  %v2285 = vpop.f32.mrf.mxu0
  %v2286 = vadd.f32 0.0, %v2285
  %2287 = vdwg.mxu0
  %v2289 = vsel %vm1314, %v1917, 0
  %v2292 = vsel %vm1314, %v1932, 0
  %v2295 = vsel %vm1314, %v1947, 0
  %v2298 = vsel %vm1314, %v1962, 0
  %2300 = vmatpush.msra.mxu0 0.0
  %2301 = vmatpush.msra.mxu0 0.0
  %2302 = vmatpush.msra.mxu0 0.0
  %2303 = vmatpush.msra.mxu0 0.0
  %2304 = vmatpush.msra.mxu0 0.0
  %2305 = vmatpush.msra.mxu0 0.0
  %2306 = vmatpush.msra.mxu0 0.0
  %2307 = vmatpush.msra.mxu0 0.0
  %2308 = vmatpush.msra.mxu0 0.0
  %2309 = vmatpush.msra.mxu0 0.0
  %2310 = vmatpush.msra.mxu0 0.0
  %2311 = vmatpush.msra.mxu0 0.0
  %2312 = vmatpush.msra.mxu0 0.0
  %2313 = vmatpush.msra.mxu0 0.0
  %2314 = vmatpush.msra.mxu0 %v938
  %2315 = vmatpush.msra.mxu0 %v936
  %2316 = vmatmul.f32.gmra.mxu0 %v2289
  %v2317 = vpop.f32.mrf.mxu0
  %v2318 = vadd.f32 0.0, %v2317
  %2319 = vmatmul.f32.gmra.mxu0 %v2292
  %v2320 = vpop.f32.mrf.mxu0
  %v2321 = vadd.f32 0.0, %v2320
  %2322 = vmatmul.f32.gmra.mxu0 %v2295
  %v2323 = vpop.f32.mrf.mxu0
  %v2324 = vadd.f32 0.0, %v2323
  %2325 = vmatmul.f32.gmra.mxu0 %v2298
  %v2326 = vpop.f32.mrf.mxu0
  %v2327 = vadd.f32 0.0, %v2326
  %2328 = vdwg.mxu0
  %v2330 = vsel %vm1314, %v1977, 0
  %v2333 = vsel %vm1314, %v1992, 0
  %v2336 = vsel %vm1314, %v2007, 0
  %v2339 = vsel %vm1314, %v2022, 0
  %2341 = vmatpush.msra.mxu0 0.0
  %2342 = vmatpush.msra.mxu0 0.0
  %2343 = vmatpush.msra.mxu0 0.0
  %2344 = vmatpush.msra.mxu0 0.0
  %2345 = vmatpush.msra.mxu0 0.0
  %2346 = vmatpush.msra.mxu0 0.0
  %2347 = vmatpush.msra.mxu0 0.0
  %2348 = vmatpush.msra.mxu0 0.0
  %2349 = vmatpush.msra.mxu0 0.0
  %2350 = vmatpush.msra.mxu0 0.0
  %2351 = vmatpush.msra.mxu0 0.0
  %2352 = vmatpush.msra.mxu0 0.0
  %2353 = vmatpush.msra.mxu0 0.0
  %2354 = vmatpush.msra.mxu0 0.0
  %2355 = vmatpush.msra.mxu0 %v944
  %2356 = vmatpush.msra.mxu0 %v942
  %2357 = vmatmul.f32.gmra.mxu0 %v2330
  %v2358 = vpop.f32.mrf.mxu0
  %v2359 = vadd.f32 0.0, %v2358
  %2360 = vmatmul.f32.gmra.mxu0 %v2333
  %v2361 = vpop.f32.mrf.mxu0
  %v2362 = vadd.f32 0.0, %v2361
  %2363 = vmatmul.f32.gmra.mxu0 %v2336
  %v2364 = vpop.f32.mrf.mxu0
  %v2365 = vadd.f32 0.0, %v2364
  %2366 = vmatmul.f32.gmra.mxu0 %v2339
  %v2367 = vpop.f32.mrf.mxu0
  %v2368 = vadd.f32 0.0, %v2367
  %2369 = vdwg.mxu0
  %v2371 = vsel %vm1314, %v2037, 0
  %v2374 = vsel %vm1314, %v2052, 0
  %v2377 = vsel %vm1314, %v2067, 0
  %v2380 = vsel %vm1314, %v2082, 0
  %2382 = vmatpush.msra.mxu0 0.0
  %2383 = vmatpush.msra.mxu0 0.0
  %2384 = vmatpush.msra.mxu0 0.0
  %2385 = vmatpush.msra.mxu0 0.0
  %2386 = vmatpush.msra.mxu0 0.0
  %2387 = vmatpush.msra.mxu0 0.0
  %2388 = vmatpush.msra.mxu0 0.0
  %2389 = vmatpush.msra.mxu0 0.0
  %2390 = vmatpush.msra.mxu0 0.0
  %2391 = vmatpush.msra.mxu0 0.0
  %2392 = vmatpush.msra.mxu0 0.0
  %2393 = vmatpush.msra.mxu0 0.0
  %2394 = vmatpush.msra.mxu0 0.0
  %2395 = vmatpush.msra.mxu0 0.0
  %2396 = vmatpush.msra.mxu0 %v950
  %2397 = vmatpush.msra.mxu0 %v948
  %2398 = vmatmul.f32.gmra.mxu0 %v2371
  %v2399 = vpop.f32.mrf.mxu0
  %v2400 = vadd.f32 0.0, %v2399
  %2401 = vmatmul.f32.gmra.mxu0 %v2374
  %v2402 = vpop.f32.mrf.mxu0
  %v2403 = vadd.f32 0.0, %v2402
  %2404 = vmatmul.f32.gmra.mxu0 %v2377
  %v2405 = vpop.f32.mrf.mxu0
  %v2406 = vadd.f32 0.0, %v2405
  %2407 = vmatmul.f32.gmra.mxu0 %v2380
  %v2408 = vpop.f32.mrf.mxu0
  %v2409 = vadd.f32 0.0, %v2408
  %2410 = vdwg.mxu0
  %2415 = vrot.lane.b32.xlu0 %v2154, 8
  %v2416 = vpop.permute.xlu0 %2415
  %2417 = vrot.lane.b32.xlu0 %v2157, 8
  %v2418 = vpop.permute.xlu0 %2417
  %2419 = vrot.lane.b32.xlu0 %v2160, 8
  %v2420 = vpop.permute.xlu0 %2419
  %2421 = vrot.lane.b32.xlu0 %v2163, 8
  %v2422 = vpop.permute.xlu0 %2421
  %2431 = vrot.lane.b32.xlu0 %v2195, 16
  %v2432 = vpop.permute.xlu0 %2431
  %2433 = vrot.lane.b32.xlu0 %v2198, 16
  %v2434 = vpop.permute.xlu0 %2433
  %2435 = vrot.lane.b32.xlu0 %v2201, 16
  %v2436 = vpop.permute.xlu0 %2435
  %2437 = vrot.lane.b32.xlu0 %v2204, 16
  %v2438 = vpop.permute.xlu0 %2437
  %2447 = vrot.lane.b32.xlu0 %v2236, 24
  %v2448 = vpop.permute.xlu0 %2447
  %2449 = vrot.lane.b32.xlu0 %v2239, 24
  %v2450 = vpop.permute.xlu0 %2449
  %2451 = vrot.lane.b32.xlu0 %v2242, 24
  %v2452 = vpop.permute.xlu0 %2451
  %2453 = vrot.lane.b32.xlu0 %v2245, 24
  %v2454 = vpop.permute.xlu0 %2453
  %v2459 = vsel %vm953, %v2113, %v2416
  %v2460 = vsel %vm953, %v2116, %v2418
  %v2461 = vsel %vm953, %v2119, %v2420
  %v2462 = vsel %vm953, %v2122, %v2422
  %v2463 = vsel %vm1314, %v2459, %v2432
  %v2464 = vsel %vm1314, %v2460, %v2434
  %v2465 = vsel %vm1314, %v2461, %v2436
  %v2466 = vsel %vm1314, %v2462, %v2438
  %vm2467 = vcmask 195584
  %v2468 = vsel %vm2467, %v2463, %v2448
  %v2469 = vsel %vm2467, %v2464, %v2450
  %v2470 = vsel %vm2467, %v2465, %v2452
  %v2471 = vsel %vm2467, %v2466, %v2454
  %2476 = vrot.lane.b32.xlu0 %v2318, 8
  %v2477 = vpop.permute.xlu0 %2476
  %2478 = vrot.lane.b32.xlu0 %v2321, 8
  %v2479 = vpop.permute.xlu0 %2478
  %2480 = vrot.lane.b32.xlu0 %v2324, 8
  %v2481 = vpop.permute.xlu0 %2480
  %2482 = vrot.lane.b32.xlu0 %v2327, 8
  %v2483 = vpop.permute.xlu0 %2482
  %2492 = vrot.lane.b32.xlu0 %v2359, 16
  %v2493 = vpop.permute.xlu0 %2492
  %2494 = vrot.lane.b32.xlu0 %v2362, 16
  %v2495 = vpop.permute.xlu0 %2494
  %2496 = vrot.lane.b32.xlu0 %v2365, 16
  %v2497 = vpop.permute.xlu0 %2496
  %2498 = vrot.lane.b32.xlu0 %v2368, 16
  %v2499 = vpop.permute.xlu0 %2498
  %2508 = vrot.lane.b32.xlu0 %v2400, 24
  %v2509 = vpop.permute.xlu0 %2508
  %2510 = vrot.lane.b32.xlu0 %v2403, 24
  %v2511 = vpop.permute.xlu0 %2510
  %2512 = vrot.lane.b32.xlu0 %v2406, 24
  %v2513 = vpop.permute.xlu0 %2512
  %2514 = vrot.lane.b32.xlu0 %v2409, 24
  %v2515 = vpop.permute.xlu0 %2514
  %v2520 = vsel %vm953, %v2277, %v2477
  %v2521 = vsel %vm953, %v2280, %v2479
  %v2522 = vsel %vm953, %v2283, %v2481
  %v2523 = vsel %vm953, %v2286, %v2483
  %v2524 = vsel %vm1314, %v2520, %v2493
  %v2525 = vsel %vm1314, %v2521, %v2495
  %v2526 = vsel %vm1314, %v2522, %v2497
  %v2527 = vsel %vm1314, %v2523, %v2499
  %v2528 = vsel %vm2467, %v2524, %v2509
  %v2529 = vsel %vm2467, %v2525, %v2511
  %v2530 = vsel %vm2467, %v2526, %v2513
  %v2531 = vsel %vm2467, %v2527, %v2515
  %v2532 = vld [vmem:[%s13] sm:$0xff]
  %v2533 = vld [vmem:[%s13 + $0x8] sm:$0xff]
  %v2534 = vld [vmem:[%s13 + $0x10] sm:$0xff]
  %v2535 = vld [vmem:[%s13 + $0x18] sm:$0xff]
  %v2536 = vld [vmem:[%s14] sm:$0x1]
  %v2538 = vperm.slane %v2536, 0
  %v2541 = vsel %vm204, %v2468, 0
  %v2544 = vsel %vm204, %v2469, 0
  %v2547 = vsel %vm204, %v2470, 0
  %v2550 = vsel %vm204, %v2471, 0
  %v2553 = vsel %vm204, %v2528, 0
  %v2556 = vsel %vm204, %v2529, 0
  %v2559 = vsel %vm204, %v2530, 0
  %v2562 = vsel %vm204, %v2531, 0
  %2564 = vmatpush.msra.mxu0 0.0
  %2565 = vmatpush.msra.mxu0 0.0
  %2566 = vmatpush.msra.mxu0 0.0
  %2567 = vmatpush.msra.mxu0 0.0
  %2568 = vmatpush.msra.mxu0 0.0
  %2569 = vmatpush.msra.mxu0 0.0
  %2570 = vmatpush.msra.mxu0 0.0
  %2571 = vmatpush.msra.mxu0 0.0
  %2572 = vmatpush.msra.mxu0 0.0
  %2573 = vmatpush.msra.mxu0 0.0
  %2574 = vmatpush.msra.mxu0 0.0
  %2575 = vmatpush.msra.mxu0 0.0
  %2576 = vmatpush.msra.mxu0 %v2535
  %2577 = vmatpush.msra.mxu0 %v2534
  %2578 = vmatpush.msra.mxu0 %v2533
  %2579 = vmatpush.msra.mxu0 %v2532
  %2580 = vmatmul.f32.gmra.mxu0 %v2541
  %v2581 = vpop.f32.mrf.mxu0
  %v2582 = vadd.f32 %v2538, %v2581
  %2583 = vmatmul.f32.gmra.mxu0 %v2544
  %v2584 = vpop.f32.mrf.mxu0
  %v2585 = vadd.f32 %v2538, %v2584
  %2586 = vmatmul.f32.gmra.mxu0 %v2547
  %v2587 = vpop.f32.mrf.mxu0
  %v2588 = vadd.f32 %v2538, %v2587
  %2589 = vmatmul.f32.gmra.mxu0 %v2550
  %v2590 = vpop.f32.mrf.mxu0
  %v2591 = vadd.f32 %v2538, %v2590
  %2592 = vmatmul.f32.gmra.mxu0 %v2553
  %v2593 = vpop.f32.mrf.mxu0
  %v2594 = vadd.f32 %v2538, %v2593
  %2595 = vmatmul.f32.gmra.mxu0 %v2556
  %v2596 = vpop.f32.mrf.mxu0
  %v2597 = vadd.f32 %v2538, %v2596
  %2598 = vmatmul.f32.gmra.mxu0 %v2559
  %v2599 = vpop.f32.mrf.mxu0
  %v2600 = vadd.f32 %v2538, %v2599
  %2601 = vmatmul.f32.gmra.mxu0 %v2562
  %v2602 = vpop.f32.mrf.mxu0
  %v2603 = vadd.f32 %v2538, %v2602
  %2604 = vdwg.mxu0
  %v2605 = vmul.f32 %v2582, %v288
  %v2606 = vmul.f32 %v2585, %v291
  %v2607 = vmul.f32 %v2588, %v294
  %v2608 = vmul.f32 %v2591, %v297
  %v2609 = vmul.f32 %v2594, %v300
  %v2610 = vmul.f32 %v2597, %v303
  %v2611 = vmul.f32 %v2600, %v306
  %v2612 = vmul.f32 %v2603, %v309
  %v2613 = vadd.f32 %v2605, %v182
  %v2614 = vadd.f32 %v2606, %v183
  %v2615 = vadd.f32 %v2607, %v184
  %v2616 = vadd.f32 %v2608, %v185
  %v2617 = vadd.f32 %v2609, %v186
  %v2618 = vadd.f32 %v2610, %v187
  %v2619 = vadd.f32 %v2611, %v188
  %v2620 = vadd.f32 %v2612, %v189
  %v2621 = vsel %vm204, %v2613, 0.0
  %2622 = vadd.xlane.f32.xlu0 %v2621
  %v2623 = vpop.xlane.xlu0 %2622
  %v2624 = vsel %vm204, %v2614, 0.0
  %2625 = vadd.xlane.f32.xlu0 %v2624
  %v2626 = vpop.xlane.xlu0 %2625
  %v2627 = vsel %vm204, %v2615, 0.0
  %2628 = vadd.xlane.f32.xlu0 %v2627
  %v2629 = vpop.xlane.xlu0 %2628
  %v2630 = vsel %vm204, %v2616, 0.0
  %2631 = vadd.xlane.f32.xlu0 %v2630
  %v2632 = vpop.xlane.xlu0 %2631
  %v2633 = vsel %vm204, %v2617, 0.0
  %2634 = vadd.xlane.f32.xlu0 %v2633
  %v2635 = vpop.xlane.xlu0 %2634
  %v2636 = vsel %vm204, %v2618, 0.0
  %2637 = vadd.xlane.f32.xlu0 %v2636
  %v2638 = vpop.xlane.xlu0 %2637
  %v2639 = vsel %vm204, %v2619, 0.0
  %2640 = vadd.xlane.f32.xlu0 %v2639
  %v2641 = vpop.xlane.xlu0 %2640
  %v2642 = vsel %vm204, %v2620, 0.0
  %2643 = vadd.xlane.f32.xlu0 %v2642
  %v2644 = vpop.xlane.xlu0 %2643
  %v2645 = vmul.f32 %v2623, %v341
  %v2646 = vmul.f32 %v2626, %v341
  %v2647 = vmul.f32 %v2629, %v341
  %v2648 = vmul.f32 %v2632, %v341
  %v2649 = vmul.f32 %v2635, %v341
  %v2650 = vmul.f32 %v2638, %v341
  %v2651 = vmul.f32 %v2641, %v341
  %v2652 = vmul.f32 %v2644, %v341
  %v2653 = vsub.f32 %v2613, %v2645
  %v2654 = vsub.f32 %v2614, %v2646
  %v2655 = vsub.f32 %v2615, %v2647
  %v2656 = vsub.f32 %v2616, %v2648
  %v2657 = vsub.f32 %v2617, %v2649
  %v2658 = vsub.f32 %v2618, %v2650
  %v2659 = vsub.f32 %v2619, %v2651
  %v2660 = vsub.f32 %v2620, %v2652
  %v2661 = vmul.f32 %v2653, %v2653
  %v2662 = vmul.f32 %v2654, %v2654
  %v2663 = vmul.f32 %v2655, %v2655
  %v2664 = vmul.f32 %v2656, %v2656
  %v2665 = vmul.f32 %v2657, %v2657
  %v2666 = vmul.f32 %v2658, %v2658
  %v2667 = vmul.f32 %v2659, %v2659
  %v2668 = vmul.f32 %v2660, %v2660
  %v2669 = vsel %vm204, %v2661, 0.0
  %2670 = vadd.xlane.f32.xlu0 %v2669
  %v2671 = vpop.xlane.xlu0 %2670
  %v2672 = vsel %vm204, %v2662, 0.0
  %2673 = vadd.xlane.f32.xlu0 %v2672
  %v2674 = vpop.xlane.xlu0 %2673
  %v2675 = vsel %vm204, %v2663, 0.0
  %2676 = vadd.xlane.f32.xlu0 %v2675
  %v2677 = vpop.xlane.xlu0 %2676
  %v2678 = vsel %vm204, %v2664, 0.0
  %2679 = vadd.xlane.f32.xlu0 %v2678
  %v2680 = vpop.xlane.xlu0 %2679
  %v2681 = vsel %vm204, %v2665, 0.0
  %2682 = vadd.xlane.f32.xlu0 %v2681
  %v2683 = vpop.xlane.xlu0 %2682
  %v2684 = vsel %vm204, %v2666, 0.0
  %2685 = vadd.xlane.f32.xlu0 %v2684
  %v2686 = vpop.xlane.xlu0 %2685
  %v2687 = vsel %vm204, %v2667, 0.0
  %2688 = vadd.xlane.f32.xlu0 %v2687
  %v2689 = vpop.xlane.xlu0 %2688
  %v2690 = vsel %vm204, %v2668, 0.0
  %2691 = vadd.xlane.f32.xlu0 %v2690
  %v2692 = vpop.xlane.xlu0 %2691
  %v2693 = vmul.f32 %v2671, %v341
  %v2694 = vmul.f32 %v2674, %v341
  %v2695 = vmul.f32 %v2677, %v341
  %v2696 = vmul.f32 %v2680, %v341
  %v2697 = vmul.f32 %v2683, %v341
  %v2698 = vmul.f32 %v2686, %v341
  %v2699 = vmul.f32 %v2689, %v341
  %v2700 = vmul.f32 %v2692, %v341
  %v2701 = vadd.f32 %v2693, 1e-06
  %v2702 = vadd.f32 %v2694, 1e-06
  %v2703 = vadd.f32 %v2695, 1e-06
  %v2704 = vadd.f32 %v2696, 1e-06
  %v2705 = vadd.f32 %v2697, 1e-06
  %v2706 = vadd.f32 %v2698, 1e-06
  %v2707 = vadd.f32 %v2699, 1e-06
  %v2708 = vadd.f32 %v2700, 1e-06
  %v2709 = vrsqrt.pop %v2701
  %v2710 = vmul.f32 %v2709, %v2701
  %v2711 = vmul.f32 %v2710, %v2709
  %v2712 = vmul.f32 0.5, %v2711
  %v2713 = vsub.f32 1.5, %v2712
  %v2714 = vmul.f32 %v2709, %v2713
  %vm2715 = vweird.f32 %v2701
  %vm2716 = vweird.f32 %v2709
  %vm2717 = vmor %vm2715, %vm2716
  %v2718 = vsel %vm2717, %v2709, %v2714
  %v2719 = vrsqrt.pop %v2702
  %v2720 = vmul.f32 %v2719, %v2702
  %v2721 = vmul.f32 %v2720, %v2719
  %v2722 = vmul.f32 0.5, %v2721
  %v2723 = vsub.f32 1.5, %v2722
  %v2724 = vmul.f32 %v2719, %v2723
  %vm2725 = vweird.f32 %v2702
  %vm2726 = vweird.f32 %v2719
  %vm2727 = vmor %vm2725, %vm2726
  %v2728 = vsel %vm2727, %v2719, %v2724
  %v2729 = vrsqrt.pop %v2703
  %v2730 = vmul.f32 %v2729, %v2703
  %v2731 = vmul.f32 %v2730, %v2729
  %v2732 = vmul.f32 0.5, %v2731
  %v2733 = vsub.f32 1.5, %v2732
  %v2734 = vmul.f32 %v2729, %v2733
  %vm2735 = vweird.f32 %v2703
  %vm2736 = vweird.f32 %v2729
  %vm2737 = vmor %vm2735, %vm2736
  %v2738 = vsel %vm2737, %v2729, %v2734
  %v2739 = vrsqrt.pop %v2704
  %v2740 = vmul.f32 %v2739, %v2704
  %v2741 = vmul.f32 %v2740, %v2739
  %v2742 = vmul.f32 0.5, %v2741
  %v2743 = vsub.f32 1.5, %v2742
  %v2744 = vmul.f32 %v2739, %v2743
  %vm2745 = vweird.f32 %v2704
  %vm2746 = vweird.f32 %v2739
  %vm2747 = vmor %vm2745, %vm2746
  %v2748 = vsel %vm2747, %v2739, %v2744
  %v2749 = vrsqrt.pop %v2705
  %v2750 = vmul.f32 %v2749, %v2705
  %v2751 = vmul.f32 %v2750, %v2749
  %v2752 = vmul.f32 0.5, %v2751
  %v2753 = vsub.f32 1.5, %v2752
  %v2754 = vmul.f32 %v2749, %v2753
  %vm2755 = vweird.f32 %v2705
  %vm2756 = vweird.f32 %v2749
  %vm2757 = vmor %vm2755, %vm2756
  %v2758 = vsel %vm2757, %v2749, %v2754
  %v2759 = vrsqrt.pop %v2706
  %v2760 = vmul.f32 %v2759, %v2706
  %v2761 = vmul.f32 %v2760, %v2759
  %v2762 = vmul.f32 0.5, %v2761
  %v2763 = vsub.f32 1.5, %v2762
  %v2764 = vmul.f32 %v2759, %v2763
  %vm2765 = vweird.f32 %v2706
  %vm2766 = vweird.f32 %v2759
  %vm2767 = vmor %vm2765, %vm2766
  %v2768 = vsel %vm2767, %v2759, %v2764
  %v2769 = vrsqrt.pop %v2707
  %v2770 = vmul.f32 %v2769, %v2707
  %v2771 = vmul.f32 %v2770, %v2769
  %v2772 = vmul.f32 0.5, %v2771
  %v2773 = vsub.f32 1.5, %v2772
  %v2774 = vmul.f32 %v2769, %v2773
  %vm2775 = vweird.f32 %v2707
  %vm2776 = vweird.f32 %v2769
  %vm2777 = vmor %vm2775, %vm2776
  %v2778 = vsel %vm2777, %v2769, %v2774
  %v2779 = vrsqrt.pop %v2708
  %v2780 = vmul.f32 %v2779, %v2708
  %v2781 = vmul.f32 %v2780, %v2779
  %v2782 = vmul.f32 0.5, %v2781
  %v2783 = vsub.f32 1.5, %v2782
  %v2784 = vmul.f32 %v2779, %v2783
  %vm2785 = vweird.f32 %v2708
  %vm2786 = vweird.f32 %v2779
  %vm2787 = vmor %vm2785, %vm2786
  %v2788 = vsel %vm2787, %v2779, %v2784
  %v2789 = vmul.f32 %v2653, %v2718
  %v2790 = vmul.f32 %v2654, %v2728
  %v2791 = vmul.f32 %v2655, %v2738
  %v2792 = vmul.f32 %v2656, %v2748
  %v2793 = vmul.f32 %v2657, %v2758
  %v2794 = vmul.f32 %v2658, %v2768
  %v2795 = vmul.f32 %v2659, %v2778
  %v2796 = vmul.f32 %v2660, %v2788
  %2805 = vrot.lane.b32.xlu0 %v494, 64
  %v2806 = vpop.permute.xlu0 %2805
  %2807 = vrot.lane.b32.xlu0 %v495, 64
  %v2808 = vpop.permute.xlu0 %2807
  %2809 = vrot.lane.b32.xlu0 %v496, 64
  %v2810 = vpop.permute.xlu0 %2809
  %2811 = vrot.lane.b32.xlu0 %v497, 64
  %v2812 = vpop.permute.xlu0 %2811
  %2813 = vrot.lane.b32.xlu0 %v498, 64
  %v2814 = vpop.permute.xlu0 %2813
  %2815 = vrot.lane.b32.xlu0 %v499, 64
  %v2816 = vpop.permute.xlu0 %2815
  %2817 = vrot.lane.b32.xlu0 %v500, 64
  %v2818 = vpop.permute.xlu0 %2817
  %2819 = vrot.lane.b32.xlu0 %v501, 64
  %v2820 = vpop.permute.xlu0 %2819
  %v2829 = vmul.f32 %v2789, %v2806
  %v2830 = vmul.f32 %v2790, %v2808
  %v2831 = vmul.f32 %v2791, %v2810
  %v2832 = vmul.f32 %v2792, %v2812
  %v2833 = vmul.f32 %v2793, %v2814
  %v2834 = vmul.f32 %v2794, %v2816
  %v2835 = vmul.f32 %v2795, %v2818
  %v2836 = vmul.f32 %v2796, %v2820
  %2837 = vrot.lane.b32.xlu0 %v247, 32
  %v2838 = vpop.permute.xlu0 %2837
  %2839 = vrot.lane.b32.xlu0 %v250, 32
  %v2840 = vpop.permute.xlu0 %2839
  %2841 = vrot.lane.b32.xlu0 %v253, 32
  %v2842 = vpop.permute.xlu0 %2841
  %2843 = vrot.lane.b32.xlu0 %v256, 32
  %v2844 = vpop.permute.xlu0 %2843
  %2845 = vrot.lane.b32.xlu0 %v259, 32
  %v2846 = vpop.permute.xlu0 %2845
  %2847 = vrot.lane.b32.xlu0 %v262, 32
  %v2848 = vpop.permute.xlu0 %2847
  %2849 = vrot.lane.b32.xlu0 %v265, 32
  %v2850 = vpop.permute.xlu0 %2849
  %2851 = vrot.lane.b32.xlu0 %v268, 32
  %v2852 = vpop.permute.xlu0 %2851
  %v2861 = vadd.f32 %v2829, %v2838
  %v2862 = vadd.f32 %v2830, %v2840
  %v2863 = vadd.f32 %v2831, %v2842
  %v2864 = vadd.f32 %v2832, %v2844
  %v2865 = vadd.f32 %v2833, %v2846
  %v2866 = vadd.f32 %v2834, %v2848
  %v2867 = vadd.f32 %v2835, %v2850
  %v2868 = vadd.f32 %v2836, %v2852
  %v2869 = vld [vmem:[%s15] sm:$0xff]
  %v2870 = vld [vmem:[%s15 + $0x8] sm:$0xff]
  %v2871 = vld [vmem:[%s15 + $0x10] sm:$0xff]
  %v2872 = vld [vmem:[%s15 + $0x18] sm:$0xff]
  %v2873 = vld [vmem:[%s16] sm:$0x1]
  %v2875 = vperm.slane %v2873, 0
  %v2878 = vsel %vm204, %v2861, 0
  %v2881 = vsel %vm204, %v2862, 0
  %v2884 = vsel %vm204, %v2863, 0
  %v2887 = vsel %vm204, %v2864, 0
  %v2890 = vsel %vm204, %v2865, 0
  %v2893 = vsel %vm204, %v2866, 0
  %v2896 = vsel %vm204, %v2867, 0
  %v2899 = vsel %vm204, %v2868, 0
  %2901 = vmatpush.msra.mxu0 0.0
  %2902 = vmatpush.msra.mxu0 0.0
  %2903 = vmatpush.msra.mxu0 0.0
  %2904 = vmatpush.msra.mxu0 0.0
  %2905 = vmatpush.msra.mxu0 0.0
  %2906 = vmatpush.msra.mxu0 0.0
  %2907 = vmatpush.msra.mxu0 0.0
  %2908 = vmatpush.msra.mxu0 0.0
  %2909 = vmatpush.msra.mxu0 0.0
  %2910 = vmatpush.msra.mxu0 0.0
  %2911 = vmatpush.msra.mxu0 0.0
  %2912 = vmatpush.msra.mxu0 0.0
  %2913 = vmatpush.msra.mxu0 %v2872
  %2914 = vmatpush.msra.mxu0 %v2871
  %2915 = vmatpush.msra.mxu0 %v2870
  %2916 = vmatpush.msra.mxu0 %v2869
  %2917 = vmatmul.f32.gmra.mxu0 %v2878
  %v2918 = vpop.f32.mrf.mxu0
  %v2919 = vadd.f32 %v2875, %v2918
  %2920 = vmatmul.f32.gmra.mxu0 %v2881
  %v2921 = vpop.f32.mrf.mxu0
  %v2922 = vadd.f32 %v2875, %v2921
  %2923 = vmatmul.f32.gmra.mxu0 %v2884
  %v2924 = vpop.f32.mrf.mxu0
  %v2925 = vadd.f32 %v2875, %v2924
  %2926 = vmatmul.f32.gmra.mxu0 %v2887
  %v2927 = vpop.f32.mrf.mxu0
  %v2928 = vadd.f32 %v2875, %v2927
  %2929 = vmatmul.f32.gmra.mxu0 %v2890
  %v2930 = vpop.f32.mrf.mxu0
  %v2931 = vadd.f32 %v2875, %v2930
  %2932 = vmatmul.f32.gmra.mxu0 %v2893
  %v2933 = vpop.f32.mrf.mxu0
  %v2934 = vadd.f32 %v2875, %v2933
  %2935 = vmatmul.f32.gmra.mxu0 %v2896
  %v2936 = vpop.f32.mrf.mxu0
  %v2937 = vadd.f32 %v2875, %v2936
  %2938 = vmatmul.f32.gmra.mxu0 %v2899
  %v2939 = vpop.f32.mrf.mxu0
  %v2940 = vadd.f32 %v2875, %v2939
  %2941 = vdwg.mxu0
  %v2942 = vmul.f32 %v2919, 0.5
  %v2943 = vmul.f32 %v2922, 0.5
  %v2944 = vmul.f32 %v2925, 0.5
  %v2945 = vmul.f32 %v2928, 0.5
  %v2946 = vmul.f32 %v2931, 0.5
  %v2947 = vmul.f32 %v2934, 0.5
  %v2948 = vmul.f32 %v2937, 0.5
  %v2949 = vmul.f32 %v2940, 0.5
  %v2950 = vmul.f32 %v2919, 0.044715
  %v2951 = vmul.f32 %v2922, 0.044715
  %v2952 = vmul.f32 %v2925, 0.044715
  %v2953 = vmul.f32 %v2928, 0.044715
  %v2954 = vmul.f32 %v2931, 0.044715
  %v2955 = vmul.f32 %v2934, 0.044715
  %v2956 = vmul.f32 %v2937, 0.044715
  %v2957 = vmul.f32 %v2940, 0.044715
  %v2958 = vmul.f32 %v2950, %v2919
  %v2959 = vmul.f32 %v2951, %v2922
  %v2960 = vmul.f32 %v2952, %v2925
  %v2961 = vmul.f32 %v2953, %v2928
  %v2962 = vmul.f32 %v2954, %v2931
  %v2963 = vmul.f32 %v2955, %v2934
  %v2964 = vmul.f32 %v2956, %v2937
  %v2965 = vmul.f32 %v2957, %v2940
  %v2966 = vmul.f32 %v2958, %v2919
  %v2967 = vmul.f32 %v2959, %v2922
  %v2968 = vmul.f32 %v2960, %v2925
  %v2969 = vmul.f32 %v2961, %v2928
  %v2970 = vmul.f32 %v2962, %v2931
  %v2971 = vmul.f32 %v2963, %v2934
  %v2972 = vmul.f32 %v2964, %v2937
  %v2973 = vmul.f32 %v2965, %v2940
  %v2974 = vadd.f32 %v2919, %v2966
  %v2975 = vadd.f32 %v2922, %v2967
  %v2976 = vadd.f32 %v2925, %v2968
  %v2977 = vadd.f32 %v2928, %v2969
  %v2978 = vadd.f32 %v2931, %v2970
  %v2979 = vadd.f32 %v2934, %v2971
  %v2980 = vadd.f32 %v2937, %v2972
  %v2981 = vadd.f32 %v2940, %v2973
  %v2982 = vmul.f32 %v2974, 0.7978846
  %v2983 = vmul.f32 %v2975, 0.7978846
  %v2984 = vmul.f32 %v2976, 0.7978846
  %v2985 = vmul.f32 %v2977, 0.7978846
  %v2986 = vmul.f32 %v2978, 0.7978846
  %v2987 = vmul.f32 %v2979, 0.7978846
  %v2988 = vmul.f32 %v2980, 0.7978846
  %v2989 = vmul.f32 %v2981, 0.7978846
  %v2990 = vtanh.pop %v2982
  %v2991 = vtanh.pop %v2983
  %v2992 = vtanh.pop %v2984
  %v2993 = vtanh.pop %v2985
  %v2994 = vtanh.pop %v2986
  %v2995 = vtanh.pop %v2987
  %v2996 = vtanh.pop %v2988
  %v2997 = vtanh.pop %v2989
  %v2998 = vadd.f32 %v2990, 1.0
  %v2999 = vadd.f32 %v2991, 1.0
  %v3000 = vadd.f32 %v2992, 1.0
  %v3001 = vadd.f32 %v2993, 1.0
  %v3002 = vadd.f32 %v2994, 1.0
  %v3003 = vadd.f32 %v2995, 1.0
  %v3004 = vadd.f32 %v2996, 1.0
  %v3005 = vadd.f32 %v2997, 1.0
  %v3006 = vmul.f32 %v2942, %v2998
  %v3007 = vmul.f32 %v2943, %v2999
  %v3008 = vmul.f32 %v2944, %v3000
  %v3009 = vmul.f32 %v2945, %v3001
  %v3010 = vmul.f32 %v2946, %v3002
  %v3011 = vmul.f32 %v2947, %v3003
  %v3012 = vmul.f32 %v2948, %v3004
  %v3013 = vmul.f32 %v2949, %v3005
  %v3014 = vld [vmem:[%s17] sm:$0xff]
  %v3015 = vld [vmem:[%s17 + $0x8] sm:$0xff]
  %v3016 = vld [vmem:[%s17 + $0x10] sm:$0xff]
  %v3017 = vld [vmem:[%s17 + $0x18] sm:$0xff]
  %v3018 = vld [vmem:[%s17 + $0x20] sm:$0xff]
  %v3019 = vld [vmem:[%s17 + $0x28] sm:$0xff]
  %v3020 = vld [vmem:[%s17 + $0x30] sm:$0xff]
  %v3021 = vld [vmem:[%s17 + $0x38] sm:$0xff]
  %v3022 = vld [vmem:[%s18] sm:$0x1]
  %v3024 = vperm.slane %v3022, 0
  %vm3026 = vcmask 523264
  %v3028 = vsel %vm3026, %v3006, 0
  %v3031 = vsel %vm3026, %v3007, 0
  %v3034 = vsel %vm3026, %v3008, 0
  %v3037 = vsel %vm3026, %v3009, 0
  %v3040 = vsel %vm3026, %v3010, 0
  %v3043 = vsel %vm3026, %v3011, 0
  %v3046 = vsel %vm3026, %v3012, 0
  %v3049 = vsel %vm3026, %v3013, 0
  %3051 = vmatpush.msra.mxu0 0.0
  %3052 = vmatpush.msra.mxu0 0.0
  %3053 = vmatpush.msra.mxu0 0.0
  %3054 = vmatpush.msra.mxu0 0.0
  %3055 = vmatpush.msra.mxu0 0.0
  %3056 = vmatpush.msra.mxu0 0.0
  %3057 = vmatpush.msra.mxu0 0.0
  %3058 = vmatpush.msra.mxu0 0.0
  %3059 = vmatpush.msra.mxu0 %v3021
  %3060 = vmatpush.msra.mxu0 %v3020
  %3061 = vmatpush.msra.mxu0 %v3019
  %3062 = vmatpush.msra.mxu0 %v3018
  %3063 = vmatpush.msra.mxu0 %v3017
  %3064 = vmatpush.msra.mxu0 %v3016
  %3065 = vmatpush.msra.mxu0 %v3015
  %3066 = vmatpush.msra.mxu0 %v3014
  %3067 = vmatmul.f32.gmra.mxu0 %v3028
  %v3068 = vpop.f32.mrf.mxu0
  %v3069 = vadd.f32 %v3024, %v3068
  %3070 = vmatmul.f32.gmra.mxu0 %v3031
  %v3071 = vpop.f32.mrf.mxu0
  %v3072 = vadd.f32 %v3024, %v3071
  %3073 = vmatmul.f32.gmra.mxu0 %v3034
  %v3074 = vpop.f32.mrf.mxu0
  %v3075 = vadd.f32 %v3024, %v3074
  %3076 = vmatmul.f32.gmra.mxu0 %v3037
  %v3077 = vpop.f32.mrf.mxu0
  %v3078 = vadd.f32 %v3024, %v3077
  %3079 = vmatmul.f32.gmra.mxu0 %v3040
  %v3080 = vpop.f32.mrf.mxu0
  %v3081 = vadd.f32 %v3024, %v3080
  %3082 = vmatmul.f32.gmra.mxu0 %v3043
  %v3083 = vpop.f32.mrf.mxu0
  %v3084 = vadd.f32 %v3024, %v3083
  %3085 = vmatmul.f32.gmra.mxu0 %v3046
  %v3086 = vpop.f32.mrf.mxu0
  %v3087 = vadd.f32 %v3024, %v3086
  %3088 = vmatmul.f32.gmra.mxu0 %v3049
  %v3089 = vpop.f32.mrf.mxu0
  %v3090 = vadd.f32 %v3024, %v3089
  %3091 = vdwg.mxu0
  %3100 = vrot.lane.b32.xlu0 %v288, 96
  %v3101 = vpop.permute.xlu0 %3100
  %3102 = vrot.lane.b32.xlu0 %v291, 96
  %v3103 = vpop.permute.xlu0 %3102
  %3104 = vrot.lane.b32.xlu0 %v294, 96
  %v3105 = vpop.permute.xlu0 %3104
  %3106 = vrot.lane.b32.xlu0 %v297, 96
  %v3107 = vpop.permute.xlu0 %3106
  %3108 = vrot.lane.b32.xlu0 %v300, 96
  %v3109 = vpop.permute.xlu0 %3108
  %3110 = vrot.lane.b32.xlu0 %v303, 96
  %v3111 = vpop.permute.xlu0 %3110
  %3112 = vrot.lane.b32.xlu0 %v306, 96
  %v3113 = vpop.permute.xlu0 %3112
  %3114 = vrot.lane.b32.xlu0 %v309, 96
  %v3115 = vpop.permute.xlu0 %3114
  %v3124 = vmul.f32 %v3069, %v3101
  %v3125 = vmul.f32 %v3072, %v3103
  %v3126 = vmul.f32 %v3075, %v3105
  %v3127 = vmul.f32 %v3078, %v3107
  %v3128 = vmul.f32 %v3081, %v3109
  %v3129 = vmul.f32 %v3084, %v3111
  %v3130 = vmul.f32 %v3087, %v3113
  %v3131 = vmul.f32 %v3090, %v3115
  %v3132 = vadd.f32 %v3124, %v2613
  %v3133 = vadd.f32 %v3125, %v2614
  %v3134 = vadd.f32 %v3126, %v2615
  %v3135 = vadd.f32 %v3127, %v2616
  %v3136 = vadd.f32 %v3128, %v2617
  %v3137 = vadd.f32 %v3129, %v2618
  %v3138 = vadd.f32 %v3130, %v2619
  %v3139 = vadd.f32 %v3131, %v2620
  %s3140 = scalar_lea.vmem %s19, 64
  %v3141 = vld [vmem:[%s3140] sm:$0xff]
  %v3142 = vld [vmem:[%s3140 + $0x8] sm:$0xff]
  %v3143 = vld [vmem:[%s3140 + $0x10] sm:$0xff]
  %v3144 = vld [vmem:[%s3140 + $0x18] sm:$0xff]
  %v3145 = vld [vmem:[%s3140 + $0x20] sm:$0xff]
  %v3146 = vld [vmem:[%s3140 + $0x28] sm:$0xff]
  %v3147 = vld [vmem:[%s3140 + $0x30] sm:$0xff]
  %v3148 = vld [vmem:[%s3140 + $0x38] sm:$0xff]
  %s3149 = scalar_lea.vmem %s20, 2
  %v3150 = vld [vmem:[%s3149] sm:$0x3]
  %v3152 = vperm.slane %v3150, 0
  %v3153 = vperm.slane %v3150, 1
  %3156 = vmatpush.msra.mxu0 0.0
  %3157 = vmatpush.msra.mxu0 0.0
  %3158 = vmatpush.msra.mxu0 0.0
  %3159 = vmatpush.msra.mxu0 0.0
  %3160 = vmatpush.msra.mxu0 0.0
  %3161 = vmatpush.msra.mxu0 0.0
  %3162 = vmatpush.msra.mxu0 0.0
  %3163 = vmatpush.msra.mxu0 0.0
  %3164 = vmatpush.msra.mxu0 0.0
  %3165 = vmatpush.msra.mxu0 0.0
  %3166 = vmatpush.msra.mxu0 0.0
  %3167 = vmatpush.msra.mxu0 0.0
  %3168 = vmatpush.msra.mxu0 %v3147
  %3169 = vmatpush.msra.mxu0 %v3145
  %3170 = vmatpush.msra.mxu0 %v3143
  %3171 = vmatpush.msra.mxu0 %v3141
  %3172 = vmatmul.f32.gmra.mxu0 %v206
  %v3173 = vpop.f32.mrf.mxu0
  %v3174 = vadd.f32 %v3152, %v3173
  %3175 = vmatmul.f32.gmra.mxu0 %v209
  %v3176 = vpop.f32.mrf.mxu0
  %v3177 = vadd.f32 %v3152, %v3176
  %3178 = vmatmul.f32.gmra.mxu0 %v212
  %v3179 = vpop.f32.mrf.mxu0
  %v3180 = vadd.f32 %v3152, %v3179
  %3181 = vmatmul.f32.gmra.mxu0 %v215
  %v3182 = vpop.f32.mrf.mxu0
  %v3183 = vadd.f32 %v3152, %v3182
  %3184 = vmatmul.f32.gmra.mxu0 %v218
  %v3185 = vpop.f32.mrf.mxu0
  %v3186 = vadd.f32 %v3152, %v3185
  %3187 = vmatmul.f32.gmra.mxu0 %v221
  %v3188 = vpop.f32.mrf.mxu0
  %v3189 = vadd.f32 %v3152, %v3188
  %3190 = vmatmul.f32.gmra.mxu0 %v224
  %v3191 = vpop.f32.mrf.mxu0
  %v3192 = vadd.f32 %v3152, %v3191
  %3193 = vmatmul.f32.gmra.mxu0 %v227
  %v3194 = vpop.f32.mrf.mxu0
  %v3195 = vadd.f32 %v3152, %v3194
  %3196 = vdwg.mxu0
  %3197 = vmatpush.msra.mxu0 0.0
  %3198 = vmatpush.msra.mxu0 0.0
  %3199 = vmatpush.msra.mxu0 0.0
  %3200 = vmatpush.msra.mxu0 0.0
  %3201 = vmatpush.msra.mxu0 0.0
  %3202 = vmatpush.msra.mxu0 0.0
  %3203 = vmatpush.msra.mxu0 0.0
  %3204 = vmatpush.msra.mxu0 0.0
  %3205 = vmatpush.msra.mxu0 0.0
  %3206 = vmatpush.msra.mxu0 0.0
  %3207 = vmatpush.msra.mxu0 0.0
  %3208 = vmatpush.msra.mxu0 0.0
  %3209 = vmatpush.msra.mxu0 %v3148
  %3210 = vmatpush.msra.mxu0 %v3146
  %3211 = vmatpush.msra.mxu0 %v3144
  %3212 = vmatpush.msra.mxu0 %v3142
  %3213 = vmatmul.f32.gmra.mxu0 %v206
  %v3214 = vpop.f32.mrf.mxu0
  %v3215 = vadd.f32 %v3153, %v3214
  %3216 = vmatmul.f32.gmra.mxu0 %v209
  %v3217 = vpop.f32.mrf.mxu0
  %v3218 = vadd.f32 %v3153, %v3217
  %3219 = vmatmul.f32.gmra.mxu0 %v212
  %v3220 = vpop.f32.mrf.mxu0
  %v3221 = vadd.f32 %v3153, %v3220
  %3222 = vmatmul.f32.gmra.mxu0 %v215
  %v3223 = vpop.f32.mrf.mxu0
  %v3224 = vadd.f32 %v3153, %v3223
  %3225 = vmatmul.f32.gmra.mxu0 %v218
  %v3226 = vpop.f32.mrf.mxu0
  %v3227 = vadd.f32 %v3153, %v3226
  %3228 = vmatmul.f32.gmra.mxu0 %v221
  %v3229 = vpop.f32.mrf.mxu0
  %v3230 = vadd.f32 %v3153, %v3229
  %3231 = vmatmul.f32.gmra.mxu0 %v224
  %v3232 = vpop.f32.mrf.mxu0
  %v3233 = vadd.f32 %v3153, %v3232
  %3234 = vmatmul.f32.gmra.mxu0 %v227
  %v3235 = vpop.f32.mrf.mxu0
  %v3236 = vadd.f32 %v3153, %v3235
  %3237 = vdwg.mxu0
  %v3238 = vsel %vm204, %v3132, 0.0
  %3239 = vadd.xlane.f32.xlu0 %v3238
  %v3240 = vpop.xlane.xlu0 %3239
  %v3241 = vsel %vm204, %v3133, 0.0
  %3242 = vadd.xlane.f32.xlu0 %v3241
  %v3243 = vpop.xlane.xlu0 %3242
  %v3244 = vsel %vm204, %v3134, 0.0
  %3245 = vadd.xlane.f32.xlu0 %v3244
  %v3246 = vpop.xlane.xlu0 %3245
  %v3247 = vsel %vm204, %v3135, 0.0
  %3248 = vadd.xlane.f32.xlu0 %v3247
  %v3249 = vpop.xlane.xlu0 %3248
  %v3250 = vsel %vm204, %v3136, 0.0
  %3251 = vadd.xlane.f32.xlu0 %v3250
  %v3252 = vpop.xlane.xlu0 %3251
  %v3253 = vsel %vm204, %v3137, 0.0
  %3254 = vadd.xlane.f32.xlu0 %v3253
  %v3255 = vpop.xlane.xlu0 %3254
  %v3256 = vsel %vm204, %v3138, 0.0
  %3257 = vadd.xlane.f32.xlu0 %v3256
  %v3258 = vpop.xlane.xlu0 %3257
  %v3259 = vsel %vm204, %v3139, 0.0
  %3260 = vadd.xlane.f32.xlu0 %v3259
  %v3261 = vpop.xlane.xlu0 %3260
  %v3262 = vmul.f32 %v3240, %v341
  %v3263 = vmul.f32 %v3243, %v341
  %v3264 = vmul.f32 %v3246, %v341
  %v3265 = vmul.f32 %v3249, %v341
  %v3266 = vmul.f32 %v3252, %v341
  %v3267 = vmul.f32 %v3255, %v341
  %v3268 = vmul.f32 %v3258, %v341
  %v3269 = vmul.f32 %v3261, %v341
  %v3270 = vsub.f32 %v3132, %v3262
  %v3271 = vsub.f32 %v3133, %v3263
  %v3272 = vsub.f32 %v3134, %v3264
  %v3273 = vsub.f32 %v3135, %v3265
  %v3274 = vsub.f32 %v3136, %v3266
  %v3275 = vsub.f32 %v3137, %v3267
  %v3276 = vsub.f32 %v3138, %v3268
  %v3277 = vsub.f32 %v3139, %v3269
  %v3278 = vmul.f32 %v3270, %v3270
  %v3279 = vmul.f32 %v3271, %v3271
  %v3280 = vmul.f32 %v3272, %v3272
  %v3281 = vmul.f32 %v3273, %v3273
  %v3282 = vmul.f32 %v3274, %v3274
  %v3283 = vmul.f32 %v3275, %v3275
  %v3284 = vmul.f32 %v3276, %v3276
  %v3285 = vmul.f32 %v3277, %v3277
  %v3286 = vsel %vm204, %v3278, 0.0
  %3287 = vadd.xlane.f32.xlu0 %v3286
  %v3288 = vpop.xlane.xlu0 %3287
  %v3289 = vsel %vm204, %v3279, 0.0
  %3290 = vadd.xlane.f32.xlu0 %v3289
  %v3291 = vpop.xlane.xlu0 %3290
  %v3292 = vsel %vm204, %v3280, 0.0
  %3293 = vadd.xlane.f32.xlu0 %v3292
  %v3294 = vpop.xlane.xlu0 %3293
  %v3295 = vsel %vm204, %v3281, 0.0
  %3296 = vadd.xlane.f32.xlu0 %v3295
  %v3297 = vpop.xlane.xlu0 %3296
  %v3298 = vsel %vm204, %v3282, 0.0
  %3299 = vadd.xlane.f32.xlu0 %v3298
  %v3300 = vpop.xlane.xlu0 %3299
  %v3301 = vsel %vm204, %v3283, 0.0
  %3302 = vadd.xlane.f32.xlu0 %v3301
  %v3303 = vpop.xlane.xlu0 %3302
  %v3304 = vsel %vm204, %v3284, 0.0
  %3305 = vadd.xlane.f32.xlu0 %v3304
  %v3306 = vpop.xlane.xlu0 %3305
  %v3307 = vsel %vm204, %v3285, 0.0
  %3308 = vadd.xlane.f32.xlu0 %v3307
  %v3309 = vpop.xlane.xlu0 %3308
  %v3310 = vmul.f32 %v3288, %v341
  %v3311 = vmul.f32 %v3291, %v341
  %v3312 = vmul.f32 %v3294, %v341
  %v3313 = vmul.f32 %v3297, %v341
  %v3314 = vmul.f32 %v3300, %v341
  %v3315 = vmul.f32 %v3303, %v341
  %v3316 = vmul.f32 %v3306, %v341
  %v3317 = vmul.f32 %v3309, %v341
  %v3318 = vadd.f32 %v3310, 1e-06
  %v3319 = vadd.f32 %v3311, 1e-06
  %v3320 = vadd.f32 %v3312, 1e-06
  %v3321 = vadd.f32 %v3313, 1e-06
  %v3322 = vadd.f32 %v3314, 1e-06
  %v3323 = vadd.f32 %v3315, 1e-06
  %v3324 = vadd.f32 %v3316, 1e-06
  %v3325 = vadd.f32 %v3317, 1e-06
  %v3326 = vrsqrt.pop %v3318
  %v3327 = vmul.f32 %v3326, %v3318
  %v3328 = vmul.f32 %v3327, %v3326
  %v3329 = vmul.f32 0.5, %v3328
  %v3330 = vsub.f32 1.5, %v3329
  %v3331 = vmul.f32 %v3326, %v3330
  %vm3332 = vweird.f32 %v3318
  %vm3333 = vweird.f32 %v3326
  %vm3334 = vmor %vm3332, %vm3333
  %v3335 = vsel %vm3334, %v3326, %v3331
  %v3336 = vrsqrt.pop %v3319
  %v3337 = vmul.f32 %v3336, %v3319
  %v3338 = vmul.f32 %v3337, %v3336
  %v3339 = vmul.f32 0.5, %v3338
  %v3340 = vsub.f32 1.5, %v3339
  %v3341 = vmul.f32 %v3336, %v3340
  %vm3342 = vweird.f32 %v3319
  %vm3343 = vweird.f32 %v3336
  %vm3344 = vmor %vm3342, %vm3343
  %v3345 = vsel %vm3344, %v3336, %v3341
  %v3346 = vrsqrt.pop %v3320
  %v3347 = vmul.f32 %v3346, %v3320
  %v3348 = vmul.f32 %v3347, %v3346
  %v3349 = vmul.f32 0.5, %v3348
  %v3350 = vsub.f32 1.5, %v3349
  %v3351 = vmul.f32 %v3346, %v3350
  %vm3352 = vweird.f32 %v3320
  %vm3353 = vweird.f32 %v3346
  %vm3354 = vmor %vm3352, %vm3353
  %v3355 = vsel %vm3354, %v3346, %v3351
  %v3356 = vrsqrt.pop %v3321
  %v3357 = vmul.f32 %v3356, %v3321
  %v3358 = vmul.f32 %v3357, %v3356
  %v3359 = vmul.f32 0.5, %v3358
  %v3360 = vsub.f32 1.5, %v3359
  %v3361 = vmul.f32 %v3356, %v3360
  %vm3362 = vweird.f32 %v3321
  %vm3363 = vweird.f32 %v3356
  %vm3364 = vmor %vm3362, %vm3363
  %v3365 = vsel %vm3364, %v3356, %v3361
  %v3366 = vrsqrt.pop %v3322
  %v3367 = vmul.f32 %v3366, %v3322
  %v3368 = vmul.f32 %v3367, %v3366
  %v3369 = vmul.f32 0.5, %v3368
  %v3370 = vsub.f32 1.5, %v3369
  %v3371 = vmul.f32 %v3366, %v3370
  %vm3372 = vweird.f32 %v3322
  %vm3373 = vweird.f32 %v3366
  %vm3374 = vmor %vm3372, %vm3373
  %v3375 = vsel %vm3374, %v3366, %v3371
  %v3376 = vrsqrt.pop %v3323
  %v3377 = vmul.f32 %v3376, %v3323
  %v3378 = vmul.f32 %v3377, %v3376
  %v3379 = vmul.f32 0.5, %v3378
  %v3380 = vsub.f32 1.5, %v3379
  %v3381 = vmul.f32 %v3376, %v3380
  %vm3382 = vweird.f32 %v3323
  %vm3383 = vweird.f32 %v3376
  %vm3384 = vmor %vm3382, %vm3383
  %v3385 = vsel %vm3384, %v3376, %v3381
  %v3386 = vrsqrt.pop %v3324
  %v3387 = vmul.f32 %v3386, %v3324
  %v3388 = vmul.f32 %v3387, %v3386
  %v3389 = vmul.f32 0.5, %v3388
  %v3390 = vsub.f32 1.5, %v3389
  %v3391 = vmul.f32 %v3386, %v3390
  %vm3392 = vweird.f32 %v3324
  %vm3393 = vweird.f32 %v3386
  %vm3394 = vmor %vm3392, %vm3393
  %v3395 = vsel %vm3394, %v3386, %v3391
  %v3396 = vrsqrt.pop %v3325
  %v3397 = vmul.f32 %v3396, %v3325
  %v3398 = vmul.f32 %v3397, %v3396
  %v3399 = vmul.f32 0.5, %v3398
  %v3400 = vsub.f32 1.5, %v3399
  %v3401 = vmul.f32 %v3396, %v3400
  %vm3402 = vweird.f32 %v3325
  %vm3403 = vweird.f32 %v3396
  %vm3404 = vmor %vm3402, %vm3403
  %v3405 = vsel %vm3404, %v3396, %v3401
  %v3406 = vmul.f32 %v3270, %v3335
  %v3407 = vmul.f32 %v3271, %v3345
  %v3408 = vmul.f32 %v3272, %v3355
  %v3409 = vmul.f32 %v3273, %v3365
  %v3410 = vmul.f32 %v3274, %v3375
  %v3411 = vmul.f32 %v3275, %v3385
  %v3412 = vmul.f32 %v3276, %v3395
  %v3413 = vmul.f32 %v3277, %v3405
  %v3414 = vadd.f32 %v3174, 1.0
  %v3415 = vadd.f32 %v3177, 1.0
  %v3416 = vadd.f32 %v3180, 1.0
  %v3417 = vadd.f32 %v3183, 1.0
  %v3418 = vadd.f32 %v3186, 1.0
  %v3419 = vadd.f32 %v3189, 1.0
  %v3420 = vadd.f32 %v3192, 1.0
  %v3421 = vadd.f32 %v3195, 1.0
  %v3422 = vmul.f32 %v3406, %v3414
  %v3423 = vmul.f32 %v3407, %v3415
  %v3424 = vmul.f32 %v3408, %v3416
  %v3425 = vmul.f32 %v3409, %v3417
  %v3426 = vmul.f32 %v3410, %v3418
  %v3427 = vmul.f32 %v3411, %v3419
  %v3428 = vmul.f32 %v3412, %v3420
  %v3429 = vmul.f32 %v3413, %v3421
  %3438 = vrot.lane.b32.xlu0 %v3174, 96
  %v3439 = vpop.permute.xlu0 %3438
  %3440 = vrot.lane.b32.xlu0 %v3177, 96
  %v3441 = vpop.permute.xlu0 %3440
  %3442 = vrot.lane.b32.xlu0 %v3180, 96
  %v3443 = vpop.permute.xlu0 %3442
  %3444 = vrot.lane.b32.xlu0 %v3183, 96
  %v3445 = vpop.permute.xlu0 %3444
  %3446 = vrot.lane.b32.xlu0 %v3186, 96
  %v3447 = vpop.permute.xlu0 %3446
  %3448 = vrot.lane.b32.xlu0 %v3189, 96
  %v3449 = vpop.permute.xlu0 %3448
  %3450 = vrot.lane.b32.xlu0 %v3192, 96
  %v3451 = vpop.permute.xlu0 %3450
  %3452 = vrot.lane.b32.xlu0 %v3195, 96
  %v3453 = vpop.permute.xlu0 %3452
  %v3462 = vadd.f32 %v3422, %v3439
  %v3463 = vadd.f32 %v3423, %v3441
  %v3464 = vadd.f32 %v3424, %v3443
  %v3465 = vadd.f32 %v3425, %v3445
  %v3466 = vadd.f32 %v3426, %v3447
  %v3467 = vadd.f32 %v3427, %v3449
  %v3468 = vadd.f32 %v3428, %v3451
  %v3469 = vadd.f32 %v3429, %v3453
  %s3470 = scalar_lea.vmem %s5, 32
  %v3471 = vld [vmem:[%s3470] sm:$0xff]
  %v3472 = vld [vmem:[%s3470 + $0x8] sm:$0xff]
  %v3473 = vld [vmem:[%s3470 + $0x10] sm:$0xff]
  %v3474 = vld [vmem:[%s3470 + $0x18] sm:$0xff]
  %s3475 = scalar_lea.vmem %s6, 1
  %v3476 = vld [vmem:[%s3475] sm:$0x1]
  %v3478 = vperm.slane %v3476, 0
  %v3481 = vsel %vm204, %v3462, 0
  %v3484 = vsel %vm204, %v3463, 0
  %v3487 = vsel %vm204, %v3464, 0
  %v3490 = vsel %vm204, %v3465, 0
  %v3493 = vsel %vm204, %v3466, 0
  %v3496 = vsel %vm204, %v3467, 0
  %v3499 = vsel %vm204, %v3468, 0
  %v3502 = vsel %vm204, %v3469, 0
  %3504 = vmatpush.msra.mxu0 0.0
  %3505 = vmatpush.msra.mxu0 0.0
  %3506 = vmatpush.msra.mxu0 0.0
  %3507 = vmatpush.msra.mxu0 0.0
  %3508 = vmatpush.msra.mxu0 0.0
  %3509 = vmatpush.msra.mxu0 0.0
  %3510 = vmatpush.msra.mxu0 0.0
  %3511 = vmatpush.msra.mxu0 0.0
  %3512 = vmatpush.msra.mxu0 0.0
  %3513 = vmatpush.msra.mxu0 0.0
  %3514 = vmatpush.msra.mxu0 0.0
  %3515 = vmatpush.msra.mxu0 0.0
  %3516 = vmatpush.msra.mxu0 %v3474
  %3517 = vmatpush.msra.mxu0 %v3473
  %3518 = vmatpush.msra.mxu0 %v3472
  %3519 = vmatpush.msra.mxu0 %v3471
  %3520 = vmatmul.f32.gmra.mxu0 %v3481
  %v3521 = vpop.f32.mrf.mxu0
  %v3522 = vadd.f32 %v3478, %v3521
  %3523 = vmatmul.f32.gmra.mxu0 %v3484
  %v3524 = vpop.f32.mrf.mxu0
  %v3525 = vadd.f32 %v3478, %v3524
  %3526 = vmatmul.f32.gmra.mxu0 %v3487
  %v3527 = vpop.f32.mrf.mxu0
  %v3528 = vadd.f32 %v3478, %v3527
  %3529 = vmatmul.f32.gmra.mxu0 %v3490
  %v3530 = vpop.f32.mrf.mxu0
  %v3531 = vadd.f32 %v3478, %v3530
  %3532 = vmatmul.f32.gmra.mxu0 %v3493
  %v3533 = vpop.f32.mrf.mxu0
  %v3534 = vadd.f32 %v3478, %v3533
  %3535 = vmatmul.f32.gmra.mxu0 %v3496
  %v3536 = vpop.f32.mrf.mxu0
  %v3537 = vadd.f32 %v3478, %v3536
  %3538 = vmatmul.f32.gmra.mxu0 %v3499
  %v3539 = vpop.f32.mrf.mxu0
  %v3540 = vadd.f32 %v3478, %v3539
  %3541 = vmatmul.f32.gmra.mxu0 %v3502
  %v3542 = vpop.f32.mrf.mxu0
  %v3543 = vadd.f32 %v3478, %v3542
  %3544 = vdwg.mxu0
  %s3545 = scalar_lea.vmem %s7, 32
  %v3546 = vld [vmem:[%s3545] sm:$0xff]
  %v3547 = vld [vmem:[%s3545 + $0x8] sm:$0xff]
  %v3548 = vld [vmem:[%s3545 + $0x10] sm:$0xff]
  %v3549 = vld [vmem:[%s3545 + $0x18] sm:$0xff]
  %s3550 = scalar_lea.vmem %s8, 1
  %v3551 = vld [vmem:[%s3550] sm:$0x1]
  %v3553 = vperm.slane %v3551, 0
  %3555 = vmatpush.msra.mxu0 0.0
  %3556 = vmatpush.msra.mxu0 0.0
  %3557 = vmatpush.msra.mxu0 0.0
  %3558 = vmatpush.msra.mxu0 0.0
  %3559 = vmatpush.msra.mxu0 0.0
  %3560 = vmatpush.msra.mxu0 0.0
  %3561 = vmatpush.msra.mxu0 0.0
  %3562 = vmatpush.msra.mxu0 0.0
  %3563 = vmatpush.msra.mxu0 0.0
  %3564 = vmatpush.msra.mxu0 0.0
  %3565 = vmatpush.msra.mxu0 0.0
  %3566 = vmatpush.msra.mxu0 0.0
  %3567 = vmatpush.msra.mxu0 %v3549
  %3568 = vmatpush.msra.mxu0 %v3548
  %3569 = vmatpush.msra.mxu0 %v3547
  %3570 = vmatpush.msra.mxu0 %v3546
  %3571 = vmatmul.f32.gmra.mxu0 %v3481
  %v3572 = vpop.f32.mrf.mxu0
  %v3573 = vadd.f32 %v3553, %v3572
  %3574 = vmatmul.f32.gmra.mxu0 %v3484
  %v3575 = vpop.f32.mrf.mxu0
  %v3576 = vadd.f32 %v3553, %v3575
  %3577 = vmatmul.f32.gmra.mxu0 %v3487
  %v3578 = vpop.f32.mrf.mxu0
  %v3579 = vadd.f32 %v3553, %v3578
  %3580 = vmatmul.f32.gmra.mxu0 %v3490
  %v3581 = vpop.f32.mrf.mxu0
  %v3582 = vadd.f32 %v3553, %v3581
  %3583 = vmatmul.f32.gmra.mxu0 %v3493
  %v3584 = vpop.f32.mrf.mxu0
  %v3585 = vadd.f32 %v3553, %v3584
  %3586 = vmatmul.f32.gmra.mxu0 %v3496
  %v3587 = vpop.f32.mrf.mxu0
  %v3588 = vadd.f32 %v3553, %v3587
  %3589 = vmatmul.f32.gmra.mxu0 %v3499
  %v3590 = vpop.f32.mrf.mxu0
  %v3591 = vadd.f32 %v3553, %v3590
  %3592 = vmatmul.f32.gmra.mxu0 %v3502
  %v3593 = vpop.f32.mrf.mxu0
  %v3594 = vadd.f32 %v3553, %v3593
  %3595 = vdwg.mxu0
  %s3596 = scalar_lea.vmem %s9, 32
  %v3597 = vld [vmem:[%s3596] sm:$0xff]
  %v3598 = vld [vmem:[%s3596 + $0x8] sm:$0xff]
  %v3599 = vld [vmem:[%s3596 + $0x10] sm:$0xff]
  %v3600 = vld [vmem:[%s3596 + $0x18] sm:$0xff]
  %s3601 = scalar_lea.vmem %s10, 1
  %v3602 = vld [vmem:[%s3601] sm:$0x1]
  %v3604 = vperm.slane %v3602, 0
  %3606 = vmatpush.msra.mxu0 0.0
  %3607 = vmatpush.msra.mxu0 0.0
  %3608 = vmatpush.msra.mxu0 0.0
  %3609 = vmatpush.msra.mxu0 0.0
  %3610 = vmatpush.msra.mxu0 0.0
  %3611 = vmatpush.msra.mxu0 0.0
  %3612 = vmatpush.msra.mxu0 0.0
  %3613 = vmatpush.msra.mxu0 0.0
  %3614 = vmatpush.msra.mxu0 0.0
  %3615 = vmatpush.msra.mxu0 0.0
  %3616 = vmatpush.msra.mxu0 0.0
  %3617 = vmatpush.msra.mxu0 0.0
  %3618 = vmatpush.msra.mxu0 %v3600
  %3619 = vmatpush.msra.mxu0 %v3599
  %3620 = vmatpush.msra.mxu0 %v3598
  %3621 = vmatpush.msra.mxu0 %v3597
  %3622 = vmatmul.f32.gmra.mxu0 %v3481
  %v3623 = vpop.f32.mrf.mxu0
  %v3624 = vadd.f32 %v3604, %v3623
  %3625 = vmatmul.f32.gmra.mxu0 %v3484
  %v3626 = vpop.f32.mrf.mxu0
  %v3627 = vadd.f32 %v3604, %v3626
  %3628 = vmatmul.f32.gmra.mxu0 %v3487
  %v3629 = vpop.f32.mrf.mxu0
  %v3630 = vadd.f32 %v3604, %v3629
  %3631 = vmatmul.f32.gmra.mxu0 %v3490
  %v3632 = vpop.f32.mrf.mxu0
  %v3633 = vadd.f32 %v3604, %v3632
  %3634 = vmatmul.f32.gmra.mxu0 %v3493
  %v3635 = vpop.f32.mrf.mxu0
  %v3636 = vadd.f32 %v3604, %v3635
  %3637 = vmatmul.f32.gmra.mxu0 %v3496
  %v3638 = vpop.f32.mrf.mxu0
  %v3639 = vadd.f32 %v3604, %v3638
  %3640 = vmatmul.f32.gmra.mxu0 %v3499
  %v3641 = vpop.f32.mrf.mxu0
  %v3642 = vadd.f32 %v3604, %v3641
  %3643 = vmatmul.f32.gmra.mxu0 %v3502
  %v3644 = vpop.f32.mrf.mxu0
  %v3645 = vadd.f32 %v3604, %v3644
  %3646 = vdwg.mxu0
  %3651 = vrot.lane.b32.xlu0 %v3585, 32
  %v3652 = vpop.permute.xlu0 %3651
  %3653 = vrot.lane.b32.xlu0 %v3588, 32
  %v3654 = vpop.permute.xlu0 %3653
  %3655 = vrot.lane.b32.xlu0 %v3591, 32
  %v3656 = vpop.permute.xlu0 %3655
  %3657 = vrot.lane.b32.xlu0 %v3594, 32
  %v3658 = vpop.permute.xlu0 %3657
  %v3663 = vsel %vm204, %v3573, %v3652
  %v3664 = vsel %vm204, %v3576, %v3654
  %v3665 = vsel %vm204, %v3579, %v3656
  %v3666 = vsel %vm204, %v3582, %v3658
  %3671 = vrot.lane.b32.xlu0 %v3636, 32
  %v3672 = vpop.permute.xlu0 %3671
  %3673 = vrot.lane.b32.xlu0 %v3639, 32
  %v3674 = vpop.permute.xlu0 %3673
  %3675 = vrot.lane.b32.xlu0 %v3642, 32
  %v3676 = vpop.permute.xlu0 %3675
  %3677 = vrot.lane.b32.xlu0 %v3645, 32
  %v3678 = vpop.permute.xlu0 %3677
  %v3683 = vsel %vm204, %v3624, %v3672
  %v3684 = vsel %vm204, %v3627, %v3674
  %v3685 = vsel %vm204, %v3630, %v3676
  %v3686 = vsel %vm204, %v3633, %v3678
  %s3687 = scalar_lea.vmem %s11, 16
  %v3688 = vld [vmem:[%s3687] sm:$0xff]
  %v3689 = vld [vmem:[%s3687 + $0x8] sm:$0xff]
  %v3691 = vsel %vm204, %v3688, 0
  %v3694 = vsel %vm204, %v3689, 0
  %3696 = vmatpush.msra.mxu0 0.0
  %3697 = vmatpush.msra.mxu0 0.0
  %3698 = vmatpush.msra.mxu0 0.0
  %3699 = vmatpush.msra.mxu0 0.0
  %3700 = vmatpush.msra.mxu0 0.0
  %3701 = vmatpush.msra.mxu0 0.0
  %3702 = vmatpush.msra.mxu0 0.0
  %3703 = vmatpush.msra.mxu0 0.0
  %3704 = vmatpush.msra.mxu0 0.0
  %3705 = vmatpush.msra.mxu0 0.0
  %3706 = vmatpush.msra.mxu0 0.0
  %3707 = vmatpush.msra.mxu0 0.0
  %3708 = vmatpush.msra.mxu0 %v3666
  %3709 = vmatpush.msra.mxu0 %v3665
  %3710 = vmatpush.msra.mxu0 %v3664
  %3711 = vmatpush.msra.mxu0 %v3663
  %3712 = vmatmul.f32.gmra.mxu0 %v3691
  %v3713 = vpop.f32.mrf.mxu0
  %v3714 = vadd.f32 0.0, %v3713
  %3715 = vmatmul.f32.gmra.mxu0 %v3694
  %v3716 = vpop.f32.mrf.mxu0
  %v3717 = vadd.f32 0.0, %v3716
  %3718 = vdwg.mxu0
  %s3719 = scalar_lea.vmem %s12, 16
  %v3720 = vld [vmem:[%s3719] sm:$0xff]
  %v3721 = vld [vmem:[%s3719 + $0x8] sm:$0xff]
  %v3723 = vsel %vm204, %v3720, 0
  %v3726 = vsel %vm204, %v3721, 0
  %3728 = vmatpush.msra.mxu0 0.0
  %3729 = vmatpush.msra.mxu0 0.0
  %3730 = vmatpush.msra.mxu0 0.0
  %3731 = vmatpush.msra.mxu0 0.0
  %3732 = vmatpush.msra.mxu0 0.0
  %3733 = vmatpush.msra.mxu0 0.0
  %3734 = vmatpush.msra.mxu0 0.0
  %3735 = vmatpush.msra.mxu0 0.0
  %3736 = vmatpush.msra.mxu0 0.0
  %3737 = vmatpush.msra.mxu0 0.0
  %3738 = vmatpush.msra.mxu0 0.0
  %3739 = vmatpush.msra.mxu0 0.0
  %3740 = vmatpush.msra.mxu0 %v3686
  %3741 = vmatpush.msra.mxu0 %v3685
  %3742 = vmatpush.msra.mxu0 %v3684
  %3743 = vmatpush.msra.mxu0 %v3683
  %3744 = vmatmul.f32.gmra.mxu0 %v3723
  %v3745 = vpop.f32.mrf.mxu0
  %v3746 = vadd.f32 0.0, %v3745
  %3747 = vmatmul.f32.gmra.mxu0 %v3726
  %v3748 = vpop.f32.mrf.mxu0
  %v3749 = vadd.f32 0.0, %v3748
  %3750 = vdwg.mxu0
  %3755 = vrot.lane.b32.xlu0 %v3522, 120
  %v3756 = vpop.permute.xlu0 %3755
  %3757 = vrot.lane.b32.xlu0 %v3525, 120
  %v3758 = vpop.permute.xlu0 %3757
  %3759 = vrot.lane.b32.xlu0 %v3528, 120
  %v3760 = vpop.permute.xlu0 %3759
  %3761 = vrot.lane.b32.xlu0 %v3531, 120
  %v3762 = vpop.permute.xlu0 %3761
  %3763 = vrot.lane.b32.xlu0 %v3522, 112
  %v3764 = vpop.permute.xlu0 %3763
  %3765 = vrot.lane.b32.xlu0 %v3525, 112
  %v3766 = vpop.permute.xlu0 %3765
  %3767 = vrot.lane.b32.xlu0 %v3528, 112
  %v3768 = vpop.permute.xlu0 %3767
  %3769 = vrot.lane.b32.xlu0 %v3531, 112
  %v3770 = vpop.permute.xlu0 %3769
  %3771 = vrot.lane.b32.xlu0 %v3522, 104
  %v3772 = vpop.permute.xlu0 %3771
  %3773 = vrot.lane.b32.xlu0 %v3525, 104
  %v3774 = vpop.permute.xlu0 %3773
  %3775 = vrot.lane.b32.xlu0 %v3528, 104
  %v3776 = vpop.permute.xlu0 %3775
  %3777 = vrot.lane.b32.xlu0 %v3531, 104
  %v3778 = vpop.permute.xlu0 %3777
  %3783 = vrot.lane.b32.xlu0 %v3534, 120
  %v3784 = vpop.permute.xlu0 %3783
  %3785 = vrot.lane.b32.xlu0 %v3537, 120
  %v3786 = vpop.permute.xlu0 %3785
  %3787 = vrot.lane.b32.xlu0 %v3540, 120
  %v3788 = vpop.permute.xlu0 %3787
  %3789 = vrot.lane.b32.xlu0 %v3543, 120
  %v3790 = vpop.permute.xlu0 %3789
  %3791 = vrot.lane.b32.xlu0 %v3534, 112
  %v3792 = vpop.permute.xlu0 %3791
  %3793 = vrot.lane.b32.xlu0 %v3537, 112
  %v3794 = vpop.permute.xlu0 %3793
  %3795 = vrot.lane.b32.xlu0 %v3540, 112
  %v3796 = vpop.permute.xlu0 %3795
  %3797 = vrot.lane.b32.xlu0 %v3543, 112
  %v3798 = vpop.permute.xlu0 %3797
  %3799 = vrot.lane.b32.xlu0 %v3534, 104
  %v3800 = vpop.permute.xlu0 %3799
  %3801 = vrot.lane.b32.xlu0 %v3537, 104
  %v3802 = vpop.permute.xlu0 %3801
  %3803 = vrot.lane.b32.xlu0 %v3540, 104
  %v3804 = vpop.permute.xlu0 %3803
  %3805 = vrot.lane.b32.xlu0 %v3543, 104
  %v3806 = vpop.permute.xlu0 %3805
  %3809 = vrot.lane.b32.xlu0 %v3714, 120
  %v3810 = vpop.permute.xlu0 %3809
  %3811 = vrot.lane.b32.xlu0 %v3717, 120
  %v3812 = vpop.permute.xlu0 %3811
  %3813 = vrot.lane.b32.xlu0 %v3714, 112
  %v3814 = vpop.permute.xlu0 %3813
  %3815 = vrot.lane.b32.xlu0 %v3717, 112
  %v3816 = vpop.permute.xlu0 %3815
  %3817 = vrot.lane.b32.xlu0 %v3714, 104
  %v3818 = vpop.permute.xlu0 %3817
  %3819 = vrot.lane.b32.xlu0 %v3717, 104
  %v3820 = vpop.permute.xlu0 %3819
  %3821 = vrot.lane.b32.xlu0 %v3714, 96
  %v3822 = vpop.permute.xlu0 %3821
  %3823 = vrot.lane.b32.xlu0 %v3717, 96
  %v3824 = vpop.permute.xlu0 %3823
  %3825 = vrot.lane.b32.xlu0 %v3714, 88
  %v3826 = vpop.permute.xlu0 %3825
  %3827 = vrot.lane.b32.xlu0 %v3717, 88
  %v3828 = vpop.permute.xlu0 %3827
  %3829 = vrot.lane.b32.xlu0 %v3714, 80
  %v3830 = vpop.permute.xlu0 %3829
  %3831 = vrot.lane.b32.xlu0 %v3717, 80
  %v3832 = vpop.permute.xlu0 %3831
  %3833 = vrot.lane.b32.xlu0 %v3714, 72
  %v3834 = vpop.permute.xlu0 %3833
  %3835 = vrot.lane.b32.xlu0 %v3717, 72
  %v3836 = vpop.permute.xlu0 %3835
  %3839 = vrot.lane.b32.xlu0 %v3746, 120
  %v3840 = vpop.permute.xlu0 %3839
  %3841 = vrot.lane.b32.xlu0 %v3749, 120
  %v3842 = vpop.permute.xlu0 %3841
  %3845 = vrot.lane.b32.xlu0 %v3746, 112
  %v3846 = vpop.permute.xlu0 %3845
  %3847 = vrot.lane.b32.xlu0 %v3749, 112
  %v3848 = vpop.permute.xlu0 %3847
  %3851 = vrot.lane.b32.xlu0 %v3746, 104
  %v3852 = vpop.permute.xlu0 %3851
  %3853 = vrot.lane.b32.xlu0 %v3749, 104
  %v3854 = vpop.permute.xlu0 %3853
  %3857 = vrot.lane.b32.xlu0 %v3746, 96
  %v3858 = vpop.permute.xlu0 %3857
  %3859 = vrot.lane.b32.xlu0 %v3749, 96
  %v3860 = vpop.permute.xlu0 %3859
  %3863 = vrot.lane.b32.xlu0 %v3746, 88
  %v3864 = vpop.permute.xlu0 %3863
  %3865 = vrot.lane.b32.xlu0 %v3749, 88
  %v3866 = vpop.permute.xlu0 %3865
  %3869 = vrot.lane.b32.xlu0 %v3746, 80
  %v3870 = vpop.permute.xlu0 %3869
  %3871 = vrot.lane.b32.xlu0 %v3749, 80
  %v3872 = vpop.permute.xlu0 %3871
  %3875 = vrot.lane.b32.xlu0 %v3746, 72
  %v3876 = vpop.permute.xlu0 %3875
  %3877 = vrot.lane.b32.xlu0 %v3749, 72
  %v3878 = vpop.permute.xlu0 %3877
  %v3881 = vsel %vm953, %v3522, 0
  %v3883 = vsel %vm953, %v3525, 0
  %v3885 = vsel %vm953, %v3528, 0
  %v3887 = vsel %vm953, %v3531, 0
  %v3889 = vsel %vm953, %v3714, 0
  %v3891 = vsel %vm953, %v3717, 0
  %3893 = vmatpush.xpose.msra.mxu0 0.0
  %3894 = vmatpush.xpose.msra.mxu0 0.0
  %3895 = vmatpush.xpose.msra.mxu0 0.0
  %3896 = vmatpush.xpose.msra.mxu0 0.0
  %3897 = vmatpush.xpose.msra.mxu0 0.0
  %3898 = vmatpush.xpose.msra.mxu0 0.0
  %3899 = vmatpush.xpose.msra.mxu0 0.0
  %3900 = vmatpush.xpose.msra.mxu0 0.0
  %3901 = vmatpush.xpose.msra.mxu0 0.0
  %3902 = vmatpush.xpose.msra.mxu0 0.0
  %3903 = vmatpush.xpose.msra.mxu0 0.0
  %3904 = vmatpush.xpose.msra.mxu0 0.0
  %3905 = vmatpush.xpose.msra.mxu0 0.0
  %3906 = vmatpush.xpose.msra.mxu0 0.0
  %3907 = vmatpush.xpose.msra.mxu0 %v3891
  %3908 = vmatpush.xpose.msra.mxu0 %v3889
  %3909 = vmatmul.f32.gmra.mxu0 %v3881
  %v3910 = vpop.f32.mrf.mxu0
  %v3911 = vadd.f32 0.0, %v3910
  %3912 = vmatmul.f32.gmra.mxu0 %v3883
  %v3913 = vpop.f32.mrf.mxu0
  %v3914 = vadd.f32 0.0, %v3913
  %3915 = vmatmul.f32.gmra.mxu0 %v3885
  %v3916 = vpop.f32.mrf.mxu0
  %v3917 = vadd.f32 0.0, %v3916
  %3918 = vmatmul.f32.gmra.mxu0 %v3887
  %v3919 = vpop.f32.mrf.mxu0
  %v3920 = vadd.f32 0.0, %v3919
  %3921 = vdwg.mxu0
  %v3922 = vsel %vm953, %v3756, 0
  %v3924 = vsel %vm953, %v3758, 0
  %v3926 = vsel %vm953, %v3760, 0
  %v3928 = vsel %vm953, %v3762, 0
  %v3930 = vsel %vm953, %v3810, 0
  %v3932 = vsel %vm953, %v3812, 0
  %3934 = vmatpush.xpose.msra.mxu0 0.0
  %3935 = vmatpush.xpose.msra.mxu0 0.0
  %3936 = vmatpush.xpose.msra.mxu0 0.0
  %3937 = vmatpush.xpose.msra.mxu0 0.0
  %3938 = vmatpush.xpose.msra.mxu0 0.0
  %3939 = vmatpush.xpose.msra.mxu0 0.0
  %3940 = vmatpush.xpose.msra.mxu0 0.0
  %3941 = vmatpush.xpose.msra.mxu0 0.0
  %3942 = vmatpush.xpose.msra.mxu0 0.0
  %3943 = vmatpush.xpose.msra.mxu0 0.0
  %3944 = vmatpush.xpose.msra.mxu0 0.0
  %3945 = vmatpush.xpose.msra.mxu0 0.0
  %3946 = vmatpush.xpose.msra.mxu0 0.0
  %3947 = vmatpush.xpose.msra.mxu0 0.0
  %3948 = vmatpush.xpose.msra.mxu0 %v3932
  %3949 = vmatpush.xpose.msra.mxu0 %v3930
  %3950 = vmatmul.f32.gmra.mxu0 %v3922
  %v3951 = vpop.f32.mrf.mxu0
  %v3952 = vadd.f32 0.0, %v3951
  %3953 = vmatmul.f32.gmra.mxu0 %v3924
  %v3954 = vpop.f32.mrf.mxu0
  %v3955 = vadd.f32 0.0, %v3954
  %3956 = vmatmul.f32.gmra.mxu0 %v3926
  %v3957 = vpop.f32.mrf.mxu0
  %v3958 = vadd.f32 0.0, %v3957
  %3959 = vmatmul.f32.gmra.mxu0 %v3928
  %v3960 = vpop.f32.mrf.mxu0
  %v3961 = vadd.f32 0.0, %v3960
  %3962 = vdwg.mxu0
  %v3963 = vsel %vm953, %v3764, 0
  %v3965 = vsel %vm953, %v3766, 0
  %v3967 = vsel %vm953, %v3768, 0
  %v3969 = vsel %vm953, %v3770, 0
  %v3971 = vsel %vm953, %v3814, 0
  %v3973 = vsel %vm953, %v3816, 0
  %3975 = vmatpush.xpose.msra.mxu0 0.0
  %3976 = vmatpush.xpose.msra.mxu0 0.0
  %3977 = vmatpush.xpose.msra.mxu0 0.0
  %3978 = vmatpush.xpose.msra.mxu0 0.0
  %3979 = vmatpush.xpose.msra.mxu0 0.0
  %3980 = vmatpush.xpose.msra.mxu0 0.0
  %3981 = vmatpush.xpose.msra.mxu0 0.0
  %3982 = vmatpush.xpose.msra.mxu0 0.0
  %3983 = vmatpush.xpose.msra.mxu0 0.0
  %3984 = vmatpush.xpose.msra.mxu0 0.0
  %3985 = vmatpush.xpose.msra.mxu0 0.0
  %3986 = vmatpush.xpose.msra.mxu0 0.0
  %3987 = vmatpush.xpose.msra.mxu0 0.0
  %3988 = vmatpush.xpose.msra.mxu0 0.0
  %3989 = vmatpush.xpose.msra.mxu0 %v3973
  %3990 = vmatpush.xpose.msra.mxu0 %v3971
  %3991 = vmatmul.f32.gmra.mxu0 %v3963
  %v3992 = vpop.f32.mrf.mxu0
  %v3993 = vadd.f32 0.0, %v3992
  %3994 = vmatmul.f32.gmra.mxu0 %v3965
  %v3995 = vpop.f32.mrf.mxu0
  %v3996 = vadd.f32 0.0, %v3995
  %3997 = vmatmul.f32.gmra.mxu0 %v3967
  %v3998 = vpop.f32.mrf.mxu0
  %v3999 = vadd.f32 0.0, %v3998
  %4000 = vmatmul.f32.gmra.mxu0 %v3969
  %v4001 = vpop.f32.mrf.mxu0
  %v4002 = vadd.f32 0.0, %v4001
  %4003 = vdwg.mxu0
  %v4004 = vsel %vm953, %v3772, 0
  %v4006 = vsel %vm953, %v3774, 0
  %v4008 = vsel %vm953, %v3776, 0
  %v4010 = vsel %vm953, %v3778, 0
  %v4012 = vsel %vm953, %v3818, 0
  %v4014 = vsel %vm953, %v3820, 0
  %4016 = vmatpush.xpose.msra.mxu0 0.0
  %4017 = vmatpush.xpose.msra.mxu0 0.0
  %4018 = vmatpush.xpose.msra.mxu0 0.0
  %4019 = vmatpush.xpose.msra.mxu0 0.0
  %4020 = vmatpush.xpose.msra.mxu0 0.0
  %4021 = vmatpush.xpose.msra.mxu0 0.0
  %4022 = vmatpush.xpose.msra.mxu0 0.0
  %4023 = vmatpush.xpose.msra.mxu0 0.0
  %4024 = vmatpush.xpose.msra.mxu0 0.0
  %4025 = vmatpush.xpose.msra.mxu0 0.0
  %4026 = vmatpush.xpose.msra.mxu0 0.0
  %4027 = vmatpush.xpose.msra.mxu0 0.0
  %4028 = vmatpush.xpose.msra.mxu0 0.0
  %4029 = vmatpush.xpose.msra.mxu0 0.0
  %4030 = vmatpush.xpose.msra.mxu0 %v4014
  %4031 = vmatpush.xpose.msra.mxu0 %v4012
  %4032 = vmatmul.f32.gmra.mxu0 %v4004
  %v4033 = vpop.f32.mrf.mxu0
  %v4034 = vadd.f32 0.0, %v4033
  %4035 = vmatmul.f32.gmra.mxu0 %v4006
  %v4036 = vpop.f32.mrf.mxu0
  %v4037 = vadd.f32 0.0, %v4036
  %4038 = vmatmul.f32.gmra.mxu0 %v4008
  %v4039 = vpop.f32.mrf.mxu0
  %v4040 = vadd.f32 0.0, %v4039
  %4041 = vmatmul.f32.gmra.mxu0 %v4010
  %v4042 = vpop.f32.mrf.mxu0
  %v4043 = vadd.f32 0.0, %v4042
  %4044 = vdwg.mxu0
  %v4045 = vsel %vm953, %v3534, 0
  %v4047 = vsel %vm953, %v3537, 0
  %v4049 = vsel %vm953, %v3540, 0
  %v4051 = vsel %vm953, %v3543, 0
  %v4053 = vsel %vm953, %v3822, 0
  %v4055 = vsel %vm953, %v3824, 0
  %4057 = vmatpush.xpose.msra.mxu0 0.0
  %4058 = vmatpush.xpose.msra.mxu0 0.0
  %4059 = vmatpush.xpose.msra.mxu0 0.0
  %4060 = vmatpush.xpose.msra.mxu0 0.0
  %4061 = vmatpush.xpose.msra.mxu0 0.0
  %4062 = vmatpush.xpose.msra.mxu0 0.0
  %4063 = vmatpush.xpose.msra.mxu0 0.0
  %4064 = vmatpush.xpose.msra.mxu0 0.0
  %4065 = vmatpush.xpose.msra.mxu0 0.0
  %4066 = vmatpush.xpose.msra.mxu0 0.0
  %4067 = vmatpush.xpose.msra.mxu0 0.0
  %4068 = vmatpush.xpose.msra.mxu0 0.0
  %4069 = vmatpush.xpose.msra.mxu0 0.0
  %4070 = vmatpush.xpose.msra.mxu0 0.0
  %4071 = vmatpush.xpose.msra.mxu0 %v4055
  %4072 = vmatpush.xpose.msra.mxu0 %v4053
  %4073 = vmatmul.f32.gmra.mxu0 %v4045
  %v4074 = vpop.f32.mrf.mxu0
  %v4075 = vadd.f32 0.0, %v4074
  %4076 = vmatmul.f32.gmra.mxu0 %v4047
  %v4077 = vpop.f32.mrf.mxu0
  %v4078 = vadd.f32 0.0, %v4077
  %4079 = vmatmul.f32.gmra.mxu0 %v4049
  %v4080 = vpop.f32.mrf.mxu0
  %v4081 = vadd.f32 0.0, %v4080
  %4082 = vmatmul.f32.gmra.mxu0 %v4051
  %v4083 = vpop.f32.mrf.mxu0
  %v4084 = vadd.f32 0.0, %v4083
  %4085 = vdwg.mxu0
  %v4086 = vsel %vm953, %v3784, 0
  %v4088 = vsel %vm953, %v3786, 0
  %v4090 = vsel %vm953, %v3788, 0
  %v4092 = vsel %vm953, %v3790, 0
  %v4094 = vsel %vm953, %v3826, 0
  %v4096 = vsel %vm953, %v3828, 0
  %4098 = vmatpush.xpose.msra.mxu0 0.0
  %4099 = vmatpush.xpose.msra.mxu0 0.0
  %4100 = vmatpush.xpose.msra.mxu0 0.0
  %4101 = vmatpush.xpose.msra.mxu0 0.0
  %4102 = vmatpush.xpose.msra.mxu0 0.0
  %4103 = vmatpush.xpose.msra.mxu0 0.0
  %4104 = vmatpush.xpose.msra.mxu0 0.0
  %4105 = vmatpush.xpose.msra.mxu0 0.0
  %4106 = vmatpush.xpose.msra.mxu0 0.0
  %4107 = vmatpush.xpose.msra.mxu0 0.0
  %4108 = vmatpush.xpose.msra.mxu0 0.0
  %4109 = vmatpush.xpose.msra.mxu0 0.0
  %4110 = vmatpush.xpose.msra.mxu0 0.0
  %4111 = vmatpush.xpose.msra.mxu0 0.0
  %4112 = vmatpush.xpose.msra.mxu0 %v4096
  %4113 = vmatpush.xpose.msra.mxu0 %v4094
  %4114 = vmatmul.f32.gmra.mxu0 %v4086
  %v4115 = vpop.f32.mrf.mxu0
  %v4116 = vadd.f32 0.0, %v4115
  %4117 = vmatmul.f32.gmra.mxu0 %v4088
  %v4118 = vpop.f32.mrf.mxu0
  %v4119 = vadd.f32 0.0, %v4118
  %4120 = vmatmul.f32.gmra.mxu0 %v4090
  %v4121 = vpop.f32.mrf.mxu0
  %v4122 = vadd.f32 0.0, %v4121
  %4123 = vmatmul.f32.gmra.mxu0 %v4092
  %v4124 = vpop.f32.mrf.mxu0
  %v4125 = vadd.f32 0.0, %v4124
  %4126 = vdwg.mxu0
  %v4127 = vsel %vm953, %v3792, 0
  %v4129 = vsel %vm953, %v3794, 0
  %v4131 = vsel %vm953, %v3796, 0
  %v4133 = vsel %vm953, %v3798, 0
  %v4135 = vsel %vm953, %v3830, 0
  %v4137 = vsel %vm953, %v3832, 0
  %4139 = vmatpush.xpose.msra.mxu0 0.0
  %4140 = vmatpush.xpose.msra.mxu0 0.0
  %4141 = vmatpush.xpose.msra.mxu0 0.0
  %4142 = vmatpush.xpose.msra.mxu0 0.0
  %4143 = vmatpush.xpose.msra.mxu0 0.0
  %4144 = vmatpush.xpose.msra.mxu0 0.0
  %4145 = vmatpush.xpose.msra.mxu0 0.0
  %4146 = vmatpush.xpose.msra.mxu0 0.0
  %4147 = vmatpush.xpose.msra.mxu0 0.0
  %4148 = vmatpush.xpose.msra.mxu0 0.0
  %4149 = vmatpush.xpose.msra.mxu0 0.0
  %4150 = vmatpush.xpose.msra.mxu0 0.0
  %4151 = vmatpush.xpose.msra.mxu0 0.0
  %4152 = vmatpush.xpose.msra.mxu0 0.0
  %4153 = vmatpush.xpose.msra.mxu0 %v4137
  %4154 = vmatpush.xpose.msra.mxu0 %v4135
  %4155 = vmatmul.f32.gmra.mxu0 %v4127
  %v4156 = vpop.f32.mrf.mxu0
  %v4157 = vadd.f32 0.0, %v4156
  %4158 = vmatmul.f32.gmra.mxu0 %v4129
  %v4159 = vpop.f32.mrf.mxu0
  %v4160 = vadd.f32 0.0, %v4159
  %4161 = vmatmul.f32.gmra.mxu0 %v4131
  %v4162 = vpop.f32.mrf.mxu0
  %v4163 = vadd.f32 0.0, %v4162
  %4164 = vmatmul.f32.gmra.mxu0 %v4133
  %v4165 = vpop.f32.mrf.mxu0
  %v4166 = vadd.f32 0.0, %v4165
  %4167 = vdwg.mxu0
  %v4168 = vsel %vm953, %v3800, 0
  %v4170 = vsel %vm953, %v3802, 0
  %v4172 = vsel %vm953, %v3804, 0
  %v4174 = vsel %vm953, %v3806, 0
  %v4176 = vsel %vm953, %v3834, 0
  %v4178 = vsel %vm953, %v3836, 0
  %4180 = vmatpush.xpose.msra.mxu0 0.0
  %4181 = vmatpush.xpose.msra.mxu0 0.0
  %4182 = vmatpush.xpose.msra.mxu0 0.0
  %4183 = vmatpush.xpose.msra.mxu0 0.0
  %4184 = vmatpush.xpose.msra.mxu0 0.0
  %4185 = vmatpush.xpose.msra.mxu0 0.0
  %4186 = vmatpush.xpose.msra.mxu0 0.0
  %4187 = vmatpush.xpose.msra.mxu0 0.0
  %4188 = vmatpush.xpose.msra.mxu0 0.0
  %4189 = vmatpush.xpose.msra.mxu0 0.0
  %4190 = vmatpush.xpose.msra.mxu0 0.0
  %4191 = vmatpush.xpose.msra.mxu0 0.0
  %4192 = vmatpush.xpose.msra.mxu0 0.0
  %4193 = vmatpush.xpose.msra.mxu0 0.0
  %4194 = vmatpush.xpose.msra.mxu0 %v4178
  %4195 = vmatpush.xpose.msra.mxu0 %v4176
  %4196 = vmatmul.f32.gmra.mxu0 %v4168
  %v4197 = vpop.f32.mrf.mxu0
  %v4198 = vadd.f32 0.0, %v4197
  %4199 = vmatmul.f32.gmra.mxu0 %v4170
  %v4200 = vpop.f32.mrf.mxu0
  %v4201 = vadd.f32 0.0, %v4200
  %4202 = vmatmul.f32.gmra.mxu0 %v4172
  %v4203 = vpop.f32.mrf.mxu0
  %v4204 = vadd.f32 0.0, %v4203
  %4205 = vmatmul.f32.gmra.mxu0 %v4174
  %v4206 = vpop.f32.mrf.mxu0
  %v4207 = vadd.f32 0.0, %v4206
  %4208 = vdwg.mxu0
  %v4209 = vmul.f32 %v3911, 0.35355338
  %v4210 = vmul.f32 %v3914, 0.35355338
  %v4211 = vmul.f32 %v3917, 0.35355338
  %v4212 = vmul.f32 %v3920, 0.35355338
  %v4213 = vmul.f32 %v3952, 0.35355338
  %v4214 = vmul.f32 %v3955, 0.35355338
  %v4215 = vmul.f32 %v3958, 0.35355338
  %v4216 = vmul.f32 %v3961, 0.35355338
  %v4217 = vmul.f32 %v3993, 0.35355338
  %v4218 = vmul.f32 %v3996, 0.35355338
  %v4219 = vmul.f32 %v3999, 0.35355338
  %v4220 = vmul.f32 %v4002, 0.35355338
  %v4221 = vmul.f32 %v4034, 0.35355338
  %v4222 = vmul.f32 %v4037, 0.35355338
  %v4223 = vmul.f32 %v4040, 0.35355338
  %v4224 = vmul.f32 %v4043, 0.35355338
  %v4225 = vmul.f32 %v4075, 0.35355338
  %v4226 = vmul.f32 %v4078, 0.35355338
  %v4227 = vmul.f32 %v4081, 0.35355338
  %v4228 = vmul.f32 %v4084, 0.35355338
  %v4229 = vmul.f32 %v4116, 0.35355338
  %v4230 = vmul.f32 %v4119, 0.35355338
  %v4231 = vmul.f32 %v4122, 0.35355338
  %v4232 = vmul.f32 %v4125, 0.35355338
  %v4233 = vmul.f32 %v4157, 0.35355338
  %v4234 = vmul.f32 %v4160, 0.35355338
  %v4235 = vmul.f32 %v4163, 0.35355338
  %v4236 = vmul.f32 %v4166, 0.35355338
  %v4237 = vmul.f32 %v4198, 0.35355338
  %v4238 = vmul.f32 %v4201, 0.35355338
  %v4239 = vmul.f32 %v4204, 0.35355338
  %v4240 = vmul.f32 %v4207, 0.35355338
  %v4241 = vsel %vm1314, %v4209, -inf
  %4242 = vmax.xlane.f32.xlu0 %v4241
  %v4243 = vpop.xlane.xlu0 %4242
  %v4244 = vsel %vm1314, %v4210, -inf
  %4245 = vmax.xlane.f32.xlu0 %v4244
  %v4246 = vpop.xlane.xlu0 %4245
  %v4247 = vsel %vm1314, %v4211, -inf
  %4248 = vmax.xlane.f32.xlu0 %v4247
  %v4249 = vpop.xlane.xlu0 %4248
  %v4250 = vsel %vm1314, %v4212, -inf
  %4251 = vmax.xlane.f32.xlu0 %v4250
  %v4252 = vpop.xlane.xlu0 %4251
  %v4253 = vsel %vm1314, %v4213, -inf
  %4254 = vmax.xlane.f32.xlu0 %v4253
  %v4255 = vpop.xlane.xlu0 %4254
  %v4256 = vsel %vm1314, %v4214, -inf
  %4257 = vmax.xlane.f32.xlu0 %v4256
  %v4258 = vpop.xlane.xlu0 %4257
  %v4259 = vsel %vm1314, %v4215, -inf
  %4260 = vmax.xlane.f32.xlu0 %v4259
  %v4261 = vpop.xlane.xlu0 %4260
  %v4262 = vsel %vm1314, %v4216, -inf
  %4263 = vmax.xlane.f32.xlu0 %v4262
  %v4264 = vpop.xlane.xlu0 %4263
  %v4265 = vsel %vm1314, %v4217, -inf
  %4266 = vmax.xlane.f32.xlu0 %v4265
  %v4267 = vpop.xlane.xlu0 %4266
  %v4268 = vsel %vm1314, %v4218, -inf
  %4269 = vmax.xlane.f32.xlu0 %v4268
  %v4270 = vpop.xlane.xlu0 %4269
  %v4271 = vsel %vm1314, %v4219, -inf
  %4272 = vmax.xlane.f32.xlu0 %v4271
  %v4273 = vpop.xlane.xlu0 %4272
  %v4274 = vsel %vm1314, %v4220, -inf
  %4275 = vmax.xlane.f32.xlu0 %v4274
  %v4276 = vpop.xlane.xlu0 %4275
  %v4277 = vsel %vm1314, %v4221, -inf
  %4278 = vmax.xlane.f32.xlu0 %v4277
  %v4279 = vpop.xlane.xlu0 %4278
  %v4280 = vsel %vm1314, %v4222, -inf
  %4281 = vmax.xlane.f32.xlu0 %v4280
  %v4282 = vpop.xlane.xlu0 %4281
  %v4283 = vsel %vm1314, %v4223, -inf
  %4284 = vmax.xlane.f32.xlu0 %v4283
  %v4285 = vpop.xlane.xlu0 %4284
  %v4286 = vsel %vm1314, %v4224, -inf
  %4287 = vmax.xlane.f32.xlu0 %v4286
  %v4288 = vpop.xlane.xlu0 %4287
  %v4289 = vsel %vm1314, %v4225, -inf
  %4290 = vmax.xlane.f32.xlu0 %v4289
  %v4291 = vpop.xlane.xlu0 %4290
  %v4292 = vsel %vm1314, %v4226, -inf
  %4293 = vmax.xlane.f32.xlu0 %v4292
  %v4294 = vpop.xlane.xlu0 %4293
  %v4295 = vsel %vm1314, %v4227, -inf
  %4296 = vmax.xlane.f32.xlu0 %v4295
  %v4297 = vpop.xlane.xlu0 %4296
  %v4298 = vsel %vm1314, %v4228, -inf
  %4299 = vmax.xlane.f32.xlu0 %v4298
  %v4300 = vpop.xlane.xlu0 %4299
  %v4301 = vsel %vm1314, %v4229, -inf
  %4302 = vmax.xlane.f32.xlu0 %v4301
  %v4303 = vpop.xlane.xlu0 %4302
  %v4304 = vsel %vm1314, %v4230, -inf
  %4305 = vmax.xlane.f32.xlu0 %v4304
  %v4306 = vpop.xlane.xlu0 %4305
  %v4307 = vsel %vm1314, %v4231, -inf
  %4308 = vmax.xlane.f32.xlu0 %v4307
  %v4309 = vpop.xlane.xlu0 %4308
  %v4310 = vsel %vm1314, %v4232, -inf
  %4311 = vmax.xlane.f32.xlu0 %v4310
  %v4312 = vpop.xlane.xlu0 %4311
  %v4313 = vsel %vm1314, %v4233, -inf
  %4314 = vmax.xlane.f32.xlu0 %v4313
  %v4315 = vpop.xlane.xlu0 %4314
  %v4316 = vsel %vm1314, %v4234, -inf
  %4317 = vmax.xlane.f32.xlu0 %v4316
  %v4318 = vpop.xlane.xlu0 %4317
  %v4319 = vsel %vm1314, %v4235, -inf
  %4320 = vmax.xlane.f32.xlu0 %v4319
  %v4321 = vpop.xlane.xlu0 %4320
  %v4322 = vsel %vm1314, %v4236, -inf
  %4323 = vmax.xlane.f32.xlu0 %v4322
  %v4324 = vpop.xlane.xlu0 %4323
  %v4325 = vsel %vm1314, %v4237, -inf
  %4326 = vmax.xlane.f32.xlu0 %v4325
  %v4327 = vpop.xlane.xlu0 %4326
  %v4328 = vsel %vm1314, %v4238, -inf
  %4329 = vmax.xlane.f32.xlu0 %v4328
  %v4330 = vpop.xlane.xlu0 %4329
  %v4331 = vsel %vm1314, %v4239, -inf
  %4332 = vmax.xlane.f32.xlu0 %v4331
  %v4333 = vpop.xlane.xlu0 %4332
  %v4334 = vsel %vm1314, %v4240, -inf
  %4335 = vmax.xlane.f32.xlu0 %v4334
  %v4336 = vpop.xlane.xlu0 %4335
  %v4337 = vsub.f32 %v4209, %v4243
  %v4338 = vsub.f32 %v4210, %v4246
  %v4339 = vsub.f32 %v4211, %v4249
  %v4340 = vsub.f32 %v4212, %v4252
  %v4341 = vsub.f32 %v4213, %v4255
  %v4342 = vsub.f32 %v4214, %v4258
  %v4343 = vsub.f32 %v4215, %v4261
  %v4344 = vsub.f32 %v4216, %v4264
  %v4345 = vsub.f32 %v4217, %v4267
  %v4346 = vsub.f32 %v4218, %v4270
  %v4347 = vsub.f32 %v4219, %v4273
  %v4348 = vsub.f32 %v4220, %v4276
  %v4349 = vsub.f32 %v4221, %v4279
  %v4350 = vsub.f32 %v4222, %v4282
  %v4351 = vsub.f32 %v4223, %v4285
  %v4352 = vsub.f32 %v4224, %v4288
  %v4353 = vsub.f32 %v4225, %v4291
  %v4354 = vsub.f32 %v4226, %v4294
  %v4355 = vsub.f32 %v4227, %v4297
  %v4356 = vsub.f32 %v4228, %v4300
  %v4357 = vsub.f32 %v4229, %v4303
  %v4358 = vsub.f32 %v4230, %v4306
  %v4359 = vsub.f32 %v4231, %v4309
  %v4360 = vsub.f32 %v4232, %v4312
  %v4361 = vsub.f32 %v4233, %v4315
  %v4362 = vsub.f32 %v4234, %v4318
  %v4363 = vsub.f32 %v4235, %v4321
  %v4364 = vsub.f32 %v4236, %v4324
  %v4365 = vsub.f32 %v4237, %v4327
  %v4366 = vsub.f32 %v4238, %v4330
  %v4367 = vsub.f32 %v4239, %v4333
  %v4368 = vsub.f32 %v4240, %v4336
  %v4369 = vmul.f32 %v4337, 1.442695
  %v4370 = vpow.pop %v4369
  %v4371 = vmul.f32 %v4338, 1.442695
  %v4372 = vpow.pop %v4371
  %v4373 = vmul.f32 %v4339, 1.442695
  %v4374 = vpow.pop %v4373
  %v4375 = vmul.f32 %v4340, 1.442695
  %v4376 = vpow.pop %v4375
  %v4377 = vmul.f32 %v4341, 1.442695
  %v4378 = vpow.pop %v4377
  %v4379 = vmul.f32 %v4342, 1.442695
  %v4380 = vpow.pop %v4379
  %v4381 = vmul.f32 %v4343, 1.442695
  %v4382 = vpow.pop %v4381
  %v4383 = vmul.f32 %v4344, 1.442695
  %v4384 = vpow.pop %v4383
  %v4385 = vmul.f32 %v4345, 1.442695
  %v4386 = vpow.pop %v4385
  %v4387 = vmul.f32 %v4346, 1.442695
  %v4388 = vpow.pop %v4387
  %v4389 = vmul.f32 %v4347, 1.442695
  %v4390 = vpow.pop %v4389
  %v4391 = vmul.f32 %v4348, 1.442695
  %v4392 = vpow.pop %v4391
  %v4393 = vmul.f32 %v4349, 1.442695
  %v4394 = vpow.pop %v4393
  %v4395 = vmul.f32 %v4350, 1.442695
  %v4396 = vpow.pop %v4395
  %v4397 = vmul.f32 %v4351, 1.442695
  %v4398 = vpow.pop %v4397
  %v4399 = vmul.f32 %v4352, 1.442695
  %v4400 = vpow.pop %v4399
  %v4401 = vmul.f32 %v4353, 1.442695
  %v4402 = vpow.pop %v4401
  %v4403 = vmul.f32 %v4354, 1.442695
  %v4404 = vpow.pop %v4403
  %v4405 = vmul.f32 %v4355, 1.442695
  %v4406 = vpow.pop %v4405
  %v4407 = vmul.f32 %v4356, 1.442695
  %v4408 = vpow.pop %v4407
  %v4409 = vmul.f32 %v4357, 1.442695
  %v4410 = vpow.pop %v4409
  %v4411 = vmul.f32 %v4358, 1.442695
  %v4412 = vpow.pop %v4411
  %v4413 = vmul.f32 %v4359, 1.442695
  %v4414 = vpow.pop %v4413
  %v4415 = vmul.f32 %v4360, 1.442695
  %v4416 = vpow.pop %v4415
  %v4417 = vmul.f32 %v4361, 1.442695
  %v4418 = vpow.pop %v4417
  %v4419 = vmul.f32 %v4362, 1.442695
  %v4420 = vpow.pop %v4419
  %v4421 = vmul.f32 %v4363, 1.442695
  %v4422 = vpow.pop %v4421
  %v4423 = vmul.f32 %v4364, 1.442695
  %v4424 = vpow.pop %v4423
  %v4425 = vmul.f32 %v4365, 1.442695
  %v4426 = vpow.pop %v4425
  %v4427 = vmul.f32 %v4366, 1.442695
  %v4428 = vpow.pop %v4427
  %v4429 = vmul.f32 %v4367, 1.442695
  %v4430 = vpow.pop %v4429
  %v4431 = vmul.f32 %v4368, 1.442695
  %v4432 = vpow.pop %v4431
  %v4433 = vsel %vm1314, %v4370, 0.0
  %4434 = vadd.xlane.f32.xlu0 %v4433
  %v4435 = vpop.xlane.xlu0 %4434
  %v4436 = vsel %vm1314, %v4372, 0.0
  %4437 = vadd.xlane.f32.xlu0 %v4436
  %v4438 = vpop.xlane.xlu0 %4437
  %v4439 = vsel %vm1314, %v4374, 0.0
  %4440 = vadd.xlane.f32.xlu0 %v4439
  %v4441 = vpop.xlane.xlu0 %4440
  %v4442 = vsel %vm1314, %v4376, 0.0
  %4443 = vadd.xlane.f32.xlu0 %v4442
  %v4444 = vpop.xlane.xlu0 %4443
  %v4445 = vsel %vm1314, %v4378, 0.0
  %4446 = vadd.xlane.f32.xlu0 %v4445
  %v4447 = vpop.xlane.xlu0 %4446
  %v4448 = vsel %vm1314, %v4380, 0.0
  %4449 = vadd.xlane.f32.xlu0 %v4448
  %v4450 = vpop.xlane.xlu0 %4449
  %v4451 = vsel %vm1314, %v4382, 0.0
  %4452 = vadd.xlane.f32.xlu0 %v4451
  %v4453 = vpop.xlane.xlu0 %4452
  %v4454 = vsel %vm1314, %v4384, 0.0
  %4455 = vadd.xlane.f32.xlu0 %v4454
  %v4456 = vpop.xlane.xlu0 %4455
  %v4457 = vsel %vm1314, %v4386, 0.0
  %4458 = vadd.xlane.f32.xlu0 %v4457
  %v4459 = vpop.xlane.xlu0 %4458
  %v4460 = vsel %vm1314, %v4388, 0.0
  %4461 = vadd.xlane.f32.xlu0 %v4460
  %v4462 = vpop.xlane.xlu0 %4461
  %v4463 = vsel %vm1314, %v4390, 0.0
  %4464 = vadd.xlane.f32.xlu0 %v4463
  %v4465 = vpop.xlane.xlu0 %4464
  %v4466 = vsel %vm1314, %v4392, 0.0
  %4467 = vadd.xlane.f32.xlu0 %v4466
  %v4468 = vpop.xlane.xlu0 %4467
  %v4469 = vsel %vm1314, %v4394, 0.0
  %4470 = vadd.xlane.f32.xlu0 %v4469
  %v4471 = vpop.xlane.xlu0 %4470
  %v4472 = vsel %vm1314, %v4396, 0.0
  %4473 = vadd.xlane.f32.xlu0 %v4472
  %v4474 = vpop.xlane.xlu0 %4473
  %v4475 = vsel %vm1314, %v4398, 0.0
  %4476 = vadd.xlane.f32.xlu0 %v4475
  %v4477 = vpop.xlane.xlu0 %4476
  %v4478 = vsel %vm1314, %v4400, 0.0
  %4479 = vadd.xlane.f32.xlu0 %v4478
  %v4480 = vpop.xlane.xlu0 %4479
  %v4481 = vsel %vm1314, %v4402, 0.0
  %4482 = vadd.xlane.f32.xlu0 %v4481
  %v4483 = vpop.xlane.xlu0 %4482
  %v4484 = vsel %vm1314, %v4404, 0.0
  %4485 = vadd.xlane.f32.xlu0 %v4484
  %v4486 = vpop.xlane.xlu0 %4485
  %v4487 = vsel %vm1314, %v4406, 0.0
  %4488 = vadd.xlane.f32.xlu0 %v4487
  %v4489 = vpop.xlane.xlu0 %4488
  %v4490 = vsel %vm1314, %v4408, 0.0
  %4491 = vadd.xlane.f32.xlu0 %v4490
  %v4492 = vpop.xlane.xlu0 %4491
  %v4493 = vsel %vm1314, %v4410, 0.0
  %4494 = vadd.xlane.f32.xlu0 %v4493
  %v4495 = vpop.xlane.xlu0 %4494
  %v4496 = vsel %vm1314, %v4412, 0.0
  %4497 = vadd.xlane.f32.xlu0 %v4496
  %v4498 = vpop.xlane.xlu0 %4497
  %v4499 = vsel %vm1314, %v4414, 0.0
  %4500 = vadd.xlane.f32.xlu0 %v4499
  %v4501 = vpop.xlane.xlu0 %4500
  %v4502 = vsel %vm1314, %v4416, 0.0
  %4503 = vadd.xlane.f32.xlu0 %v4502
  %v4504 = vpop.xlane.xlu0 %4503
  %v4505 = vsel %vm1314, %v4418, 0.0
  %4506 = vadd.xlane.f32.xlu0 %v4505
  %v4507 = vpop.xlane.xlu0 %4506
  %v4508 = vsel %vm1314, %v4420, 0.0
  %4509 = vadd.xlane.f32.xlu0 %v4508
  %v4510 = vpop.xlane.xlu0 %4509
  %v4511 = vsel %vm1314, %v4422, 0.0
  %4512 = vadd.xlane.f32.xlu0 %v4511
  %v4513 = vpop.xlane.xlu0 %4512
  %v4514 = vsel %vm1314, %v4424, 0.0
  %4515 = vadd.xlane.f32.xlu0 %v4514
  %v4516 = vpop.xlane.xlu0 %4515
  %v4517 = vsel %vm1314, %v4426, 0.0
  %4518 = vadd.xlane.f32.xlu0 %v4517
  %v4519 = vpop.xlane.xlu0 %4518
  %v4520 = vsel %vm1314, %v4428, 0.0
  %4521 = vadd.xlane.f32.xlu0 %v4520
  %v4522 = vpop.xlane.xlu0 %4521
  %v4523 = vsel %vm1314, %v4430, 0.0
  %4524 = vadd.xlane.f32.xlu0 %v4523
  %v4525 = vpop.xlane.xlu0 %4524
  %v4526 = vsel %vm1314, %v4432, 0.0
  %4527 = vadd.xlane.f32.xlu0 %v4526
  %v4528 = vpop.xlane.xlu0 %4527
  %v4529 = vrcp.pop %v4435
  %v4530 = vmul.f32 %v4435, %v4529
  %v4531 = vsub.f32 1.0, %v4530
  %v4532 = vmul.f32 %v4529, %v4531
  %v4533 = vadd.f32 %v4529, %v4532
  %vm4534 = vweird.f32 %v4435
  %vm4535 = vweird.f32 %v4529
  %vm4536 = vmor %vm4534, %vm4535
  %v4537 = vsel %vm4536, %v4529, %v4533
  %v4538 = vand.u32 2147483647, %v4435
  %vm4539 = vcmp.eq.f32.partialorder %v4538, 8.507059e+37
  %v4540 = vand.u32 %v4435, 2147483648
  %v4541 = vor.u32 1.1754944e-38, %v4540
  %v4542 = vsel %vm4539, %v4541, %v4537
  %v4543 = vmul.f32 %v4370, %v4542
  %v4544 = vrcp.pop %v4438
  %v4545 = vmul.f32 %v4438, %v4544
  %v4546 = vsub.f32 1.0, %v4545
  %v4547 = vmul.f32 %v4544, %v4546
  %v4548 = vadd.f32 %v4544, %v4547
  %vm4549 = vweird.f32 %v4438
  %vm4550 = vweird.f32 %v4544
  %vm4551 = vmor %vm4549, %vm4550
  %v4552 = vsel %vm4551, %v4544, %v4548
  %v4553 = vand.u32 2147483647, %v4438
  %vm4554 = vcmp.eq.f32.partialorder %v4553, 8.507059e+37
  %v4555 = vand.u32 %v4438, 2147483648
  %v4556 = vor.u32 1.1754944e-38, %v4555
  %v4557 = vsel %vm4554, %v4556, %v4552
  %v4558 = vmul.f32 %v4372, %v4557
  %v4559 = vrcp.pop %v4441
  %v4560 = vmul.f32 %v4441, %v4559
  %v4561 = vsub.f32 1.0, %v4560
  %v4562 = vmul.f32 %v4559, %v4561
  %v4563 = vadd.f32 %v4559, %v4562
  %vm4564 = vweird.f32 %v4441
  %vm4565 = vweird.f32 %v4559
  %vm4566 = vmor %vm4564, %vm4565
  %v4567 = vsel %vm4566, %v4559, %v4563
  %v4568 = vand.u32 2147483647, %v4441
  %vm4569 = vcmp.eq.f32.partialorder %v4568, 8.507059e+37
  %v4570 = vand.u32 %v4441, 2147483648
  %v4571 = vor.u32 1.1754944e-38, %v4570
  %v4572 = vsel %vm4569, %v4571, %v4567
  %v4573 = vmul.f32 %v4374, %v4572
  %v4574 = vrcp.pop %v4444
  %v4575 = vmul.f32 %v4444, %v4574
  %v4576 = vsub.f32 1.0, %v4575
  %v4577 = vmul.f32 %v4574, %v4576
  %v4578 = vadd.f32 %v4574, %v4577
  %vm4579 = vweird.f32 %v4444
  %vm4580 = vweird.f32 %v4574
  %vm4581 = vmor %vm4579, %vm4580
  %v4582 = vsel %vm4581, %v4574, %v4578
  %v4583 = vand.u32 2147483647, %v4444
  %vm4584 = vcmp.eq.f32.partialorder %v4583, 8.507059e+37
  %v4585 = vand.u32 %v4444, 2147483648
  %v4586 = vor.u32 1.1754944e-38, %v4585
  %v4587 = vsel %vm4584, %v4586, %v4582
  %v4588 = vmul.f32 %v4376, %v4587
  %v4589 = vrcp.pop %v4447
  %v4590 = vmul.f32 %v4447, %v4589
  %v4591 = vsub.f32 1.0, %v4590
  %v4592 = vmul.f32 %v4589, %v4591
  %v4593 = vadd.f32 %v4589, %v4592
  %vm4594 = vweird.f32 %v4447
  %vm4595 = vweird.f32 %v4589
  %vm4596 = vmor %vm4594, %vm4595
  %v4597 = vsel %vm4596, %v4589, %v4593
  %v4598 = vand.u32 2147483647, %v4447
  %vm4599 = vcmp.eq.f32.partialorder %v4598, 8.507059e+37
  %v4600 = vand.u32 %v4447, 2147483648
  %v4601 = vor.u32 1.1754944e-38, %v4600
  %v4602 = vsel %vm4599, %v4601, %v4597
  %v4603 = vmul.f32 %v4378, %v4602
  %v4604 = vrcp.pop %v4450
  %v4605 = vmul.f32 %v4450, %v4604
  %v4606 = vsub.f32 1.0, %v4605
  %v4607 = vmul.f32 %v4604, %v4606
  %v4608 = vadd.f32 %v4604, %v4607
  %vm4609 = vweird.f32 %v4450
  %vm4610 = vweird.f32 %v4604
  %vm4611 = vmor %vm4609, %vm4610
  %v4612 = vsel %vm4611, %v4604, %v4608
  %v4613 = vand.u32 2147483647, %v4450
  %vm4614 = vcmp.eq.f32.partialorder %v4613, 8.507059e+37
  %v4615 = vand.u32 %v4450, 2147483648
  %v4616 = vor.u32 1.1754944e-38, %v4615
  %v4617 = vsel %vm4614, %v4616, %v4612
  %v4618 = vmul.f32 %v4380, %v4617
  %v4619 = vrcp.pop %v4453
  %v4620 = vmul.f32 %v4453, %v4619
  %v4621 = vsub.f32 1.0, %v4620
  %v4622 = vmul.f32 %v4619, %v4621
  %v4623 = vadd.f32 %v4619, %v4622
  %vm4624 = vweird.f32 %v4453
  %vm4625 = vweird.f32 %v4619
  %vm4626 = vmor %vm4624, %vm4625
  %v4627 = vsel %vm4626, %v4619, %v4623
  %v4628 = vand.u32 2147483647, %v4453
  %vm4629 = vcmp.eq.f32.partialorder %v4628, 8.507059e+37
  %v4630 = vand.u32 %v4453, 2147483648
  %v4631 = vor.u32 1.1754944e-38, %v4630
  %v4632 = vsel %vm4629, %v4631, %v4627
  %v4633 = vmul.f32 %v4382, %v4632
  %v4634 = vrcp.pop %v4456
  %v4635 = vmul.f32 %v4456, %v4634
  %v4636 = vsub.f32 1.0, %v4635
  %v4637 = vmul.f32 %v4634, %v4636
  %v4638 = vadd.f32 %v4634, %v4637
  %vm4639 = vweird.f32 %v4456
  %vm4640 = vweird.f32 %v4634
  %vm4641 = vmor %vm4639, %vm4640
  %v4642 = vsel %vm4641, %v4634, %v4638
  %v4643 = vand.u32 2147483647, %v4456
  %vm4644 = vcmp.eq.f32.partialorder %v4643, 8.507059e+37
  %v4645 = vand.u32 %v4456, 2147483648
  %v4646 = vor.u32 1.1754944e-38, %v4645
  %v4647 = vsel %vm4644, %v4646, %v4642
  %v4648 = vmul.f32 %v4384, %v4647
  %v4649 = vrcp.pop %v4459
  %v4650 = vmul.f32 %v4459, %v4649
  %v4651 = vsub.f32 1.0, %v4650
  %v4652 = vmul.f32 %v4649, %v4651
  %v4653 = vadd.f32 %v4649, %v4652
  %vm4654 = vweird.f32 %v4459
  %vm4655 = vweird.f32 %v4649
  %vm4656 = vmor %vm4654, %vm4655
  %v4657 = vsel %vm4656, %v4649, %v4653
  %v4658 = vand.u32 2147483647, %v4459
  %vm4659 = vcmp.eq.f32.partialorder %v4658, 8.507059e+37
  %v4660 = vand.u32 %v4459, 2147483648
  %v4661 = vor.u32 1.1754944e-38, %v4660
  %v4662 = vsel %vm4659, %v4661, %v4657
  %v4663 = vmul.f32 %v4386, %v4662
  %v4664 = vrcp.pop %v4462
  %v4665 = vmul.f32 %v4462, %v4664
  %v4666 = vsub.f32 1.0, %v4665
  %v4667 = vmul.f32 %v4664, %v4666
  %v4668 = vadd.f32 %v4664, %v4667
  %vm4669 = vweird.f32 %v4462
  %vm4670 = vweird.f32 %v4664
  %vm4671 = vmor %vm4669, %vm4670
  %v4672 = vsel %vm4671, %v4664, %v4668
  %v4673 = vand.u32 2147483647, %v4462
  %vm4674 = vcmp.eq.f32.partialorder %v4673, 8.507059e+37
  %v4675 = vand.u32 %v4462, 2147483648
  %v4676 = vor.u32 1.1754944e-38, %v4675
  %v4677 = vsel %vm4674, %v4676, %v4672
  %v4678 = vmul.f32 %v4388, %v4677
  %v4679 = vrcp.pop %v4465
  %v4680 = vmul.f32 %v4465, %v4679
  %v4681 = vsub.f32 1.0, %v4680
  %v4682 = vmul.f32 %v4679, %v4681
  %v4683 = vadd.f32 %v4679, %v4682
  %vm4684 = vweird.f32 %v4465
  %vm4685 = vweird.f32 %v4679
  %vm4686 = vmor %vm4684, %vm4685
  %v4687 = vsel %vm4686, %v4679, %v4683
  %v4688 = vand.u32 2147483647, %v4465
  %vm4689 = vcmp.eq.f32.partialorder %v4688, 8.507059e+37
  %v4690 = vand.u32 %v4465, 2147483648
  %v4691 = vor.u32 1.1754944e-38, %v4690
  %v4692 = vsel %vm4689, %v4691, %v4687
  %v4693 = vmul.f32 %v4390, %v4692
  %v4694 = vrcp.pop %v4468
  %v4695 = vmul.f32 %v4468, %v4694
  %v4696 = vsub.f32 1.0, %v4695
  %v4697 = vmul.f32 %v4694, %v4696
  %v4698 = vadd.f32 %v4694, %v4697
  %vm4699 = vweird.f32 %v4468
  %vm4700 = vweird.f32 %v4694
  %vm4701 = vmor %vm4699, %vm4700
  %v4702 = vsel %vm4701, %v4694, %v4698
  %v4703 = vand.u32 2147483647, %v4468
  %vm4704 = vcmp.eq.f32.partialorder %v4703, 8.507059e+37
  %v4705 = vand.u32 %v4468, 2147483648
  %v4706 = vor.u32 1.1754944e-38, %v4705
  %v4707 = vsel %vm4704, %v4706, %v4702
  %v4708 = vmul.f32 %v4392, %v4707
  %v4709 = vrcp.pop %v4471
  %v4710 = vmul.f32 %v4471, %v4709
  %v4711 = vsub.f32 1.0, %v4710
  %v4712 = vmul.f32 %v4709, %v4711
  %v4713 = vadd.f32 %v4709, %v4712
  %vm4714 = vweird.f32 %v4471
  %vm4715 = vweird.f32 %v4709
  %vm4716 = vmor %vm4714, %vm4715
  %v4717 = vsel %vm4716, %v4709, %v4713
  %v4718 = vand.u32 2147483647, %v4471
  %vm4719 = vcmp.eq.f32.partialorder %v4718, 8.507059e+37
  %v4720 = vand.u32 %v4471, 2147483648
  %v4721 = vor.u32 1.1754944e-38, %v4720
  %v4722 = vsel %vm4719, %v4721, %v4717
  %v4723 = vmul.f32 %v4394, %v4722
  %v4724 = vrcp.pop %v4474
  %v4725 = vmul.f32 %v4474, %v4724
  %v4726 = vsub.f32 1.0, %v4725
  %v4727 = vmul.f32 %v4724, %v4726
  %v4728 = vadd.f32 %v4724, %v4727
  %vm4729 = vweird.f32 %v4474
  %vm4730 = vweird.f32 %v4724
  %vm4731 = vmor %vm4729, %vm4730
  %v4732 = vsel %vm4731, %v4724, %v4728
  %v4733 = vand.u32 2147483647, %v4474
  %vm4734 = vcmp.eq.f32.partialorder %v4733, 8.507059e+37
  %v4735 = vand.u32 %v4474, 2147483648
  %v4736 = vor.u32 1.1754944e-38, %v4735
  %v4737 = vsel %vm4734, %v4736, %v4732
  %v4738 = vmul.f32 %v4396, %v4737
  %v4739 = vrcp.pop %v4477
  %v4740 = vmul.f32 %v4477, %v4739
  %v4741 = vsub.f32 1.0, %v4740
  %v4742 = vmul.f32 %v4739, %v4741
  %v4743 = vadd.f32 %v4739, %v4742
  %vm4744 = vweird.f32 %v4477
  %vm4745 = vweird.f32 %v4739
  %vm4746 = vmor %vm4744, %vm4745
  %v4747 = vsel %vm4746, %v4739, %v4743
  %v4748 = vand.u32 2147483647, %v4477
  %vm4749 = vcmp.eq.f32.partialorder %v4748, 8.507059e+37
  %v4750 = vand.u32 %v4477, 2147483648
  %v4751 = vor.u32 1.1754944e-38, %v4750
  %v4752 = vsel %vm4749, %v4751, %v4747
  %v4753 = vmul.f32 %v4398, %v4752
  %v4754 = vrcp.pop %v4480
  %v4755 = vmul.f32 %v4480, %v4754
  %v4756 = vsub.f32 1.0, %v4755
  %v4757 = vmul.f32 %v4754, %v4756
  %v4758 = vadd.f32 %v4754, %v4757
  %vm4759 = vweird.f32 %v4480
  %vm4760 = vweird.f32 %v4754
  %vm4761 = vmor %vm4759, %vm4760
  %v4762 = vsel %vm4761, %v4754, %v4758
  %v4763 = vand.u32 2147483647, %v4480
  %vm4764 = vcmp.eq.f32.partialorder %v4763, 8.507059e+37
  %v4765 = vand.u32 %v4480, 2147483648
  %v4766 = vor.u32 1.1754944e-38, %v4765
  %v4767 = vsel %vm4764, %v4766, %v4762
  %v4768 = vmul.f32 %v4400, %v4767
  %v4769 = vrcp.pop %v4483
  %v4770 = vmul.f32 %v4483, %v4769
  %v4771 = vsub.f32 1.0, %v4770
  %v4772 = vmul.f32 %v4769, %v4771
  %v4773 = vadd.f32 %v4769, %v4772
  %vm4774 = vweird.f32 %v4483
  %vm4775 = vweird.f32 %v4769
  %vm4776 = vmor %vm4774, %vm4775
  %v4777 = vsel %vm4776, %v4769, %v4773
  %v4778 = vand.u32 2147483647, %v4483
  %vm4779 = vcmp.eq.f32.partialorder %v4778, 8.507059e+37
  %v4780 = vand.u32 %v4483, 2147483648
  %v4781 = vor.u32 1.1754944e-38, %v4780
  %v4782 = vsel %vm4779, %v4781, %v4777
  %v4783 = vmul.f32 %v4402, %v4782
  %v4784 = vrcp.pop %v4486
  %v4785 = vmul.f32 %v4486, %v4784
  %v4786 = vsub.f32 1.0, %v4785
  %v4787 = vmul.f32 %v4784, %v4786
  %v4788 = vadd.f32 %v4784, %v4787
  %vm4789 = vweird.f32 %v4486
  %vm4790 = vweird.f32 %v4784
  %vm4791 = vmor %vm4789, %vm4790
  %v4792 = vsel %vm4791, %v4784, %v4788
  %v4793 = vand.u32 2147483647, %v4486
  %vm4794 = vcmp.eq.f32.partialorder %v4793, 8.507059e+37
  %v4795 = vand.u32 %v4486, 2147483648
  %v4796 = vor.u32 1.1754944e-38, %v4795
  %v4797 = vsel %vm4794, %v4796, %v4792
  %v4798 = vmul.f32 %v4404, %v4797
  %v4799 = vrcp.pop %v4489
  %v4800 = vmul.f32 %v4489, %v4799
  %v4801 = vsub.f32 1.0, %v4800
  %v4802 = vmul.f32 %v4799, %v4801
  %v4803 = vadd.f32 %v4799, %v4802
  %vm4804 = vweird.f32 %v4489
  %vm4805 = vweird.f32 %v4799
  %vm4806 = vmor %vm4804, %vm4805
  %v4807 = vsel %vm4806, %v4799, %v4803
  %v4808 = vand.u32 2147483647, %v4489
  %vm4809 = vcmp.eq.f32.partialorder %v4808, 8.507059e+37
  %v4810 = vand.u32 %v4489, 2147483648
  %v4811 = vor.u32 1.1754944e-38, %v4810
  %v4812 = vsel %vm4809, %v4811, %v4807
  %v4813 = vmul.f32 %v4406, %v4812
  %v4814 = vrcp.pop %v4492
  %v4815 = vmul.f32 %v4492, %v4814
  %v4816 = vsub.f32 1.0, %v4815
  %v4817 = vmul.f32 %v4814, %v4816
  %v4818 = vadd.f32 %v4814, %v4817
  %vm4819 = vweird.f32 %v4492
  %vm4820 = vweird.f32 %v4814
  %vm4821 = vmor %vm4819, %vm4820
  %v4822 = vsel %vm4821, %v4814, %v4818
  %v4823 = vand.u32 2147483647, %v4492
  %vm4824 = vcmp.eq.f32.partialorder %v4823, 8.507059e+37
  %v4825 = vand.u32 %v4492, 2147483648
  %v4826 = vor.u32 1.1754944e-38, %v4825
  %v4827 = vsel %vm4824, %v4826, %v4822
  %v4828 = vmul.f32 %v4408, %v4827
  %v4829 = vrcp.pop %v4495
  %v4830 = vmul.f32 %v4495, %v4829
  %v4831 = vsub.f32 1.0, %v4830
  %v4832 = vmul.f32 %v4829, %v4831
  %v4833 = vadd.f32 %v4829, %v4832
  %vm4834 = vweird.f32 %v4495
  %vm4835 = vweird.f32 %v4829
  %vm4836 = vmor %vm4834, %vm4835
  %v4837 = vsel %vm4836, %v4829, %v4833
  %v4838 = vand.u32 2147483647, %v4495
  %vm4839 = vcmp.eq.f32.partialorder %v4838, 8.507059e+37
  %v4840 = vand.u32 %v4495, 2147483648
  %v4841 = vor.u32 1.1754944e-38, %v4840
  %v4842 = vsel %vm4839, %v4841, %v4837
  %v4843 = vmul.f32 %v4410, %v4842
  %v4844 = vrcp.pop %v4498
  %v4845 = vmul.f32 %v4498, %v4844
  %v4846 = vsub.f32 1.0, %v4845
  %v4847 = vmul.f32 %v4844, %v4846
  %v4848 = vadd.f32 %v4844, %v4847
  %vm4849 = vweird.f32 %v4498
  %vm4850 = vweird.f32 %v4844
  %vm4851 = vmor %vm4849, %vm4850
  %v4852 = vsel %vm4851, %v4844, %v4848
  %v4853 = vand.u32 2147483647, %v4498
  %vm4854 = vcmp.eq.f32.partialorder %v4853, 8.507059e+37
  %v4855 = vand.u32 %v4498, 2147483648
  %v4856 = vor.u32 1.1754944e-38, %v4855
  %v4857 = vsel %vm4854, %v4856, %v4852
  %v4858 = vmul.f32 %v4412, %v4857
  %v4859 = vrcp.pop %v4501
  %v4860 = vmul.f32 %v4501, %v4859
  %v4861 = vsub.f32 1.0, %v4860
  %v4862 = vmul.f32 %v4859, %v4861
  %v4863 = vadd.f32 %v4859, %v4862
  %vm4864 = vweird.f32 %v4501
  %vm4865 = vweird.f32 %v4859
  %vm4866 = vmor %vm4864, %vm4865
  %v4867 = vsel %vm4866, %v4859, %v4863
  %v4868 = vand.u32 2147483647, %v4501
  %vm4869 = vcmp.eq.f32.partialorder %v4868, 8.507059e+37
  %v4870 = vand.u32 %v4501, 2147483648
  %v4871 = vor.u32 1.1754944e-38, %v4870
  %v4872 = vsel %vm4869, %v4871, %v4867
  %v4873 = vmul.f32 %v4414, %v4872
  %v4874 = vrcp.pop %v4504
  %v4875 = vmul.f32 %v4504, %v4874
  %v4876 = vsub.f32 1.0, %v4875
  %v4877 = vmul.f32 %v4874, %v4876
  %v4878 = vadd.f32 %v4874, %v4877
  %vm4879 = vweird.f32 %v4504
  %vm4880 = vweird.f32 %v4874
  %vm4881 = vmor %vm4879, %vm4880
  %v4882 = vsel %vm4881, %v4874, %v4878
  %v4883 = vand.u32 2147483647, %v4504
  %vm4884 = vcmp.eq.f32.partialorder %v4883, 8.507059e+37
  %v4885 = vand.u32 %v4504, 2147483648
  %v4886 = vor.u32 1.1754944e-38, %v4885
  %v4887 = vsel %vm4884, %v4886, %v4882
  %v4888 = vmul.f32 %v4416, %v4887
  %v4889 = vrcp.pop %v4507
  %v4890 = vmul.f32 %v4507, %v4889
  %v4891 = vsub.f32 1.0, %v4890
  %v4892 = vmul.f32 %v4889, %v4891
  %v4893 = vadd.f32 %v4889, %v4892
  %vm4894 = vweird.f32 %v4507
  %vm4895 = vweird.f32 %v4889
  %vm4896 = vmor %vm4894, %vm4895
  %v4897 = vsel %vm4896, %v4889, %v4893
  %v4898 = vand.u32 2147483647, %v4507
  %vm4899 = vcmp.eq.f32.partialorder %v4898, 8.507059e+37
  %v4900 = vand.u32 %v4507, 2147483648
  %v4901 = vor.u32 1.1754944e-38, %v4900
  %v4902 = vsel %vm4899, %v4901, %v4897
  %v4903 = vmul.f32 %v4418, %v4902
  %v4904 = vrcp.pop %v4510
  %v4905 = vmul.f32 %v4510, %v4904
  %v4906 = vsub.f32 1.0, %v4905
  %v4907 = vmul.f32 %v4904, %v4906
  %v4908 = vadd.f32 %v4904, %v4907
  %vm4909 = vweird.f32 %v4510
  %vm4910 = vweird.f32 %v4904
  %vm4911 = vmor %vm4909, %vm4910
  %v4912 = vsel %vm4911, %v4904, %v4908
  %v4913 = vand.u32 2147483647, %v4510
  %vm4914 = vcmp.eq.f32.partialorder %v4913, 8.507059e+37
  %v4915 = vand.u32 %v4510, 2147483648
  %v4916 = vor.u32 1.1754944e-38, %v4915
  %v4917 = vsel %vm4914, %v4916, %v4912
  %v4918 = vmul.f32 %v4420, %v4917
  %v4919 = vrcp.pop %v4513
  %v4920 = vmul.f32 %v4513, %v4919
  %v4921 = vsub.f32 1.0, %v4920
  %v4922 = vmul.f32 %v4919, %v4921
  %v4923 = vadd.f32 %v4919, %v4922
  %vm4924 = vweird.f32 %v4513
  %vm4925 = vweird.f32 %v4919
  %vm4926 = vmor %vm4924, %vm4925
  %v4927 = vsel %vm4926, %v4919, %v4923
  %v4928 = vand.u32 2147483647, %v4513
  %vm4929 = vcmp.eq.f32.partialorder %v4928, 8.507059e+37
  %v4930 = vand.u32 %v4513, 2147483648
  %v4931 = vor.u32 1.1754944e-38, %v4930
  %v4932 = vsel %vm4929, %v4931, %v4927
  %v4933 = vmul.f32 %v4422, %v4932
  %v4934 = vrcp.pop %v4516
  %v4935 = vmul.f32 %v4516, %v4934
  %v4936 = vsub.f32 1.0, %v4935
  %v4937 = vmul.f32 %v4934, %v4936
  %v4938 = vadd.f32 %v4934, %v4937
  %vm4939 = vweird.f32 %v4516
  %vm4940 = vweird.f32 %v4934
  %vm4941 = vmor %vm4939, %vm4940
  %v4942 = vsel %vm4941, %v4934, %v4938
  %v4943 = vand.u32 2147483647, %v4516
  %vm4944 = vcmp.eq.f32.partialorder %v4943, 8.507059e+37
  %v4945 = vand.u32 %v4516, 2147483648
  %v4946 = vor.u32 1.1754944e-38, %v4945
  %v4947 = vsel %vm4944, %v4946, %v4942
  %v4948 = vmul.f32 %v4424, %v4947
  %v4949 = vrcp.pop %v4519
  %v4950 = vmul.f32 %v4519, %v4949
  %v4951 = vsub.f32 1.0, %v4950
  %v4952 = vmul.f32 %v4949, %v4951
  %v4953 = vadd.f32 %v4949, %v4952
  %vm4954 = vweird.f32 %v4519
  %vm4955 = vweird.f32 %v4949
  %vm4956 = vmor %vm4954, %vm4955
  %v4957 = vsel %vm4956, %v4949, %v4953
  %v4958 = vand.u32 2147483647, %v4519
  %vm4959 = vcmp.eq.f32.partialorder %v4958, 8.507059e+37
  %v4960 = vand.u32 %v4519, 2147483648
  %v4961 = vor.u32 1.1754944e-38, %v4960
  %v4962 = vsel %vm4959, %v4961, %v4957
  %v4963 = vmul.f32 %v4426, %v4962
  %v4964 = vrcp.pop %v4522
  %v4965 = vmul.f32 %v4522, %v4964
  %v4966 = vsub.f32 1.0, %v4965
  %v4967 = vmul.f32 %v4964, %v4966
  %v4968 = vadd.f32 %v4964, %v4967
  %vm4969 = vweird.f32 %v4522
  %vm4970 = vweird.f32 %v4964
  %vm4971 = vmor %vm4969, %vm4970
  %v4972 = vsel %vm4971, %v4964, %v4968
  %v4973 = vand.u32 2147483647, %v4522
  %vm4974 = vcmp.eq.f32.partialorder %v4973, 8.507059e+37
  %v4975 = vand.u32 %v4522, 2147483648
  %v4976 = vor.u32 1.1754944e-38, %v4975
  %v4977 = vsel %vm4974, %v4976, %v4972
  %v4978 = vmul.f32 %v4428, %v4977
  %v4979 = vrcp.pop %v4525
  %v4980 = vmul.f32 %v4525, %v4979
  %v4981 = vsub.f32 1.0, %v4980
  %v4982 = vmul.f32 %v4979, %v4981
  %v4983 = vadd.f32 %v4979, %v4982
  %vm4984 = vweird.f32 %v4525
  %vm4985 = vweird.f32 %v4979
  %vm4986 = vmor %vm4984, %vm4985
  %v4987 = vsel %vm4986, %v4979, %v4983
  %v4988 = vand.u32 2147483647, %v4525
  %vm4989 = vcmp.eq.f32.partialorder %v4988, 8.507059e+37
  %v4990 = vand.u32 %v4525, 2147483648
  %v4991 = vor.u32 1.1754944e-38, %v4990
  %v4992 = vsel %vm4989, %v4991, %v4987
  %v4993 = vmul.f32 %v4430, %v4992
  %v4994 = vrcp.pop %v4528
  %v4995 = vmul.f32 %v4528, %v4994
  %v4996 = vsub.f32 1.0, %v4995
  %v4997 = vmul.f32 %v4994, %v4996
  %v4998 = vadd.f32 %v4994, %v4997
  %vm4999 = vweird.f32 %v4528
  %vm5000 = vweird.f32 %v4994
  %vm5001 = vmor %vm4999, %vm5000
  %v5002 = vsel %vm5001, %v4994, %v4998
  %v5003 = vand.u32 2147483647, %v4528
  %vm5004 = vcmp.eq.f32.partialorder %v5003, 8.507059e+37
  %v5005 = vand.u32 %v4528, 2147483648
  %v5006 = vor.u32 1.1754944e-38, %v5005
  %v5007 = vsel %vm5004, %v5006, %v5002
  %v5008 = vmul.f32 %v4432, %v5007
  %v5010 = vsel %vm1314, %v4543, 0
  %v5013 = vsel %vm1314, %v4558, 0
  %v5016 = vsel %vm1314, %v4573, 0
  %v5019 = vsel %vm1314, %v4588, 0
  %5021 = vmatpush.msra.mxu0 0.0
  %5022 = vmatpush.msra.mxu0 0.0
  %5023 = vmatpush.msra.mxu0 0.0
  %5024 = vmatpush.msra.mxu0 0.0
  %5025 = vmatpush.msra.mxu0 0.0
  %5026 = vmatpush.msra.mxu0 0.0
  %5027 = vmatpush.msra.mxu0 0.0
  %5028 = vmatpush.msra.mxu0 0.0
  %5029 = vmatpush.msra.mxu0 0.0
  %5030 = vmatpush.msra.mxu0 0.0
  %5031 = vmatpush.msra.mxu0 0.0
  %5032 = vmatpush.msra.mxu0 0.0
  %5033 = vmatpush.msra.mxu0 0.0
  %5034 = vmatpush.msra.mxu0 0.0
  %5035 = vmatpush.msra.mxu0 %v3749
  %5036 = vmatpush.msra.mxu0 %v3746
  %5037 = vmatmul.f32.gmra.mxu0 %v5010
  %v5038 = vpop.f32.mrf.mxu0
  %v5039 = vadd.f32 0.0, %v5038
  %5040 = vmatmul.f32.gmra.mxu0 %v5013
  %v5041 = vpop.f32.mrf.mxu0
  %v5042 = vadd.f32 0.0, %v5041
  %5043 = vmatmul.f32.gmra.mxu0 %v5016
  %v5044 = vpop.f32.mrf.mxu0
  %v5045 = vadd.f32 0.0, %v5044
  %5046 = vmatmul.f32.gmra.mxu0 %v5019
  %v5047 = vpop.f32.mrf.mxu0
  %v5048 = vadd.f32 0.0, %v5047
  %5049 = vdwg.mxu0
  %v5051 = vsel %vm1314, %v4603, 0
  %v5054 = vsel %vm1314, %v4618, 0
  %v5057 = vsel %vm1314, %v4633, 0
  %v5060 = vsel %vm1314, %v4648, 0
  %5062 = vmatpush.msra.mxu0 0.0
  %5063 = vmatpush.msra.mxu0 0.0
  %5064 = vmatpush.msra.mxu0 0.0
  %5065 = vmatpush.msra.mxu0 0.0
  %5066 = vmatpush.msra.mxu0 0.0
  %5067 = vmatpush.msra.mxu0 0.0
  %5068 = vmatpush.msra.mxu0 0.0
  %5069 = vmatpush.msra.mxu0 0.0
  %5070 = vmatpush.msra.mxu0 0.0
  %5071 = vmatpush.msra.mxu0 0.0
  %5072 = vmatpush.msra.mxu0 0.0
  %5073 = vmatpush.msra.mxu0 0.0
  %5074 = vmatpush.msra.mxu0 0.0
  %5075 = vmatpush.msra.mxu0 0.0
  %5076 = vmatpush.msra.mxu0 %v3842
  %5077 = vmatpush.msra.mxu0 %v3840
  %5078 = vmatmul.f32.gmra.mxu0 %v5051
  %v5079 = vpop.f32.mrf.mxu0
  %v5080 = vadd.f32 0.0, %v5079
  %5081 = vmatmul.f32.gmra.mxu0 %v5054
  %v5082 = vpop.f32.mrf.mxu0
  %v5083 = vadd.f32 0.0, %v5082
  %5084 = vmatmul.f32.gmra.mxu0 %v5057
  %v5085 = vpop.f32.mrf.mxu0
  %v5086 = vadd.f32 0.0, %v5085
  %5087 = vmatmul.f32.gmra.mxu0 %v5060
  %v5088 = vpop.f32.mrf.mxu0
  %v5089 = vadd.f32 0.0, %v5088
  %5090 = vdwg.mxu0
  %v5092 = vsel %vm1314, %v4663, 0
  %v5095 = vsel %vm1314, %v4678, 0
  %v5098 = vsel %vm1314, %v4693, 0
  %v5101 = vsel %vm1314, %v4708, 0
  %5103 = vmatpush.msra.mxu0 0.0
  %5104 = vmatpush.msra.mxu0 0.0
  %5105 = vmatpush.msra.mxu0 0.0
  %5106 = vmatpush.msra.mxu0 0.0
  %5107 = vmatpush.msra.mxu0 0.0
  %5108 = vmatpush.msra.mxu0 0.0
  %5109 = vmatpush.msra.mxu0 0.0
  %5110 = vmatpush.msra.mxu0 0.0
  %5111 = vmatpush.msra.mxu0 0.0
  %5112 = vmatpush.msra.mxu0 0.0
  %5113 = vmatpush.msra.mxu0 0.0
  %5114 = vmatpush.msra.mxu0 0.0
  %5115 = vmatpush.msra.mxu0 0.0
  %5116 = vmatpush.msra.mxu0 0.0
  %5117 = vmatpush.msra.mxu0 %v3848
  %5118 = vmatpush.msra.mxu0 %v3846
  %5119 = vmatmul.f32.gmra.mxu0 %v5092
  %v5120 = vpop.f32.mrf.mxu0
  %v5121 = vadd.f32 0.0, %v5120
  %5122 = vmatmul.f32.gmra.mxu0 %v5095
  %v5123 = vpop.f32.mrf.mxu0
  %v5124 = vadd.f32 0.0, %v5123
  %5125 = vmatmul.f32.gmra.mxu0 %v5098
  %v5126 = vpop.f32.mrf.mxu0
  %v5127 = vadd.f32 0.0, %v5126
  %5128 = vmatmul.f32.gmra.mxu0 %v5101
  %v5129 = vpop.f32.mrf.mxu0
  %v5130 = vadd.f32 0.0, %v5129
  %5131 = vdwg.mxu0
  %v5133 = vsel %vm1314, %v4723, 0
  %v5136 = vsel %vm1314, %v4738, 0
  %v5139 = vsel %vm1314, %v4753, 0
  %v5142 = vsel %vm1314, %v4768, 0
  %5144 = vmatpush.msra.mxu0 0.0
  %5145 = vmatpush.msra.mxu0 0.0
  %5146 = vmatpush.msra.mxu0 0.0
  %5147 = vmatpush.msra.mxu0 0.0
  %5148 = vmatpush.msra.mxu0 0.0
  %5149 = vmatpush.msra.mxu0 0.0
  %5150 = vmatpush.msra.mxu0 0.0
  %5151 = vmatpush.msra.mxu0 0.0
  %5152 = vmatpush.msra.mxu0 0.0
  %5153 = vmatpush.msra.mxu0 0.0
  %5154 = vmatpush.msra.mxu0 0.0
  %5155 = vmatpush.msra.mxu0 0.0
  %5156 = vmatpush.msra.mxu0 0.0
  %5157 = vmatpush.msra.mxu0 0.0
  %5158 = vmatpush.msra.mxu0 %v3854
  %5159 = vmatpush.msra.mxu0 %v3852
  %5160 = vmatmul.f32.gmra.mxu0 %v5133
  %v5161 = vpop.f32.mrf.mxu0
  %v5162 = vadd.f32 0.0, %v5161
  %5163 = vmatmul.f32.gmra.mxu0 %v5136
  %v5164 = vpop.f32.mrf.mxu0
  %v5165 = vadd.f32 0.0, %v5164
  %5166 = vmatmul.f32.gmra.mxu0 %v5139
  %v5167 = vpop.f32.mrf.mxu0
  %v5168 = vadd.f32 0.0, %v5167
  %5169 = vmatmul.f32.gmra.mxu0 %v5142
  %v5170 = vpop.f32.mrf.mxu0
  %v5171 = vadd.f32 0.0, %v5170
  %5172 = vdwg.mxu0
  %v5174 = vsel %vm1314, %v4783, 0
  %v5177 = vsel %vm1314, %v4798, 0
  %v5180 = vsel %vm1314, %v4813, 0
  %v5183 = vsel %vm1314, %v4828, 0
  %5185 = vmatpush.msra.mxu0 0.0
  %5186 = vmatpush.msra.mxu0 0.0
  %5187 = vmatpush.msra.mxu0 0.0
  %5188 = vmatpush.msra.mxu0 0.0
  %5189 = vmatpush.msra.mxu0 0.0
  %5190 = vmatpush.msra.mxu0 0.0
  %5191 = vmatpush.msra.mxu0 0.0
  %5192 = vmatpush.msra.mxu0 0.0
  %5193 = vmatpush.msra.mxu0 0.0
  %5194 = vmatpush.msra.mxu0 0.0
  %5195 = vmatpush.msra.mxu0 0.0
  %5196 = vmatpush.msra.mxu0 0.0
  %5197 = vmatpush.msra.mxu0 0.0
  %5198 = vmatpush.msra.mxu0 0.0
  %5199 = vmatpush.msra.mxu0 %v3860
  %5200 = vmatpush.msra.mxu0 %v3858
  %5201 = vmatmul.f32.gmra.mxu0 %v5174
  %v5202 = vpop.f32.mrf.mxu0
  %v5203 = vadd.f32 0.0, %v5202
  %5204 = vmatmul.f32.gmra.mxu0 %v5177
  %v5205 = vpop.f32.mrf.mxu0
  %v5206 = vadd.f32 0.0, %v5205
  %5207 = vmatmul.f32.gmra.mxu0 %v5180
  %v5208 = vpop.f32.mrf.mxu0
  %v5209 = vadd.f32 0.0, %v5208
  %5210 = vmatmul.f32.gmra.mxu0 %v5183
  %v5211 = vpop.f32.mrf.mxu0
  %v5212 = vadd.f32 0.0, %v5211
  %5213 = vdwg.mxu0
  %v5215 = vsel %vm1314, %v4843, 0
  %v5218 = vsel %vm1314, %v4858, 0
  %v5221 = vsel %vm1314, %v4873, 0
  %v5224 = vsel %vm1314, %v4888, 0
  %5226 = vmatpush.msra.mxu0 0.0
  %5227 = vmatpush.msra.mxu0 0.0
  %5228 = vmatpush.msra.mxu0 0.0
  %5229 = vmatpush.msra.mxu0 0.0
  %5230 = vmatpush.msra.mxu0 0.0
  %5231 = vmatpush.msra.mxu0 0.0
  %5232 = vmatpush.msra.mxu0 0.0
  %5233 = vmatpush.msra.mxu0 0.0
  %5234 = vmatpush.msra.mxu0 0.0
  %5235 = vmatpush.msra.mxu0 0.0
  %5236 = vmatpush.msra.mxu0 0.0
  %5237 = vmatpush.msra.mxu0 0.0
  %5238 = vmatpush.msra.mxu0 0.0
  %5239 = vmatpush.msra.mxu0 0.0
  %5240 = vmatpush.msra.mxu0 %v3866
  %5241 = vmatpush.msra.mxu0 %v3864
  %5242 = vmatmul.f32.gmra.mxu0 %v5215
  %v5243 = vpop.f32.mrf.mxu0
  %v5244 = vadd.f32 0.0, %v5243
  %5245 = vmatmul.f32.gmra.mxu0 %v5218
  %v5246 = vpop.f32.mrf.mxu0
  %v5247 = vadd.f32 0.0, %v5246
  %5248 = vmatmul.f32.gmra.mxu0 %v5221
  %v5249 = vpop.f32.mrf.mxu0
  %v5250 = vadd.f32 0.0, %v5249
  %5251 = vmatmul.f32.gmra.mxu0 %v5224
  %v5252 = vpop.f32.mrf.mxu0
  %v5253 = vadd.f32 0.0, %v5252
  %5254 = vdwg.mxu0
  %v5256 = vsel %vm1314, %v4903, 0
  %v5259 = vsel %vm1314, %v4918, 0
  %v5262 = vsel %vm1314, %v4933, 0
  %v5265 = vsel %vm1314, %v4948, 0
  %5267 = vmatpush.msra.mxu0 0.0
  %5268 = vmatpush.msra.mxu0 0.0
  %5269 = vmatpush.msra.mxu0 0.0
  %5270 = vmatpush.msra.mxu0 0.0
  %5271 = vmatpush.msra.mxu0 0.0
  %5272 = vmatpush.msra.mxu0 0.0
  %5273 = vmatpush.msra.mxu0 0.0
  %5274 = vmatpush.msra.mxu0 0.0
  %5275 = vmatpush.msra.mxu0 0.0
  %5276 = vmatpush.msra.mxu0 0.0
  %5277 = vmatpush.msra.mxu0 0.0
  %5278 = vmatpush.msra.mxu0 0.0
  %5279 = vmatpush.msra.mxu0 0.0
  %5280 = vmatpush.msra.mxu0 0.0
  %5281 = vmatpush.msra.mxu0 %v3872
  %5282 = vmatpush.msra.mxu0 %v3870
  %5283 = vmatmul.f32.gmra.mxu0 %v5256
  %v5284 = vpop.f32.mrf.mxu0
  %v5285 = vadd.f32 0.0, %v5284
  %5286 = vmatmul.f32.gmra.mxu0 %v5259
  %v5287 = vpop.f32.mrf.mxu0
  %v5288 = vadd.f32 0.0, %v5287
  %5289 = vmatmul.f32.gmra.mxu0 %v5262
  %v5290 = vpop.f32.mrf.mxu0
  %v5291 = vadd.f32 0.0, %v5290
  %5292 = vmatmul.f32.gmra.mxu0 %v5265
  %v5293 = vpop.f32.mrf.mxu0
  %v5294 = vadd.f32 0.0, %v5293
  %5295 = vdwg.mxu0
  %v5297 = vsel %vm1314, %v4963, 0
  %v5300 = vsel %vm1314, %v4978, 0
  %v5303 = vsel %vm1314, %v4993, 0
  %v5306 = vsel %vm1314, %v5008, 0
  %5308 = vmatpush.msra.mxu0 0.0
  %5309 = vmatpush.msra.mxu0 0.0
  %5310 = vmatpush.msra.mxu0 0.0
  %5311 = vmatpush.msra.mxu0 0.0
  %5312 = vmatpush.msra.mxu0 0.0
  %5313 = vmatpush.msra.mxu0 0.0
  %5314 = vmatpush.msra.mxu0 0.0
  %5315 = vmatpush.msra.mxu0 0.0
  %5316 = vmatpush.msra.mxu0 0.0
  %5317 = vmatpush.msra.mxu0 0.0
  %5318 = vmatpush.msra.mxu0 0.0
  %5319 = vmatpush.msra.mxu0 0.0
  %5320 = vmatpush.msra.mxu0 0.0
  %5321 = vmatpush.msra.mxu0 0.0
  %5322 = vmatpush.msra.mxu0 %v3878
  %5323 = vmatpush.msra.mxu0 %v3876
  %5324 = vmatmul.f32.gmra.mxu0 %v5297
  %v5325 = vpop.f32.mrf.mxu0
  %v5326 = vadd.f32 0.0, %v5325
  %5327 = vmatmul.f32.gmra.mxu0 %v5300
  %v5328 = vpop.f32.mrf.mxu0
  %v5329 = vadd.f32 0.0, %v5328
  %5330 = vmatmul.f32.gmra.mxu0 %v5303
  %v5331 = vpop.f32.mrf.mxu0
  %v5332 = vadd.f32 0.0, %v5331
  %5333 = vmatmul.f32.gmra.mxu0 %v5306
  %v5334 = vpop.f32.mrf.mxu0
  %v5335 = vadd.f32 0.0, %v5334
  %5336 = vdwg.mxu0
  %5341 = vrot.lane.b32.xlu0 %v5080, 8
  %v5342 = vpop.permute.xlu0 %5341
  %5343 = vrot.lane.b32.xlu0 %v5083, 8
  %v5344 = vpop.permute.xlu0 %5343
  %5345 = vrot.lane.b32.xlu0 %v5086, 8
  %v5346 = vpop.permute.xlu0 %5345
  %5347 = vrot.lane.b32.xlu0 %v5089, 8
  %v5348 = vpop.permute.xlu0 %5347
  %5357 = vrot.lane.b32.xlu0 %v5121, 16
  %v5358 = vpop.permute.xlu0 %5357
  %5359 = vrot.lane.b32.xlu0 %v5124, 16
  %v5360 = vpop.permute.xlu0 %5359
  %5361 = vrot.lane.b32.xlu0 %v5127, 16
  %v5362 = vpop.permute.xlu0 %5361
  %5363 = vrot.lane.b32.xlu0 %v5130, 16
  %v5364 = vpop.permute.xlu0 %5363
  %5373 = vrot.lane.b32.xlu0 %v5162, 24
  %v5374 = vpop.permute.xlu0 %5373
  %5375 = vrot.lane.b32.xlu0 %v5165, 24
  %v5376 = vpop.permute.xlu0 %5375
  %5377 = vrot.lane.b32.xlu0 %v5168, 24
  %v5378 = vpop.permute.xlu0 %5377
  %5379 = vrot.lane.b32.xlu0 %v5171, 24
  %v5380 = vpop.permute.xlu0 %5379
  %v5385 = vsel %vm953, %v5039, %v5342
  %v5386 = vsel %vm953, %v5042, %v5344
  %v5387 = vsel %vm953, %v5045, %v5346
  %v5388 = vsel %vm953, %v5048, %v5348
  %v5389 = vsel %vm1314, %v5385, %v5358
  %v5390 = vsel %vm1314, %v5386, %v5360
  %v5391 = vsel %vm1314, %v5387, %v5362
  %v5392 = vsel %vm1314, %v5388, %v5364
  %v5393 = vsel %vm2467, %v5389, %v5374
  %v5394 = vsel %vm2467, %v5390, %v5376
  %v5395 = vsel %vm2467, %v5391, %v5378
  %v5396 = vsel %vm2467, %v5392, %v5380
  %5401 = vrot.lane.b32.xlu0 %v5244, 8
  %v5402 = vpop.permute.xlu0 %5401
  %5403 = vrot.lane.b32.xlu0 %v5247, 8
  %v5404 = vpop.permute.xlu0 %5403
  %5405 = vrot.lane.b32.xlu0 %v5250, 8
  %v5406 = vpop.permute.xlu0 %5405
  %5407 = vrot.lane.b32.xlu0 %v5253, 8
  %v5408 = vpop.permute.xlu0 %5407
  %5417 = vrot.lane.b32.xlu0 %v5285, 16
  %v5418 = vpop.permute.xlu0 %5417
  %5419 = vrot.lane.b32.xlu0 %v5288, 16
  %v5420 = vpop.permute.xlu0 %5419
  %5421 = vrot.lane.b32.xlu0 %v5291, 16
  %v5422 = vpop.permute.xlu0 %5421
  %5423 = vrot.lane.b32.xlu0 %v5294, 16
  %v5424 = vpop.permute.xlu0 %5423
  %5433 = vrot.lane.b32.xlu0 %v5326, 24
  %v5434 = vpop.permute.xlu0 %5433
  %5435 = vrot.lane.b32.xlu0 %v5329, 24
  %v5436 = vpop.permute.xlu0 %5435
  %5437 = vrot.lane.b32.xlu0 %v5332, 24
  %v5438 = vpop.permute.xlu0 %5437
  %5439 = vrot.lane.b32.xlu0 %v5335, 24
  %v5440 = vpop.permute.xlu0 %5439
  %v5445 = vsel %vm953, %v5203, %v5402
  %v5446 = vsel %vm953, %v5206, %v5404
  %v5447 = vsel %vm953, %v5209, %v5406
  %v5448 = vsel %vm953, %v5212, %v5408
  %v5449 = vsel %vm1314, %v5445, %v5418
  %v5450 = vsel %vm1314, %v5446, %v5420
  %v5451 = vsel %vm1314, %v5447, %v5422
  %v5452 = vsel %vm1314, %v5448, %v5424
  %v5453 = vsel %vm2467, %v5449, %v5434
  %v5454 = vsel %vm2467, %v5450, %v5436
  %v5455 = vsel %vm2467, %v5451, %v5438
  %v5456 = vsel %vm2467, %v5452, %v5440
  %s5457 = scalar_lea.vmem %s13, 32
  %v5458 = vld [vmem:[%s5457] sm:$0xff]
  %v5459 = vld [vmem:[%s5457 + $0x8] sm:$0xff]
  %v5460 = vld [vmem:[%s5457 + $0x10] sm:$0xff]
  %v5461 = vld [vmem:[%s5457 + $0x18] sm:$0xff]
  %s5462 = scalar_lea.vmem %s14, 1
  %v5463 = vld [vmem:[%s5462] sm:$0x1]
  %v5465 = vperm.slane %v5463, 0
  %v5468 = vsel %vm204, %v5393, 0
  %v5471 = vsel %vm204, %v5394, 0
  %v5474 = vsel %vm204, %v5395, 0
  %v5477 = vsel %vm204, %v5396, 0
  %v5480 = vsel %vm204, %v5453, 0
  %v5483 = vsel %vm204, %v5454, 0
  %v5486 = vsel %vm204, %v5455, 0
  %v5489 = vsel %vm204, %v5456, 0
  %5491 = vmatpush.msra.mxu0 0.0
  %5492 = vmatpush.msra.mxu0 0.0
  %5493 = vmatpush.msra.mxu0 0.0
  %5494 = vmatpush.msra.mxu0 0.0
  %5495 = vmatpush.msra.mxu0 0.0
  %5496 = vmatpush.msra.mxu0 0.0
  %5497 = vmatpush.msra.mxu0 0.0
  %5498 = vmatpush.msra.mxu0 0.0
  %5499 = vmatpush.msra.mxu0 0.0
  %5500 = vmatpush.msra.mxu0 0.0
  %5501 = vmatpush.msra.mxu0 0.0
  %5502 = vmatpush.msra.mxu0 0.0
  %5503 = vmatpush.msra.mxu0 %v5461
  %5504 = vmatpush.msra.mxu0 %v5460
  %5505 = vmatpush.msra.mxu0 %v5459
  %5506 = vmatpush.msra.mxu0 %v5458
  %5507 = vmatmul.f32.gmra.mxu0 %v5468
  %v5508 = vpop.f32.mrf.mxu0
  %v5509 = vadd.f32 %v5465, %v5508
  %5510 = vmatmul.f32.gmra.mxu0 %v5471
  %v5511 = vpop.f32.mrf.mxu0
  %v5512 = vadd.f32 %v5465, %v5511
  %5513 = vmatmul.f32.gmra.mxu0 %v5474
  %v5514 = vpop.f32.mrf.mxu0
  %v5515 = vadd.f32 %v5465, %v5514
  %5516 = vmatmul.f32.gmra.mxu0 %v5477
  %v5517 = vpop.f32.mrf.mxu0
  %v5518 = vadd.f32 %v5465, %v5517
  %5519 = vmatmul.f32.gmra.mxu0 %v5480
  %v5520 = vpop.f32.mrf.mxu0
  %v5521 = vadd.f32 %v5465, %v5520
  %5522 = vmatmul.f32.gmra.mxu0 %v5483
  %v5523 = vpop.f32.mrf.mxu0
  %v5524 = vadd.f32 %v5465, %v5523
  %5525 = vmatmul.f32.gmra.mxu0 %v5486
  %v5526 = vpop.f32.mrf.mxu0
  %v5527 = vadd.f32 %v5465, %v5526
  %5528 = vmatmul.f32.gmra.mxu0 %v5489
  %v5529 = vpop.f32.mrf.mxu0
  %v5530 = vadd.f32 %v5465, %v5529
  %5531 = vdwg.mxu0
  %v5532 = vmul.f32 %v5509, %v3215
  %v5533 = vmul.f32 %v5512, %v3218
  %v5534 = vmul.f32 %v5515, %v3221
  %v5535 = vmul.f32 %v5518, %v3224
  %v5536 = vmul.f32 %v5521, %v3227
  %v5537 = vmul.f32 %v5524, %v3230
  %v5538 = vmul.f32 %v5527, %v3233
  %v5539 = vmul.f32 %v5530, %v3236
  %v5540 = vadd.f32 %v5532, %v3132
  %v5541 = vadd.f32 %v5533, %v3133
  %v5542 = vadd.f32 %v5534, %v3134
  %v5543 = vadd.f32 %v5535, %v3135
  %v5544 = vadd.f32 %v5536, %v3136
  %v5545 = vadd.f32 %v5537, %v3137
  %v5546 = vadd.f32 %v5538, %v3138
  %v5547 = vadd.f32 %v5539, %v3139
  %v5548 = vsel %vm204, %v5540, 0.0
  %5549 = vadd.xlane.f32.xlu0 %v5548
  %v5550 = vpop.xlane.xlu0 %5549
  %v5551 = vsel %vm204, %v5541, 0.0
  %5552 = vadd.xlane.f32.xlu0 %v5551
  %v5553 = vpop.xlane.xlu0 %5552
  %v5554 = vsel %vm204, %v5542, 0.0
  %5555 = vadd.xlane.f32.xlu0 %v5554
  %v5556 = vpop.xlane.xlu0 %5555
  %v5557 = vsel %vm204, %v5543, 0.0
  %5558 = vadd.xlane.f32.xlu0 %v5557
  %v5559 = vpop.xlane.xlu0 %5558
  %v5560 = vsel %vm204, %v5544, 0.0
  %5561 = vadd.xlane.f32.xlu0 %v5560
  %v5562 = vpop.xlane.xlu0 %5561
  %v5563 = vsel %vm204, %v5545, 0.0
  %5564 = vadd.xlane.f32.xlu0 %v5563
  %v5565 = vpop.xlane.xlu0 %5564
  %v5566 = vsel %vm204, %v5546, 0.0
  %5567 = vadd.xlane.f32.xlu0 %v5566
  %v5568 = vpop.xlane.xlu0 %5567
  %v5569 = vsel %vm204, %v5547, 0.0
  %5570 = vadd.xlane.f32.xlu0 %v5569
  %v5571 = vpop.xlane.xlu0 %5570
  %v5572 = vmul.f32 %v5550, %v341
  %v5573 = vmul.f32 %v5553, %v341
  %v5574 = vmul.f32 %v5556, %v341
  %v5575 = vmul.f32 %v5559, %v341
  %v5576 = vmul.f32 %v5562, %v341
  %v5577 = vmul.f32 %v5565, %v341
  %v5578 = vmul.f32 %v5568, %v341
  %v5579 = vmul.f32 %v5571, %v341
  %v5580 = vsub.f32 %v5540, %v5572
  %v5581 = vsub.f32 %v5541, %v5573
  %v5582 = vsub.f32 %v5542, %v5574
  %v5583 = vsub.f32 %v5543, %v5575
  %v5584 = vsub.f32 %v5544, %v5576
  %v5585 = vsub.f32 %v5545, %v5577
  %v5586 = vsub.f32 %v5546, %v5578
  %v5587 = vsub.f32 %v5547, %v5579
  %v5588 = vmul.f32 %v5580, %v5580
  %v5589 = vmul.f32 %v5581, %v5581
  %v5590 = vmul.f32 %v5582, %v5582
  %v5591 = vmul.f32 %v5583, %v5583
  %v5592 = vmul.f32 %v5584, %v5584
  %v5593 = vmul.f32 %v5585, %v5585
  %v5594 = vmul.f32 %v5586, %v5586
  %v5595 = vmul.f32 %v5587, %v5587
  %v5596 = vsel %vm204, %v5588, 0.0
  %5597 = vadd.xlane.f32.xlu0 %v5596
  %v5598 = vpop.xlane.xlu0 %5597
  %v5599 = vsel %vm204, %v5589, 0.0
  %5600 = vadd.xlane.f32.xlu0 %v5599
  %v5601 = vpop.xlane.xlu0 %5600
  %v5602 = vsel %vm204, %v5590, 0.0
  %5603 = vadd.xlane.f32.xlu0 %v5602
  %v5604 = vpop.xlane.xlu0 %5603
  %v5605 = vsel %vm204, %v5591, 0.0
  %5606 = vadd.xlane.f32.xlu0 %v5605
  %v5607 = vpop.xlane.xlu0 %5606
  %v5608 = vsel %vm204, %v5592, 0.0
  %5609 = vadd.xlane.f32.xlu0 %v5608
  %v5610 = vpop.xlane.xlu0 %5609
  %v5611 = vsel %vm204, %v5593, 0.0
  %5612 = vadd.xlane.f32.xlu0 %v5611
  %v5613 = vpop.xlane.xlu0 %5612
  %v5614 = vsel %vm204, %v5594, 0.0
  %5615 = vadd.xlane.f32.xlu0 %v5614
  %v5616 = vpop.xlane.xlu0 %5615
  %v5617 = vsel %vm204, %v5595, 0.0
  %5618 = vadd.xlane.f32.xlu0 %v5617
  %v5619 = vpop.xlane.xlu0 %5618
  %v5620 = vmul.f32 %v5598, %v341
  %v5621 = vmul.f32 %v5601, %v341
  %v5622 = vmul.f32 %v5604, %v341
  %v5623 = vmul.f32 %v5607, %v341
  %v5624 = vmul.f32 %v5610, %v341
  %v5625 = vmul.f32 %v5613, %v341
  %v5626 = vmul.f32 %v5616, %v341
  %v5627 = vmul.f32 %v5619, %v341
  %v5628 = vadd.f32 %v5620, 1e-06
  %v5629 = vadd.f32 %v5621, 1e-06
  %v5630 = vadd.f32 %v5622, 1e-06
  %v5631 = vadd.f32 %v5623, 1e-06
  %v5632 = vadd.f32 %v5624, 1e-06
  %v5633 = vadd.f32 %v5625, 1e-06
  %v5634 = vadd.f32 %v5626, 1e-06
  %v5635 = vadd.f32 %v5627, 1e-06
  %v5636 = vrsqrt.pop %v5628
  %v5637 = vmul.f32 %v5636, %v5628
  %v5638 = vmul.f32 %v5637, %v5636
  %v5639 = vmul.f32 0.5, %v5638
  %v5640 = vsub.f32 1.5, %v5639
  %v5641 = vmul.f32 %v5636, %v5640
  %vm5642 = vweird.f32 %v5628
  %vm5643 = vweird.f32 %v5636
  %vm5644 = vmor %vm5642, %vm5643
  %v5645 = vsel %vm5644, %v5636, %v5641
  %v5646 = vrsqrt.pop %v5629
  %v5647 = vmul.f32 %v5646, %v5629
  %v5648 = vmul.f32 %v5647, %v5646
  %v5649 = vmul.f32 0.5, %v5648
  %v5650 = vsub.f32 1.5, %v5649
  %v5651 = vmul.f32 %v5646, %v5650
  %vm5652 = vweird.f32 %v5629
  %vm5653 = vweird.f32 %v5646
  %vm5654 = vmor %vm5652, %vm5653
  %v5655 = vsel %vm5654, %v5646, %v5651
  %v5656 = vrsqrt.pop %v5630
  %v5657 = vmul.f32 %v5656, %v5630
  %v5658 = vmul.f32 %v5657, %v5656
  %v5659 = vmul.f32 0.5, %v5658
  %v5660 = vsub.f32 1.5, %v5659
  %v5661 = vmul.f32 %v5656, %v5660
  %vm5662 = vweird.f32 %v5630
  %vm5663 = vweird.f32 %v5656
  %vm5664 = vmor %vm5662, %vm5663
  %v5665 = vsel %vm5664, %v5656, %v5661
  %v5666 = vrsqrt.pop %v5631
  %v5667 = vmul.f32 %v5666, %v5631
  %v5668 = vmul.f32 %v5667, %v5666
  %v5669 = vmul.f32 0.5, %v5668
  %v5670 = vsub.f32 1.5, %v5669
  %v5671 = vmul.f32 %v5666, %v5670
  %vm5672 = vweird.f32 %v5631
  %vm5673 = vweird.f32 %v5666
  %vm5674 = vmor %vm5672, %vm5673
  %v5675 = vsel %vm5674, %v5666, %v5671
  %v5676 = vrsqrt.pop %v5632
  %v5677 = vmul.f32 %v5676, %v5632
  %v5678 = vmul.f32 %v5677, %v5676
  %v5679 = vmul.f32 0.5, %v5678
  %v5680 = vsub.f32 1.5, %v5679
  %v5681 = vmul.f32 %v5676, %v5680
  %vm5682 = vweird.f32 %v5632
  %vm5683 = vweird.f32 %v5676
  %vm5684 = vmor %vm5682, %vm5683
  %v5685 = vsel %vm5684, %v5676, %v5681
  %v5686 = vrsqrt.pop %v5633
  %v5687 = vmul.f32 %v5686, %v5633
  %v5688 = vmul.f32 %v5687, %v5686
  %v5689 = vmul.f32 0.5, %v5688
  %v5690 = vsub.f32 1.5, %v5689
  %v5691 = vmul.f32 %v5686, %v5690
  %vm5692 = vweird.f32 %v5633
  %vm5693 = vweird.f32 %v5686
  %vm5694 = vmor %vm5692, %vm5693
  %v5695 = vsel %vm5694, %v5686, %v5691
  %v5696 = vrsqrt.pop %v5634
  %v5697 = vmul.f32 %v5696, %v5634
  %v5698 = vmul.f32 %v5697, %v5696
  %v5699 = vmul.f32 0.5, %v5698
  %v5700 = vsub.f32 1.5, %v5699
  %v5701 = vmul.f32 %v5696, %v5700
  %vm5702 = vweird.f32 %v5634
  %vm5703 = vweird.f32 %v5696
  %vm5704 = vmor %vm5702, %vm5703
  %v5705 = vsel %vm5704, %v5696, %v5701
  %v5706 = vrsqrt.pop %v5635
  %v5707 = vmul.f32 %v5706, %v5635
  %v5708 = vmul.f32 %v5707, %v5706
  %v5709 = vmul.f32 0.5, %v5708
  %v5710 = vsub.f32 1.5, %v5709
  %v5711 = vmul.f32 %v5706, %v5710
  %vm5712 = vweird.f32 %v5635
  %vm5713 = vweird.f32 %v5706
  %vm5714 = vmor %vm5712, %vm5713
  %v5715 = vsel %vm5714, %v5706, %v5711
  %v5716 = vmul.f32 %v5580, %v5645
  %v5717 = vmul.f32 %v5581, %v5655
  %v5718 = vmul.f32 %v5582, %v5665
  %v5719 = vmul.f32 %v5583, %v5675
  %v5720 = vmul.f32 %v5584, %v5685
  %v5721 = vmul.f32 %v5585, %v5695
  %v5722 = vmul.f32 %v5586, %v5705
  %v5723 = vmul.f32 %v5587, %v5715
  %5732 = vrot.lane.b32.xlu0 %v3414, 64
  %v5733 = vpop.permute.xlu0 %5732
  %5734 = vrot.lane.b32.xlu0 %v3415, 64
  %v5735 = vpop.permute.xlu0 %5734
  %5736 = vrot.lane.b32.xlu0 %v3416, 64
  %v5737 = vpop.permute.xlu0 %5736
  %5738 = vrot.lane.b32.xlu0 %v3417, 64
  %v5739 = vpop.permute.xlu0 %5738
  %5740 = vrot.lane.b32.xlu0 %v3418, 64
  %v5741 = vpop.permute.xlu0 %5740
  %5742 = vrot.lane.b32.xlu0 %v3419, 64
  %v5743 = vpop.permute.xlu0 %5742
  %5744 = vrot.lane.b32.xlu0 %v3420, 64
  %v5745 = vpop.permute.xlu0 %5744
  %5746 = vrot.lane.b32.xlu0 %v3421, 64
  %v5747 = vpop.permute.xlu0 %5746
  %v5756 = vmul.f32 %v5716, %v5733
  %v5757 = vmul.f32 %v5717, %v5735
  %v5758 = vmul.f32 %v5718, %v5737
  %v5759 = vmul.f32 %v5719, %v5739
  %v5760 = vmul.f32 %v5720, %v5741
  %v5761 = vmul.f32 %v5721, %v5743
  %v5762 = vmul.f32 %v5722, %v5745
  %v5763 = vmul.f32 %v5723, %v5747
  %5764 = vrot.lane.b32.xlu0 %v3174, 32
  %v5765 = vpop.permute.xlu0 %5764
  %5766 = vrot.lane.b32.xlu0 %v3177, 32
  %v5767 = vpop.permute.xlu0 %5766
  %5768 = vrot.lane.b32.xlu0 %v3180, 32
  %v5769 = vpop.permute.xlu0 %5768
  %5770 = vrot.lane.b32.xlu0 %v3183, 32
  %v5771 = vpop.permute.xlu0 %5770
  %5772 = vrot.lane.b32.xlu0 %v3186, 32
  %v5773 = vpop.permute.xlu0 %5772
  %5774 = vrot.lane.b32.xlu0 %v3189, 32
  %v5775 = vpop.permute.xlu0 %5774
  %5776 = vrot.lane.b32.xlu0 %v3192, 32
  %v5777 = vpop.permute.xlu0 %5776
  %5778 = vrot.lane.b32.xlu0 %v3195, 32
  %v5779 = vpop.permute.xlu0 %5778
  %v5788 = vadd.f32 %v5756, %v5765
  %v5789 = vadd.f32 %v5757, %v5767
  %v5790 = vadd.f32 %v5758, %v5769
  %v5791 = vadd.f32 %v5759, %v5771
  %v5792 = vadd.f32 %v5760, %v5773
  %v5793 = vadd.f32 %v5761, %v5775
  %v5794 = vadd.f32 %v5762, %v5777
  %v5795 = vadd.f32 %v5763, %v5779
  %s5796 = scalar_lea.vmem %s15, 32
  %v5797 = vld [vmem:[%s5796] sm:$0xff]
  %v5798 = vld [vmem:[%s5796 + $0x8] sm:$0xff]
  %v5799 = vld [vmem:[%s5796 + $0x10] sm:$0xff]
  %v5800 = vld [vmem:[%s5796 + $0x18] sm:$0xff]
  %s5801 = scalar_lea.vmem %s16, 1
  %v5802 = vld [vmem:[%s5801] sm:$0x1]
  %v5804 = vperm.slane %v5802, 0
  %v5807 = vsel %vm204, %v5788, 0
  %v5810 = vsel %vm204, %v5789, 0
  %v5813 = vsel %vm204, %v5790, 0
  %v5816 = vsel %vm204, %v5791, 0
  %v5819 = vsel %vm204, %v5792, 0
  %v5822 = vsel %vm204, %v5793, 0
  %v5825 = vsel %vm204, %v5794, 0
  %v5828 = vsel %vm204, %v5795, 0
  %5830 = vmatpush.msra.mxu0 0.0
  %5831 = vmatpush.msra.mxu0 0.0
  %5832 = vmatpush.msra.mxu0 0.0
  %5833 = vmatpush.msra.mxu0 0.0
  %5834 = vmatpush.msra.mxu0 0.0
  %5835 = vmatpush.msra.mxu0 0.0
  %5836 = vmatpush.msra.mxu0 0.0
  %5837 = vmatpush.msra.mxu0 0.0
  %5838 = vmatpush.msra.mxu0 0.0
  %5839 = vmatpush.msra.mxu0 0.0
  %5840 = vmatpush.msra.mxu0 0.0
  %5841 = vmatpush.msra.mxu0 0.0
  %5842 = vmatpush.msra.mxu0 %v5800
  %5843 = vmatpush.msra.mxu0 %v5799
  %5844 = vmatpush.msra.mxu0 %v5798
  %5845 = vmatpush.msra.mxu0 %v5797
  %5846 = vmatmul.f32.gmra.mxu0 %v5807
  %v5847 = vpop.f32.mrf.mxu0
  %v5848 = vadd.f32 %v5804, %v5847
  %5849 = vmatmul.f32.gmra.mxu0 %v5810
  %v5850 = vpop.f32.mrf.mxu0
  %v5851 = vadd.f32 %v5804, %v5850
  %5852 = vmatmul.f32.gmra.mxu0 %v5813
  %v5853 = vpop.f32.mrf.mxu0
  %v5854 = vadd.f32 %v5804, %v5853
  %5855 = vmatmul.f32.gmra.mxu0 %v5816
  %v5856 = vpop.f32.mrf.mxu0
  %v5857 = vadd.f32 %v5804, %v5856
  %5858 = vmatmul.f32.gmra.mxu0 %v5819
  %v5859 = vpop.f32.mrf.mxu0
  %v5860 = vadd.f32 %v5804, %v5859
  %5861 = vmatmul.f32.gmra.mxu0 %v5822
  %v5862 = vpop.f32.mrf.mxu0
  %v5863 = vadd.f32 %v5804, %v5862
  %5864 = vmatmul.f32.gmra.mxu0 %v5825
  %v5865 = vpop.f32.mrf.mxu0
  %v5866 = vadd.f32 %v5804, %v5865
  %5867 = vmatmul.f32.gmra.mxu0 %v5828
  %v5868 = vpop.f32.mrf.mxu0
  %v5869 = vadd.f32 %v5804, %v5868
  %5870 = vdwg.mxu0
  %v5871 = vmul.f32 %v5848, 0.5
  %v5872 = vmul.f32 %v5851, 0.5
  %v5873 = vmul.f32 %v5854, 0.5
  %v5874 = vmul.f32 %v5857, 0.5
  %v5875 = vmul.f32 %v5860, 0.5
  %v5876 = vmul.f32 %v5863, 0.5
  %v5877 = vmul.f32 %v5866, 0.5
  %v5878 = vmul.f32 %v5869, 0.5
  %v5879 = vmul.f32 %v5848, 0.044715
  %v5880 = vmul.f32 %v5851, 0.044715
  %v5881 = vmul.f32 %v5854, 0.044715
  %v5882 = vmul.f32 %v5857, 0.044715
  %v5883 = vmul.f32 %v5860, 0.044715
  %v5884 = vmul.f32 %v5863, 0.044715
  %v5885 = vmul.f32 %v5866, 0.044715
  %v5886 = vmul.f32 %v5869, 0.044715
  %v5887 = vmul.f32 %v5879, %v5848
  %v5888 = vmul.f32 %v5880, %v5851
  %v5889 = vmul.f32 %v5881, %v5854
  %v5890 = vmul.f32 %v5882, %v5857
  %v5891 = vmul.f32 %v5883, %v5860
  %v5892 = vmul.f32 %v5884, %v5863
  %v5893 = vmul.f32 %v5885, %v5866
  %v5894 = vmul.f32 %v5886, %v5869
  %v5895 = vmul.f32 %v5887, %v5848
  %v5896 = vmul.f32 %v5888, %v5851
  %v5897 = vmul.f32 %v5889, %v5854
  %v5898 = vmul.f32 %v5890, %v5857
  %v5899 = vmul.f32 %v5891, %v5860
  %v5900 = vmul.f32 %v5892, %v5863
  %v5901 = vmul.f32 %v5893, %v5866
  %v5902 = vmul.f32 %v5894, %v5869
  %v5903 = vadd.f32 %v5848, %v5895
  %v5904 = vadd.f32 %v5851, %v5896
  %v5905 = vadd.f32 %v5854, %v5897
  %v5906 = vadd.f32 %v5857, %v5898
  %v5907 = vadd.f32 %v5860, %v5899
  %v5908 = vadd.f32 %v5863, %v5900
  %v5909 = vadd.f32 %v5866, %v5901
  %v5910 = vadd.f32 %v5869, %v5902
  %v5911 = vmul.f32 %v5903, 0.7978846
  %v5912 = vmul.f32 %v5904, 0.7978846
  %v5913 = vmul.f32 %v5905, 0.7978846
  %v5914 = vmul.f32 %v5906, 0.7978846
  %v5915 = vmul.f32 %v5907, 0.7978846
  %v5916 = vmul.f32 %v5908, 0.7978846
  %v5917 = vmul.f32 %v5909, 0.7978846
  %v5918 = vmul.f32 %v5910, 0.7978846
  %v5919 = vtanh.pop %v5911
  %v5920 = vtanh.pop %v5912
  %v5921 = vtanh.pop %v5913
  %v5922 = vtanh.pop %v5914
  %v5923 = vtanh.pop %v5915
  %v5924 = vtanh.pop %v5916
  %v5925 = vtanh.pop %v5917
  %v5926 = vtanh.pop %v5918
  %v5927 = vadd.f32 %v5919, 1.0
  %v5928 = vadd.f32 %v5920, 1.0
  %v5929 = vadd.f32 %v5921, 1.0
  %v5930 = vadd.f32 %v5922, 1.0
  %v5931 = vadd.f32 %v5923, 1.0
  %v5932 = vadd.f32 %v5924, 1.0
  %v5933 = vadd.f32 %v5925, 1.0
  %v5934 = vadd.f32 %v5926, 1.0
  %v5935 = vmul.f32 %v5871, %v5927
  %v5936 = vmul.f32 %v5872, %v5928
  %v5937 = vmul.f32 %v5873, %v5929
  %v5938 = vmul.f32 %v5874, %v5930
  %v5939 = vmul.f32 %v5875, %v5931
  %v5940 = vmul.f32 %v5876, %v5932
  %v5941 = vmul.f32 %v5877, %v5933
  %v5942 = vmul.f32 %v5878, %v5934
  %s5943 = scalar_lea.vmem %s17, 64
  %v5944 = vld [vmem:[%s5943] sm:$0xff]
  %v5945 = vld [vmem:[%s5943 + $0x8] sm:$0xff]
  %v5946 = vld [vmem:[%s5943 + $0x10] sm:$0xff]
  %v5947 = vld [vmem:[%s5943 + $0x18] sm:$0xff]
  %v5948 = vld [vmem:[%s5943 + $0x20] sm:$0xff]
  %v5949 = vld [vmem:[%s5943 + $0x28] sm:$0xff]
  %v5950 = vld [vmem:[%s5943 + $0x30] sm:$0xff]
  %v5951 = vld [vmem:[%s5943 + $0x38] sm:$0xff]
  %s5952 = scalar_lea.vmem %s18, 1
  %v5953 = vld [vmem:[%s5952] sm:$0x1]
  %v5955 = vperm.slane %v5953, 0
  %v5958 = vsel %vm3026, %v5935, 0
  %v5961 = vsel %vm3026, %v5936, 0
  %v5964 = vsel %vm3026, %v5937, 0
  %v5967 = vsel %vm3026, %v5938, 0
  %v5970 = vsel %vm3026, %v5939, 0
  %v5973 = vsel %vm3026, %v5940, 0
  %v5976 = vsel %vm3026, %v5941, 0
  %v5979 = vsel %vm3026, %v5942, 0
  %5981 = vmatpush.msra.mxu0 0.0
  %5982 = vmatpush.msra.mxu0 0.0
  %5983 = vmatpush.msra.mxu0 0.0
  %5984 = vmatpush.msra.mxu0 0.0
  %5985 = vmatpush.msra.mxu0 0.0
  %5986 = vmatpush.msra.mxu0 0.0
  %5987 = vmatpush.msra.mxu0 0.0
  %5988 = vmatpush.msra.mxu0 0.0
  %5989 = vmatpush.msra.mxu0 %v5951
  %5990 = vmatpush.msra.mxu0 %v5950
  %5991 = vmatpush.msra.mxu0 %v5949
  %5992 = vmatpush.msra.mxu0 %v5948
  %5993 = vmatpush.msra.mxu0 %v5947
  %5994 = vmatpush.msra.mxu0 %v5946
  %5995 = vmatpush.msra.mxu0 %v5945
  %5996 = vmatpush.msra.mxu0 %v5944
  %5997 = vmatmul.f32.gmra.mxu0 %v5958
  %v5998 = vpop.f32.mrf.mxu0
  %v5999 = vadd.f32 %v5955, %v5998
  %6000 = vmatmul.f32.gmra.mxu0 %v5961
  %v6001 = vpop.f32.mrf.mxu0
  %v6002 = vadd.f32 %v5955, %v6001
  %6003 = vmatmul.f32.gmra.mxu0 %v5964
  %v6004 = vpop.f32.mrf.mxu0
  %v6005 = vadd.f32 %v5955, %v6004
  %6006 = vmatmul.f32.gmra.mxu0 %v5967
  %v6007 = vpop.f32.mrf.mxu0
  %v6008 = vadd.f32 %v5955, %v6007
  %6009 = vmatmul.f32.gmra.mxu0 %v5970
  %v6010 = vpop.f32.mrf.mxu0
  %v6011 = vadd.f32 %v5955, %v6010
  %6012 = vmatmul.f32.gmra.mxu0 %v5973
  %v6013 = vpop.f32.mrf.mxu0
  %v6014 = vadd.f32 %v5955, %v6013
  %6015 = vmatmul.f32.gmra.mxu0 %v5976
  %v6016 = vpop.f32.mrf.mxu0
  %v6017 = vadd.f32 %v5955, %v6016
  %6018 = vmatmul.f32.gmra.mxu0 %v5979
  %v6019 = vpop.f32.mrf.mxu0
  %v6020 = vadd.f32 %v5955, %v6019
  %6021 = vdwg.mxu0
  %6030 = vrot.lane.b32.xlu0 %v3215, 96
  %v6031 = vpop.permute.xlu0 %6030
  %6032 = vrot.lane.b32.xlu0 %v3218, 96
  %v6033 = vpop.permute.xlu0 %6032
  %6034 = vrot.lane.b32.xlu0 %v3221, 96
  %v6035 = vpop.permute.xlu0 %6034
  %6036 = vrot.lane.b32.xlu0 %v3224, 96
  %v6037 = vpop.permute.xlu0 %6036
  %6038 = vrot.lane.b32.xlu0 %v3227, 96
  %v6039 = vpop.permute.xlu0 %6038
  %6040 = vrot.lane.b32.xlu0 %v3230, 96
  %v6041 = vpop.permute.xlu0 %6040
  %6042 = vrot.lane.b32.xlu0 %v3233, 96
  %v6043 = vpop.permute.xlu0 %6042
  %6044 = vrot.lane.b32.xlu0 %v3236, 96
  %v6045 = vpop.permute.xlu0 %6044
  %v6054 = vmul.f32 %v5999, %v6031
  %v6055 = vmul.f32 %v6002, %v6033
  %v6056 = vmul.f32 %v6005, %v6035
  %v6057 = vmul.f32 %v6008, %v6037
  %v6058 = vmul.f32 %v6011, %v6039
  %v6059 = vmul.f32 %v6014, %v6041
  %v6060 = vmul.f32 %v6017, %v6043
  %v6061 = vmul.f32 %v6020, %v6045
  %v6062 = vadd.f32 %v6054, %v5540
  %v6063 = vadd.f32 %v6055, %v5541
  %v6064 = vadd.f32 %v6056, %v5542
  %v6065 = vadd.f32 %v6057, %v5543
  %v6066 = vadd.f32 %v6058, %v5544
  %v6067 = vadd.f32 %v6059, %v5545
  %v6068 = vadd.f32 %v6060, %v5546
  %v6069 = vadd.f32 %v6061, %v5547
  %v6070 = vld [vmem:[%s21] sm:$0xff]
  %v6071 = vld [vmem:[%s21 + $0x8] sm:$0xff]
  %v6072 = vld [vmem:[%s21 + $0x10] sm:$0xff]
  %v6073 = vld [vmem:[%s21 + $0x18] sm:$0xff]
  %v6074 = vld [vmem:[%s22] sm:$0x1]
  %v6076 = vperm.slane %v6074, 0
  %6078 = vmatpush.msra.mxu0 0.0
  %6079 = vmatpush.msra.mxu0 0.0
  %6080 = vmatpush.msra.mxu0 0.0
  %6081 = vmatpush.msra.mxu0 0.0
  %6082 = vmatpush.msra.mxu0 0.0
  %6083 = vmatpush.msra.mxu0 0.0
  %6084 = vmatpush.msra.mxu0 0.0
  %6085 = vmatpush.msra.mxu0 0.0
  %6086 = vmatpush.msra.mxu0 0.0
  %6087 = vmatpush.msra.mxu0 0.0
  %6088 = vmatpush.msra.mxu0 0.0
  %6089 = vmatpush.msra.mxu0 0.0
  %6090 = vmatpush.msra.mxu0 %v6073
  %6091 = vmatpush.msra.mxu0 %v6072
  %6092 = vmatpush.msra.mxu0 %v6071
  %6093 = vmatpush.msra.mxu0 %v6070
  %6094 = vmatmul.f32.gmra.mxu0 %v206
  %v6095 = vpop.f32.mrf.mxu0
  %v6096 = vadd.f32 %v6076, %v6095
  %6097 = vmatmul.f32.gmra.mxu0 %v209
  %v6098 = vpop.f32.mrf.mxu0
  %v6099 = vadd.f32 %v6076, %v6098
  %6100 = vmatmul.f32.gmra.mxu0 %v212
  %v6101 = vpop.f32.mrf.mxu0
  %v6102 = vadd.f32 %v6076, %v6101
  %6103 = vmatmul.f32.gmra.mxu0 %v215
  %v6104 = vpop.f32.mrf.mxu0
  %v6105 = vadd.f32 %v6076, %v6104
  %6106 = vmatmul.f32.gmra.mxu0 %v218
  %v6107 = vpop.f32.mrf.mxu0
  %v6108 = vadd.f32 %v6076, %v6107
  %6109 = vmatmul.f32.gmra.mxu0 %v221
  %v6110 = vpop.f32.mrf.mxu0
  %v6111 = vadd.f32 %v6076, %v6110
  %6112 = vmatmul.f32.gmra.mxu0 %v224
  %v6113 = vpop.f32.mrf.mxu0
  %v6114 = vadd.f32 %v6076, %v6113
  %6115 = vmatmul.f32.gmra.mxu0 %v227
  %v6116 = vpop.f32.mrf.mxu0
  %v6117 = vadd.f32 %v6076, %v6116
  %6118 = vdwg.mxu0
  %v6119 = vld [vmem:[%s23] sm:$0xff]
  %v6120 = vld [vmem:[%s23 + $0x8] sm:$0xff]
  %v6121 = vld [vmem:[%s23 + $0x10] sm:$0xff]
  %v6122 = vld [vmem:[%s23 + $0x18] sm:$0xff]
  %v6123 = vld [vmem:[%s24] sm:$0x1]
  %v6125 = vperm.slane %v6123, 0
  %6127 = vmatpush.msra.mxu0 0.0
  %6128 = vmatpush.msra.mxu0 0.0
  %6129 = vmatpush.msra.mxu0 0.0
  %6130 = vmatpush.msra.mxu0 0.0
  %6131 = vmatpush.msra.mxu0 0.0
  %6132 = vmatpush.msra.mxu0 0.0
  %6133 = vmatpush.msra.mxu0 0.0
  %6134 = vmatpush.msra.mxu0 0.0
  %6135 = vmatpush.msra.mxu0 0.0
  %6136 = vmatpush.msra.mxu0 0.0
  %6137 = vmatpush.msra.mxu0 0.0
  %6138 = vmatpush.msra.mxu0 0.0
  %6139 = vmatpush.msra.mxu0 %v6122
  %6140 = vmatpush.msra.mxu0 %v6121
  %6141 = vmatpush.msra.mxu0 %v6120
  %6142 = vmatpush.msra.mxu0 %v6119
  %6143 = vmatmul.f32.gmra.mxu0 %v206
  %v6144 = vpop.f32.mrf.mxu0
  %v6145 = vadd.f32 %v6125, %v6144
  %6146 = vmatmul.f32.gmra.mxu0 %v209
  %v6147 = vpop.f32.mrf.mxu0
  %v6148 = vadd.f32 %v6125, %v6147
  %6149 = vmatmul.f32.gmra.mxu0 %v212
  %v6150 = vpop.f32.mrf.mxu0
  %v6151 = vadd.f32 %v6125, %v6150
  %6152 = vmatmul.f32.gmra.mxu0 %v215
  %v6153 = vpop.f32.mrf.mxu0
  %v6154 = vadd.f32 %v6125, %v6153
  %6155 = vmatmul.f32.gmra.mxu0 %v218
  %v6156 = vpop.f32.mrf.mxu0
  %v6157 = vadd.f32 %v6125, %v6156
  %6158 = vmatmul.f32.gmra.mxu0 %v221
  %v6159 = vpop.f32.mrf.mxu0
  %v6160 = vadd.f32 %v6125, %v6159
  %6161 = vmatmul.f32.gmra.mxu0 %v224
  %v6162 = vpop.f32.mrf.mxu0
  %v6163 = vadd.f32 %v6125, %v6162
  %6164 = vmatmul.f32.gmra.mxu0 %v227
  %v6165 = vpop.f32.mrf.mxu0
  %v6166 = vadd.f32 %v6125, %v6165
  %6167 = vdwg.mxu0
  %v6168 = vsel %vm204, %v6062, 0.0
  %6169 = vadd.xlane.f32.xlu0 %v6168
  %v6170 = vpop.xlane.xlu0 %6169
  %v6171 = vsel %vm204, %v6063, 0.0
  %6172 = vadd.xlane.f32.xlu0 %v6171
  %v6173 = vpop.xlane.xlu0 %6172
  %v6174 = vsel %vm204, %v6064, 0.0
  %6175 = vadd.xlane.f32.xlu0 %v6174
  %v6176 = vpop.xlane.xlu0 %6175
  %v6177 = vsel %vm204, %v6065, 0.0
  %6178 = vadd.xlane.f32.xlu0 %v6177
  %v6179 = vpop.xlane.xlu0 %6178
  %v6180 = vsel %vm204, %v6066, 0.0
  %6181 = vadd.xlane.f32.xlu0 %v6180
  %v6182 = vpop.xlane.xlu0 %6181
  %v6183 = vsel %vm204, %v6067, 0.0
  %6184 = vadd.xlane.f32.xlu0 %v6183
  %v6185 = vpop.xlane.xlu0 %6184
  %v6186 = vsel %vm204, %v6068, 0.0
  %6187 = vadd.xlane.f32.xlu0 %v6186
  %v6188 = vpop.xlane.xlu0 %6187
  %v6189 = vsel %vm204, %v6069, 0.0
  %6190 = vadd.xlane.f32.xlu0 %v6189
  %v6191 = vpop.xlane.xlu0 %6190
  %v6192 = vmul.f32 %v6170, %v341
  %v6193 = vmul.f32 %v6173, %v341
  %v6194 = vmul.f32 %v6176, %v341
  %v6195 = vmul.f32 %v6179, %v341
  %v6196 = vmul.f32 %v6182, %v341
  %v6197 = vmul.f32 %v6185, %v341
  %v6198 = vmul.f32 %v6188, %v341
  %v6199 = vmul.f32 %v6191, %v341
  %v6200 = vsub.f32 %v6062, %v6192
  %v6201 = vsub.f32 %v6063, %v6193
  %v6202 = vsub.f32 %v6064, %v6194
  %v6203 = vsub.f32 %v6065, %v6195
  %v6204 = vsub.f32 %v6066, %v6196
  %v6205 = vsub.f32 %v6067, %v6197
  %v6206 = vsub.f32 %v6068, %v6198
  %v6207 = vsub.f32 %v6069, %v6199
  %v6208 = vmul.f32 %v6200, %v6200
  %v6209 = vmul.f32 %v6201, %v6201
  %v6210 = vmul.f32 %v6202, %v6202
  %v6211 = vmul.f32 %v6203, %v6203
  %v6212 = vmul.f32 %v6204, %v6204
  %v6213 = vmul.f32 %v6205, %v6205
  %v6214 = vmul.f32 %v6206, %v6206
  %v6215 = vmul.f32 %v6207, %v6207
  %v6216 = vsel %vm204, %v6208, 0.0
  %6217 = vadd.xlane.f32.xlu0 %v6216
  %v6218 = vpop.xlane.xlu0 %6217
  %v6219 = vsel %vm204, %v6209, 0.0
  %6220 = vadd.xlane.f32.xlu0 %v6219
  %v6221 = vpop.xlane.xlu0 %6220
  %v6222 = vsel %vm204, %v6210, 0.0
  %6223 = vadd.xlane.f32.xlu0 %v6222
  %v6224 = vpop.xlane.xlu0 %6223
  %v6225 = vsel %vm204, %v6211, 0.0
  %6226 = vadd.xlane.f32.xlu0 %v6225
  %v6227 = vpop.xlane.xlu0 %6226
  %v6228 = vsel %vm204, %v6212, 0.0
  %6229 = vadd.xlane.f32.xlu0 %v6228
  %v6230 = vpop.xlane.xlu0 %6229
  %v6231 = vsel %vm204, %v6213, 0.0
  %6232 = vadd.xlane.f32.xlu0 %v6231
  %v6233 = vpop.xlane.xlu0 %6232
  %v6234 = vsel %vm204, %v6214, 0.0
  %6235 = vadd.xlane.f32.xlu0 %v6234
  %v6236 = vpop.xlane.xlu0 %6235
  %v6237 = vsel %vm204, %v6215, 0.0
  %6238 = vadd.xlane.f32.xlu0 %v6237
  %v6239 = vpop.xlane.xlu0 %6238
  %v6240 = vmul.f32 %v6218, %v341
  %v6241 = vmul.f32 %v6221, %v341
  %v6242 = vmul.f32 %v6224, %v341
  %v6243 = vmul.f32 %v6227, %v341
  %v6244 = vmul.f32 %v6230, %v341
  %v6245 = vmul.f32 %v6233, %v341
  %v6246 = vmul.f32 %v6236, %v341
  %v6247 = vmul.f32 %v6239, %v341
  %v6248 = vadd.f32 %v6240, 1e-06
  %v6249 = vadd.f32 %v6241, 1e-06
  %v6250 = vadd.f32 %v6242, 1e-06
  %v6251 = vadd.f32 %v6243, 1e-06
  %v6252 = vadd.f32 %v6244, 1e-06
  %v6253 = vadd.f32 %v6245, 1e-06
  %v6254 = vadd.f32 %v6246, 1e-06
  %v6255 = vadd.f32 %v6247, 1e-06
  %v6256 = vrsqrt.pop %v6248
  %v6257 = vmul.f32 %v6256, %v6248
  %v6258 = vmul.f32 %v6257, %v6256
  %v6259 = vmul.f32 0.5, %v6258
  %v6260 = vsub.f32 1.5, %v6259
  %v6261 = vmul.f32 %v6256, %v6260
  %vm6262 = vweird.f32 %v6248
  %vm6263 = vweird.f32 %v6256
  %vm6264 = vmor %vm6262, %vm6263
  %v6265 = vsel %vm6264, %v6256, %v6261
  %v6266 = vrsqrt.pop %v6249
  %v6267 = vmul.f32 %v6266, %v6249
  %v6268 = vmul.f32 %v6267, %v6266
  %v6269 = vmul.f32 0.5, %v6268
  %v6270 = vsub.f32 1.5, %v6269
  %v6271 = vmul.f32 %v6266, %v6270
  %vm6272 = vweird.f32 %v6249
  %vm6273 = vweird.f32 %v6266
  %vm6274 = vmor %vm6272, %vm6273
  %v6275 = vsel %vm6274, %v6266, %v6271
  %v6276 = vrsqrt.pop %v6250
  %v6277 = vmul.f32 %v6276, %v6250
  %v6278 = vmul.f32 %v6277, %v6276
  %v6279 = vmul.f32 0.5, %v6278
  %v6280 = vsub.f32 1.5, %v6279
  %v6281 = vmul.f32 %v6276, %v6280
  %vm6282 = vweird.f32 %v6250
  %vm6283 = vweird.f32 %v6276
  %vm6284 = vmor %vm6282, %vm6283
  %v6285 = vsel %vm6284, %v6276, %v6281
  %v6286 = vrsqrt.pop %v6251
  %v6287 = vmul.f32 %v6286, %v6251
  %v6288 = vmul.f32 %v6287, %v6286
  %v6289 = vmul.f32 0.5, %v6288
  %v6290 = vsub.f32 1.5, %v6289
  %v6291 = vmul.f32 %v6286, %v6290
  %vm6292 = vweird.f32 %v6251
  %vm6293 = vweird.f32 %v6286
  %vm6294 = vmor %vm6292, %vm6293
  %v6295 = vsel %vm6294, %v6286, %v6291
  %v6296 = vrsqrt.pop %v6252
  %v6297 = vmul.f32 %v6296, %v6252
  %v6298 = vmul.f32 %v6297, %v6296
  %v6299 = vmul.f32 0.5, %v6298
  %v6300 = vsub.f32 1.5, %v6299
  %v6301 = vmul.f32 %v6296, %v6300
  %vm6302 = vweird.f32 %v6252
  %vm6303 = vweird.f32 %v6296
  %vm6304 = vmor %vm6302, %vm6303
  %v6305 = vsel %vm6304, %v6296, %v6301
  %v6306 = vrsqrt.pop %v6253
  %v6307 = vmul.f32 %v6306, %v6253
  %v6308 = vmul.f32 %v6307, %v6306
  %v6309 = vmul.f32 0.5, %v6308
  %v6310 = vsub.f32 1.5, %v6309
  %v6311 = vmul.f32 %v6306, %v6310
  %vm6312 = vweird.f32 %v6253
  %vm6313 = vweird.f32 %v6306
  %vm6314 = vmor %vm6312, %vm6313
  %v6315 = vsel %vm6314, %v6306, %v6311
  %v6316 = vrsqrt.pop %v6254
  %v6317 = vmul.f32 %v6316, %v6254
  %v6318 = vmul.f32 %v6317, %v6316
  %v6319 = vmul.f32 0.5, %v6318
  %v6320 = vsub.f32 1.5, %v6319
  %v6321 = vmul.f32 %v6316, %v6320
  %vm6322 = vweird.f32 %v6254
  %vm6323 = vweird.f32 %v6316
  %vm6324 = vmor %vm6322, %vm6323
  %v6325 = vsel %vm6324, %v6316, %v6321
  %v6326 = vrsqrt.pop %v6255
  %v6327 = vmul.f32 %v6326, %v6255
  %v6328 = vmul.f32 %v6327, %v6326
  %v6329 = vmul.f32 0.5, %v6328
  %v6330 = vsub.f32 1.5, %v6329
  %v6331 = vmul.f32 %v6326, %v6330
  %vm6332 = vweird.f32 %v6255
  %vm6333 = vweird.f32 %v6326
  %vm6334 = vmor %vm6332, %vm6333
  %v6335 = vsel %vm6334, %v6326, %v6331
  %v6336 = vmul.f32 %v6200, %v6265
  %v6337 = vmul.f32 %v6201, %v6275
  %v6338 = vmul.f32 %v6202, %v6285
  %v6339 = vmul.f32 %v6203, %v6295
  %v6340 = vmul.f32 %v6204, %v6305
  %v6341 = vmul.f32 %v6205, %v6315
  %v6342 = vmul.f32 %v6206, %v6325
  %v6343 = vmul.f32 %v6207, %v6335
  %v6344 = vadd.f32 %v6096, 1.0
  %v6345 = vadd.f32 %v6099, 1.0
  %v6346 = vadd.f32 %v6102, 1.0
  %v6347 = vadd.f32 %v6105, 1.0
  %v6348 = vadd.f32 %v6108, 1.0
  %v6349 = vadd.f32 %v6111, 1.0
  %v6350 = vadd.f32 %v6114, 1.0
  %v6351 = vadd.f32 %v6117, 1.0
  %v6352 = vmul.f32 %v6336, %v6344
  %v6353 = vmul.f32 %v6337, %v6345
  %v6354 = vmul.f32 %v6338, %v6346
  %v6355 = vmul.f32 %v6339, %v6347
  %v6356 = vmul.f32 %v6340, %v6348
  %v6357 = vmul.f32 %v6341, %v6349
  %v6358 = vmul.f32 %v6342, %v6350
  %v6359 = vmul.f32 %v6343, %v6351
  %v6360 = vadd.f32 %v6352, %v6145
  %v6361 = vadd.f32 %v6353, %v6148
  %v6362 = vadd.f32 %v6354, %v6151
  %v6363 = vadd.f32 %v6355, %v6154
  %v6364 = vadd.f32 %v6356, %v6157
  %v6365 = vadd.f32 %v6357, %v6160
  %v6366 = vadd.f32 %v6358, %v6163
  %v6367 = vadd.f32 %v6359, %v6166
  %v6368 = vld [vmem:[%s25] sm:$0xff]
  %v6369 = vld [vmem:[%s25 + $0x8] sm:$0xff]
  %v6370 = vld [vmem:[%s25 + $0x10] sm:$0xff]
  %v6371 = vld [vmem:[%s25 + $0x18] sm:$0xff]
  %v6372 = vld [vmem:[%s26] sm:$0x1]
  %v6374 = vperm.slane %v6372, 0
  %v6377 = vsel %vm204, %v6360, 0
  %v6380 = vsel %vm204, %v6361, 0
  %v6383 = vsel %vm204, %v6362, 0
  %v6386 = vsel %vm204, %v6363, 0
  %v6389 = vsel %vm204, %v6364, 0
  %v6392 = vsel %vm204, %v6365, 0
  %v6395 = vsel %vm204, %v6366, 0
  %v6398 = vsel %vm204, %v6367, 0
  %6400 = vmatpush.msra.mxu0 0.0
  %6401 = vmatpush.msra.mxu0 0.0
  %6402 = vmatpush.msra.mxu0 0.0
  %6403 = vmatpush.msra.mxu0 0.0
  %6404 = vmatpush.msra.mxu0 0.0
  %6405 = vmatpush.msra.mxu0 0.0
  %6406 = vmatpush.msra.mxu0 0.0
  %6407 = vmatpush.msra.mxu0 0.0
  %6408 = vmatpush.msra.mxu0 0.0
  %6409 = vmatpush.msra.mxu0 0.0
  %6410 = vmatpush.msra.mxu0 0.0
  %6411 = vmatpush.msra.mxu0 0.0
  %6412 = vmatpush.msra.mxu0 %v6371
  %6413 = vmatpush.msra.mxu0 %v6370
  %6414 = vmatpush.msra.mxu0 %v6369
  %6415 = vmatpush.msra.mxu0 %v6368
  %6416 = vmatmul.f32.gmra.mxu0 %v6377
  %v6417 = vpop.f32.mrf.mxu0
  %v6418 = vadd.f32 %v6374, %v6417
  %6419 = vmatmul.f32.gmra.mxu0 %v6380
  %v6420 = vpop.f32.mrf.mxu0
  %v6421 = vadd.f32 %v6374, %v6420
  %6422 = vmatmul.f32.gmra.mxu0 %v6383
  %v6423 = vpop.f32.mrf.mxu0
  %v6424 = vadd.f32 %v6374, %v6423
  %6425 = vmatmul.f32.gmra.mxu0 %v6386
  %v6426 = vpop.f32.mrf.mxu0
  %v6427 = vadd.f32 %v6374, %v6426
  %6428 = vmatmul.f32.gmra.mxu0 %v6389
  %v6429 = vpop.f32.mrf.mxu0
  %v6430 = vadd.f32 %v6374, %v6429
  %6431 = vmatmul.f32.gmra.mxu0 %v6392
  %v6432 = vpop.f32.mrf.mxu0
  %v6433 = vadd.f32 %v6374, %v6432
  %6434 = vmatmul.f32.gmra.mxu0 %v6395
  %v6435 = vpop.f32.mrf.mxu0
  %v6436 = vadd.f32 %v6374, %v6435
  %6437 = vmatmul.f32.gmra.mxu0 %v6398
  %v6438 = vpop.f32.mrf.mxu0
  %v6439 = vadd.f32 %v6374, %v6438
  %6440 = vdwg.mxu0
  %6441 = vst.msk [vmem:[%s27] sm:$0xff] %vm108, %v6418
  %6442 = vst.msk [vmem:[%s27 + $0x8] sm:$0xff] %vm108, %v6421
  %6443 = vst.msk [vmem:[%s27 + $0x10] sm:$0xff] %vm108, %v6424
  %6444 = vst.msk [vmem:[%s27 + $0x18] sm:$0xff] %vm108, %v6427
  %6445 = vst.msk [vmem:[%s27 + $0x20] sm:$0xff] %vm108, %v6430
  %6446 = vst.msk [vmem:[%s27 + $0x28] sm:$0xff] %vm108, %v6433
  %6447 = vst.msk [vmem:[%s27 + $0x30] sm:$0xff] %vm108, %v6436
  %6448 = vst.msk [vmem:[%s27 + $0x38] sm:$0xff] %vm108, %v6439
  // Predicated region
  $region110: #{transformer_forward.3} parent=0 // pred_check
    _
  $region111: #{transformer_forward.3} parent=0 // pred_check_branch
    %6450 = sbr.rel (0) target = $region113
  $region112: #{transformer_forward.3} parent=0 // pred_region
    _
  $region113: #{transformer_forward.3} parent=0 // pred_fallthru
    _
  // Predicated region
  $region114: #{transformer_forward.3} parent=0 // pred_check
    _
  $region115: #{transformer_forward.3} parent=0 // pred_check_branch
    %6452 = sbr.rel (0) target = $region117
  $region116: #{transformer_forward.3} parent=0 // pred_region
    _
  $region117: #{transformer_forward.3} parent=0 // pred_fallthru
    _

</llo_original>
